<compile_context>
chip_gen: v7x
topology: tpu7x:2x2x1
jax: 0.10.0
libtpu: 0.0.40
codegen_flags: <defaults>
</compile_context>

<pallas_src>
import functools

import jax
import jax.numpy as jnp
from jax import lax
from jax.experimental import pallas as pl
from jax.experimental.pallas import tpu as pltpu


def _round_up(x, m):
    return -(-x // m) * m


def _const_index_map(ndim):
    return lambda i: (0,) * ndim


# ---------------------------------------------------------------------------
# Weight packing (runs ONCE in make_cnn_forward -- hoisted out of the jit).
# ---------------------------------------------------------------------------
def _pack_conv_pool(w, b, h_in, chp, tb, dtype):
    """Tables turning 2x2-maxpool(relu(conv2d(slab) + b)) into
         one Toeplitz matmul + row-max + column-pair-max + one 0/1 matmul
    on an activation slab with rows = ci*h_in + h (zero padded to `chp` rows)
    and lanes = j*tb + b (width-major, batch interleaved).

    Returns
      t     : (2*cout*ohp, k*chp)  even pooled conv rows stacked over odd ones;
                                   kw taps folded into the contraction dim.
      b_col : (cout*ohp, 1) f32    per-row bias.
      se    : ((ow-1)*tb, owp*tb)  0/1 selector keeping even column pairs.
    """
    cout, cin, k, _ = w.shape
    oh = h_in - k + 1
    ohp = oh // 2
    ow = oh
    owp = ohp
    wf = w.astype(jnp.float32)

    p_i, co_i, i_i, ci_i, kh_i, kw_i = jnp.meshgrid(
        jnp.arange(2), jnp.arange(cout), jnp.arange(ohp), jnp.arange(cin),
        jnp.arange(k), jnp.arange(k), indexing="ij")
    rows = p_i * (cout * ohp) + co_i * ohp + i_i
    cols = kw_i * chp + ci_i * h_in + (2 * i_i + p_i + kh_i)
    t = (jnp.zeros((2 * cout * ohp, k * chp), jnp.float32)
         .at[rows, cols].set(wf[co_i, ci_i, kh_i, kw_i]))

    q_i, b_i = jnp.meshgrid(jnp.arange(owp), jnp.arange(tb), indexing="ij")
    se = (jnp.zeros(((ow - 1) * tb, owp * tb), jnp.float32)
          .at[2 * q_i * tb + b_i, q_i * tb + b_i].set(1.0))

    b_col = jnp.repeat(b.astype(jnp.float32), ohp)[:, None]
    return t.astype(dtype), b_col, se.astype(dtype)


# ---------------------------------------------------------------------------
# Fused Pallas kernel: the whole forward pass for one batch tile.
# ---------------------------------------------------------------------------
def _fused_cnn_kernel(x_ref,
                      t1_ref, b1_ref, s1_ref,
                      t2_ref, b2_ref, s2_ref,
                      g1_ref, fb1_ref, w2t_ref, fb2_ref, w3t_ref, fb3_ref,
                      out_ref,
                      xs1_ref, am1_ref, a1_ref, xs2_ref, am2_ref, a2_ref,
                      af_ref,
                      *, k1, ow1, chp1, k2, ow2, chp2, s2p, tb):
    f32 = jnp.float32

    def conv_relu_pool(src_ref, xs_ref, am_ref, t_ref, b_ref, s_ref,
                       k, ow, chp):
        # (a) kw-shifted contraction stack: K sublane-aligned VMEM copies.
        for kw in range(k):                                 # static unroll
            xs_ref[kw * chp:(kw + 1) * chp, :] = (
                src_ref[:, kw * tb:(kw + ow) * tb])
        # (b) ONE conv matmul; even pooled conv rows land in the top half of
        #     the output, odd pooled conv rows in the bottom half.
        z = jnp.dot(t_ref[...], xs_ref[...], preferred_element_type=f32)
        half = t_ref.shape[0] // 2
        a = jnp.maximum(jnp.maximum(z[:half], z[half:]) + b_ref[...], 0.0)
        am_ref[...] = a.astype(am_ref.dtype)
        # (c) column pair-max via a one-column shifted VMEM view, then a
        #     single 0/1 decimation matmul keeping even column pairs.
        m = jnp.maximum(am_ref[:, :(ow - 1) * tb], am_ref[:, tb:ow * tb])
        return jnp.dot(m, s_ref[...], preferred_element_type=f32)

    # ---- conv1 + ReLU + 2x2 max-pool (reads the x block directly) ---------
    p1 = conv_relu_pool(x_ref, xs1_ref, am1_ref, t1_ref, b1_ref, s1_ref,
                        k1, ow1, chp1)
    a1_ref[...] = p1.astype(a1_ref.dtype)

    # ---- conv2 + ReLU + 2x2 max-pool (consumes the VMEM-resident slab) ----
    p2 = conv_relu_pool(a1_ref, xs2_ref, am2_ref, t2_ref, b2_ref, s2_ref,
                        k2, ow2, chp2)
    a2_ref[...] = p2

    # ---- fc1: restack pooled columns onto sublanes -> one (F1,288)x(288,tb)
    r2 = a2_ref.shape[0]                                    # c2 * sp2
    for j in range(s2p):                                    # static unroll
        af_ref[j * r2:(j + 1) * r2, :] = a2_ref[:, j * tb:(j + 1) * tb]
    h1 = jnp.maximum(
        jnp.dot(g1_ref[...], af_ref[...], preferred_element_type=f32)
        + fb1_ref[...], 0.0)

    # ---- fc2 (+ReLU) and fc3 in (features, batch) layout -------------------
    h2 = jnp.maximum(
        jnp.dot(w2t_ref[...], h1, preferred_element_type=f32)
        + fb2_ref[...], 0.0)
    out_ref[...] = (jnp.dot(w3t_ref[...], h2, preferred_element_type=f32)
                    + fb3_ref[...]).astype(out_ref.dtype)


# ---------------------------------------------------------------------------
# Build a forward function: pack weights once, return a jitted forward(x).
# ---------------------------------------------------------------------------
def make_cnn_forward(params, *, img_hw=28, tb=32, mxu_dtype=jnp.float32):
    """Packs the CNN weights once and returns a jitted `forward(x) -> logits`.

    tb        : images per grid step, interleaved on the lane axis.  32 makes
                the pool1/pool2 slabs 384 / 128 lanes wide and keeps the
                O(tb^2) column selectors inside every chip's default scoped
                VMEM (v5e 16 MiB, v6e/v7x 32 MiB).
    mxu_dtype : storage dtype of the conv-stage MXU operands (packed weight
                tables + activation slabs); accumulation is always f32.
                Use jnp.bfloat16 on v6e / v7x.
    """
    w1, b1 = params["w1"], params["b1"]
    w2, b2 = params["w2"], params["b2"]
    fw1, fb1 = params["fw1"], params["fb1"]
    fw2, fb2 = params["fw2"], params["fb2"]
    fw3, fb3 = params["fw3"], params["fb3"]

    c1, cin, k1, _ = w1.shape
    c2, _, k2, _ = w2.shape
    f1, ncls = fb1.shape[0], fb3.shape[0]

    o1 = img_hw - k1 + 1                      # conv1 spatial
    o2 = (o1 // 2) - k2 + 1                   # conv2 spatial
    sp1, sp2 = o1 // 2, o2 // 2               # pooled spatial
    assert o1 % 2 == 0 and o2 % 2 == 0, "2x2/2 pooling must tile exactly"
    assert fw1.shape[0] == c2 * sp2 * sp2, "fc1 input size mismatch"

    sub = 8 if jnp.dtype(mxu_dtype).itemsize == 4 else 16
    cinh = cin * img_hw
    chp1 = _round_up(cinh, sub)               # conv1 slab rows (zero padded)
    chp2 = c1 * sp1                           # conv2 slab rows (= pool1 rows)
    assert chp2 % sub == 0, "conv1-output slab rows must be sublane aligned"

    # ---- pack once (hoisted out of the per-call jit) -----------------------
    t1, b1c, se1 = _pack_conv_pool(w1, b1, img_hw, chp1, tb, mxu_dtype)
    t2, b2c, se2 = _pack_conv_pool(w2, b2, sp1, chp2, tb, mxu_dtype)
    # fc1 weights permuted so they read the column-restacked pooled slab:
    #   af row = j*(c2*sp2) + c2_idx*sp2 + i  <->  flat feature c2*sp2^2+i*sp2+j
    g1 = (fw1.astype(jnp.float32).reshape(c2, sp2, sp2, f1)
          .transpose(2, 0, 1, 3).reshape(sp2 * c2 * sp2, f1).T)
    fb1c = fb1.astype(jnp.float32)[:, None]
    w2t = fw2.T.astype(jnp.float32)
    fb2c = fb2.astype(jnp.float32)[:, None]
    w3t = fw3.T.astype(jnp.float32)
    fb3c = fb3.astype(jnp.float32)[:, None]
    consts = (t1, b1c, se1, t2, b2c, se2, g1, fb1c, w2t, fb2c, w3t, fb3c)

    kernel = functools.partial(
        _fused_cnn_kernel, k1=k1, ow1=o1, chp1=chp1,
        k2=k2, ow2=o2, chp2=chp2, s2p=sp2, tb=tb)

    @jax.jit
    def forward(x):
        n = x.shape[0]
        assert x.shape[1:] == (cin, img_hw, img_hw), x.shape
        num_tiles = -(-n // tb)
        n_pad = num_tiles * tb
        xp = jnp.pad(x.astype(jnp.float32),
                     ((0, n_pad - n), (0, 0), (0, 0), (0, 0)))
        # (nt, tb, cin, h, w) -> slab: rows (cin*h), lanes (w, batch) interleaved
        x_slab = (xp.reshape(num_tiles, tb, cin, img_hw, img_hw)
                    .transpose(0, 2, 3, 4, 1)
                    .reshape(num_tiles, cinh, img_hw * tb))
        x_slab = jnp.pad(x_slab, ((0, 0), (0, chp1 - cinh), (0, 0)))
        x_slab = x_slab.astype(mxu_dtype)

        out3 = pl.pallas_call(
            kernel,
            out_shape=jax.ShapeDtypeStruct((num_tiles, ncls, tb), jnp.float32),
            grid_spec=pltpu.PrefetchScalarGridSpec(
                num_scalar_prefetch=0,
                grid=(num_tiles,),
                in_specs=[pl.BlockSpec((None, chp1, img_hw * tb),
                                       lambda i: (i, 0, 0))]
                + [pl.BlockSpec(a.shape, _const_index_map(a.ndim))
                   for a in consts],
                out_specs=pl.BlockSpec((None, ncls, tb), lambda i: (i, 0, 0)),
                scratch_shapes=[
                    pltpu.VMEM((k1 * chp1, o1 * tb), mxu_dtype),   # xs1 stack
                    pltpu.VMEM((c1 * sp1, o1 * tb), mxu_dtype),    # am1
                    pltpu.VMEM((c1 * sp1, sp1 * tb), mxu_dtype),   # a1 (pool1)
                    pltpu.VMEM((k2 * chp2, o2 * tb), mxu_dtype),   # xs2 stack
                    pltpu.VMEM((c2 * sp2, o2 * tb), mxu_dtype),    # am2
                    pltpu.VMEM((c2 * sp2, sp2 * tb), jnp.float32),  # a2 (pool2)
                    pltpu.VMEM((sp2 * c2 * sp2, tb), jnp.float32),  # af (fc1)
                ]),
            compiler_params=pltpu.CompilerParams(
                dimension_semantics=("parallel",)),   # megacore across tiles
        )(x_slab, *consts)

        # (num_tiles, ncls, tb) -> (N, ncls)
        return out3.transpose(0, 2, 1).reshape(n_pad, ncls)[:n]

    return forward


# ---------------------------------------------------------------------------
# Parameter init (deterministic, PyTorch-like uniform(-1/sqrt(fan_in), ...))
# ---------------------------------------------------------------------------
def init_cnn_params(key, in_channels=1, img=28,
                    c1_out=8, k1=5, c2_out=18, k2=5,
                    fc1_out=120, fc2_out=84, num_classes=10):
    def uni(key, shape, fan_in):
        bound = 1.0 / jnp.sqrt(fan_in)
        return jax.random.uniform(key, shape, jnp.float32, -bound, bound)

    s1 = (img - k1 + 1) // 2
    s2 = (s1 - k2 + 1) // 2
    fc1_in = c2_out * s2 * s2

    ks = jax.random.split(key, 10)
    return {
        "w1": uni(ks[0], (c1_out, in_channels, k1, k1), in_channels * k1 * k1),
        "b1": uni(ks[1], (c1_out,), in_channels * k1 * k1),
        "w2": uni(ks[2], (c2_out, c1_out, k2, k2), c1_out * k2 * k2),
        "b2": uni(ks[3], (c2_out,), c1_out * k2 * k2),
        "fw1": uni(ks[4], (fc1_in, fc1_out), fc1_in),
        "fb1": uni(ks[5], (fc1_out,), fc1_in),
        "fw2": uni(ks[6], (fc1_out, fc2_out), fc1_out),
        "fb2": uni(ks[7], (fc2_out,), fc1_out),
        "fw3": uni(ks[8], (fc2_out, num_classes), fc2_out),
        "fb3": uni(ks[9], (num_classes,), fc2_out),
    }


# ---------------------------------------------------------------------------
# Pure-JAX reference for correctness checking.
# ---------------------------------------------------------------------------
def reference_forward(params, x):
    def conv(x, w, b):
        y = lax.conv_general_dilated(
            x, w, (1, 1), "VALID",
            dimension_numbers=("NCHW", "OIHW", "NCHW"))
        return jnp.maximum(y + b[None, :, None, None], 0.0)

    def pool(x):
        return lax.reduce_window(x, -jnp.inf, lax.max,
                                 (1, 1, 2, 2), (1, 1, 2, 2), "VALID")

    x = pool(conv(x, params["w1"], params["b1"]))
    x = pool(conv(x, params["w2"], params["b2"]))
    x = x.reshape(x.shape[0], -1)
    x = jnp.maximum(x @ params["fw1"] + params["fb1"], 0.0)
    x = jnp.maximum(x @ params["fw2"] + params["fb2"], 0.0)
    return x @ params["fw3"] + params["fb3"]


if __name__ == "__main__":
    key = jax.random.PRNGKey(0)
    pkey, xkey = jax.random.split(key)
    params = init_cnn_params(pkey)

    # --- small-shape check (f32 MXU operands, tight tolerance) --------------
    x_small = jax.random.normal(xkey, (2, 1, 28, 28), jnp.float32)
    fwd_f32 = make_cnn_forward(params, mxu_dtype=jnp.float32)
    out = jax.block_until_ready(fwd_f32(x_small))
    ref = jax.block_until_ready(reference_forward(params, x_small))
    assert out.shape == (2, 10), out.shape
    err = float(jnp.max(jnp.abs(out - ref)))
    assert jnp.allclose(out, ref, atol=2e-3, rtol=2e-3), f"f32 max err {err}"

    # --- perf-path check: 2 grid steps (megacore) + bf16 MXU operands -------
    x_big = jax.random.normal(jax.random.fold_in(xkey, 1), (48, 1, 28, 28),
                              jnp.float32)
    fwd_bf16 = make_cnn_forward(params, mxu_dtype=jnp.bfloat16)
    out_b = jax.block_until_ready(fwd_bf16(x_big))
    ref_b = jax.block_until_ready(reference_forward(params, x_big))
    assert out_b.shape == (48, 10), out_b.shape
    err_b = float(jnp.max(jnp.abs(out_b - ref_b)))
    assert jnp.allclose(out_b, ref_b, atol=6e-2, rtol=6e-2), \
        f"bf16 max err {err_b}"

    print("KERNEL_OK")
</pallas_src>

<mosaic_0001>
module attributes {stable_mosaic.version = 11 : i64} {
  func.func @_fused_cnn_kernel(%arg0: i32, %arg1: memref<1x32x896xf32, #tpu.memory_space<vmem>>, %arg2: memref<192x160xf32, #tpu.memory_space<vmem>>, %arg3: memref<96x1xf32, #tpu.memory_space<vmem>>, %arg4: memref<736x384xf32, #tpu.memory_space<vmem>>, %arg5: memref<144x480xf32, #tpu.memory_space<vmem>>, %arg6: memref<72x1xf32, #tpu.memory_space<vmem>>, %arg7: memref<224x128xf32, #tpu.memory_space<vmem>>, %arg8: memref<120x288xf32, #tpu.memory_space<vmem>>, %arg9: memref<120x1xf32, #tpu.memory_space<vmem>>, %arg10: memref<84x120xf32, #tpu.memory_space<vmem>>, %arg11: memref<84x1xf32, #tpu.memory_space<vmem>>, %arg12: memref<10x84xf32, #tpu.memory_space<vmem>>, %arg13: memref<10x1xf32, #tpu.memory_space<vmem>>, %arg14: memref<1x10x32xf32, #tpu.memory_space<vmem>>, %arg15: memref<160x768xf32, #tpu.memory_space<vmem>>, %arg16: memref<96x768xf32, #tpu.memory_space<vmem>>, %arg17: memref<96x384xf32, #tpu.memory_space<vmem>>, %arg18: memref<480x256xf32, #tpu.memory_space<vmem>>, %arg19: memref<72x256xf32, #tpu.memory_space<vmem>>, %arg20: memref<72x128xf32, #tpu.memory_space<vmem>>, %arg21: memref<288x32xf32, #tpu.memory_space<vmem>>) attributes {dimension_semantics = [#tpu.dimension_semantics<parallel>], iteration_bounds = array<i64: 1>, scalar_prefetch = 0 : i64, scratch_operands = 7 : i64, tpu.core_type = #tpu.core_type<tc>, window_params = [{transform_indices = @transform_0, window_bounds = array<i64: 1, 32, 896>}, {pipeline_mode = #tpu.pipeline_mode<synchronous>, transform_indices = @transform_1, window_bounds = array<i64: 192, 160>}, {pipeline_mode = #tpu.pipeline_mode<synchronous>, transform_indices = @transform_2, window_bounds = array<i64: 96, 1>}, {pipeline_mode = #tpu.pipeline_mode<synchronous>, transform_indices = @transform_3, window_bounds = array<i64: 736, 384>}, {pipeline_mode = #tpu.pipeline_mode<synchronous>, transform_indices = @transform_4, window_bounds = array<i64: 144, 480>}, {pipeline_mode = #tpu.pipeline_mode<synchronous>, transform_indices = @transform_5, window_bounds = array<i64: 72, 1>}, {pipeline_mode = #tpu.pipeline_mode<synchronous>, transform_indices = @transform_6, window_bounds = array<i64: 224, 128>}, {pipeline_mode = #tpu.pipeline_mode<synchronous>, transform_indices = @transform_7, window_bounds = array<i64: 120, 288>}, {pipeline_mode = #tpu.pipeline_mode<synchronous>, transform_indices = @transform_8, window_bounds = array<i64: 120, 1>}, {pipeline_mode = #tpu.pipeline_mode<synchronous>, transform_indices = @transform_9, window_bounds = array<i64: 84, 120>}, {pipeline_mode = #tpu.pipeline_mode<synchronous>, transform_indices = @transform_10, window_bounds = array<i64: 84, 1>}, {pipeline_mode = #tpu.pipeline_mode<synchronous>, transform_indices = @transform_11, window_bounds = array<i64: 10, 84>}, {pipeline_mode = #tpu.pipeline_mode<synchronous>, transform_indices = @transform_12, window_bounds = array<i64: 10, 1>}, {transform_indices = @transform_13, window_bounds = array<i64: 1, 10, 32>}]} {
    %c0 = arith.constant 0 : index
    %c0_0 = arith.constant 0 : index
    %c0_1 = arith.constant 0 : index
    %0 = vector.load %arg1[%c0, %c0_0, %c0_1] : memref<1x32x896xf32, #tpu.memory_space<vmem>>, vector<1x32x768xf32>
    %1 = vector.shape_cast %0 : vector<1x32x768xf32> to vector<32x768xf32>
    %c0_2 = arith.constant 0 : index
    %c0_3 = arith.constant 0 : index
    %2 = vector.load %arg15[%c0_2, %c0_3] : memref<160x768xf32, #tpu.memory_space<vmem>>, vector<32x768xf32>
    tpu.vector_store %arg15[%c0_2, %c0_3], %1 {strides = array<i32>} : memref<160x768xf32, #tpu.memory_space<vmem>>, vector<32x768xf32>,
    %c0_4 = arith.constant 0 : index
    %c0_5 = arith.constant 0 : index
    %c32 = arith.constant 32 : index
    %3 = vector.load %arg1[%c0_4, %c0_5, %c32] : memref<1x32x896xf32, #tpu.memory_space<vmem>>, vector<1x32x768xf32>
    %4 = vector.shape_cast %3 : vector<1x32x768xf32> to vector<32x768xf32>
    %c32_6 = arith.constant 32 : index
    %c0_7 = arith.constant 0 : index
    %5 = vector.load %arg15[%c32_6, %c0_7] : memref<160x768xf32, #tpu.memory_space<vmem>>, vector<32x768xf32>
    tpu.vector_store %arg15[%c32_6, %c0_7], %4 {strides = array<i32>} : memref<160x768xf32, #tpu.memory_space<vmem>>, vector<32x768xf32>,
    %c0_8 = arith.constant 0 : index
    %c0_9 = arith.constant 0 : index
    %c64 = arith.constant 64 : index
    %6 = vector.load %arg1[%c0_8, %c0_9, %c64] : memref<1x32x896xf32, #tpu.memory_space<vmem>>, vector<1x32x768xf32>
    %7 = vector.shape_cast %6 : vector<1x32x768xf32> to vector<32x768xf32>
    %c64_10 = arith.constant 64 : index
    %c0_11 = arith.constant 0 : index
    %8 = vector.load %arg15[%c64_10, %c0_11] : memref<160x768xf32, #tpu.memory_space<vmem>>, vector<32x768xf32>
    tpu.vector_store %arg15[%c64_10, %c0_11], %7 {strides = array<i32>} : memref<160x768xf32, #tpu.memory_space<vmem>>, vector<32x768xf32>,
    %c0_12 = arith.constant 0 : index
    %c0_13 = arith.constant 0 : index
    %c96 = arith.constant 96 : index
    %9 = vector.load %arg1[%c0_12, %c0_13, %c96] : memref<1x32x896xf32, #tpu.memory_space<vmem>>, vector<1x32x768xf32>
    %10 = vector.shape_cast %9 : vector<1x32x768xf32> to vector<32x768xf32>
    %c96_14 = arith.constant 96 : index
    %c0_15 = arith.constant 0 : index
    %11 = vector.load %arg15[%c96_14, %c0_15] : memref<160x768xf32, #tpu.memory_space<vmem>>, vector<32x768xf32>
    tpu.vector_store %arg15[%c96_14, %c0_15], %10 {strides = array<i32>} : memref<160x768xf32, #tpu.memory_space<vmem>>, vector<32x768xf32>,
    %c0_16 = arith.constant 0 : index
    %c0_17 = arith.constant 0 : index
    %c128 = arith.constant 128 : index
    %12 = vector.load %arg1[%c0_16, %c0_17, %c128] : memref<1x32x896xf32, #tpu.memory_space<vmem>>, vector<1x32x768xf32>
    %13 = vector.shape_cast %12 : vector<1x32x768xf32> to vector<32x768xf32>
    %c128_18 = arith.constant 128 : index
    %c0_19 = arith.constant 0 : index
    %14 = vector.load %arg15[%c128_18, %c0_19] : memref<160x768xf32, #tpu.memory_space<vmem>>, vector<32x768xf32>
    tpu.vector_store %arg15[%c128_18, %c0_19], %13 {strides = array<i32>} : memref<160x768xf32, #tpu.memory_space<vmem>>, vector<32x768xf32>,
    %c0_20 = arith.constant 0 : index
    %c0_21 = arith.constant 0 : index
    %15 = vector.load %arg2[%c0_20, %c0_21] : memref<192x160xf32, #tpu.memory_space<vmem>>, vector<192x160xf32>
    %c0_22 = arith.constant 0 : index
    %c0_23 = arith.constant 0 : index
    %16 = vector.load %arg15[%c0_22, %c0_23] : memref<160x768xf32, #tpu.memory_space<vmem>>, vector<160x768xf32>
    %cst = arith.constant dense<0.000000e+00> : vector<192x768xf32>
    %17 = tpu.matmul %15, %16, %cst {dimension_numbers = #tpu.dot_dimension_numbers<[1], [0], [0], [1], [0, 0, 1, 1], [], []>} : vector<192x160xf32>, vector<160x768xf32>, vector<192x768xf32> -> vector<192x768xf32>
    %18 = vector.extract_strided_slice %17 {offsets = [0, 0], sizes = [96, 768], strides = [1, 1]} : vector<192x768xf32> to vector<96x768xf32>
    %19 = vector.extract_strided_slice %17 {offsets = [96, 0], sizes = [96, 768], strides = [1, 1]} : vector<192x768xf32> to vector<96x768xf32>
    %20 = arith.maximumf %18, %19 : vector<96x768xf32>
    %c0_24 = arith.constant 0 : index
    %c0_25 = arith.constant 0 : index
    %21 = vector.load %arg3[%c0_24, %c0_25] : memref<96x1xf32, #tpu.memory_space<vmem>>, vector<96x1xf32>
    %22 = vector.broadcast %21 : vector<96x1xf32> to vector<96x768xf32>
    %23 = arith.addf %20, %22 : vector<96x768xf32>
    %cst_26 = arith.constant 0.000000e+00 : f32
    %24 = vector.broadcast %cst_26 : f32 to vector<96x768xf32>
    %25 = arith.maximumf %23, %24 : vector<96x768xf32>
    %c0_27 = arith.constant 0 : index
    %c0_28 = arith.constant 0 : index
    %26 = vector.load %arg16[%c0_27, %c0_28] : memref<96x768xf32, #tpu.memory_space<vmem>>, vector<96x768xf32>
    tpu.vector_store %arg16[%c0_27, %c0_28], %25 {strides = array<i32>} : memref<96x768xf32, #tpu.memory_space<vmem>>, vector<96x768xf32>,
    %c0_29 = arith.constant 0 : index
    %c0_30 = arith.constant 0 : index
    %27 = vector.load %arg16[%c0_29, %c0_30] : memref<96x768xf32, #tpu.memory_space<vmem>>, vector<96x736xf32>
    %c0_31 = arith.constant 0 : index
    %c32_32 = arith.constant 32 : index
    %28 = vector.load %arg16[%c0_31, %c32_32] : memref<96x768xf32, #tpu.memory_space<vmem>>, vector<96x736xf32>
    %29 = arith.maximumf %27, %28 : vector<96x736xf32>
    %c0_33 = arith.constant 0 : index
    %c0_34 = arith.constant 0 : index
    %30 = vector.load %arg4[%c0_33, %c0_34] : memref<736x384xf32, #tpu.memory_space<vmem>>, vector<736x384xf32>
    %cst_35 = arith.constant dense<0.000000e+00> : vector<96x384xf32>
    %31 = tpu.matmul %29, %30, %cst_35 {dimension_numbers = #tpu.dot_dimension_numbers<[1], [0], [0], [1], [0, 0, 1, 1], [], []>} : vector<96x736xf32>, vector<736x384xf32>, vector<96x384xf32> -> vector<96x384xf32>
    %c0_36 = arith.constant 0 : index
    %c0_37 = arith.constant 0 : index
    %32 = vector.load %arg17[%c0_36, %c0_37] : memref<96x384xf32, #tpu.memory_space<vmem>>, vector<96x384xf32>
    tpu.vector_store %arg17[%c0_36, %c0_37], %31 {strides = array<i32>} : memref<96x384xf32, #tpu.memory_space<vmem>>, vector<96x384xf32>,
    %c0_38 = arith.constant 0 : index
    %c0_39 = arith.constant 0 : index
    %33 = vector.load %arg17[%c0_38, %c0_39] : memref<96x384xf32, #tpu.memory_space<vmem>>, vector<96x256xf32>
    %c0_40 = arith.constant 0 : index
    %c0_41 = arith.constant 0 : index
    %34 = vector.load %arg18[%c0_40, %c0_41] : memref<480x256xf32, #tpu.memory_space<vmem>>, vector<96x256xf32>
    tpu.vector_store %arg18[%c0_40, %c0_41], %33 {strides = array<i32>} : memref<480x256xf32, #tpu.memory_space<vmem>>, vector<96x256xf32>,
    %c0_42 = arith.constant 0 : index
    %c32_43 = arith.constant 32 : index
    %35 = vector.load %arg17[%c0_42, %c32_43] : memref<96x384xf32, #tpu.memory_space<vmem>>, vector<96x256xf32>
    %c96_44 = arith.constant 96 : index
    %c0_45 = arith.constant 0 : index
    %36 = vector.load %arg18[%c96_44, %c0_45] : memref<480x256xf32, #tpu.memory_space<vmem>>, vector<96x256xf32>
    tpu.vector_store %arg18[%c96_44, %c0_45], %35 {strides = array<i32>} : memref<480x256xf32, #tpu.memory_space<vmem>>, vector<96x256xf32>,
    %c0_46 = arith.constant 0 : index
    %c64_47 = arith.constant 64 : index
    %37 = vector.load %arg17[%c0_46, %c64_47] : memref<96x384xf32, #tpu.memory_space<vmem>>, vector<96x256xf32>
    %c192 = arith.constant 192 : index
    %c0_48 = arith.constant 0 : index
    %38 = vector.load %arg18[%c192, %c0_48] : memref<480x256xf32, #tpu.memory_space<vmem>>, vector<96x256xf32>
    tpu.vector_store %arg18[%c192, %c0_48], %37 {strides = array<i32>} : memref<480x256xf32, #tpu.memory_space<vmem>>, vector<96x256xf32>,
    %c0_49 = arith.constant 0 : index
    %c96_50 = arith.constant 96 : index
    %39 = vector.load %arg17[%c0_49, %c96_50] : memref<96x384xf32, #tpu.memory_space<vmem>>, vector<96x256xf32>
    %c288 = arith.constant 288 : index
    %c0_51 = arith.constant 0 : index
    %40 = vector.load %arg18[%c288, %c0_51] : memref<480x256xf32, #tpu.memory_space<vmem>>, vector<96x256xf32>
    tpu.vector_store %arg18[%c288, %c0_51], %39 {strides = array<i32>} : memref<480x256xf32, #tpu.memory_space<vmem>>, vector<96x256xf32>,
    %c0_52 = arith.constant 0 : index
    %c128_53 = arith.constant 128 : index
    %41 = vector.load %arg17[%c0_52, %c128_53] : memref<96x384xf32, #tpu.memory_space<vmem>>, vector<96x256xf32>
    %c384 = arith.constant 384 : index
    %c0_54 = arith.constant 0 : index
    %42 = vector.load %arg18[%c384, %c0_54] : memref<480x256xf32, #tpu.memory_space<vmem>>, vector<96x256xf32>
    tpu.vector_store %arg18[%c384, %c0_54], %41 {strides = array<i32>} : memref<480x256xf32, #tpu.memory_space<vmem>>, vector<96x256xf32>,
    %c0_55 = arith.constant 0 : index
    %c0_56 = arith.constant 0 : index
    %43 = vector.load %arg5[%c0_55, %c0_56] : memref<144x480xf32, #tpu.memory_space<vmem>>, vector<144x480xf32>
    %c0_57 = arith.constant 0 : index
    %c0_58 = arith.constant 0 : index
    %44 = vector.load %arg18[%c0_57, %c0_58] : memref<480x256xf32, #tpu.memory_space<vmem>>, vector<480x256xf32>
    %cst_59 = arith.constant dense<0.000000e+00> : vector<144x256xf32>
    %45 = tpu.matmul %43, %44, %cst_59 {dimension_numbers = #tpu.dot_dimension_numbers<[1], [0], [0], [1], [0, 0, 1, 1], [], []>} : vector<144x480xf32>, vector<480x256xf32>, vector<144x256xf32> -> vector<144x256xf32>
    %46 = vector.extract_strided_slice %45 {offsets = [0, 0], sizes = [72, 256], strides = [1, 1]} : vector<144x256xf32> to vector<72x256xf32>
    %47 = vector.extract_strided_slice %45 {offsets = [72, 0], sizes = [72, 256], strides = [1, 1]} : vector<144x256xf32> to vector<72x256xf32>
    %48 = arith.maximumf %46, %47 : vector<72x256xf32>
    %c0_60 = arith.constant 0 : index
    %c0_61 = arith.constant 0 : index
    %49 = vector.load %arg6[%c0_60, %c0_61] : memref<72x1xf32, #tpu.memory_space<vmem>>, vector<72x1xf32>
    %50 = vector.broadcast %49 : vector<72x1xf32> to vector<72x256xf32>
    %51 = arith.addf %48, %50 : vector<72x256xf32>
    %cst_62 = arith.constant 0.000000e+00 : f32
    %52 = vector.broadcast %cst_62 : f32 to vector<72x256xf32>
    %53 = arith.maximumf %51, %52 : vector<72x256xf32>
    %c0_63 = arith.constant 0 : index
    %c0_64 = arith.constant 0 : index
    %54 = vector.load %arg19[%c0_63, %c0_64] : memref<72x256xf32, #tpu.memory_space<vmem>>, vector<72x256xf32>
    tpu.vector_store %arg19[%c0_63, %c0_64], %53 {strides = array<i32>} : memref<72x256xf32, #tpu.memory_space<vmem>>, vector<72x256xf32>,
    %c0_65 = arith.constant 0 : index
    %c0_66 = arith.constant 0 : index
    %55 = vector.load %arg19[%c0_65, %c0_66] : memref<72x256xf32, #tpu.memory_space<vmem>>, vector<72x224xf32>
    %c0_67 = arith.constant 0 : index
    %c32_68 = arith.constant 32 : index
    %56 = vector.load %arg19[%c0_67, %c32_68] : memref<72x256xf32, #tpu.memory_space<vmem>>, vector<72x224xf32>
    %57 = arith.maximumf %55, %56 : vector<72x224xf32>
    %c0_69 = arith.constant 0 : index
    %c0_70 = arith.constant 0 : index
    %58 = vector.load %arg7[%c0_69, %c0_70] : memref<224x128xf32, #tpu.memory_space<vmem>>, vector<224x128xf32>
    %cst_71 = arith.constant dense<0.000000e+00> : vector<72x128xf32>
    %59 = tpu.matmul %57, %58, %cst_71 {dimension_numbers = #tpu.dot_dimension_numbers<[1], [0], [0], [1], [0, 0, 1, 1], [], []>} : vector<72x224xf32>, vector<224x128xf32>, vector<72x128xf32> -> vector<72x128xf32>
    %c0_72 = arith.constant 0 : index
    %c0_73 = arith.constant 0 : index
    %60 = vector.load %arg20[%c0_72, %c0_73] : memref<72x128xf32, #tpu.memory_space<vmem>>, vector<72x128xf32>
    tpu.vector_store %arg20[%c0_72, %c0_73], %59 {strides = array<i32>} : memref<72x128xf32, #tpu.memory_space<vmem>>, vector<72x128xf32>,
    %c0_74 = arith.constant 0 : index
    %c0_75 = arith.constant 0 : index
    %61 = vector.load %arg20[%c0_74, %c0_75] : memref<72x128xf32, #tpu.memory_space<vmem>>, vector<72x32xf32>
    %c0_76 = arith.constant 0 : index
    %c0_77 = arith.constant 0 : index
    %62 = vector.load %arg21[%c0_76, %c0_77] : memref<288x32xf32, #tpu.memory_space<vmem>>, vector<72x32xf32>
    tpu.vector_store %arg21[%c0_76, %c0_77], %61 {strides = array<i32>} : memref<288x32xf32, #tpu.memory_space<vmem>>, vector<72x32xf32>,
    %c0_78 = arith.constant 0 : index
    %c32_79 = arith.constant 32 : index
    %63 = vector.load %arg20[%c0_78, %c32_79] : memref<72x128xf32, #tpu.memory_space<vmem>>, vector<72x32xf32>
    %c72 = arith.constant 72 : index
    %c0_80 = arith.constant 0 : index
    %64 = vector.load %arg21[%c72, %c0_80] : memref<288x32xf32, #tpu.memory_space<vmem>>, vector<72x32xf32>
    tpu.vector_store %arg21[%c72, %c0_80], %63 {strides = array<i32>} : memref<288x32xf32, #tpu.memory_space<vmem>>, vector<72x32xf32>,
    %c0_81 = arith.constant 0 : index
    %c64_82 = arith.constant 64 : index
    %65 = vector.load %arg20[%c0_81, %c64_82] : memref<72x128xf32, #tpu.memory_space<vmem>>, vector<72x32xf32>
    %c144 = arith.constant 144 : index
    %c0_83 = arith.constant 0 : index
    %66 = vector.load %arg21[%c144, %c0_83] : memref<288x32xf32, #tpu.memory_space<vmem>>, vector<72x32xf32>
    tpu.vector_store %arg21[%c144, %c0_83], %65 {strides = array<i32>} : memref<288x32xf32, #tpu.memory_space<vmem>>, vector<72x32xf32>,
    %c0_84 = arith.constant 0 : index
    %c96_85 = arith.constant 96 : index
    %67 = vector.load %arg20[%c0_84, %c96_85] : memref<72x128xf32, #tpu.memory_space<vmem>>, vector<72x32xf32>
    %c216 = arith.constant 216 : index
    %c0_86 = arith.constant 0 : index
    %68 = vector.load %arg21[%c216, %c0_86] : memref<288x32xf32, #tpu.memory_space<vmem>>, vector<72x32xf32>
    tpu.vector_store %arg21[%c216, %c0_86], %67 {strides = array<i32>} : memref<288x32xf32, #tpu.memory_space<vmem>>, vector<72x32xf32>,
    %c0_87 = arith.constant 0 : index
    %c0_88 = arith.constant 0 : index
    %69 = vector.load %arg8[%c0_87, %c0_88] : memref<120x288xf32, #tpu.memory_space<vmem>>, vector<120x288xf32>
    %c0_89 = arith.constant 0 : index
    %c0_90 = arith.constant 0 : index
    %70 = vector.load %arg21[%c0_89, %c0_90] : memref<288x32xf32, #tpu.memory_space<vmem>>, vector<288x32xf32>
    %cst_91 = arith.constant dense<0.000000e+00> : vector<120x32xf32>
    %71 = tpu.matmul %69, %70, %cst_91 {dimension_numbers = #tpu.dot_dimension_numbers<[1], [0], [0], [1], [0, 0, 1, 1], [], []>} : vector<120x288xf32>, vector<288x32xf32>, vector<120x32xf32> -> vector<120x32xf32>
    %c0_92 = arith.constant 0 : index
    %c0_93 = arith.constant 0 : index
    %72 = vector.load %arg9[%c0_92, %c0_93] : memref<120x1xf32, #tpu.memory_space<vmem>>, vector<120x1xf32>
    %73 = vector.broadcast %72 : vector<120x1xf32> to vector<120x32xf32>
    %74 = arith.addf %71, %73 : vector<120x32xf32>
    %cst_94 = arith.constant 0.000000e+00 : f32
    %75 = vector.broadcast %cst_94 : f32 to vector<120x32xf32>
    %76 = arith.maximumf %74, %75 : vector<120x32xf32>
    %c0_95 = arith.constant 0 : index
    %c0_96 = arith.constant 0 : index
    %77 = vector.load %arg10[%c0_95, %c0_96] : memref<84x120xf32, #tpu.memory_space<vmem>>, vector<84x120xf32>
    %cst_97 = arith.constant dense<0.000000e+00> : vector<84x32xf32>
    %78 = tpu.matmul %77, %76, %cst_97 {dimension_numbers = #tpu.dot_dimension_numbers<[1], [0], [0], [1], [0, 0, 1, 1], [], []>} : vector<84x120xf32>, vector<120x32xf32>, vector<84x32xf32> -> vector<84x32xf32>
    %c0_98 = arith.constant 0 : index
    %c0_99 = arith.constant 0 : index
    %79 = vector.load %arg11[%c0_98, %c0_99] : memref<84x1xf32, #tpu.memory_space<vmem>>, vector<84x1xf32>
    %80 = vector.broadcast %79 : vector<84x1xf32> to vector<84x32xf32>
    %81 = arith.addf %78, %80 : vector<84x32xf32>
    %cst_100 = arith.constant 0.000000e+00 : f32
    %82 = vector.broadcast %cst_100 : f32 to vector<84x32xf32>
    %83 = arith.maximumf %81, %82 : vector<84x32xf32>
    %c0_101 = arith.constant 0 : index
    %c0_102 = arith.constant 0 : index
    %84 = vector.load %arg12[%c0_101, %c0_102] : memref<10x84xf32, #tpu.memory_space<vmem>>, vector<10x84xf32>
    %cst_103 = arith.constant dense<0.000000e+00> : vector<10x32xf32>
    %85 = tpu.matmul %84, %83, %cst_103 {dimension_numbers = #tpu.dot_dimension_numbers<[1], [0], [0], [1], [0, 0, 1, 1], [], []>} : vector<10x84xf32>, vector<84x32xf32>, vector<10x32xf32> -> vector<10x32xf32>
    %c0_104 = arith.constant 0 : index
    %c0_105 = arith.constant 0 : index
    %86 = vector.load %arg13[%c0_104, %c0_105] : memref<10x1xf32, #tpu.memory_space<vmem>>, vector<10x1xf32>
    %87 = vector.broadcast %86 : vector<10x1xf32> to vector<10x32xf32>
    %88 = arith.addf %85, %87 : vector<10x32xf32>
    %c0_106 = arith.constant 0 : index
    %c0_107 = arith.constant 0 : index
    %c0_108 = arith.constant 0 : index
    %89 = vector.load %arg14[%c0_106, %c0_107, %c0_108] : memref<1x10x32xf32, #tpu.memory_space<vmem>>, vector<1x10x32xf32>
    %90 = vector.shape_cast %89 : vector<1x10x32xf32> to vector<10x32xf32>
    %91 = vector.shape_cast %88 : vector<10x32xf32> to vector<1x10x32xf32>
    tpu.vector_store %arg14[%c0_106, %c0_107, %c0_108], %91 {strides = array<i32>} : memref<1x10x32xf32, #tpu.memory_space<vmem>>, vector<1x10x32xf32>,
    return
  }
  func.func @transform_0(%arg0: i32) -> (i32, i32, i32) {
    %c0_i32 = arith.constant 0 : i32
    %c0_i32_0 = arith.constant 0 : i32
    %c0_i32_1 = arith.constant 0 : i32
    return %arg0, %c0_i32, %c0_i32_0 : i32, i32, i32
  }
  func.func @transform_1(%arg0: i32) -> (i32, i32) {
    %c0_i32 = arith.constant 0 : i32
    %c0_i32_0 = arith.constant 0 : i32
    %c0_i32_1 = arith.constant 0 : i32
    return %c0_i32, %c0_i32_0 : i32, i32
  }
  func.func @transform_2(%arg0: i32) -> (i32, i32) {
    %c0_i32 = arith.constant 0 : i32
    %c0_i32_0 = arith.constant 0 : i32
    %c0_i32_1 = arith.constant 0 : i32
    return %c0_i32, %c0_i32_0 : i32, i32
  }
  func.func @transform_3(%arg0: i32) -> (i32, i32) {
    %c0_i32 = arith.constant 0 : i32
    %c0_i32_0 = arith.constant 0 : i32
    %c0_i32_1 = arith.constant 0 : i32
    return %c0_i32, %c0_i32_0 : i32, i32
  }
  func.func @transform_4(%arg0: i32) -> (i32, i32) {
    %c0_i32 = arith.constant 0 : i32
    %c0_i32_0 = arith.constant 0 : i32
    %c0_i32_1 = arith.constant 0 : i32
    return %c0_i32, %c0_i32_0 : i32, i32
  }
  func.func @transform_5(%arg0: i32) -> (i32, i32) {
    %c0_i32 = arith.constant 0 : i32
    %c0_i32_0 = arith.constant 0 : i32
    %c0_i32_1 = arith.constant 0 : i32
    return %c0_i32, %c0_i32_0 : i32, i32
  }
  func.func @transform_6(%arg0: i32) -> (i32, i32) {
    %c0_i32 = arith.constant 0 : i32
    %c0_i32_0 = arith.constant 0 : i32
    %c0_i32_1 = arith.constant 0 : i32
    return %c0_i32, %c0_i32_0 : i32, i32
  }
  func.func @transform_7(%arg0: i32) -> (i32, i32) {
    %c0_i32 = arith.constant 0 : i32
    %c0_i32_0 = arith.constant 0 : i32
    %c0_i32_1 = arith.constant 0 : i32
    return %c0_i32, %c0_i32_0 : i32, i32
  }
  func.func @transform_8(%arg0: i32) -> (i32, i32) {
    %c0_i32 = arith.constant 0 : i32
    %c0_i32_0 = arith.constant 0 : i32
    %c0_i32_1 = arith.constant 0 : i32
    return %c0_i32, %c0_i32_0 : i32, i32
  }
  func.func @transform_9(%arg0: i32) -> (i32, i32) {
    %c0_i32 = arith.constant 0 : i32
    %c0_i32_0 = arith.constant 0 : i32
    %c0_i32_1 = arith.constant 0 : i32
    return %c0_i32, %c0_i32_0 : i32, i32
  }
  func.func @transform_10(%arg0: i32) -> (i32, i32) {
    %c0_i32 = arith.constant 0 : i32
    %c0_i32_0 = arith.constant 0 : i32
    %c0_i32_1 = arith.constant 0 : i32
    return %c0_i32, %c0_i32_0 : i32, i32
  }
  func.func @transform_11(%arg0: i32) -> (i32, i32) {
    %c0_i32 = arith.constant 0 : i32
    %c0_i32_0 = arith.constant 0 : i32
    %c0_i32_1 = arith.constant 0 : i32
    return %c0_i32, %c0_i32_0 : i32, i32
  }
  func.func @transform_12(%arg0: i32) -> (i32, i32) {
    %c0_i32 = arith.constant 0 : i32
    %c0_i32_0 = arith.constant 0 : i32
    %c0_i32_1 = arith.constant 0 : i32
    return %c0_i32, %c0_i32_0 : i32, i32
  }
  func.func @transform_13(%arg0: i32) -> (i32, i32, i32) {
    %c0_i32 = arith.constant 0 : i32
    %c0_i32_0 = arith.constant 0 : i32
    %c0_i32_1 = arith.constant 0 : i32
    return %arg0, %c0_i32, %c0_i32_0 : i32, i32, i32
  }
}

</mosaic_0001>

<llo_original>
// kernel: forward.1
$region0: #{forward.1}
  #allocation0 [shape = 'u32[]', space=smem, size = 0x4, offset = 0x4, fixed_abs, tag = 'smem constant byte address 0x4 - core index']
  #allocation1 [shape = 'u32[144,128]{1,0:T(1,128)}', space=vmem, size = 0x12000, scoped, tag = 'internal scratch']
  #allocation2 [shape = 'f32[160,768]{1,0:T(8,128)}', space=vmem, size = 0x78000, scoped, tag = 'scratch operand']
  #allocation3 [shape = 'f32[96,768]{1,0:T(8,128)}', space=vmem, size = 0x48000, scoped, tag = 'scratch operand']
  #allocation4 [shape = 'f32[96,384]{1,0:T(8,128)}', space=vmem, size = 0x24000, scoped, tag = 'scratch operand']
  #allocation5 [shape = 'f32[480,256]{1,0:T(8,128)}', space=vmem, size = 0x78000, scoped, tag = 'scratch operand']
  #allocation6 [shape = 'f32[72,256]{1,0:T(8,128)}', space=vmem, size = 0x12000, scoped, tag = 'scratch operand']
  #allocation7 [shape = 'f32[72,128]{1,0:T(8,128)}', space=vmem, size = 0x9000, scoped, tag = 'scratch operand']
  #allocation8 [shape = 'f32[288,32]{1,0:T(8,128)}', space=vmem, size = 0x24000, scoped, tag = 'scratch operand']
  %s0 = inlined_call_operand.vmem [shape: f32[1,32,896], index: 0, kind: input, shape index: {}]
  %s1 = inlined_call_operand.vmem [shape: f32[192,160], index: 1, kind: input, shape index: {}]
  %s2 = inlined_call_operand.vmem [shape: f32[96,1], index: 2, kind: input, shape index: {}]
  %s3 = inlined_call_operand.vmem [shape: f32[736,384], index: 3, kind: input, shape index: {}]
  %s4 = inlined_call_operand.vmem [shape: f32[144,480], index: 4, kind: input, shape index: {}]
  %s5 = inlined_call_operand.vmem [shape: f32[72,1], index: 5, kind: input, shape index: {}]
  %s6 = inlined_call_operand.vmem [shape: f32[224,128], index: 6, kind: input, shape index: {}]
  %s7 = inlined_call_operand.vmem [shape: f32[120,288], index: 7, kind: input, shape index: {}]
  %s8 = inlined_call_operand.vmem [shape: f32[120,1], index: 8, kind: input, shape index: {}]
  %s9 = inlined_call_operand.vmem [shape: f32[84,120], index: 9, kind: input, shape index: {}]
  %s10 = inlined_call_operand.vmem [shape: f32[84,1], index: 10, kind: input, shape index: {}]
  %s11 = inlined_call_operand.vmem [shape: f32[10,84], index: 11, kind: input, shape index: {}]
  %s12 = inlined_call_operand.vmem [shape: f32[10,1], index: 12, kind: input, shape index: {}]
  %s13 = inlined_call_operand.vmem [shape: f32[1,10,32], index: 13, kind: output, shape index: {}]
  %s14 = sld [smem:[#allocation0]]
  $region62: #{forward.1} parent=0
    _
  %s16 = ssub.s32 1, %s14
  %s17 = scalar_select 0, %s16, %s14
  // Predicated region
  $region2: #{forward.1} parent=0 // pred_check
    _
  $region3: #{forward.1} parent=0 // pred_check_branch
    %19 = sbr.rel (0) target = $region5
  $region4: #{forward.1} parent=0 // pred_region
    _
  $region5: #{forward.1} parent=0 // pred_fallthru
    _
  // Predicated region
  $region6: #{forward.1} parent=0 // pred_check
    _
  $region7: #{forward.1} parent=0 // pred_check_branch
    %21 = sbr.rel (0) target = $region9
  $region8: #{forward.1} parent=0 // pred_region
    _
  $region9: #{forward.1} parent=0 // pred_fallthru
    _
  // Predicated region
  $region10: #{forward.1} parent=0 // pred_check
    _
  $region11: #{forward.1} parent=0 // pred_check_branch
    %23 = sbr.rel (0) target = $region13
  $region12: #{forward.1} parent=0 // pred_region
    _
  $region13: #{forward.1} parent=0 // pred_fallthru
    _
  // Predicated region
  $region14: #{forward.1} parent=0 // pred_check
    _
  $region15: #{forward.1} parent=0 // pred_check_branch
    %25 = sbr.rel (0) target = $region17
  $region16: #{forward.1} parent=0 // pred_region
    _
  $region17: #{forward.1} parent=0 // pred_fallthru
    _
  // Predicated region
  $region18: #{forward.1} parent=0 // pred_check
    _
  $region19: #{forward.1} parent=0 // pred_check_branch
    %27 = sbr.rel (0) target = $region21
  $region20: #{forward.1} parent=0 // pred_region
    _
  $region21: #{forward.1} parent=0 // pred_fallthru
    _
  // Predicated region
  $region22: #{forward.1} parent=0 // pred_check
    _
  $region23: #{forward.1} parent=0 // pred_check_branch
    %29 = sbr.rel (0) target = $region25
  $region24: #{forward.1} parent=0 // pred_region
    _
  $region25: #{forward.1} parent=0 // pred_fallthru
    _
  // Predicated region
  $region26: #{forward.1} parent=0 // pred_check
    _
  $region27: #{forward.1} parent=0 // pred_check_branch
    %31 = sbr.rel (0) target = $region29
  $region28: #{forward.1} parent=0 // pred_region
    _
  $region29: #{forward.1} parent=0 // pred_fallthru
    _
  // Predicated region
  $region30: #{forward.1} parent=0 // pred_check
    _
  $region31: #{forward.1} parent=0 // pred_check_branch
    %33 = sbr.rel (0) target = $region33
  $region32: #{forward.1} parent=0 // pred_region
    _
  $region33: #{forward.1} parent=0 // pred_fallthru
    _
  // Predicated region
  $region34: #{forward.1} parent=0 // pred_check
    _
  $region35: #{forward.1} parent=0 // pred_check_branch
    %35 = sbr.rel (0) target = $region37
  $region36: #{forward.1} parent=0 // pred_region
    _
  $region37: #{forward.1} parent=0 // pred_fallthru
    _
  // Predicated region
  $region38: #{forward.1} parent=0 // pred_check
    _
  $region39: #{forward.1} parent=0 // pred_check_branch
    %37 = sbr.rel (0) target = $region41
  $region40: #{forward.1} parent=0 // pred_region
    _
  $region41: #{forward.1} parent=0 // pred_fallthru
    _
  // Predicated region
  $region42: #{forward.1} parent=0 // pred_check
    _
  $region43: #{forward.1} parent=0 // pred_check_branch
    %39 = sbr.rel (0) target = $region45
  $region44: #{forward.1} parent=0 // pred_region
    _
  $region45: #{forward.1} parent=0 // pred_fallthru
    _
  // Predicated region
  $region46: #{forward.1} parent=0 // pred_check
    _
  $region47: #{forward.1} parent=0 // pred_check_branch
    %41 = sbr.rel (0) target = $region49
  $region48: #{forward.1} parent=0 // pred_region
    _
  $region49: #{forward.1} parent=0 // pred_fallthru
    _
  // Predicated region
  $region50: #{forward.1} parent=0 // pred_check
    _
  $region51: #{forward.1} parent=0 // pred_check_branch
    %43 = sbr.rel (0) target = $region53
  $region52: #{forward.1} parent=0 // pred_region
    _
  $region53: #{forward.1} parent=0 // pred_fallthru
    _
  %v44 = vld [vmem:[%s0] sm:$0xff]
  %v45 = vld [vmem:[%s0 + $0x8] sm:$0xff]
  %v46 = vld [vmem:[%s0 + $0x10] sm:$0xff]
  %v47 = vld [vmem:[%s0 + $0x18] sm:$0xff]
  %v48 = vld [vmem:[%s0 + $0x20] sm:$0xff]
  %v49 = vld [vmem:[%s0 + $0x28] sm:$0xff]
  %v50 = vld [vmem:[%s0 + $0x38] sm:$0xff]
  %v51 = vld [vmem:[%s0 + $0x40] sm:$0xff]
  %v52 = vld [vmem:[%s0 + $0x48] sm:$0xff]
  %v53 = vld [vmem:[%s0 + $0x50] sm:$0xff]
  %v54 = vld [vmem:[%s0 + $0x58] sm:$0xff]
  %v55 = vld [vmem:[%s0 + $0x60] sm:$0xff]
  %v56 = vld [vmem:[%s0 + $0x70] sm:$0xff]
  %v57 = vld [vmem:[%s0 + $0x78] sm:$0xff]
  %v58 = vld [vmem:[%s0 + $0x80] sm:$0xff]
  %v59 = vld [vmem:[%s0 + $0x88] sm:$0xff]
  %v60 = vld [vmem:[%s0 + $0x90] sm:$0xff]
  %v61 = vld [vmem:[%s0 + $0x98] sm:$0xff]
  %v62 = vld [vmem:[%s0 + $0xa8] sm:$0xff]
  %v63 = vld [vmem:[%s0 + $0xb0] sm:$0xff]
  %v64 = vld [vmem:[%s0 + $0xb8] sm:$0xff]
  %v65 = vld [vmem:[%s0 + $0xc0] sm:$0xff]
  %v66 = vld [vmem:[%s0 + $0xc8] sm:$0xff]
  %v67 = vld [vmem:[%s0 + $0xd0] sm:$0xff]
  %68 = vst [vmem:[#allocation2] sm:$0xff] %v44
  %69 = vst [vmem:[#allocation2 + $0x8] sm:$0xff] %v45
  %70 = vst [vmem:[#allocation2 + $0x10] sm:$0xff] %v46
  %71 = vst [vmem:[#allocation2 + $0x18] sm:$0xff] %v47
  %72 = vst [vmem:[#allocation2 + $0x20] sm:$0xff] %v48
  %73 = vst [vmem:[#allocation2 + $0x28] sm:$0xff] %v49
  %74 = vst [vmem:[#allocation2 + $0x30] sm:$0xff] %v50
  %75 = vst [vmem:[#allocation2 + $0x38] sm:$0xff] %v51
  %76 = vst [vmem:[#allocation2 + $0x40] sm:$0xff] %v52
  %77 = vst [vmem:[#allocation2 + $0x48] sm:$0xff] %v53
  %78 = vst [vmem:[#allocation2 + $0x50] sm:$0xff] %v54
  %79 = vst [vmem:[#allocation2 + $0x58] sm:$0xff] %v55
  %80 = vst [vmem:[#allocation2 + $0x60] sm:$0xff] %v56
  %81 = vst [vmem:[#allocation2 + $0x68] sm:$0xff] %v57
  %82 = vst [vmem:[#allocation2 + $0x70] sm:$0xff] %v58
  %83 = vst [vmem:[#allocation2 + $0x78] sm:$0xff] %v59
  %84 = vst [vmem:[#allocation2 + $0x80] sm:$0xff] %v60
  %85 = vst [vmem:[#allocation2 + $0x88] sm:$0xff] %v61
  %86 = vst [vmem:[#allocation2 + $0x90] sm:$0xff] %v62
  %87 = vst [vmem:[#allocation2 + $0x98] sm:$0xff] %v63
  %88 = vst [vmem:[#allocation2 + $0xa0] sm:$0xff] %v64
  %89 = vst [vmem:[#allocation2 + $0xa8] sm:$0xff] %v65
  %90 = vst [vmem:[#allocation2 + $0xb0] sm:$0xff] %v66
  %91 = vst [vmem:[#allocation2 + $0xb8] sm:$0xff] %v67
  %v92 = vld [vmem:[%s0] sm:$0xff]
  %v93 = vld [vmem:[%s0 + $0x8] sm:$0xff]
  %v94 = vld [vmem:[%s0 + $0x10] sm:$0xff]
  %v95 = vld [vmem:[%s0 + $0x18] sm:$0xff]
  %v96 = vld [vmem:[%s0 + $0x20] sm:$0xff]
  %v97 = vld [vmem:[%s0 + $0x28] sm:$0xff]
  %v98 = vld [vmem:[%s0 + $0x30] sm:$0xff]
  %v99 = vld [vmem:[%s0 + $0x38] sm:$0xff]
  %v100 = vld [vmem:[%s0 + $0x40] sm:$0xff]
  %v101 = vld [vmem:[%s0 + $0x48] sm:$0xff]
  %v102 = vld [vmem:[%s0 + $0x50] sm:$0xff]
  %v103 = vld [vmem:[%s0 + $0x58] sm:$0xff]
  %v104 = vld [vmem:[%s0 + $0x60] sm:$0xff]
  %v105 = vld [vmem:[%s0 + $0x68] sm:$0xff]
  %v106 = vld [vmem:[%s0 + $0x70] sm:$0xff]
  %v107 = vld [vmem:[%s0 + $0x78] sm:$0xff]
  %v108 = vld [vmem:[%s0 + $0x80] sm:$0xff]
  %v109 = vld [vmem:[%s0 + $0x88] sm:$0xff]
  %v110 = vld [vmem:[%s0 + $0x90] sm:$0xff]
  %v111 = vld [vmem:[%s0 + $0x98] sm:$0xff]
  %v112 = vld [vmem:[%s0 + $0xa0] sm:$0xff]
  %v113 = vld [vmem:[%s0 + $0xa8] sm:$0xff]
  %v114 = vld [vmem:[%s0 + $0xb0] sm:$0xff]
  %v115 = vld [vmem:[%s0 + $0xb8] sm:$0xff]
  %v116 = vld [vmem:[%s0 + $0xc0] sm:$0xff]
  %v117 = vld [vmem:[%s0 + $0xc8] sm:$0xff]
  %v118 = vld [vmem:[%s0 + $0xd0] sm:$0xff]
  %v119 = vld [vmem:[%s0 + $0xd8] sm:$0xff]
  %148 = vrot.lane.b32.xlu0 %v92, 96
  %v149 = vpop.permute.xlu0 %148
  %150 = vrot.lane.b32.xlu0 %v93, 96
  %v151 = vpop.permute.xlu0 %150
  %152 = vrot.lane.b32.xlu0 %v94, 96
  %v153 = vpop.permute.xlu0 %152
  %154 = vrot.lane.b32.xlu0 %v95, 96
  %v155 = vpop.permute.xlu0 %154
  %156 = vrot.lane.b32.xlu0 %v96, 96
  %v157 = vpop.permute.xlu0 %156
  %158 = vrot.lane.b32.xlu0 %v97, 96
  %v159 = vpop.permute.xlu0 %158
  %160 = vrot.lane.b32.xlu0 %v98, 96
  %v161 = vpop.permute.xlu0 %160
  %162 = vrot.lane.b32.xlu0 %v99, 96
  %v163 = vpop.permute.xlu0 %162
  %164 = vrot.lane.b32.xlu0 %v100, 96
  %v165 = vpop.permute.xlu0 %164
  %166 = vrot.lane.b32.xlu0 %v101, 96
  %v167 = vpop.permute.xlu0 %166
  %168 = vrot.lane.b32.xlu0 %v102, 96
  %v169 = vpop.permute.xlu0 %168
  %170 = vrot.lane.b32.xlu0 %v103, 96
  %v171 = vpop.permute.xlu0 %170
  %172 = vrot.lane.b32.xlu0 %v104, 96
  %v173 = vpop.permute.xlu0 %172
  %174 = vrot.lane.b32.xlu0 %v105, 96
  %v175 = vpop.permute.xlu0 %174
  %176 = vrot.lane.b32.xlu0 %v106, 96
  %v177 = vpop.permute.xlu0 %176
  %178 = vrot.lane.b32.xlu0 %v107, 96
  %v179 = vpop.permute.xlu0 %178
  %180 = vrot.lane.b32.xlu0 %v108, 96
  %v181 = vpop.permute.xlu0 %180
  %182 = vrot.lane.b32.xlu0 %v109, 96
  %v183 = vpop.permute.xlu0 %182
  %184 = vrot.lane.b32.xlu0 %v110, 96
  %v185 = vpop.permute.xlu0 %184
  %186 = vrot.lane.b32.xlu0 %v111, 96
  %v187 = vpop.permute.xlu0 %186
  %188 = vrot.lane.b32.xlu0 %v112, 96
  %v189 = vpop.permute.xlu0 %188
  %190 = vrot.lane.b32.xlu0 %v113, 96
  %v191 = vpop.permute.xlu0 %190
  %192 = vrot.lane.b32.xlu0 %v114, 96
  %v193 = vpop.permute.xlu0 %192
  %194 = vrot.lane.b32.xlu0 %v115, 96
  %v195 = vpop.permute.xlu0 %194
  %196 = vrot.lane.b32.xlu0 %v116, 96
  %v197 = vpop.permute.xlu0 %196
  %198 = vrot.lane.b32.xlu0 %v117, 96
  %v199 = vpop.permute.xlu0 %198
  %200 = vrot.lane.b32.xlu0 %v118, 96
  %v201 = vpop.permute.xlu0 %200
  %202 = vrot.lane.b32.xlu0 %v119, 96
  %v203 = vpop.permute.xlu0 %202
  %vm204 = vcmask 785408
  %v205 = vsel %vm204, %v149, %v151
  %v206 = vsel %vm204, %v151, %v153
  %v207 = vsel %vm204, %v153, %v155
  %v208 = vsel %vm204, %v155, %v157
  %v209 = vsel %vm204, %v157, %v159
  %v210 = vsel %vm204, %v159, %v161
  %v211 = vsel %vm204, %v163, %v165
  %v212 = vsel %vm204, %v165, %v167
  %v213 = vsel %vm204, %v167, %v169
  %v214 = vsel %vm204, %v169, %v171
  %v215 = vsel %vm204, %v171, %v173
  %v216 = vsel %vm204, %v173, %v175
  %v217 = vsel %vm204, %v177, %v179
  %v218 = vsel %vm204, %v179, %v181
  %v219 = vsel %vm204, %v181, %v183
  %v220 = vsel %vm204, %v183, %v185
  %v221 = vsel %vm204, %v185, %v187
  %v222 = vsel %vm204, %v187, %v189
  %v223 = vsel %vm204, %v191, %v193
  %v224 = vsel %vm204, %v193, %v195
  %v225 = vsel %vm204, %v195, %v197
  %v226 = vsel %vm204, %v197, %v199
  %v227 = vsel %vm204, %v199, %v201
  %v228 = vsel %vm204, %v201, %v203
  %253 = vst [vmem:[#allocation2 + $0xc0] sm:$0xff] %v205
  %254 = vst [vmem:[#allocation2 + $0xc8] sm:$0xff] %v206
  %255 = vst [vmem:[#allocation2 + $0xd0] sm:$0xff] %v207
  %256 = vst [vmem:[#allocation2 + $0xd8] sm:$0xff] %v208
  %257 = vst [vmem:[#allocation2 + $0xe0] sm:$0xff] %v209
  %258 = vst [vmem:[#allocation2 + $0xe8] sm:$0xff] %v210
  %259 = vst [vmem:[#allocation2 + $0xf0] sm:$0xff] %v211
  %260 = vst [vmem:[#allocation2 + $0xf8] sm:$0xff] %v212
  %261 = vst [vmem:[#allocation2 + $0x100] sm:$0xff] %v213
  %262 = vst [vmem:[#allocation2 + $0x108] sm:$0xff] %v214
  %263 = vst [vmem:[#allocation2 + $0x110] sm:$0xff] %v215
  %264 = vst [vmem:[#allocation2 + $0x118] sm:$0xff] %v216
  %265 = vst [vmem:[#allocation2 + $0x120] sm:$0xff] %v217
  %266 = vst [vmem:[#allocation2 + $0x128] sm:$0xff] %v218
  %267 = vst [vmem:[#allocation2 + $0x130] sm:$0xff] %v219
  %268 = vst [vmem:[#allocation2 + $0x138] sm:$0xff] %v220
  %269 = vst [vmem:[#allocation2 + $0x140] sm:$0xff] %v221
  %270 = vst [vmem:[#allocation2 + $0x148] sm:$0xff] %v222
  %271 = vst [vmem:[#allocation2 + $0x150] sm:$0xff] %v223
  %272 = vst [vmem:[#allocation2 + $0x158] sm:$0xff] %v224
  %273 = vst [vmem:[#allocation2 + $0x160] sm:$0xff] %v225
  %274 = vst [vmem:[#allocation2 + $0x168] sm:$0xff] %v226
  %275 = vst [vmem:[#allocation2 + $0x170] sm:$0xff] %v227
  %276 = vst [vmem:[#allocation2 + $0x178] sm:$0xff] %v228
  %v277 = vld [vmem:[%s0] sm:$0xff]
  %v278 = vld [vmem:[%s0 + $0x8] sm:$0xff]
  %v279 = vld [vmem:[%s0 + $0x10] sm:$0xff]
  %v280 = vld [vmem:[%s0 + $0x18] sm:$0xff]
  %v281 = vld [vmem:[%s0 + $0x20] sm:$0xff]
  %v282 = vld [vmem:[%s0 + $0x28] sm:$0xff]
  %v283 = vld [vmem:[%s0 + $0x30] sm:$0xff]
  %v284 = vld [vmem:[%s0 + $0x38] sm:$0xff]
  %v285 = vld [vmem:[%s0 + $0x40] sm:$0xff]
  %v286 = vld [vmem:[%s0 + $0x48] sm:$0xff]
  %v287 = vld [vmem:[%s0 + $0x50] sm:$0xff]
  %v288 = vld [vmem:[%s0 + $0x58] sm:$0xff]
  %v289 = vld [vmem:[%s0 + $0x60] sm:$0xff]
  %v290 = vld [vmem:[%s0 + $0x68] sm:$0xff]
  %v291 = vld [vmem:[%s0 + $0x70] sm:$0xff]
  %v292 = vld [vmem:[%s0 + $0x78] sm:$0xff]
  %v293 = vld [vmem:[%s0 + $0x80] sm:$0xff]
  %v294 = vld [vmem:[%s0 + $0x88] sm:$0xff]
  %v295 = vld [vmem:[%s0 + $0x90] sm:$0xff]
  %v296 = vld [vmem:[%s0 + $0x98] sm:$0xff]
  %v297 = vld [vmem:[%s0 + $0xa0] sm:$0xff]
  %v298 = vld [vmem:[%s0 + $0xa8] sm:$0xff]
  %v299 = vld [vmem:[%s0 + $0xb0] sm:$0xff]
  %v300 = vld [vmem:[%s0 + $0xb8] sm:$0xff]
  %v301 = vld [vmem:[%s0 + $0xc0] sm:$0xff]
  %v302 = vld [vmem:[%s0 + $0xc8] sm:$0xff]
  %v303 = vld [vmem:[%s0 + $0xd0] sm:$0xff]
  %v304 = vld [vmem:[%s0 + $0xd8] sm:$0xff]
  %333 = vrot.lane.b32.xlu0 %v277, 64
  %v334 = vpop.permute.xlu0 %333
  %335 = vrot.lane.b32.xlu0 %v278, 64
  %v336 = vpop.permute.xlu0 %335
  %337 = vrot.lane.b32.xlu0 %v279, 64
  %v338 = vpop.permute.xlu0 %337
  %339 = vrot.lane.b32.xlu0 %v280, 64
  %v340 = vpop.permute.xlu0 %339
  %341 = vrot.lane.b32.xlu0 %v281, 64
  %v342 = vpop.permute.xlu0 %341
  %343 = vrot.lane.b32.xlu0 %v282, 64
  %v344 = vpop.permute.xlu0 %343
  %345 = vrot.lane.b32.xlu0 %v283, 64
  %v346 = vpop.permute.xlu0 %345
  %347 = vrot.lane.b32.xlu0 %v284, 64
  %v348 = vpop.permute.xlu0 %347
  %349 = vrot.lane.b32.xlu0 %v285, 64
  %v350 = vpop.permute.xlu0 %349
  %351 = vrot.lane.b32.xlu0 %v286, 64
  %v352 = vpop.permute.xlu0 %351
  %353 = vrot.lane.b32.xlu0 %v287, 64
  %v354 = vpop.permute.xlu0 %353
  %355 = vrot.lane.b32.xlu0 %v288, 64
  %v356 = vpop.permute.xlu0 %355
  %357 = vrot.lane.b32.xlu0 %v289, 64
  %v358 = vpop.permute.xlu0 %357
  %359 = vrot.lane.b32.xlu0 %v290, 64
  %v360 = vpop.permute.xlu0 %359
  %361 = vrot.lane.b32.xlu0 %v291, 64
  %v362 = vpop.permute.xlu0 %361
  %363 = vrot.lane.b32.xlu0 %v292, 64
  %v364 = vpop.permute.xlu0 %363
  %365 = vrot.lane.b32.xlu0 %v293, 64
  %v366 = vpop.permute.xlu0 %365
  %367 = vrot.lane.b32.xlu0 %v294, 64
  %v368 = vpop.permute.xlu0 %367
  %369 = vrot.lane.b32.xlu0 %v295, 64
  %v370 = vpop.permute.xlu0 %369
  %371 = vrot.lane.b32.xlu0 %v296, 64
  %v372 = vpop.permute.xlu0 %371
  %373 = vrot.lane.b32.xlu0 %v297, 64
  %v374 = vpop.permute.xlu0 %373
  %375 = vrot.lane.b32.xlu0 %v298, 64
  %v376 = vpop.permute.xlu0 %375
  %377 = vrot.lane.b32.xlu0 %v299, 64
  %v378 = vpop.permute.xlu0 %377
  %379 = vrot.lane.b32.xlu0 %v300, 64
  %v380 = vpop.permute.xlu0 %379
  %381 = vrot.lane.b32.xlu0 %v301, 64
  %v382 = vpop.permute.xlu0 %381
  %383 = vrot.lane.b32.xlu0 %v302, 64
  %v384 = vpop.permute.xlu0 %383
  %385 = vrot.lane.b32.xlu0 %v303, 64
  %v386 = vpop.permute.xlu0 %385
  %387 = vrot.lane.b32.xlu0 %v304, 64
  %v388 = vpop.permute.xlu0 %387
  %vm389 = vcmask 523264
  %v390 = vsel %vm389, %v334, %v336
  %v391 = vsel %vm389, %v336, %v338
  %v392 = vsel %vm389, %v338, %v340
  %v393 = vsel %vm389, %v340, %v342
  %v394 = vsel %vm389, %v342, %v344
  %v395 = vsel %vm389, %v344, %v346
  %v396 = vsel %vm389, %v348, %v350
  %v397 = vsel %vm389, %v350, %v352
  %v398 = vsel %vm389, %v352, %v354
  %v399 = vsel %vm389, %v354, %v356
  %v400 = vsel %vm389, %v356, %v358
  %v401 = vsel %vm389, %v358, %v360
  %v402 = vsel %vm389, %v362, %v364
  %v403 = vsel %vm389, %v364, %v366
  %v404 = vsel %vm389, %v366, %v368
  %v405 = vsel %vm389, %v368, %v370
  %v406 = vsel %vm389, %v370, %v372
  %v407 = vsel %vm389, %v372, %v374
  %v408 = vsel %vm389, %v376, %v378
  %v409 = vsel %vm389, %v378, %v380
  %v410 = vsel %vm389, %v380, %v382
  %v411 = vsel %vm389, %v382, %v384
  %v412 = vsel %vm389, %v384, %v386
  %v413 = vsel %vm389, %v386, %v388
  %438 = vst [vmem:[#allocation2 + $0x180] sm:$0xff] %v390
  %439 = vst [vmem:[#allocation2 + $0x188] sm:$0xff] %v391
  %440 = vst [vmem:[#allocation2 + $0x190] sm:$0xff] %v392
  %441 = vst [vmem:[#allocation2 + $0x198] sm:$0xff] %v393
  %442 = vst [vmem:[#allocation2 + $0x1a0] sm:$0xff] %v394
  %443 = vst [vmem:[#allocation2 + $0x1a8] sm:$0xff] %v395
  %444 = vst [vmem:[#allocation2 + $0x1b0] sm:$0xff] %v396
  %445 = vst [vmem:[#allocation2 + $0x1b8] sm:$0xff] %v397
  %446 = vst [vmem:[#allocation2 + $0x1c0] sm:$0xff] %v398
  %447 = vst [vmem:[#allocation2 + $0x1c8] sm:$0xff] %v399
  %448 = vst [vmem:[#allocation2 + $0x1d0] sm:$0xff] %v400
  %449 = vst [vmem:[#allocation2 + $0x1d8] sm:$0xff] %v401
  %450 = vst [vmem:[#allocation2 + $0x1e0] sm:$0xff] %v402
  %451 = vst [vmem:[#allocation2 + $0x1e8] sm:$0xff] %v403
  %452 = vst [vmem:[#allocation2 + $0x1f0] sm:$0xff] %v404
  %453 = vst [vmem:[#allocation2 + $0x1f8] sm:$0xff] %v405
  %454 = vst [vmem:[#allocation2 + $0x200] sm:$0xff] %v406
  %455 = vst [vmem:[#allocation2 + $0x208] sm:$0xff] %v407
  %456 = vst [vmem:[#allocation2 + $0x210] sm:$0xff] %v408
  %457 = vst [vmem:[#allocation2 + $0x218] sm:$0xff] %v409
  %458 = vst [vmem:[#allocation2 + $0x220] sm:$0xff] %v410
  %459 = vst [vmem:[#allocation2 + $0x228] sm:$0xff] %v411
  %460 = vst [vmem:[#allocation2 + $0x230] sm:$0xff] %v412
  %461 = vst [vmem:[#allocation2 + $0x238] sm:$0xff] %v413
  %v462 = vld [vmem:[%s0] sm:$0xff]
  %v463 = vld [vmem:[%s0 + $0x8] sm:$0xff]
  %v464 = vld [vmem:[%s0 + $0x10] sm:$0xff]
  %v465 = vld [vmem:[%s0 + $0x18] sm:$0xff]
  %v466 = vld [vmem:[%s0 + $0x20] sm:$0xff]
  %v467 = vld [vmem:[%s0 + $0x28] sm:$0xff]
  %v468 = vld [vmem:[%s0 + $0x30] sm:$0xff]
  %v469 = vld [vmem:[%s0 + $0x38] sm:$0xff]
  %v470 = vld [vmem:[%s0 + $0x40] sm:$0xff]
  %v471 = vld [vmem:[%s0 + $0x48] sm:$0xff]
  %v472 = vld [vmem:[%s0 + $0x50] sm:$0xff]
  %v473 = vld [vmem:[%s0 + $0x58] sm:$0xff]
  %v474 = vld [vmem:[%s0 + $0x60] sm:$0xff]
  %v475 = vld [vmem:[%s0 + $0x68] sm:$0xff]
  %v476 = vld [vmem:[%s0 + $0x70] sm:$0xff]
  %v477 = vld [vmem:[%s0 + $0x78] sm:$0xff]
  %v478 = vld [vmem:[%s0 + $0x80] sm:$0xff]
  %v479 = vld [vmem:[%s0 + $0x88] sm:$0xff]
  %v480 = vld [vmem:[%s0 + $0x90] sm:$0xff]
  %v481 = vld [vmem:[%s0 + $0x98] sm:$0xff]
  %v482 = vld [vmem:[%s0 + $0xa0] sm:$0xff]
  %v483 = vld [vmem:[%s0 + $0xa8] sm:$0xff]
  %v484 = vld [vmem:[%s0 + $0xb0] sm:$0xff]
  %v485 = vld [vmem:[%s0 + $0xb8] sm:$0xff]
  %v486 = vld [vmem:[%s0 + $0xc0] sm:$0xff]
  %v487 = vld [vmem:[%s0 + $0xc8] sm:$0xff]
  %v488 = vld [vmem:[%s0 + $0xd0] sm:$0xff]
  %v489 = vld [vmem:[%s0 + $0xd8] sm:$0xff]
  %518 = vrot.lane.b32.xlu0 %v462, 32
  %v519 = vpop.permute.xlu0 %518
  %520 = vrot.lane.b32.xlu0 %v463, 32
  %v521 = vpop.permute.xlu0 %520
  %522 = vrot.lane.b32.xlu0 %v464, 32
  %v523 = vpop.permute.xlu0 %522
  %524 = vrot.lane.b32.xlu0 %v465, 32
  %v525 = vpop.permute.xlu0 %524
  %526 = vrot.lane.b32.xlu0 %v466, 32
  %v527 = vpop.permute.xlu0 %526
  %528 = vrot.lane.b32.xlu0 %v467, 32
  %v529 = vpop.permute.xlu0 %528
  %530 = vrot.lane.b32.xlu0 %v468, 32
  %v531 = vpop.permute.xlu0 %530
  %532 = vrot.lane.b32.xlu0 %v469, 32
  %v533 = vpop.permute.xlu0 %532
  %534 = vrot.lane.b32.xlu0 %v470, 32
  %v535 = vpop.permute.xlu0 %534
  %536 = vrot.lane.b32.xlu0 %v471, 32
  %v537 = vpop.permute.xlu0 %536
  %538 = vrot.lane.b32.xlu0 %v472, 32
  %v539 = vpop.permute.xlu0 %538
  %540 = vrot.lane.b32.xlu0 %v473, 32
  %v541 = vpop.permute.xlu0 %540
  %542 = vrot.lane.b32.xlu0 %v474, 32
  %v543 = vpop.permute.xlu0 %542
  %544 = vrot.lane.b32.xlu0 %v475, 32
  %v545 = vpop.permute.xlu0 %544
  %546 = vrot.lane.b32.xlu0 %v476, 32
  %v547 = vpop.permute.xlu0 %546
  %548 = vrot.lane.b32.xlu0 %v477, 32
  %v549 = vpop.permute.xlu0 %548
  %550 = vrot.lane.b32.xlu0 %v478, 32
  %v551 = vpop.permute.xlu0 %550
  %552 = vrot.lane.b32.xlu0 %v479, 32
  %v553 = vpop.permute.xlu0 %552
  %554 = vrot.lane.b32.xlu0 %v480, 32
  %v555 = vpop.permute.xlu0 %554
  %556 = vrot.lane.b32.xlu0 %v481, 32
  %v557 = vpop.permute.xlu0 %556
  %558 = vrot.lane.b32.xlu0 %v482, 32
  %v559 = vpop.permute.xlu0 %558
  %560 = vrot.lane.b32.xlu0 %v483, 32
  %v561 = vpop.permute.xlu0 %560
  %562 = vrot.lane.b32.xlu0 %v484, 32
  %v563 = vpop.permute.xlu0 %562
  %564 = vrot.lane.b32.xlu0 %v485, 32
  %v565 = vpop.permute.xlu0 %564
  %566 = vrot.lane.b32.xlu0 %v486, 32
  %v567 = vpop.permute.xlu0 %566
  %568 = vrot.lane.b32.xlu0 %v487, 32
  %v569 = vpop.permute.xlu0 %568
  %570 = vrot.lane.b32.xlu0 %v488, 32
  %v571 = vpop.permute.xlu0 %570
  %572 = vrot.lane.b32.xlu0 %v489, 32
  %v573 = vpop.permute.xlu0 %572
  %vm574 = vcmask 261120
  %v575 = vsel %vm574, %v519, %v521
  %v576 = vsel %vm574, %v521, %v523
  %v577 = vsel %vm574, %v523, %v525
  %v578 = vsel %vm574, %v525, %v527
  %v579 = vsel %vm574, %v527, %v529
  %v580 = vsel %vm574, %v529, %v531
  %v581 = vsel %vm574, %v533, %v535
  %v582 = vsel %vm574, %v535, %v537
  %v583 = vsel %vm574, %v537, %v539
  %v584 = vsel %vm574, %v539, %v541
  %v585 = vsel %vm574, %v541, %v543
  %v586 = vsel %vm574, %v543, %v545
  %v587 = vsel %vm574, %v547, %v549
  %v588 = vsel %vm574, %v549, %v551
  %v589 = vsel %vm574, %v551, %v553
  %v590 = vsel %vm574, %v553, %v555
  %v591 = vsel %vm574, %v555, %v557
  %v592 = vsel %vm574, %v557, %v559
  %v593 = vsel %vm574, %v561, %v563
  %v594 = vsel %vm574, %v563, %v565
  %v595 = vsel %vm574, %v565, %v567
  %v596 = vsel %vm574, %v567, %v569
  %v597 = vsel %vm574, %v569, %v571
  %v598 = vsel %vm574, %v571, %v573
  %623 = vst [vmem:[#allocation2 + $0x240] sm:$0xff] %v575
  %624 = vst [vmem:[#allocation2 + $0x248] sm:$0xff] %v576
  %625 = vst [vmem:[#allocation2 + $0x250] sm:$0xff] %v577
  %626 = vst [vmem:[#allocation2 + $0x258] sm:$0xff] %v578
  %627 = vst [vmem:[#allocation2 + $0x260] sm:$0xff] %v579
  %628 = vst [vmem:[#allocation2 + $0x268] sm:$0xff] %v580
  %629 = vst [vmem:[#allocation2 + $0x270] sm:$0xff] %v581
  %630 = vst [vmem:[#allocation2 + $0x278] sm:$0xff] %v582
  %631 = vst [vmem:[#allocation2 + $0x280] sm:$0xff] %v583
  %632 = vst [vmem:[#allocation2 + $0x288] sm:$0xff] %v584
  %633 = vst [vmem:[#allocation2 + $0x290] sm:$0xff] %v585
  %634 = vst [vmem:[#allocation2 + $0x298] sm:$0xff] %v586
  %635 = vst [vmem:[#allocation2 + $0x2a0] sm:$0xff] %v587
  %636 = vst [vmem:[#allocation2 + $0x2a8] sm:$0xff] %v588
  %637 = vst [vmem:[#allocation2 + $0x2b0] sm:$0xff] %v589
  %638 = vst [vmem:[#allocation2 + $0x2b8] sm:$0xff] %v590
  %639 = vst [vmem:[#allocation2 + $0x2c0] sm:$0xff] %v591
  %640 = vst [vmem:[#allocation2 + $0x2c8] sm:$0xff] %v592
  %641 = vst [vmem:[#allocation2 + $0x2d0] sm:$0xff] %v593
  %642 = vst [vmem:[#allocation2 + $0x2d8] sm:$0xff] %v594
  %643 = vst [vmem:[#allocation2 + $0x2e0] sm:$0xff] %v595
  %644 = vst [vmem:[#allocation2 + $0x2e8] sm:$0xff] %v596
  %645 = vst [vmem:[#allocation2 + $0x2f0] sm:$0xff] %v597
  %646 = vst [vmem:[#allocation2 + $0x2f8] sm:$0xff] %v598
  %v647 = vld [vmem:[%s0 + $0x8] sm:$0xff]
  %v648 = vld [vmem:[%s0 + $0x10] sm:$0xff]
  %v649 = vld [vmem:[%s0 + $0x18] sm:$0xff]
  %v650 = vld [vmem:[%s0 + $0x20] sm:$0xff]
  %v651 = vld [vmem:[%s0 + $0x28] sm:$0xff]
  %v652 = vld [vmem:[%s0 + $0x30] sm:$0xff]
  %v653 = vld [vmem:[%s0 + $0x40] sm:$0xff]
  %v654 = vld [vmem:[%s0 + $0x48] sm:$0xff]
  %v655 = vld [vmem:[%s0 + $0x50] sm:$0xff]
  %v656 = vld [vmem:[%s0 + $0x58] sm:$0xff]
  %v657 = vld [vmem:[%s0 + $0x60] sm:$0xff]
  %v658 = vld [vmem:[%s0 + $0x68] sm:$0xff]
  %v659 = vld [vmem:[%s0 + $0x78] sm:$0xff]
  %v660 = vld [vmem:[%s0 + $0x80] sm:$0xff]
  %v661 = vld [vmem:[%s0 + $0x88] sm:$0xff]
  %v662 = vld [vmem:[%s0 + $0x90] sm:$0xff]
  %v663 = vld [vmem:[%s0 + $0x98] sm:$0xff]
  %v664 = vld [vmem:[%s0 + $0xa0] sm:$0xff]
  %v665 = vld [vmem:[%s0 + $0xb0] sm:$0xff]
  %v666 = vld [vmem:[%s0 + $0xb8] sm:$0xff]
  %v667 = vld [vmem:[%s0 + $0xc0] sm:$0xff]
  %v668 = vld [vmem:[%s0 + $0xc8] sm:$0xff]
  %v669 = vld [vmem:[%s0 + $0xd0] sm:$0xff]
  %v670 = vld [vmem:[%s0 + $0xd8] sm:$0xff]
  %671 = vst [vmem:[#allocation2 + $0x300] sm:$0xff] %v647
  %672 = vst [vmem:[#allocation2 + $0x308] sm:$0xff] %v648
  %673 = vst [vmem:[#allocation2 + $0x310] sm:$0xff] %v649
  %674 = vst [vmem:[#allocation2 + $0x318] sm:$0xff] %v650
  %675 = vst [vmem:[#allocation2 + $0x320] sm:$0xff] %v651
  %676 = vst [vmem:[#allocation2 + $0x328] sm:$0xff] %v652
  %677 = vst [vmem:[#allocation2 + $0x330] sm:$0xff] %v653
  %678 = vst [vmem:[#allocation2 + $0x338] sm:$0xff] %v654
  %679 = vst [vmem:[#allocation2 + $0x340] sm:$0xff] %v655
  %680 = vst [vmem:[#allocation2 + $0x348] sm:$0xff] %v656
  %681 = vst [vmem:[#allocation2 + $0x350] sm:$0xff] %v657
  %682 = vst [vmem:[#allocation2 + $0x358] sm:$0xff] %v658
  %683 = vst [vmem:[#allocation2 + $0x360] sm:$0xff] %v659
  %684 = vst [vmem:[#allocation2 + $0x368] sm:$0xff] %v660
  %685 = vst [vmem:[#allocation2 + $0x370] sm:$0xff] %v661
  %686 = vst [vmem:[#allocation2 + $0x378] sm:$0xff] %v662
  %687 = vst [vmem:[#allocation2 + $0x380] sm:$0xff] %v663
  %688 = vst [vmem:[#allocation2 + $0x388] sm:$0xff] %v664
  %689 = vst [vmem:[#allocation2 + $0x390] sm:$0xff] %v665
  %690 = vst [vmem:[#allocation2 + $0x398] sm:$0xff] %v666
  %691 = vst [vmem:[#allocation2 + $0x3a0] sm:$0xff] %v667
  %692 = vst [vmem:[#allocation2 + $0x3a8] sm:$0xff] %v668
  %693 = vst [vmem:[#allocation2 + $0x3b0] sm:$0xff] %v669
  %694 = vst [vmem:[#allocation2 + $0x3b8] sm:$0xff] %v670
  %v695 = vld [vmem:[%s1] sm:$0xff]
  %v696 = vld [vmem:[%s1 + $0x8] sm:$0xff]
  %v697 = vld [vmem:[%s1 + $0x10] sm:$0xff]
  %v698 = vld [vmem:[%s1 + $0x18] sm:$0xff]
  %v699 = vld [vmem:[%s1 + $0x20] sm:$0xff]
  %v700 = vld [vmem:[%s1 + $0x28] sm:$0xff]
  %v701 = vld [vmem:[%s1 + $0x30] sm:$0xff]
  %v702 = vld [vmem:[%s1 + $0x38] sm:$0xff]
  %v703 = vld [vmem:[%s1 + $0x40] sm:$0xff]
  %v704 = vld [vmem:[%s1 + $0x48] sm:$0xff]
  %v705 = vld [vmem:[%s1 + $0x50] sm:$0xff]
  %v706 = vld [vmem:[%s1 + $0x58] sm:$0xff]
  %v707 = vld [vmem:[%s1 + $0x60] sm:$0xff]
  %v708 = vld [vmem:[%s1 + $0x68] sm:$0xff]
  %v709 = vld [vmem:[%s1 + $0x70] sm:$0xff]
  %v710 = vld [vmem:[%s1 + $0x78] sm:$0xff]
  %v711 = vld [vmem:[%s1 + $0x80] sm:$0xff]
  %v712 = vld [vmem:[%s1 + $0x88] sm:$0xff]
  %v713 = vld [vmem:[%s1 + $0x90] sm:$0xff]
  %v714 = vld [vmem:[%s1 + $0x98] sm:$0xff]
  %v715 = vld [vmem:[%s1 + $0xa0] sm:$0xff]
  %v716 = vld [vmem:[%s1 + $0xa8] sm:$0xff]
  %v717 = vld [vmem:[%s1 + $0xb0] sm:$0xff]
  %v718 = vld [vmem:[%s1 + $0xb8] sm:$0xff]
  %v719 = vld [vmem:[%s1 + $0xc0] sm:$0xff]
  %v720 = vld [vmem:[%s1 + $0xc8] sm:$0xff]
  %v721 = vld [vmem:[%s1 + $0xd0] sm:$0xff]
  %v722 = vld [vmem:[%s1 + $0xd8] sm:$0xff]
  %v723 = vld [vmem:[%s1 + $0xe0] sm:$0xff]
  %v724 = vld [vmem:[%s1 + $0xe8] sm:$0xff]
  %v725 = vld [vmem:[%s1 + $0xf0] sm:$0xff]
  %v726 = vld [vmem:[%s1 + $0xf8] sm:$0xff]
  %v727 = vld [vmem:[%s1 + $0x100] sm:$0xff]
  %v728 = vld [vmem:[%s1 + $0x108] sm:$0xff]
  %v729 = vld [vmem:[%s1 + $0x110] sm:$0xff]
  %v730 = vld [vmem:[%s1 + $0x118] sm:$0xff]
  %v731 = vld [vmem:[%s1 + $0x120] sm:$0xff]
  %v732 = vld [vmem:[%s1 + $0x128] sm:$0xff]
  %v733 = vld [vmem:[%s1 + $0x130] sm:$0xff]
  %v734 = vld [vmem:[%s1 + $0x138] sm:$0xff]
  %v735 = vld [vmem:[%s1 + $0x140] sm:$0xff]
  %v736 = vld [vmem:[%s1 + $0x148] sm:$0xff]
  %v737 = vld [vmem:[%s1 + $0x150] sm:$0xff]
  %v738 = vld [vmem:[%s1 + $0x158] sm:$0xff]
  %v739 = vld [vmem:[%s1 + $0x160] sm:$0xff]
  %v740 = vld [vmem:[%s1 + $0x168] sm:$0xff]
  %v741 = vld [vmem:[%s1 + $0x170] sm:$0xff]
  %v742 = vld [vmem:[%s1 + $0x178] sm:$0xff]
  %v743 = vld [vmem:[#allocation2] sm:$0xff]
  %v744 = vld [vmem:[#allocation2 + $0x8] sm:$0xff]
  %v745 = vld [vmem:[#allocation2 + $0x10] sm:$0xff]
  %v746 = vld [vmem:[#allocation2 + $0x18] sm:$0xff]
  %v747 = vld [vmem:[#allocation2 + $0x20] sm:$0xff]
  %v748 = vld [vmem:[#allocation2 + $0x28] sm:$0xff]
  %v749 = vld [vmem:[#allocation2 + $0x30] sm:$0xff]
  %v750 = vld [vmem:[#allocation2 + $0x38] sm:$0xff]
  %v751 = vld [vmem:[#allocation2 + $0x40] sm:$0xff]
  %v752 = vld [vmem:[#allocation2 + $0x48] sm:$0xff]
  %v753 = vld [vmem:[#allocation2 + $0x50] sm:$0xff]
  %v754 = vld [vmem:[#allocation2 + $0x58] sm:$0xff]
  %v755 = vld [vmem:[#allocation2 + $0x60] sm:$0xff]
  %v756 = vld [vmem:[#allocation2 + $0x68] sm:$0xff]
  %v757 = vld [vmem:[#allocation2 + $0x70] sm:$0xff]
  %v758 = vld [vmem:[#allocation2 + $0x78] sm:$0xff]
  %v759 = vld [vmem:[#allocation2 + $0x80] sm:$0xff]
  %v760 = vld [vmem:[#allocation2 + $0x88] sm:$0xff]
  %v761 = vld [vmem:[#allocation2 + $0x90] sm:$0xff]
  %v762 = vld [vmem:[#allocation2 + $0x98] sm:$0xff]
  %v763 = vld [vmem:[#allocation2 + $0xa0] sm:$0xff]
  %v764 = vld [vmem:[#allocation2 + $0xa8] sm:$0xff]
  %v765 = vld [vmem:[#allocation2 + $0xb0] sm:$0xff]
  %v766 = vld [vmem:[#allocation2 + $0xb8] sm:$0xff]
  %v767 = vld [vmem:[#allocation2 + $0xc0] sm:$0xff]
  %v768 = vld [vmem:[#allocation2 + $0xc8] sm:$0xff]
  %v769 = vld [vmem:[#allocation2 + $0xd0] sm:$0xff]
  %v770 = vld [vmem:[#allocation2 + $0xd8] sm:$0xff]
  %v771 = vld [vmem:[#allocation2 + $0xe0] sm:$0xff]
  %v772 = vld [vmem:[#allocation2 + $0xe8] sm:$0xff]
  %v773 = vld [vmem:[#allocation2 + $0xf0] sm:$0xff]
  %v774 = vld [vmem:[#allocation2 + $0xf8] sm:$0xff]
  %v775 = vld [vmem:[#allocation2 + $0x100] sm:$0xff]
  %v776 = vld [vmem:[#allocation2 + $0x108] sm:$0xff]
  %v777 = vld [vmem:[#allocation2 + $0x110] sm:$0xff]
  %v778 = vld [vmem:[#allocation2 + $0x118] sm:$0xff]
  %v779 = vld [vmem:[#allocation2 + $0x120] sm:$0xff]
  %v780 = vld [vmem:[#allocation2 + $0x128] sm:$0xff]
  %v781 = vld [vmem:[#allocation2 + $0x130] sm:$0xff]
  %v782 = vld [vmem:[#allocation2 + $0x138] sm:$0xff]
  %v783 = vld [vmem:[#allocation2 + $0x140] sm:$0xff]
  %v784 = vld [vmem:[#allocation2 + $0x148] sm:$0xff]
  %v785 = vld [vmem:[#allocation2 + $0x150] sm:$0xff]
  %v786 = vld [vmem:[#allocation2 + $0x158] sm:$0xff]
  %v787 = vld [vmem:[#allocation2 + $0x160] sm:$0xff]
  %v788 = vld [vmem:[#allocation2 + $0x168] sm:$0xff]
  %v789 = vld [vmem:[#allocation2 + $0x170] sm:$0xff]
  %v790 = vld [vmem:[#allocation2 + $0x178] sm:$0xff]
  %v791 = vld [vmem:[#allocation2 + $0x180] sm:$0xff]
  %v792 = vld [vmem:[#allocation2 + $0x188] sm:$0xff]
  %v793 = vld [vmem:[#allocation2 + $0x190] sm:$0xff]
  %v794 = vld [vmem:[#allocation2 + $0x198] sm:$0xff]
  %v795 = vld [vmem:[#allocation2 + $0x1a0] sm:$0xff]
  %v796 = vld [vmem:[#allocation2 + $0x1a8] sm:$0xff]
  %v797 = vld [vmem:[#allocation2 + $0x1b0] sm:$0xff]
  %v798 = vld [vmem:[#allocation2 + $0x1b8] sm:$0xff]
  %v799 = vld [vmem:[#allocation2 + $0x1c0] sm:$0xff]
  %v800 = vld [vmem:[#allocation2 + $0x1c8] sm:$0xff]
  %v801 = vld [vmem:[#allocation2 + $0x1d0] sm:$0xff]
  %v802 = vld [vmem:[#allocation2 + $0x1d8] sm:$0xff]
  %v803 = vld [vmem:[#allocation2 + $0x1e0] sm:$0xff]
  %v804 = vld [vmem:[#allocation2 + $0x1e8] sm:$0xff]
  %v805 = vld [vmem:[#allocation2 + $0x1f0] sm:$0xff]
  %v806 = vld [vmem:[#allocation2 + $0x1f8] sm:$0xff]
  %v807 = vld [vmem:[#allocation2 + $0x200] sm:$0xff]
  %v808 = vld [vmem:[#allocation2 + $0x208] sm:$0xff]
  %v809 = vld [vmem:[#allocation2 + $0x210] sm:$0xff]
  %v810 = vld [vmem:[#allocation2 + $0x218] sm:$0xff]
  %v811 = vld [vmem:[#allocation2 + $0x220] sm:$0xff]
  %v812 = vld [vmem:[#allocation2 + $0x228] sm:$0xff]
  %v813 = vld [vmem:[#allocation2 + $0x230] sm:$0xff]
  %v814 = vld [vmem:[#allocation2 + $0x238] sm:$0xff]
  %v815 = vld [vmem:[#allocation2 + $0x240] sm:$0xff]
  %v816 = vld [vmem:[#allocation2 + $0x248] sm:$0xff]
  %v817 = vld [vmem:[#allocation2 + $0x250] sm:$0xff]
  %v818 = vld [vmem:[#allocation2 + $0x258] sm:$0xff]
  %v819 = vld [vmem:[#allocation2 + $0x260] sm:$0xff]
  %v820 = vld [vmem:[#allocation2 + $0x268] sm:$0xff]
  %v821 = vld [vmem:[#allocation2 + $0x270] sm:$0xff]
  %v822 = vld [vmem:[#allocation2 + $0x278] sm:$0xff]
  %v823 = vld [vmem:[#allocation2 + $0x280] sm:$0xff]
  %v824 = vld [vmem:[#allocation2 + $0x288] sm:$0xff]
  %v825 = vld [vmem:[#allocation2 + $0x290] sm:$0xff]
  %v826 = vld [vmem:[#allocation2 + $0x298] sm:$0xff]
  %v827 = vld [vmem:[#allocation2 + $0x2a0] sm:$0xff]
  %v828 = vld [vmem:[#allocation2 + $0x2a8] sm:$0xff]
  %v829 = vld [vmem:[#allocation2 + $0x2b0] sm:$0xff]
  %v830 = vld [vmem:[#allocation2 + $0x2b8] sm:$0xff]
  %v831 = vld [vmem:[#allocation2 + $0x2c0] sm:$0xff]
  %v832 = vld [vmem:[#allocation2 + $0x2c8] sm:$0xff]
  %v833 = vld [vmem:[#allocation2 + $0x2d0] sm:$0xff]
  %v834 = vld [vmem:[#allocation2 + $0x2d8] sm:$0xff]
  %v835 = vld [vmem:[#allocation2 + $0x2e0] sm:$0xff]
  %v836 = vld [vmem:[#allocation2 + $0x2e8] sm:$0xff]
  %v837 = vld [vmem:[#allocation2 + $0x2f0] sm:$0xff]
  %v838 = vld [vmem:[#allocation2 + $0x2f8] sm:$0xff]
  %v839 = vld [vmem:[#allocation2 + $0x300] sm:$0xff]
  %v840 = vld [vmem:[#allocation2 + $0x308] sm:$0xff]
  %v841 = vld [vmem:[#allocation2 + $0x310] sm:$0xff]
  %v842 = vld [vmem:[#allocation2 + $0x318] sm:$0xff]
  %v843 = vld [vmem:[#allocation2 + $0x320] sm:$0xff]
  %v844 = vld [vmem:[#allocation2 + $0x328] sm:$0xff]
  %v845 = vld [vmem:[#allocation2 + $0x330] sm:$0xff]
  %v846 = vld [vmem:[#allocation2 + $0x338] sm:$0xff]
  %v847 = vld [vmem:[#allocation2 + $0x340] sm:$0xff]
  %v848 = vld [vmem:[#allocation2 + $0x348] sm:$0xff]
  %v849 = vld [vmem:[#allocation2 + $0x350] sm:$0xff]
  %v850 = vld [vmem:[#allocation2 + $0x358] sm:$0xff]
  %v851 = vld [vmem:[#allocation2 + $0x360] sm:$0xff]
  %v852 = vld [vmem:[#allocation2 + $0x368] sm:$0xff]
  %v853 = vld [vmem:[#allocation2 + $0x370] sm:$0xff]
  %v854 = vld [vmem:[#allocation2 + $0x378] sm:$0xff]
  %v855 = vld [vmem:[#allocation2 + $0x380] sm:$0xff]
  %v856 = vld [vmem:[#allocation2 + $0x388] sm:$0xff]
  %v857 = vld [vmem:[#allocation2 + $0x390] sm:$0xff]
  %v858 = vld [vmem:[#allocation2 + $0x398] sm:$0xff]
  %v859 = vld [vmem:[#allocation2 + $0x3a0] sm:$0xff]
  %v860 = vld [vmem:[#allocation2 + $0x3a8] sm:$0xff]
  %v861 = vld [vmem:[#allocation2 + $0x3b0] sm:$0xff]
  %v862 = vld [vmem:[#allocation2 + $0x3b8] sm:$0xff]
  %v864 = vsel %vm574, %v696, 0
  %v867 = vsel %vm574, %v698, 0
  %v870 = vsel %vm574, %v700, 0
  %v873 = vsel %vm574, %v702, 0
  %v876 = vsel %vm574, %v704, 0
  %v879 = vsel %vm574, %v706, 0
  %v882 = vsel %vm574, %v708, 0
  %v885 = vsel %vm574, %v710, 0
  %v888 = vsel %vm574, %v712, 0
  %v891 = vsel %vm574, %v714, 0
  %v894 = vsel %vm574, %v716, 0
  %v897 = vsel %vm574, %v718, 0
  %v900 = vsel %vm574, %v720, 0
  %v903 = vsel %vm574, %v722, 0
  %v906 = vsel %vm574, %v724, 0
  %v909 = vsel %vm574, %v726, 0
  %v912 = vsel %vm574, %v728, 0
  %v915 = vsel %vm574, %v730, 0
  %v918 = vsel %vm574, %v732, 0
  %v921 = vsel %vm574, %v734, 0
  %v924 = vsel %vm574, %v736, 0
  %v927 = vsel %vm574, %v738, 0
  %v930 = vsel %vm574, %v740, 0
  %v933 = vsel %vm574, %v742, 0
  %935 = vmatprep.subr.mxu0 %v744
  %936 = vmatpush1.msra.mxu0 %v743
  %937 = vmatprep.subr.mxu0 %v750
  %938 = vmatpush1.msra.mxu0 %v749
  %939 = vmatprep.subr.mxu0 %v756
  %940 = vmatpush1.msra.mxu0 %v755
  %941 = vmatprep.subr.mxu0 %v762
  %942 = vmatpush1.msra.mxu0 %v761
  %943 = vmatprep.subr.mxu0 %v768
  %944 = vmatpush1.msra.mxu0 %v767
  %945 = vmatprep.subr.mxu0 %v774
  %946 = vmatpush1.msra.mxu0 %v773
  %947 = vmatprep.subr.mxu0 %v780
  %948 = vmatpush1.msra.mxu0 %v779
  %949 = vmatprep.subr.mxu0 %v786
  %950 = vmatpush1.msra.mxu0 %v785
  %951 = vmatprep.subr.mxu0 %v792
  %952 = vmatpush1.msra.mxu0 %v791
  %953 = vmatprep.subr.mxu0 %v798
  %954 = vmatpush1.msra.mxu0 %v797
  %955 = vmatprep.subr.mxu0 %v804
  %956 = vmatpush1.msra.mxu0 %v803
  %957 = vmatprep.subr.mxu0 %v810
  %958 = vmatpush1.msra.mxu0 %v809
  %959 = vmatprep.subr.mxu0 %v816
  %960 = vmatpush1.msra.mxu0 %v815
  %961 = vmatprep.subr.mxu0 %v822
  %962 = vmatpush1.msra.mxu0 %v821
  %963 = vmatprep.subr.mxu0 %v828
  %964 = vmatpush1.msra.mxu0 %v827
  %965 = vmatprep.subr.mxu0 %v834
  %966 = vmatpush1.msra.mxu0 %v833
  %967 = vmatprep.subr.mxu0 %v840
  %968 = vmatpush1.msra.mxu0 %v839
  %969 = vmatprep.subr.mxu0 %v846
  %970 = vmatpush1.msra.mxu0 %v845
  %971 = vmatprep.subr.mxu0 %v852
  %972 = vmatpush1.msra.mxu0 %v851
  %973 = vmatprep.subr.mxu0 %v858
  %974 = vmatpush1.msra.mxu0 %v857
  %975 = vmatprep.subr.mxu0 0.0
  %976 = vmatpush1.msra.mxu0 0.0
  %977 = vmatprep.subr.mxu0 0.0
  %978 = vmatpush1.msra.mxu0 0.0
  %979 = vmatprep.subr.mxu0 0.0
  %980 = vmatpush1.msra.mxu0 0.0
  %981 = vmatprep.subr.mxu0 0.0
  %982 = vmatpush1.msra.mxu0 0.0
  %983 = vmatprep.subr.mxu0 0.0
  %984 = vmatpush1.msra.mxu0 0.0
  %985 = vmatprep.subr.mxu0 0.0
  %986 = vmatpush1.msra.mxu0 0.0
  %987 = vmatprep.subr.mxu0 0.0
  %988 = vmatpush1.msra.mxu0 0.0
  %989 = vmatprep.subr.mxu0 0.0
  %990 = vmatpush1.msra.mxu0 0.0
  %991 = vmatprep.subr.mxu0 0.0
  %992 = vmatpush1.msra.mxu0 0.0
  %993 = vmatprep.subr.mxu0 0.0
  %994 = vmatpush1.msra.mxu0 0.0
  %995 = vmatprep.subr.mxu0 0.0
  %996 = vmatpush1.msra.mxu0 0.0
  %997 = vmatprep.subr.mxu0 0.0
  %998 = vmatpush1.msra.mxu0 0.0
  %999 = vmatprep.mubr.f32.mxu0 %v864
  %1000 = vmatmul.mubr.f32.gmra.mrb[0].mxu0 %v695
  %v1001 = vpop.f32.mrb[0].mxu0
  %v1002 = vadd.f32 0.0, %v1001
  %v1003 = vpop.f32.mrb[0].mxu0
  %v1004 = vadd.f32 0.0, %v1003
  %1005 = vmatprep.mubr.f32.mxu0 %v867
  %1006 = vmatmul.mubr.f32.gmra.mrb[0].mxu0 %v697
  %v1007 = vpop.f32.mrb[0].mxu0
  %v1008 = vadd.f32 0.0, %v1007
  %v1009 = vpop.f32.mrb[0].mxu0
  %v1010 = vadd.f32 0.0, %v1009
  %1011 = vmatprep.mubr.f32.mxu0 %v870
  %1012 = vmatmul.mubr.f32.gmra.mrb[0].mxu0 %v699
  %v1013 = vpop.f32.mrb[0].mxu0
  %v1014 = vadd.f32 0.0, %v1013
  %v1015 = vpop.f32.mrb[0].mxu0
  %v1016 = vadd.f32 0.0, %v1015
  %1017 = vmatprep.mubr.f32.mxu0 %v873
  %1018 = vmatmul.mubr.f32.gmra.mrb[0].mxu0 %v701
  %v1019 = vpop.f32.mrb[0].mxu0
  %v1020 = vadd.f32 0.0, %v1019
  %v1021 = vpop.f32.mrb[0].mxu0
  %v1022 = vadd.f32 0.0, %v1021
  %1023 = vmatprep.mubr.f32.mxu0 %v876
  %1024 = vmatmul.mubr.f32.gmra.mrb[0].mxu0 %v703
  %v1025 = vpop.f32.mrb[0].mxu0
  %v1026 = vadd.f32 0.0, %v1025
  %v1027 = vpop.f32.mrb[0].mxu0
  %v1028 = vadd.f32 0.0, %v1027
  %1029 = vmatprep.mubr.f32.mxu0 %v879
  %1030 = vmatmul.mubr.f32.gmra.mrb[0].mxu0 %v705
  %v1031 = vpop.f32.mrb[0].mxu0
  %v1032 = vadd.f32 0.0, %v1031
  %v1033 = vpop.f32.mrb[0].mxu0
  %v1034 = vadd.f32 0.0, %v1033
  %1035 = vmatprep.mubr.f32.mxu0 %v882
  %1036 = vmatmul.mubr.f32.gmra.mrb[0].mxu0 %v707
  %v1037 = vpop.f32.mrb[0].mxu0
  %v1038 = vadd.f32 0.0, %v1037
  %v1039 = vpop.f32.mrb[0].mxu0
  %v1040 = vadd.f32 0.0, %v1039
  %1041 = vmatprep.mubr.f32.mxu0 %v885
  %1042 = vmatmul.mubr.f32.gmra.mrb[0].mxu0 %v709
  %v1043 = vpop.f32.mrb[0].mxu0
  %v1044 = vadd.f32 0.0, %v1043
  %v1045 = vpop.f32.mrb[0].mxu0
  %v1046 = vadd.f32 0.0, %v1045
  %1047 = vmatprep.mubr.f32.mxu0 %v888
  %1048 = vmatmul.mubr.f32.gmra.mrb[0].mxu0 %v711
  %v1049 = vpop.f32.mrb[0].mxu0
  %v1050 = vadd.f32 0.0, %v1049
  %v1051 = vpop.f32.mrb[0].mxu0
  %v1052 = vadd.f32 0.0, %v1051
  %1053 = vmatprep.mubr.f32.mxu0 %v891
  %1054 = vmatmul.mubr.f32.gmra.mrb[0].mxu0 %v713
  %v1055 = vpop.f32.mrb[0].mxu0
  %v1056 = vadd.f32 0.0, %v1055
  %v1057 = vpop.f32.mrb[0].mxu0
  %v1058 = vadd.f32 0.0, %v1057
  %1059 = vmatprep.mubr.f32.mxu0 %v894
  %1060 = vmatmul.mubr.f32.gmra.mrb[0].mxu0 %v715
  %v1061 = vpop.f32.mrb[0].mxu0
  %v1062 = vadd.f32 0.0, %v1061
  %v1063 = vpop.f32.mrb[0].mxu0
  %v1064 = vadd.f32 0.0, %v1063
  %1065 = vmatprep.mubr.f32.mxu0 %v897
  %1066 = vmatmul.mubr.f32.gmra.mrb[0].mxu0 %v717
  %v1067 = vpop.f32.mrb[0].mxu0
  %v1068 = vadd.f32 0.0, %v1067
  %v1069 = vpop.f32.mrb[0].mxu0
  %v1070 = vadd.f32 0.0, %v1069
  %1071 = vmatprep.mubr.f32.mxu0 %v900
  %1072 = vmatmul.mubr.f32.gmra.mrb[0].mxu0 %v719
  %v1073 = vpop.f32.mrb[0].mxu0
  %v1074 = vadd.f32 0.0, %v1073
  %v1075 = vpop.f32.mrb[0].mxu0
  %v1076 = vadd.f32 0.0, %v1075
  %1077 = vmatprep.mubr.f32.mxu0 %v903
  %1078 = vmatmul.mubr.f32.gmra.mrb[0].mxu0 %v721
  %v1079 = vpop.f32.mrb[0].mxu0
  %v1080 = vadd.f32 0.0, %v1079
  %v1081 = vpop.f32.mrb[0].mxu0
  %v1082 = vadd.f32 0.0, %v1081
  %1083 = vmatprep.mubr.f32.mxu0 %v906
  %1084 = vmatmul.mubr.f32.gmra.mrb[0].mxu0 %v723
  %v1085 = vpop.f32.mrb[0].mxu0
  %v1086 = vadd.f32 0.0, %v1085
  %v1087 = vpop.f32.mrb[0].mxu0
  %v1088 = vadd.f32 0.0, %v1087
  %1089 = vmatprep.mubr.f32.mxu0 %v909
  %1090 = vmatmul.mubr.f32.gmra.mrb[0].mxu0 %v725
  %v1091 = vpop.f32.mrb[0].mxu0
  %v1092 = vadd.f32 0.0, %v1091
  %v1093 = vpop.f32.mrb[0].mxu0
  %v1094 = vadd.f32 0.0, %v1093
  %1095 = vmatprep.mubr.f32.mxu0 %v912
  %1096 = vmatmul.mubr.f32.gmra.mrb[0].mxu0 %v727
  %v1097 = vpop.f32.mrb[0].mxu0
  %v1098 = vadd.f32 0.0, %v1097
  %v1099 = vpop.f32.mrb[0].mxu0
  %v1100 = vadd.f32 0.0, %v1099
  %1101 = vmatprep.mubr.f32.mxu0 %v915
  %1102 = vmatmul.mubr.f32.gmra.mrb[0].mxu0 %v729
  %v1103 = vpop.f32.mrb[0].mxu0
  %v1104 = vadd.f32 0.0, %v1103
  %v1105 = vpop.f32.mrb[0].mxu0
  %v1106 = vadd.f32 0.0, %v1105
  %1107 = vmatprep.mubr.f32.mxu0 %v918
  %1108 = vmatmul.mubr.f32.gmra.mrb[0].mxu0 %v731
  %v1109 = vpop.f32.mrb[0].mxu0
  %v1110 = vadd.f32 0.0, %v1109
  %v1111 = vpop.f32.mrb[0].mxu0
  %v1112 = vadd.f32 0.0, %v1111
  %1113 = vmatprep.mubr.f32.mxu0 %v921
  %1114 = vmatmul.mubr.f32.gmra.mrb[0].mxu0 %v733
  %v1115 = vpop.f32.mrb[0].mxu0
  %v1116 = vadd.f32 0.0, %v1115
  %v1117 = vpop.f32.mrb[0].mxu0
  %v1118 = vadd.f32 0.0, %v1117
  %1119 = vmatprep.mubr.f32.mxu0 %v924
  %1120 = vmatmul.mubr.f32.gmra.mrb[0].mxu0 %v735
  %v1121 = vpop.f32.mrb[0].mxu0
  %v1122 = vadd.f32 0.0, %v1121
  %v1123 = vpop.f32.mrb[0].mxu0
  %v1124 = vadd.f32 0.0, %v1123
  %1125 = vmatprep.mubr.f32.mxu0 %v927
  %1126 = vmatmul.mubr.f32.gmra.mrb[0].mxu0 %v737
  %v1127 = vpop.f32.mrb[0].mxu0
  %v1128 = vadd.f32 0.0, %v1127
  %v1129 = vpop.f32.mrb[0].mxu0
  %v1130 = vadd.f32 0.0, %v1129
  %1131 = vmatprep.mubr.f32.mxu0 %v930
  %1132 = vmatmul.mubr.f32.gmra.mrb[0].mxu0 %v739
  %v1133 = vpop.f32.mrb[0].mxu0
  %v1134 = vadd.f32 0.0, %v1133
  %v1135 = vpop.f32.mrb[0].mxu0
  %v1136 = vadd.f32 0.0, %v1135
  %1137 = vmatprep.mubr.f32.mxu0 %v933
  %1138 = vmatmul.mubr.f32.gmra.mrb[0].mxu0 %v741
  %v1139 = vpop.f32.mrb[0].mxu0
  %v1140 = vadd.f32 0.0, %v1139
  %v1141 = vpop.f32.mrb[0].mxu0
  %v1142 = vadd.f32 0.0, %v1141
  %1143 = vdwg.mxu0
  %1144 = vmatprep.subr.mxu0 %v746
  %1145 = vmatpush1.msra.mxu0 %v745
  %1146 = vmatprep.subr.mxu0 %v752
  %1147 = vmatpush1.msra.mxu0 %v751
  %1148 = vmatprep.subr.mxu0 %v758
  %1149 = vmatpush1.msra.mxu0 %v757
  %1150 = vmatprep.subr.mxu0 %v764
  %1151 = vmatpush1.msra.mxu0 %v763
  %1152 = vmatprep.subr.mxu0 %v770
  %1153 = vmatpush1.msra.mxu0 %v769
  %1154 = vmatprep.subr.mxu0 %v776
  %1155 = vmatpush1.msra.mxu0 %v775
  %1156 = vmatprep.subr.mxu0 %v782
  %1157 = vmatpush1.msra.mxu0 %v781
  %1158 = vmatprep.subr.mxu0 %v788
  %1159 = vmatpush1.msra.mxu0 %v787
  %1160 = vmatprep.subr.mxu0 %v794
  %1161 = vmatpush1.msra.mxu0 %v793
  %1162 = vmatprep.subr.mxu0 %v800
  %1163 = vmatpush1.msra.mxu0 %v799
  %1164 = vmatprep.subr.mxu0 %v806
  %1165 = vmatpush1.msra.mxu0 %v805
  %1166 = vmatprep.subr.mxu0 %v812
  %1167 = vmatpush1.msra.mxu0 %v811
  %1168 = vmatprep.subr.mxu0 %v818
  %1169 = vmatpush1.msra.mxu0 %v817
  %1170 = vmatprep.subr.mxu0 %v824
  %1171 = vmatpush1.msra.mxu0 %v823
  %1172 = vmatprep.subr.mxu0 %v830
  %1173 = vmatpush1.msra.mxu0 %v829
  %1174 = vmatprep.subr.mxu0 %v836
  %1175 = vmatpush1.msra.mxu0 %v835
  %1176 = vmatprep.subr.mxu0 %v842
  %1177 = vmatpush1.msra.mxu0 %v841
  %1178 = vmatprep.subr.mxu0 %v848
  %1179 = vmatpush1.msra.mxu0 %v847
  %1180 = vmatprep.subr.mxu0 %v854
  %1181 = vmatpush1.msra.mxu0 %v853
  %1182 = vmatprep.subr.mxu0 %v860
  %1183 = vmatpush1.msra.mxu0 %v859
  %1184 = vmatprep.subr.mxu0 0.0
  %1185 = vmatpush1.msra.mxu0 0.0
  %1186 = vmatprep.subr.mxu0 0.0
  %1187 = vmatpush1.msra.mxu0 0.0
  %1188 = vmatprep.subr.mxu0 0.0
  %1189 = vmatpush1.msra.mxu0 0.0
  %1190 = vmatprep.subr.mxu0 0.0
  %1191 = vmatpush1.msra.mxu0 0.0
  %1192 = vmatprep.subr.mxu0 0.0
  %1193 = vmatpush1.msra.mxu0 0.0
  %1194 = vmatprep.subr.mxu0 0.0
  %1195 = vmatpush1.msra.mxu0 0.0
  %1196 = vmatprep.subr.mxu0 0.0
  %1197 = vmatpush1.msra.mxu0 0.0
  %1198 = vmatprep.subr.mxu0 0.0
  %1199 = vmatpush1.msra.mxu0 0.0
  %1200 = vmatprep.subr.mxu0 0.0
  %1201 = vmatpush1.msra.mxu0 0.0
  %1202 = vmatprep.subr.mxu0 0.0
  %1203 = vmatpush1.msra.mxu0 0.0
  %1204 = vmatprep.subr.mxu0 0.0
  %1205 = vmatpush1.msra.mxu0 0.0
  %1206 = vmatprep.subr.mxu0 0.0
  %1207 = vmatpush1.msra.mxu0 0.0
  %1208 = vmatprep.mubr.f32.mxu0 %v864
  %1209 = vmatmul.mubr.f32.gmra.mrb[0].mxu0 %v695
  %v1210 = vpop.f32.mrb[0].mxu0
  %v1211 = vadd.f32 0.0, %v1210
  %v1212 = vpop.f32.mrb[0].mxu0
  %v1213 = vadd.f32 0.0, %v1212
  %1214 = vmatprep.mubr.f32.mxu0 %v867
  %1215 = vmatmul.mubr.f32.gmra.mrb[0].mxu0 %v697
  %v1216 = vpop.f32.mrb[0].mxu0
  %v1217 = vadd.f32 0.0, %v1216
  %v1218 = vpop.f32.mrb[0].mxu0
  %v1219 = vadd.f32 0.0, %v1218
  %1220 = vmatprep.mubr.f32.mxu0 %v870
  %1221 = vmatmul.mubr.f32.gmra.mrb[0].mxu0 %v699
  %v1222 = vpop.f32.mrb[0].mxu0
  %v1223 = vadd.f32 0.0, %v1222
  %v1224 = vpop.f32.mrb[0].mxu0
  %v1225 = vadd.f32 0.0, %v1224
  %1226 = vmatprep.mubr.f32.mxu0 %v873
  %1227 = vmatmul.mubr.f32.gmra.mrb[0].mxu0 %v701
  %v1228 = vpop.f32.mrb[0].mxu0
  %v1229 = vadd.f32 0.0, %v1228
  %v1230 = vpop.f32.mrb[0].mxu0
  %v1231 = vadd.f32 0.0, %v1230
  %1232 = vmatprep.mubr.f32.mxu0 %v876
  %1233 = vmatmul.mubr.f32.gmra.mrb[0].mxu0 %v703
  %v1234 = vpop.f32.mrb[0].mxu0
  %v1235 = vadd.f32 0.0, %v1234
  %v1236 = vpop.f32.mrb[0].mxu0
  %v1237 = vadd.f32 0.0, %v1236
  %1238 = vmatprep.mubr.f32.mxu0 %v879
  %1239 = vmatmul.mubr.f32.gmra.mrb[0].mxu0 %v705
  %v1240 = vpop.f32.mrb[0].mxu0
  %v1241 = vadd.f32 0.0, %v1240
  %v1242 = vpop.f32.mrb[0].mxu0
  %v1243 = vadd.f32 0.0, %v1242
  %1244 = vmatprep.mubr.f32.mxu0 %v882
  %1245 = vmatmul.mubr.f32.gmra.mrb[0].mxu0 %v707
  %v1246 = vpop.f32.mrb[0].mxu0
  %v1247 = vadd.f32 0.0, %v1246
  %v1248 = vpop.f32.mrb[0].mxu0
  %v1249 = vadd.f32 0.0, %v1248
  %1250 = vmatprep.mubr.f32.mxu0 %v885
  %1251 = vmatmul.mubr.f32.gmra.mrb[0].mxu0 %v709
  %v1252 = vpop.f32.mrb[0].mxu0
  %v1253 = vadd.f32 0.0, %v1252
  %v1254 = vpop.f32.mrb[0].mxu0
  %v1255 = vadd.f32 0.0, %v1254
  %1256 = vmatprep.mubr.f32.mxu0 %v888
  %1257 = vmatmul.mubr.f32.gmra.mrb[0].mxu0 %v711
  %v1258 = vpop.f32.mrb[0].mxu0
  %v1259 = vadd.f32 0.0, %v1258
  %v1260 = vpop.f32.mrb[0].mxu0
  %v1261 = vadd.f32 0.0, %v1260
  %1262 = vmatprep.mubr.f32.mxu0 %v891
  %1263 = vmatmul.mubr.f32.gmra.mrb[0].mxu0 %v713
  %v1264 = vpop.f32.mrb[0].mxu0
  %v1265 = vadd.f32 0.0, %v1264
  %v1266 = vpop.f32.mrb[0].mxu0
  %v1267 = vadd.f32 0.0, %v1266
  %1268 = vmatprep.mubr.f32.mxu0 %v894
  %1269 = vmatmul.mubr.f32.gmra.mrb[0].mxu0 %v715
  %v1270 = vpop.f32.mrb[0].mxu0
  %v1271 = vadd.f32 0.0, %v1270
  %v1272 = vpop.f32.mrb[0].mxu0
  %v1273 = vadd.f32 0.0, %v1272
  %1274 = vmatprep.mubr.f32.mxu0 %v897
  %1275 = vmatmul.mubr.f32.gmra.mrb[0].mxu0 %v717
  %v1276 = vpop.f32.mrb[0].mxu0
  %v1277 = vadd.f32 0.0, %v1276
  %v1278 = vpop.f32.mrb[0].mxu0
  %v1279 = vadd.f32 0.0, %v1278
  %1280 = vmatprep.mubr.f32.mxu0 %v900
  %1281 = vmatmul.mubr.f32.gmra.mrb[0].mxu0 %v719
  %v1282 = vpop.f32.mrb[0].mxu0
  %v1283 = vadd.f32 0.0, %v1282
  %v1284 = vpop.f32.mrb[0].mxu0
  %v1285 = vadd.f32 0.0, %v1284
  %1286 = vmatprep.mubr.f32.mxu0 %v903
  %1287 = vmatmul.mubr.f32.gmra.mrb[0].mxu0 %v721
  %v1288 = vpop.f32.mrb[0].mxu0
  %v1289 = vadd.f32 0.0, %v1288
  %v1290 = vpop.f32.mrb[0].mxu0
  %v1291 = vadd.f32 0.0, %v1290
  %1292 = vmatprep.mubr.f32.mxu0 %v906
  %1293 = vmatmul.mubr.f32.gmra.mrb[0].mxu0 %v723
  %v1294 = vpop.f32.mrb[0].mxu0
  %v1295 = vadd.f32 0.0, %v1294
  %v1296 = vpop.f32.mrb[0].mxu0
  %v1297 = vadd.f32 0.0, %v1296
  %1298 = vmatprep.mubr.f32.mxu0 %v909
  %1299 = vmatmul.mubr.f32.gmra.mrb[0].mxu0 %v725
  %v1300 = vpop.f32.mrb[0].mxu0
  %v1301 = vadd.f32 0.0, %v1300
  %v1302 = vpop.f32.mrb[0].mxu0
  %v1303 = vadd.f32 0.0, %v1302
  %1304 = vmatprep.mubr.f32.mxu0 %v912
  %1305 = vmatmul.mubr.f32.gmra.mrb[0].mxu0 %v727
  %v1306 = vpop.f32.mrb[0].mxu0
  %v1307 = vadd.f32 0.0, %v1306
  %v1308 = vpop.f32.mrb[0].mxu0
  %v1309 = vadd.f32 0.0, %v1308
  %1310 = vmatprep.mubr.f32.mxu0 %v915
  %1311 = vmatmul.mubr.f32.gmra.mrb[0].mxu0 %v729
  %v1312 = vpop.f32.mrb[0].mxu0
  %v1313 = vadd.f32 0.0, %v1312
  %v1314 = vpop.f32.mrb[0].mxu0
  %v1315 = vadd.f32 0.0, %v1314
  %1316 = vmatprep.mubr.f32.mxu0 %v918
  %1317 = vmatmul.mubr.f32.gmra.mrb[0].mxu0 %v731
  %v1318 = vpop.f32.mrb[0].mxu0
  %v1319 = vadd.f32 0.0, %v1318
  %v1320 = vpop.f32.mrb[0].mxu0
  %v1321 = vadd.f32 0.0, %v1320
  %1322 = vmatprep.mubr.f32.mxu0 %v921
  %1323 = vmatmul.mubr.f32.gmra.mrb[0].mxu0 %v733
  %v1324 = vpop.f32.mrb[0].mxu0
  %v1325 = vadd.f32 0.0, %v1324
  %v1326 = vpop.f32.mrb[0].mxu0
  %v1327 = vadd.f32 0.0, %v1326
  %1328 = vmatprep.mubr.f32.mxu0 %v924
  %1329 = vmatmul.mubr.f32.gmra.mrb[0].mxu0 %v735
  %v1330 = vpop.f32.mrb[0].mxu0
  %v1331 = vadd.f32 0.0, %v1330
  %v1332 = vpop.f32.mrb[0].mxu0
  %v1333 = vadd.f32 0.0, %v1332
  %1334 = vmatprep.mubr.f32.mxu0 %v927
  %1335 = vmatmul.mubr.f32.gmra.mrb[0].mxu0 %v737
  %v1336 = vpop.f32.mrb[0].mxu0
  %v1337 = vadd.f32 0.0, %v1336
  %v1338 = vpop.f32.mrb[0].mxu0
  %v1339 = vadd.f32 0.0, %v1338
  %1340 = vmatprep.mubr.f32.mxu0 %v930
  %1341 = vmatmul.mubr.f32.gmra.mrb[0].mxu0 %v739
  %v1342 = vpop.f32.mrb[0].mxu0
  %v1343 = vadd.f32 0.0, %v1342
  %v1344 = vpop.f32.mrb[0].mxu0
  %v1345 = vadd.f32 0.0, %v1344
  %1346 = vmatprep.mubr.f32.mxu0 %v933
  %1347 = vmatmul.mubr.f32.gmra.mrb[0].mxu0 %v741
  %v1348 = vpop.f32.mrb[0].mxu0
  %v1349 = vadd.f32 0.0, %v1348
  %v1350 = vpop.f32.mrb[0].mxu0
  %v1351 = vadd.f32 0.0, %v1350
  %1352 = vdwg.mxu0
  %1353 = vmatprep.subr.mxu0 %v748
  %1354 = vmatpush1.msra.mxu0 %v747
  %1355 = vmatprep.subr.mxu0 %v754
  %1356 = vmatpush1.msra.mxu0 %v753
  %1357 = vmatprep.subr.mxu0 %v760
  %1358 = vmatpush1.msra.mxu0 %v759
  %1359 = vmatprep.subr.mxu0 %v766
  %1360 = vmatpush1.msra.mxu0 %v765
  %1361 = vmatprep.subr.mxu0 %v772
  %1362 = vmatpush1.msra.mxu0 %v771
  %1363 = vmatprep.subr.mxu0 %v778
  %1364 = vmatpush1.msra.mxu0 %v777
  %1365 = vmatprep.subr.mxu0 %v784
  %1366 = vmatpush1.msra.mxu0 %v783
  %1367 = vmatprep.subr.mxu0 %v790
  %1368 = vmatpush1.msra.mxu0 %v789
  %1369 = vmatprep.subr.mxu0 %v796
  %1370 = vmatpush1.msra.mxu0 %v795
  %1371 = vmatprep.subr.mxu0 %v802
  %1372 = vmatpush1.msra.mxu0 %v801
  %1373 = vmatprep.subr.mxu0 %v808
  %1374 = vmatpush1.msra.mxu0 %v807
  %1375 = vmatprep.subr.mxu0 %v814
  %1376 = vmatpush1.msra.mxu0 %v813
  %1377 = vmatprep.subr.mxu0 %v820
  %1378 = vmatpush1.msra.mxu0 %v819
  %1379 = vmatprep.subr.mxu0 %v826
  %1380 = vmatpush1.msra.mxu0 %v825
  %1381 = vmatprep.subr.mxu0 %v832
  %1382 = vmatpush1.msra.mxu0 %v831
  %1383 = vmatprep.subr.mxu0 %v838
  %1384 = vmatpush1.msra.mxu0 %v837
  %1385 = vmatprep.subr.mxu0 %v844
  %1386 = vmatpush1.msra.mxu0 %v843
  %1387 = vmatprep.subr.mxu0 %v850
  %1388 = vmatpush1.msra.mxu0 %v849
  %1389 = vmatprep.subr.mxu0 %v856
  %1390 = vmatpush1.msra.mxu0 %v855
  %1391 = vmatprep.subr.mxu0 %v862
  %1392 = vmatpush1.msra.mxu0 %v861
  %1393 = vmatprep.subr.mxu0 0.0
  %1394 = vmatpush1.msra.mxu0 0.0
  %1395 = vmatprep.subr.mxu0 0.0
  %1396 = vmatpush1.msra.mxu0 0.0
  %1397 = vmatprep.subr.mxu0 0.0
  %1398 = vmatpush1.msra.mxu0 0.0
  %1399 = vmatprep.subr.mxu0 0.0
  %1400 = vmatpush1.msra.mxu0 0.0
  %1401 = vmatprep.subr.mxu0 0.0
  %1402 = vmatpush1.msra.mxu0 0.0
  %1403 = vmatprep.subr.mxu0 0.0
  %1404 = vmatpush1.msra.mxu0 0.0
  %1405 = vmatprep.subr.mxu0 0.0
  %1406 = vmatpush1.msra.mxu0 0.0
  %1407 = vmatprep.subr.mxu0 0.0
  %1408 = vmatpush1.msra.mxu0 0.0
  %1409 = vmatprep.subr.mxu0 0.0
  %1410 = vmatpush1.msra.mxu0 0.0
  %1411 = vmatprep.subr.mxu0 0.0
  %1412 = vmatpush1.msra.mxu0 0.0
  %1413 = vmatprep.subr.mxu0 0.0
  %1414 = vmatpush1.msra.mxu0 0.0
  %1415 = vmatprep.subr.mxu0 0.0
  %1416 = vmatpush1.msra.mxu0 0.0
  %1417 = vmatprep.mubr.f32.mxu0 %v864
  %1418 = vmatmul.mubr.f32.gmra.mrb[0].mxu0 %v695
  %v1419 = vpop.f32.mrb[0].mxu0
  %v1420 = vadd.f32 0.0, %v1419
  %v1421 = vpop.f32.mrb[0].mxu0
  %v1422 = vadd.f32 0.0, %v1421
  %1423 = vmatprep.mubr.f32.mxu0 %v867
  %1424 = vmatmul.mubr.f32.gmra.mrb[0].mxu0 %v697
  %v1425 = vpop.f32.mrb[0].mxu0
  %v1426 = vadd.f32 0.0, %v1425
  %v1427 = vpop.f32.mrb[0].mxu0
  %v1428 = vadd.f32 0.0, %v1427
  %1429 = vmatprep.mubr.f32.mxu0 %v870
  %1430 = vmatmul.mubr.f32.gmra.mrb[0].mxu0 %v699
  %v1431 = vpop.f32.mrb[0].mxu0
  %v1432 = vadd.f32 0.0, %v1431
  %v1433 = vpop.f32.mrb[0].mxu0
  %v1434 = vadd.f32 0.0, %v1433
  %1435 = vmatprep.mubr.f32.mxu0 %v873
  %1436 = vmatmul.mubr.f32.gmra.mrb[0].mxu0 %v701
  %v1437 = vpop.f32.mrb[0].mxu0
  %v1438 = vadd.f32 0.0, %v1437
  %v1439 = vpop.f32.mrb[0].mxu0
  %v1440 = vadd.f32 0.0, %v1439
  %1441 = vmatprep.mubr.f32.mxu0 %v876
  %1442 = vmatmul.mubr.f32.gmra.mrb[0].mxu0 %v703
  %v1443 = vpop.f32.mrb[0].mxu0
  %v1444 = vadd.f32 0.0, %v1443
  %v1445 = vpop.f32.mrb[0].mxu0
  %v1446 = vadd.f32 0.0, %v1445
  %1447 = vmatprep.mubr.f32.mxu0 %v879
  %1448 = vmatmul.mubr.f32.gmra.mrb[0].mxu0 %v705
  %v1449 = vpop.f32.mrb[0].mxu0
  %v1450 = vadd.f32 0.0, %v1449
  %v1451 = vpop.f32.mrb[0].mxu0
  %v1452 = vadd.f32 0.0, %v1451
  %1453 = vmatprep.mubr.f32.mxu0 %v882
  %1454 = vmatmul.mubr.f32.gmra.mrb[0].mxu0 %v707
  %v1455 = vpop.f32.mrb[0].mxu0
  %v1456 = vadd.f32 0.0, %v1455
  %v1457 = vpop.f32.mrb[0].mxu0
  %v1458 = vadd.f32 0.0, %v1457
  %1459 = vmatprep.mubr.f32.mxu0 %v885
  %1460 = vmatmul.mubr.f32.gmra.mrb[0].mxu0 %v709
  %v1461 = vpop.f32.mrb[0].mxu0
  %v1462 = vadd.f32 0.0, %v1461
  %v1463 = vpop.f32.mrb[0].mxu0
  %v1464 = vadd.f32 0.0, %v1463
  %1465 = vmatprep.mubr.f32.mxu0 %v888
  %1466 = vmatmul.mubr.f32.gmra.mrb[0].mxu0 %v711
  %v1467 = vpop.f32.mrb[0].mxu0
  %v1468 = vadd.f32 0.0, %v1467
  %v1469 = vpop.f32.mrb[0].mxu0
  %v1470 = vadd.f32 0.0, %v1469
  %1471 = vmatprep.mubr.f32.mxu0 %v891
  %1472 = vmatmul.mubr.f32.gmra.mrb[0].mxu0 %v713
  %v1473 = vpop.f32.mrb[0].mxu0
  %v1474 = vadd.f32 0.0, %v1473
  %v1475 = vpop.f32.mrb[0].mxu0
  %v1476 = vadd.f32 0.0, %v1475
  %1477 = vmatprep.mubr.f32.mxu0 %v894
  %1478 = vmatmul.mubr.f32.gmra.mrb[0].mxu0 %v715
  %v1479 = vpop.f32.mrb[0].mxu0
  %v1480 = vadd.f32 0.0, %v1479
  %v1481 = vpop.f32.mrb[0].mxu0
  %v1482 = vadd.f32 0.0, %v1481
  %1483 = vmatprep.mubr.f32.mxu0 %v897
  %1484 = vmatmul.mubr.f32.gmra.mrb[0].mxu0 %v717
  %v1485 = vpop.f32.mrb[0].mxu0
  %v1486 = vadd.f32 0.0, %v1485
  %v1487 = vpop.f32.mrb[0].mxu0
  %v1488 = vadd.f32 0.0, %v1487
  %1489 = vmatprep.mubr.f32.mxu0 %v900
  %1490 = vmatmul.mubr.f32.gmra.mrb[0].mxu0 %v719
  %v1491 = vpop.f32.mrb[0].mxu0
  %v1492 = vadd.f32 0.0, %v1491
  %v1493 = vpop.f32.mrb[0].mxu0
  %v1494 = vadd.f32 0.0, %v1493
  %1495 = vmatprep.mubr.f32.mxu0 %v903
  %1496 = vmatmul.mubr.f32.gmra.mrb[0].mxu0 %v721
  %v1497 = vpop.f32.mrb[0].mxu0
  %v1498 = vadd.f32 0.0, %v1497
  %v1499 = vpop.f32.mrb[0].mxu0
  %v1500 = vadd.f32 0.0, %v1499
  %1501 = vmatprep.mubr.f32.mxu0 %v906
  %1502 = vmatmul.mubr.f32.gmra.mrb[0].mxu0 %v723
  %v1503 = vpop.f32.mrb[0].mxu0
  %v1504 = vadd.f32 0.0, %v1503
  %v1505 = vpop.f32.mrb[0].mxu0
  %v1506 = vadd.f32 0.0, %v1505
  %1507 = vmatprep.mubr.f32.mxu0 %v909
  %1508 = vmatmul.mubr.f32.gmra.mrb[0].mxu0 %v725
  %v1509 = vpop.f32.mrb[0].mxu0
  %v1510 = vadd.f32 0.0, %v1509
  %v1511 = vpop.f32.mrb[0].mxu0
  %v1512 = vadd.f32 0.0, %v1511
  %1513 = vmatprep.mubr.f32.mxu0 %v912
  %1514 = vmatmul.mubr.f32.gmra.mrb[0].mxu0 %v727
  %v1515 = vpop.f32.mrb[0].mxu0
  %v1516 = vadd.f32 0.0, %v1515
  %v1517 = vpop.f32.mrb[0].mxu0
  %v1518 = vadd.f32 0.0, %v1517
  %1519 = vmatprep.mubr.f32.mxu0 %v915
  %1520 = vmatmul.mubr.f32.gmra.mrb[0].mxu0 %v729
  %v1521 = vpop.f32.mrb[0].mxu0
  %v1522 = vadd.f32 0.0, %v1521
  %v1523 = vpop.f32.mrb[0].mxu0
  %v1524 = vadd.f32 0.0, %v1523
  %1525 = vmatprep.mubr.f32.mxu0 %v918
  %1526 = vmatmul.mubr.f32.gmra.mrb[0].mxu0 %v731
  %v1527 = vpop.f32.mrb[0].mxu0
  %v1528 = vadd.f32 0.0, %v1527
  %v1529 = vpop.f32.mrb[0].mxu0
  %v1530 = vadd.f32 0.0, %v1529
  %1531 = vmatprep.mubr.f32.mxu0 %v921
  %1532 = vmatmul.mubr.f32.gmra.mrb[0].mxu0 %v733
  %v1533 = vpop.f32.mrb[0].mxu0
  %v1534 = vadd.f32 0.0, %v1533
  %v1535 = vpop.f32.mrb[0].mxu0
  %v1536 = vadd.f32 0.0, %v1535
  %1537 = vmatprep.mubr.f32.mxu0 %v924
  %1538 = vmatmul.mubr.f32.gmra.mrb[0].mxu0 %v735
  %v1539 = vpop.f32.mrb[0].mxu0
  %v1540 = vadd.f32 0.0, %v1539
  %v1541 = vpop.f32.mrb[0].mxu0
  %v1542 = vadd.f32 0.0, %v1541
  %1543 = vmatprep.mubr.f32.mxu0 %v927
  %1544 = vmatmul.mubr.f32.gmra.mrb[0].mxu0 %v737
  %v1545 = vpop.f32.mrb[0].mxu0
  %v1546 = vadd.f32 0.0, %v1545
  %v1547 = vpop.f32.mrb[0].mxu0
  %v1548 = vadd.f32 0.0, %v1547
  %1549 = vmatprep.mubr.f32.mxu0 %v930
  %1550 = vmatmul.mubr.f32.gmra.mrb[0].mxu0 %v739
  %v1551 = vpop.f32.mrb[0].mxu0
  %v1552 = vadd.f32 0.0, %v1551
  %v1553 = vpop.f32.mrb[0].mxu0
  %v1554 = vadd.f32 0.0, %v1553
  %1555 = vmatprep.mubr.f32.mxu0 %v933
  %1556 = vmatmul.mubr.f32.gmra.mrb[0].mxu0 %v741
  %v1557 = vpop.f32.mrb[0].mxu0
  %v1558 = vadd.f32 0.0, %v1557
  %v1559 = vpop.f32.mrb[0].mxu0
  %v1560 = vadd.f32 0.0, %v1559
  %1561 = vdwg.mxu0
  %v1562 = vmax.f32 %v1002, %v1074
  %v1563 = vmax.f32 %v1004, %v1076
  %v1564 = vmax.f32 %v1211, %v1283
  %v1565 = vmax.f32 %v1213, %v1285
  %v1566 = vmax.f32 %v1420, %v1492
  %v1567 = vmax.f32 %v1422, %v1494
  %v1568 = vmax.f32 %v1008, %v1080
  %v1569 = vmax.f32 %v1010, %v1082
  %v1570 = vmax.f32 %v1217, %v1289
  %v1571 = vmax.f32 %v1219, %v1291
  %v1572 = vmax.f32 %v1426, %v1498
  %v1573 = vmax.f32 %v1428, %v1500
  %v1574 = vmax.f32 %v1014, %v1086
  %v1575 = vmax.f32 %v1016, %v1088
  %v1576 = vmax.f32 %v1223, %v1295
  %v1577 = vmax.f32 %v1225, %v1297
  %v1578 = vmax.f32 %v1432, %v1504
  %v1579 = vmax.f32 %v1434, %v1506
  %v1580 = vmax.f32 %v1020, %v1092
  %v1581 = vmax.f32 %v1022, %v1094
  %v1582 = vmax.f32 %v1229, %v1301
  %v1583 = vmax.f32 %v1231, %v1303
  %v1584 = vmax.f32 %v1438, %v1510
  %v1585 = vmax.f32 %v1440, %v1512
  %v1586 = vmax.f32 %v1026, %v1098
  %v1587 = vmax.f32 %v1028, %v1100
  %v1588 = vmax.f32 %v1235, %v1307
  %v1589 = vmax.f32 %v1237, %v1309
  %v1590 = vmax.f32 %v1444, %v1516
  %v1591 = vmax.f32 %v1446, %v1518
  %v1592 = vmax.f32 %v1032, %v1104
  %v1593 = vmax.f32 %v1034, %v1106
  %v1594 = vmax.f32 %v1241, %v1313
  %v1595 = vmax.f32 %v1243, %v1315
  %v1596 = vmax.f32 %v1450, %v1522
  %v1597 = vmax.f32 %v1452, %v1524
  %v1598 = vmax.f32 %v1038, %v1110
  %v1599 = vmax.f32 %v1040, %v1112
  %v1600 = vmax.f32 %v1247, %v1319
  %v1601 = vmax.f32 %v1249, %v1321
  %v1602 = vmax.f32 %v1456, %v1528
  %v1603 = vmax.f32 %v1458, %v1530
  %v1604 = vmax.f32 %v1044, %v1116
  %v1605 = vmax.f32 %v1046, %v1118
  %v1606 = vmax.f32 %v1253, %v1325
  %v1607 = vmax.f32 %v1255, %v1327
  %v1608 = vmax.f32 %v1462, %v1534
  %v1609 = vmax.f32 %v1464, %v1536
  %v1610 = vmax.f32 %v1050, %v1122
  %v1611 = vmax.f32 %v1052, %v1124
  %v1612 = vmax.f32 %v1259, %v1331
  %v1613 = vmax.f32 %v1261, %v1333
  %v1614 = vmax.f32 %v1468, %v1540
  %v1615 = vmax.f32 %v1470, %v1542
  %v1616 = vmax.f32 %v1056, %v1128
  %v1617 = vmax.f32 %v1058, %v1130
  %v1618 = vmax.f32 %v1265, %v1337
  %v1619 = vmax.f32 %v1267, %v1339
  %v1620 = vmax.f32 %v1474, %v1546
  %v1621 = vmax.f32 %v1476, %v1548
  %v1622 = vmax.f32 %v1062, %v1134
  %v1623 = vmax.f32 %v1064, %v1136
  %v1624 = vmax.f32 %v1271, %v1343
  %v1625 = vmax.f32 %v1273, %v1345
  %v1626 = vmax.f32 %v1480, %v1552
  %v1627 = vmax.f32 %v1482, %v1554
  %v1628 = vmax.f32 %v1068, %v1140
  %v1629 = vmax.f32 %v1070, %v1142
  %v1630 = vmax.f32 %v1277, %v1349
  %v1631 = vmax.f32 %v1279, %v1351
  %v1632 = vmax.f32 %v1486, %v1558
  %v1633 = vmax.f32 %v1488, %v1560
  %v1634 = vld [vmem:[%s2] sm:$0xff]
  %v1635 = vld [vmem:[%s2 + $0x8] sm:$0xff]
  %v1636 = vld [vmem:[%s2 + $0x10] sm:$0xff]
  %v1637 = vld [vmem:[%s2 + $0x18] sm:$0xff]
  %v1638 = vld [vmem:[%s2 + $0x20] sm:$0xff]
  %v1639 = vld [vmem:[%s2 + $0x28] sm:$0xff]
  %v1640 = vld [vmem:[%s2 + $0x30] sm:$0xff]
  %v1641 = vld [vmem:[%s2 + $0x38] sm:$0xff]
  %v1642 = vld [vmem:[%s2 + $0x40] sm:$0xff]
  %v1643 = vld [vmem:[%s2 + $0x48] sm:$0xff]
  %v1644 = vld [vmem:[%s2 + $0x50] sm:$0xff]
  %v1645 = vld [vmem:[%s2 + $0x58] sm:$0xff]
  %1647 = vset.pattern.permute.xlu0 0
  %1648 = vperm.xlu0 %1647, %v1634
  %v1649 = vpop.permute.xlu0 %1648
  %1652 = vset.pattern.permute.xlu0 0
  %1653 = vperm.xlu0 %1652, %v1635
  %v1654 = vpop.permute.xlu0 %1653
  %1657 = vset.pattern.permute.xlu0 0
  %1658 = vperm.xlu0 %1657, %v1636
  %v1659 = vpop.permute.xlu0 %1658
  %1662 = vset.pattern.permute.xlu0 0
  %1663 = vperm.xlu0 %1662, %v1637
  %v1664 = vpop.permute.xlu0 %1663
  %1667 = vset.pattern.permute.xlu0 0
  %1668 = vperm.xlu0 %1667, %v1638
  %v1669 = vpop.permute.xlu0 %1668
  %1672 = vset.pattern.permute.xlu0 0
  %1673 = vperm.xlu0 %1672, %v1639
  %v1674 = vpop.permute.xlu0 %1673
  %1677 = vset.pattern.permute.xlu0 0
  %1678 = vperm.xlu0 %1677, %v1640
  %v1679 = vpop.permute.xlu0 %1678
  %1682 = vset.pattern.permute.xlu0 0
  %1683 = vperm.xlu0 %1682, %v1641
  %v1684 = vpop.permute.xlu0 %1683
  %1687 = vset.pattern.permute.xlu0 0
  %1688 = vperm.xlu0 %1687, %v1642
  %v1689 = vpop.permute.xlu0 %1688
  %1692 = vset.pattern.permute.xlu0 0
  %1693 = vperm.xlu0 %1692, %v1643
  %v1694 = vpop.permute.xlu0 %1693
  %1697 = vset.pattern.permute.xlu0 0
  %1698 = vperm.xlu0 %1697, %v1644
  %v1699 = vpop.permute.xlu0 %1698
  %1702 = vset.pattern.permute.xlu0 0
  %1703 = vperm.xlu0 %1702, %v1645
  %v1704 = vpop.permute.xlu0 %1703
  %v1706 = vadd.f32 %v1562, %v1649
  %v1707 = vadd.f32 %v1563, %v1649
  %v1708 = vadd.f32 %v1564, %v1649
  %v1709 = vadd.f32 %v1565, %v1649
  %v1710 = vadd.f32 %v1566, %v1649
  %v1711 = vadd.f32 %v1567, %v1649
  %v1712 = vadd.f32 %v1568, %v1654
  %v1713 = vadd.f32 %v1569, %v1654
  %v1714 = vadd.f32 %v1570, %v1654
  %v1715 = vadd.f32 %v1571, %v1654
  %v1716 = vadd.f32 %v1572, %v1654
  %v1717 = vadd.f32 %v1573, %v1654
  %v1718 = vadd.f32 %v1574, %v1659
  %v1719 = vadd.f32 %v1575, %v1659
  %v1720 = vadd.f32 %v1576, %v1659
  %v1721 = vadd.f32 %v1577, %v1659
  %v1722 = vadd.f32 %v1578, %v1659
  %v1723 = vadd.f32 %v1579, %v1659
  %v1724 = vadd.f32 %v1580, %v1664
  %v1725 = vadd.f32 %v1581, %v1664
  %v1726 = vadd.f32 %v1582, %v1664
  %v1727 = vadd.f32 %v1583, %v1664
  %v1728 = vadd.f32 %v1584, %v1664
  %v1729 = vadd.f32 %v1585, %v1664
  %v1730 = vadd.f32 %v1586, %v1669
  %v1731 = vadd.f32 %v1587, %v1669
  %v1732 = vadd.f32 %v1588, %v1669
  %v1733 = vadd.f32 %v1589, %v1669
  %v1734 = vadd.f32 %v1590, %v1669
  %v1735 = vadd.f32 %v1591, %v1669
  %v1736 = vadd.f32 %v1592, %v1674
  %v1737 = vadd.f32 %v1593, %v1674
  %v1738 = vadd.f32 %v1594, %v1674
  %v1739 = vadd.f32 %v1595, %v1674
  %v1740 = vadd.f32 %v1596, %v1674
  %v1741 = vadd.f32 %v1597, %v1674
  %v1742 = vadd.f32 %v1598, %v1679
  %v1743 = vadd.f32 %v1599, %v1679
  %v1744 = vadd.f32 %v1600, %v1679
  %v1745 = vadd.f32 %v1601, %v1679
  %v1746 = vadd.f32 %v1602, %v1679
  %v1747 = vadd.f32 %v1603, %v1679
  %v1748 = vadd.f32 %v1604, %v1684
  %v1749 = vadd.f32 %v1605, %v1684
  %v1750 = vadd.f32 %v1606, %v1684
  %v1751 = vadd.f32 %v1607, %v1684
  %v1752 = vadd.f32 %v1608, %v1684
  %v1753 = vadd.f32 %v1609, %v1684
  %v1754 = vadd.f32 %v1610, %v1689
  %v1755 = vadd.f32 %v1611, %v1689
  %v1756 = vadd.f32 %v1612, %v1689
  %v1757 = vadd.f32 %v1613, %v1689
  %v1758 = vadd.f32 %v1614, %v1689
  %v1759 = vadd.f32 %v1615, %v1689
  %v1760 = vadd.f32 %v1616, %v1694
  %v1761 = vadd.f32 %v1617, %v1694
  %v1762 = vadd.f32 %v1618, %v1694
  %v1763 = vadd.f32 %v1619, %v1694
  %v1764 = vadd.f32 %v1620, %v1694
  %v1765 = vadd.f32 %v1621, %v1694
  %v1766 = vadd.f32 %v1622, %v1699
  %v1767 = vadd.f32 %v1623, %v1699
  %v1768 = vadd.f32 %v1624, %v1699
  %v1769 = vadd.f32 %v1625, %v1699
  %v1770 = vadd.f32 %v1626, %v1699
  %v1771 = vadd.f32 %v1627, %v1699
  %v1772 = vadd.f32 %v1628, %v1704
  %v1773 = vadd.f32 %v1629, %v1704
  %v1774 = vadd.f32 %v1630, %v1704
  %v1775 = vadd.f32 %v1631, %v1704
  %v1776 = vadd.f32 %v1632, %v1704
  %v1777 = vadd.f32 %v1633, %v1704
  %v1778 = vmax.f32 %v1706, 0.0
  %v1779 = vmax.f32 %v1707, 0.0
  %v1780 = vmax.f32 %v1708, 0.0
  %v1781 = vmax.f32 %v1709, 0.0
  %v1782 = vmax.f32 %v1710, 0.0
  %v1783 = vmax.f32 %v1711, 0.0
  %v1784 = vmax.f32 %v1712, 0.0
  %v1785 = vmax.f32 %v1713, 0.0
  %v1786 = vmax.f32 %v1714, 0.0
  %v1787 = vmax.f32 %v1715, 0.0
  %v1788 = vmax.f32 %v1716, 0.0
  %v1789 = vmax.f32 %v1717, 0.0
  %v1790 = vmax.f32 %v1718, 0.0
  %v1791 = vmax.f32 %v1719, 0.0
  %v1792 = vmax.f32 %v1720, 0.0
  %v1793 = vmax.f32 %v1721, 0.0
  %v1794 = vmax.f32 %v1722, 0.0
  %v1795 = vmax.f32 %v1723, 0.0
  %v1796 = vmax.f32 %v1724, 0.0
  %v1797 = vmax.f32 %v1725, 0.0
  %v1798 = vmax.f32 %v1726, 0.0
  %v1799 = vmax.f32 %v1727, 0.0
  %v1800 = vmax.f32 %v1728, 0.0
  %v1801 = vmax.f32 %v1729, 0.0
  %v1802 = vmax.f32 %v1730, 0.0
  %v1803 = vmax.f32 %v1731, 0.0
  %v1804 = vmax.f32 %v1732, 0.0
  %v1805 = vmax.f32 %v1733, 0.0
  %v1806 = vmax.f32 %v1734, 0.0
  %v1807 = vmax.f32 %v1735, 0.0
  %v1808 = vmax.f32 %v1736, 0.0
  %v1809 = vmax.f32 %v1737, 0.0
  %v1810 = vmax.f32 %v1738, 0.0
  %v1811 = vmax.f32 %v1739, 0.0
  %v1812 = vmax.f32 %v1740, 0.0
  %v1813 = vmax.f32 %v1741, 0.0
  %v1814 = vmax.f32 %v1742, 0.0
  %v1815 = vmax.f32 %v1743, 0.0
  %v1816 = vmax.f32 %v1744, 0.0
  %v1817 = vmax.f32 %v1745, 0.0
  %v1818 = vmax.f32 %v1746, 0.0
  %v1819 = vmax.f32 %v1747, 0.0
  %v1820 = vmax.f32 %v1748, 0.0
  %v1821 = vmax.f32 %v1749, 0.0
  %v1822 = vmax.f32 %v1750, 0.0
  %v1823 = vmax.f32 %v1751, 0.0
  %v1824 = vmax.f32 %v1752, 0.0
  %v1825 = vmax.f32 %v1753, 0.0
  %v1826 = vmax.f32 %v1754, 0.0
  %v1827 = vmax.f32 %v1755, 0.0
  %v1828 = vmax.f32 %v1756, 0.0
  %v1829 = vmax.f32 %v1757, 0.0
  %v1830 = vmax.f32 %v1758, 0.0
  %v1831 = vmax.f32 %v1759, 0.0
  %v1832 = vmax.f32 %v1760, 0.0
  %v1833 = vmax.f32 %v1761, 0.0
  %v1834 = vmax.f32 %v1762, 0.0
  %v1835 = vmax.f32 %v1763, 0.0
  %v1836 = vmax.f32 %v1764, 0.0
  %v1837 = vmax.f32 %v1765, 0.0
  %v1838 = vmax.f32 %v1766, 0.0
  %v1839 = vmax.f32 %v1767, 0.0
  %v1840 = vmax.f32 %v1768, 0.0
  %v1841 = vmax.f32 %v1769, 0.0
  %v1842 = vmax.f32 %v1770, 0.0
  %v1843 = vmax.f32 %v1771, 0.0
  %v1844 = vmax.f32 %v1772, 0.0
  %v1845 = vmax.f32 %v1773, 0.0
  %v1846 = vmax.f32 %v1774, 0.0
  %v1847 = vmax.f32 %v1775, 0.0
  %v1848 = vmax.f32 %v1776, 0.0
  %v1849 = vmax.f32 %v1777, 0.0
  %1850 = vst [vmem:[#allocation3] sm:$0xff] %v1778
  %1851 = vst [vmem:[#allocation3 + $0x8] sm:$0xff] %v1779
  %1852 = vst [vmem:[#allocation3 + $0x10] sm:$0xff] %v1780
  %1853 = vst [vmem:[#allocation3 + $0x18] sm:$0xff] %v1781
  %1854 = vst [vmem:[#allocation3 + $0x20] sm:$0xff] %v1782
  %1855 = vst [vmem:[#allocation3 + $0x28] sm:$0xff] %v1783
  %1856 = vst [vmem:[#allocation3 + $0x30] sm:$0xff] %v1784
  %1857 = vst [vmem:[#allocation3 + $0x38] sm:$0xff] %v1785
  %1858 = vst [vmem:[#allocation3 + $0x40] sm:$0xff] %v1786
  %1859 = vst [vmem:[#allocation3 + $0x48] sm:$0xff] %v1787
  %1860 = vst [vmem:[#allocation3 + $0x50] sm:$0xff] %v1788
  %1861 = vst [vmem:[#allocation3 + $0x58] sm:$0xff] %v1789
  %1862 = vst [vmem:[#allocation3 + $0x60] sm:$0xff] %v1790
  %1863 = vst [vmem:[#allocation3 + $0x68] sm:$0xff] %v1791
  %1864 = vst [vmem:[#allocation3 + $0x70] sm:$0xff] %v1792
  %1865 = vst [vmem:[#allocation3 + $0x78] sm:$0xff] %v1793
  %1866 = vst [vmem:[#allocation3 + $0x80] sm:$0xff] %v1794
  %1867 = vst [vmem:[#allocation3 + $0x88] sm:$0xff] %v1795
  %1868 = vst [vmem:[#allocation3 + $0x90] sm:$0xff] %v1796
  %1869 = vst [vmem:[#allocation3 + $0x98] sm:$0xff] %v1797
  %1870 = vst [vmem:[#allocation3 + $0xa0] sm:$0xff] %v1798
  %1871 = vst [vmem:[#allocation3 + $0xa8] sm:$0xff] %v1799
  %1872 = vst [vmem:[#allocation3 + $0xb0] sm:$0xff] %v1800
  %1873 = vst [vmem:[#allocation3 + $0xb8] sm:$0xff] %v1801
  %1874 = vst [vmem:[#allocation3 + $0xc0] sm:$0xff] %v1802
  %1875 = vst [vmem:[#allocation3 + $0xc8] sm:$0xff] %v1803
  %1876 = vst [vmem:[#allocation3 + $0xd0] sm:$0xff] %v1804
  %1877 = vst [vmem:[#allocation3 + $0xd8] sm:$0xff] %v1805
  %1878 = vst [vmem:[#allocation3 + $0xe0] sm:$0xff] %v1806
  %1879 = vst [vmem:[#allocation3 + $0xe8] sm:$0xff] %v1807
  %1880 = vst [vmem:[#allocation3 + $0xf0] sm:$0xff] %v1808
  %1881 = vst [vmem:[#allocation3 + $0xf8] sm:$0xff] %v1809
  %1882 = vst [vmem:[#allocation3 + $0x100] sm:$0xff] %v1810
  %1883 = vst [vmem:[#allocation3 + $0x108] sm:$0xff] %v1811
  %1884 = vst [vmem:[#allocation3 + $0x110] sm:$0xff] %v1812
  %1885 = vst [vmem:[#allocation3 + $0x118] sm:$0xff] %v1813
  %1886 = vst [vmem:[#allocation3 + $0x120] sm:$0xff] %v1814
  %1887 = vst [vmem:[#allocation3 + $0x128] sm:$0xff] %v1815
  %1888 = vst [vmem:[#allocation3 + $0x130] sm:$0xff] %v1816
  %1889 = vst [vmem:[#allocation3 + $0x138] sm:$0xff] %v1817
  %1890 = vst [vmem:[#allocation3 + $0x140] sm:$0xff] %v1818
  %1891 = vst [vmem:[#allocation3 + $0x148] sm:$0xff] %v1819
  %1892 = vst [vmem:[#allocation3 + $0x150] sm:$0xff] %v1820
  %1893 = vst [vmem:[#allocation3 + $0x158] sm:$0xff] %v1821
  %1894 = vst [vmem:[#allocation3 + $0x160] sm:$0xff] %v1822
  %1895 = vst [vmem:[#allocation3 + $0x168] sm:$0xff] %v1823
  %1896 = vst [vmem:[#allocation3 + $0x170] sm:$0xff] %v1824
  %1897 = vst [vmem:[#allocation3 + $0x178] sm:$0xff] %v1825
  %1898 = vst [vmem:[#allocation3 + $0x180] sm:$0xff] %v1826
  %1899 = vst [vmem:[#allocation3 + $0x188] sm:$0xff] %v1827
  %1900 = vst [vmem:[#allocation3 + $0x190] sm:$0xff] %v1828
  %1901 = vst [vmem:[#allocation3 + $0x198] sm:$0xff] %v1829
  %1902 = vst [vmem:[#allocation3 + $0x1a0] sm:$0xff] %v1830
  %1903 = vst [vmem:[#allocation3 + $0x1a8] sm:$0xff] %v1831
  %1904 = vst [vmem:[#allocation3 + $0x1b0] sm:$0xff] %v1832
  %1905 = vst [vmem:[#allocation3 + $0x1b8] sm:$0xff] %v1833
  %1906 = vst [vmem:[#allocation3 + $0x1c0] sm:$0xff] %v1834
  %1907 = vst [vmem:[#allocation3 + $0x1c8] sm:$0xff] %v1835
  %1908 = vst [vmem:[#allocation3 + $0x1d0] sm:$0xff] %v1836
  %1909 = vst [vmem:[#allocation3 + $0x1d8] sm:$0xff] %v1837
  %1910 = vst [vmem:[#allocation3 + $0x1e0] sm:$0xff] %v1838
  %1911 = vst [vmem:[#allocation3 + $0x1e8] sm:$0xff] %v1839
  %1912 = vst [vmem:[#allocation3 + $0x1f0] sm:$0xff] %v1840
  %1913 = vst [vmem:[#allocation3 + $0x1f8] sm:$0xff] %v1841
  %1914 = vst [vmem:[#allocation3 + $0x200] sm:$0xff] %v1842
  %1915 = vst [vmem:[#allocation3 + $0x208] sm:$0xff] %v1843
  %1916 = vst [vmem:[#allocation3 + $0x210] sm:$0xff] %v1844
  %1917 = vst [vmem:[#allocation3 + $0x218] sm:$0xff] %v1845
  %1918 = vst [vmem:[#allocation3 + $0x220] sm:$0xff] %v1846
  %1919 = vst [vmem:[#allocation3 + $0x228] sm:$0xff] %v1847
  %1920 = vst [vmem:[#allocation3 + $0x230] sm:$0xff] %v1848
  %1921 = vst [vmem:[#allocation3 + $0x238] sm:$0xff] %v1849
  %v1922 = vld [vmem:[#allocation3] sm:$0xff]
  %v1923 = vld [vmem:[#allocation3 + $0x8] sm:$0xff]
  %v1924 = vld [vmem:[#allocation3 + $0x10] sm:$0xff]
  %v1925 = vld [vmem:[#allocation3 + $0x18] sm:$0xff]
  %v1926 = vld [vmem:[#allocation3 + $0x20] sm:$0xff]
  %v1927 = vld [vmem:[#allocation3 + $0x28] sm:$0xff]
  %v1928 = vld [vmem:[#allocation3 + $0x30] sm:$0xff]
  %v1929 = vld [vmem:[#allocation3 + $0x38] sm:$0xff]
  %v1930 = vld [vmem:[#allocation3 + $0x40] sm:$0xff]
  %v1931 = vld [vmem:[#allocation3 + $0x48] sm:$0xff]
  %v1932 = vld [vmem:[#allocation3 + $0x50] sm:$0xff]
  %v1933 = vld [vmem:[#allocation3 + $0x58] sm:$0xff]
  %v1934 = vld [vmem:[#allocation3 + $0x60] sm:$0xff]
  %v1935 = vld [vmem:[#allocation3 + $0x68] sm:$0xff]
  %v1936 = vld [vmem:[#allocation3 + $0x70] sm:$0xff]
  %v1937 = vld [vmem:[#allocation3 + $0x78] sm:$0xff]
  %v1938 = vld [vmem:[#allocation3 + $0x80] sm:$0xff]
  %v1939 = vld [vmem:[#allocation3 + $0x88] sm:$0xff]
  %v1940 = vld [vmem:[#allocation3 + $0x90] sm:$0xff]
  %v1941 = vld [vmem:[#allocation3 + $0x98] sm:$0xff]
  %v1942 = vld [vmem:[#allocation3 + $0xa0] sm:$0xff]
  %v1943 = vld [vmem:[#allocation3 + $0xa8] sm:$0xff]
  %v1944 = vld [vmem:[#allocation3 + $0xb0] sm:$0xff]
  %v1945 = vld [vmem:[#allocation3 + $0xb8] sm:$0xff]
  %v1946 = vld [vmem:[#allocation3 + $0xc0] sm:$0xff]
  %v1947 = vld [vmem:[#allocation3 + $0xc8] sm:$0xff]
  %v1948 = vld [vmem:[#allocation3 + $0xd0] sm:$0xff]
  %v1949 = vld [vmem:[#allocation3 + $0xd8] sm:$0xff]
  %v1950 = vld [vmem:[#allocation3 + $0xe0] sm:$0xff]
  %v1951 = vld [vmem:[#allocation3 + $0xe8] sm:$0xff]
  %v1952 = vld [vmem:[#allocation3 + $0xf0] sm:$0xff]
  %v1953 = vld [vmem:[#allocation3 + $0xf8] sm:$0xff]
  %v1954 = vld [vmem:[#allocation3 + $0x100] sm:$0xff]
  %v1955 = vld [vmem:[#allocation3 + $0x108] sm:$0xff]
  %v1956 = vld [vmem:[#allocation3 + $0x110] sm:$0xff]
  %v1957 = vld [vmem:[#allocation3 + $0x118] sm:$0xff]
  %v1958 = vld [vmem:[#allocation3 + $0x120] sm:$0xff]
  %v1959 = vld [vmem:[#allocation3 + $0x128] sm:$0xff]
  %v1960 = vld [vmem:[#allocation3 + $0x130] sm:$0xff]
  %v1961 = vld [vmem:[#allocation3 + $0x138] sm:$0xff]
  %v1962 = vld [vmem:[#allocation3 + $0x140] sm:$0xff]
  %v1963 = vld [vmem:[#allocation3 + $0x148] sm:$0xff]
  %v1964 = vld [vmem:[#allocation3 + $0x150] sm:$0xff]
  %v1965 = vld [vmem:[#allocation3 + $0x158] sm:$0xff]
  %v1966 = vld [vmem:[#allocation3 + $0x160] sm:$0xff]
  %v1967 = vld [vmem:[#allocation3 + $0x168] sm:$0xff]
  %v1968 = vld [vmem:[#allocation3 + $0x170] sm:$0xff]
  %v1969 = vld [vmem:[#allocation3 + $0x178] sm:$0xff]
  %v1970 = vld [vmem:[#allocation3 + $0x180] sm:$0xff]
  %v1971 = vld [vmem:[#allocation3 + $0x188] sm:$0xff]
  %v1972 = vld [vmem:[#allocation3 + $0x190] sm:$0xff]
  %v1973 = vld [vmem:[#allocation3 + $0x198] sm:$0xff]
  %v1974 = vld [vmem:[#allocation3 + $0x1a0] sm:$0xff]
  %v1975 = vld [vmem:[#allocation3 + $0x1a8] sm:$0xff]
  %v1976 = vld [vmem:[#allocation3 + $0x1b0] sm:$0xff]
  %v1977 = vld [vmem:[#allocation3 + $0x1b8] sm:$0xff]
  %v1978 = vld [vmem:[#allocation3 + $0x1c0] sm:$0xff]
  %v1979 = vld [vmem:[#allocation3 + $0x1c8] sm:$0xff]
  %v1980 = vld [vmem:[#allocation3 + $0x1d0] sm:$0xff]
  %v1981 = vld [vmem:[#allocation3 + $0x1d8] sm:$0xff]
  %v1982 = vld [vmem:[#allocation3 + $0x1e0] sm:$0xff]
  %v1983 = vld [vmem:[#allocation3 + $0x1e8] sm:$0xff]
  %v1984 = vld [vmem:[#allocation3 + $0x1f0] sm:$0xff]
  %v1985 = vld [vmem:[#allocation3 + $0x1f8] sm:$0xff]
  %v1986 = vld [vmem:[#allocation3 + $0x200] sm:$0xff]
  %v1987 = vld [vmem:[#allocation3 + $0x208] sm:$0xff]
  %v1988 = vld [vmem:[#allocation3 + $0x210] sm:$0xff]
  %v1989 = vld [vmem:[#allocation3 + $0x218] sm:$0xff]
  %v1990 = vld [vmem:[#allocation3 + $0x220] sm:$0xff]
  %v1991 = vld [vmem:[#allocation3 + $0x228] sm:$0xff]
  %v1992 = vld [vmem:[#allocation3 + $0x230] sm:$0xff]
  %v1993 = vld [vmem:[#allocation3 + $0x238] sm:$0xff]
  %2066 = vrot.lane.b32.xlu0 %v1922, 96
  %v2067 = vpop.permute.xlu0 %2066
  %2068 = vrot.lane.b32.xlu0 %v1923, 96
  %v2069 = vpop.permute.xlu0 %2068
  %2070 = vrot.lane.b32.xlu0 %v1924, 96
  %v2071 = vpop.permute.xlu0 %2070
  %2072 = vrot.lane.b32.xlu0 %v1925, 96
  %v2073 = vpop.permute.xlu0 %2072
  %2074 = vrot.lane.b32.xlu0 %v1926, 96
  %v2075 = vpop.permute.xlu0 %2074
  %2076 = vrot.lane.b32.xlu0 %v1927, 96
  %v2077 = vpop.permute.xlu0 %2076
  %2078 = vrot.lane.b32.xlu0 %v1928, 96
  %v2079 = vpop.permute.xlu0 %2078
  %2080 = vrot.lane.b32.xlu0 %v1929, 96
  %v2081 = vpop.permute.xlu0 %2080
  %2082 = vrot.lane.b32.xlu0 %v1930, 96
  %v2083 = vpop.permute.xlu0 %2082
  %2084 = vrot.lane.b32.xlu0 %v1931, 96
  %v2085 = vpop.permute.xlu0 %2084
  %2086 = vrot.lane.b32.xlu0 %v1932, 96
  %v2087 = vpop.permute.xlu0 %2086
  %2088 = vrot.lane.b32.xlu0 %v1933, 96
  %v2089 = vpop.permute.xlu0 %2088
  %2090 = vrot.lane.b32.xlu0 %v1934, 96
  %v2091 = vpop.permute.xlu0 %2090
  %2092 = vrot.lane.b32.xlu0 %v1935, 96
  %v2093 = vpop.permute.xlu0 %2092
  %2094 = vrot.lane.b32.xlu0 %v1936, 96
  %v2095 = vpop.permute.xlu0 %2094
  %2096 = vrot.lane.b32.xlu0 %v1937, 96
  %v2097 = vpop.permute.xlu0 %2096
  %2098 = vrot.lane.b32.xlu0 %v1938, 96
  %v2099 = vpop.permute.xlu0 %2098
  %2100 = vrot.lane.b32.xlu0 %v1939, 96
  %v2101 = vpop.permute.xlu0 %2100
  %2102 = vrot.lane.b32.xlu0 %v1940, 96
  %v2103 = vpop.permute.xlu0 %2102
  %2104 = vrot.lane.b32.xlu0 %v1941, 96
  %v2105 = vpop.permute.xlu0 %2104
  %2106 = vrot.lane.b32.xlu0 %v1942, 96
  %v2107 = vpop.permute.xlu0 %2106
  %2108 = vrot.lane.b32.xlu0 %v1943, 96
  %v2109 = vpop.permute.xlu0 %2108
  %2110 = vrot.lane.b32.xlu0 %v1944, 96
  %v2111 = vpop.permute.xlu0 %2110
  %2112 = vrot.lane.b32.xlu0 %v1945, 96
  %v2113 = vpop.permute.xlu0 %2112
  %2114 = vrot.lane.b32.xlu0 %v1946, 96
  %v2115 = vpop.permute.xlu0 %2114
  %2116 = vrot.lane.b32.xlu0 %v1947, 96
  %v2117 = vpop.permute.xlu0 %2116
  %2118 = vrot.lane.b32.xlu0 %v1948, 96
  %v2119 = vpop.permute.xlu0 %2118
  %2120 = vrot.lane.b32.xlu0 %v1949, 96
  %v2121 = vpop.permute.xlu0 %2120
  %2122 = vrot.lane.b32.xlu0 %v1950, 96
  %v2123 = vpop.permute.xlu0 %2122
  %2124 = vrot.lane.b32.xlu0 %v1951, 96
  %v2125 = vpop.permute.xlu0 %2124
  %2126 = vrot.lane.b32.xlu0 %v1952, 96
  %v2127 = vpop.permute.xlu0 %2126
  %2128 = vrot.lane.b32.xlu0 %v1953, 96
  %v2129 = vpop.permute.xlu0 %2128
  %2130 = vrot.lane.b32.xlu0 %v1954, 96
  %v2131 = vpop.permute.xlu0 %2130
  %2132 = vrot.lane.b32.xlu0 %v1955, 96
  %v2133 = vpop.permute.xlu0 %2132
  %2134 = vrot.lane.b32.xlu0 %v1956, 96
  %v2135 = vpop.permute.xlu0 %2134
  %2136 = vrot.lane.b32.xlu0 %v1957, 96
  %v2137 = vpop.permute.xlu0 %2136
  %2138 = vrot.lane.b32.xlu0 %v1958, 96
  %v2139 = vpop.permute.xlu0 %2138
  %2140 = vrot.lane.b32.xlu0 %v1959, 96
  %v2141 = vpop.permute.xlu0 %2140
  %2142 = vrot.lane.b32.xlu0 %v1960, 96
  %v2143 = vpop.permute.xlu0 %2142
  %2144 = vrot.lane.b32.xlu0 %v1961, 96
  %v2145 = vpop.permute.xlu0 %2144
  %2146 = vrot.lane.b32.xlu0 %v1962, 96
  %v2147 = vpop.permute.xlu0 %2146
  %2148 = vrot.lane.b32.xlu0 %v1963, 96
  %v2149 = vpop.permute.xlu0 %2148
  %2150 = vrot.lane.b32.xlu0 %v1964, 96
  %v2151 = vpop.permute.xlu0 %2150
  %2152 = vrot.lane.b32.xlu0 %v1965, 96
  %v2153 = vpop.permute.xlu0 %2152
  %2154 = vrot.lane.b32.xlu0 %v1966, 96
  %v2155 = vpop.permute.xlu0 %2154
  %2156 = vrot.lane.b32.xlu0 %v1967, 96
  %v2157 = vpop.permute.xlu0 %2156
  %2158 = vrot.lane.b32.xlu0 %v1968, 96
  %v2159 = vpop.permute.xlu0 %2158
  %2160 = vrot.lane.b32.xlu0 %v1969, 96
  %v2161 = vpop.permute.xlu0 %2160
  %2162 = vrot.lane.b32.xlu0 %v1970, 96
  %v2163 = vpop.permute.xlu0 %2162
  %2164 = vrot.lane.b32.xlu0 %v1971, 96
  %v2165 = vpop.permute.xlu0 %2164
  %2166 = vrot.lane.b32.xlu0 %v1972, 96
  %v2167 = vpop.permute.xlu0 %2166
  %2168 = vrot.lane.b32.xlu0 %v1973, 96
  %v2169 = vpop.permute.xlu0 %2168
  %2170 = vrot.lane.b32.xlu0 %v1974, 96
  %v2171 = vpop.permute.xlu0 %2170
  %2172 = vrot.lane.b32.xlu0 %v1975, 96
  %v2173 = vpop.permute.xlu0 %2172
  %2174 = vrot.lane.b32.xlu0 %v1976, 96
  %v2175 = vpop.permute.xlu0 %2174
  %2176 = vrot.lane.b32.xlu0 %v1977, 96
  %v2177 = vpop.permute.xlu0 %2176
  %2178 = vrot.lane.b32.xlu0 %v1978, 96
  %v2179 = vpop.permute.xlu0 %2178
  %2180 = vrot.lane.b32.xlu0 %v1979, 96
  %v2181 = vpop.permute.xlu0 %2180
  %2182 = vrot.lane.b32.xlu0 %v1980, 96
  %v2183 = vpop.permute.xlu0 %2182
  %2184 = vrot.lane.b32.xlu0 %v1981, 96
  %v2185 = vpop.permute.xlu0 %2184
  %2186 = vrot.lane.b32.xlu0 %v1982, 96
  %v2187 = vpop.permute.xlu0 %2186
  %2188 = vrot.lane.b32.xlu0 %v1983, 96
  %v2189 = vpop.permute.xlu0 %2188
  %2190 = vrot.lane.b32.xlu0 %v1984, 96
  %v2191 = vpop.permute.xlu0 %2190
  %2192 = vrot.lane.b32.xlu0 %v1985, 96
  %v2193 = vpop.permute.xlu0 %2192
  %2194 = vrot.lane.b32.xlu0 %v1986, 96
  %v2195 = vpop.permute.xlu0 %2194
  %2196 = vrot.lane.b32.xlu0 %v1987, 96
  %v2197 = vpop.permute.xlu0 %2196
  %2198 = vrot.lane.b32.xlu0 %v1988, 96
  %v2199 = vpop.permute.xlu0 %2198
  %2200 = vrot.lane.b32.xlu0 %v1989, 96
  %v2201 = vpop.permute.xlu0 %2200
  %2202 = vrot.lane.b32.xlu0 %v1990, 96
  %v2203 = vpop.permute.xlu0 %2202
  %2204 = vrot.lane.b32.xlu0 %v1991, 96
  %v2205 = vpop.permute.xlu0 %2204
  %2206 = vrot.lane.b32.xlu0 %v1992, 96
  %v2207 = vpop.permute.xlu0 %2206
  %2208 = vrot.lane.b32.xlu0 %v1993, 96
  %v2209 = vpop.permute.xlu0 %2208
  %v2210 = vsel %vm204, %v2067, %v2069
  %v2211 = vsel %vm204, %v2069, %v2071
  %v2212 = vsel %vm204, %v2071, %v2073
  %v2213 = vsel %vm204, %v2073, %v2075
  %v2214 = vsel %vm204, %v2075, %v2077
  %v2215 = vsel %vm204, %v2079, %v2081
  %v2216 = vsel %vm204, %v2081, %v2083
  %v2217 = vsel %vm204, %v2083, %v2085
  %v2218 = vsel %vm204, %v2085, %v2087
  %v2219 = vsel %vm204, %v2087, %v2089
  %v2220 = vsel %vm204, %v2091, %v2093
  %v2221 = vsel %vm204, %v2093, %v2095
  %v2222 = vsel %vm204, %v2095, %v2097
  %v2223 = vsel %vm204, %v2097, %v2099
  %v2224 = vsel %vm204, %v2099, %v2101
  %v2225 = vsel %vm204, %v2103, %v2105
  %v2226 = vsel %vm204, %v2105, %v2107
  %v2227 = vsel %vm204, %v2107, %v2109
  %v2228 = vsel %vm204, %v2109, %v2111
  %v2229 = vsel %vm204, %v2111, %v2113
  %v2230 = vsel %vm204, %v2115, %v2117
  %v2231 = vsel %vm204, %v2117, %v2119
  %v2232 = vsel %vm204, %v2119, %v2121
  %v2233 = vsel %vm204, %v2121, %v2123
  %v2234 = vsel %vm204, %v2123, %v2125
  %v2235 = vsel %vm204, %v2127, %v2129
  %v2236 = vsel %vm204, %v2129, %v2131
  %v2237 = vsel %vm204, %v2131, %v2133
  %v2238 = vsel %vm204, %v2133, %v2135
  %v2239 = vsel %vm204, %v2135, %v2137
  %v2240 = vsel %vm204, %v2139, %v2141
  %v2241 = vsel %vm204, %v2141, %v2143
  %v2242 = vsel %vm204, %v2143, %v2145
  %v2243 = vsel %vm204, %v2145, %v2147
  %v2244 = vsel %vm204, %v2147, %v2149
  %v2245 = vsel %vm204, %v2151, %v2153
  %v2246 = vsel %vm204, %v2153, %v2155
  %v2247 = vsel %vm204, %v2155, %v2157
  %v2248 = vsel %vm204, %v2157, %v2159
  %v2249 = vsel %vm204, %v2159, %v2161
  %v2250 = vsel %vm204, %v2163, %v2165
  %v2251 = vsel %vm204, %v2165, %v2167
  %v2252 = vsel %vm204, %v2167, %v2169
  %v2253 = vsel %vm204, %v2169, %v2171
  %v2254 = vsel %vm204, %v2171, %v2173
  %v2255 = vsel %vm204, %v2175, %v2177
  %v2256 = vsel %vm204, %v2177, %v2179
  %v2257 = vsel %vm204, %v2179, %v2181
  %v2258 = vsel %vm204, %v2181, %v2183
  %v2259 = vsel %vm204, %v2183, %v2185
  %v2260 = vsel %vm204, %v2187, %v2189
  %v2261 = vsel %vm204, %v2189, %v2191
  %v2262 = vsel %vm204, %v2191, %v2193
  %v2263 = vsel %vm204, %v2193, %v2195
  %v2264 = vsel %vm204, %v2195, %v2197
  %v2265 = vsel %vm204, %v2199, %v2201
  %v2266 = vsel %vm204, %v2201, %v2203
  %v2267 = vsel %vm204, %v2203, %v2205
  %v2268 = vsel %vm204, %v2205, %v2207
  %v2269 = vsel %vm204, %v2207, %v2209
  %v2342 = vmax.f32 %v1922, %v2210
  %v2343 = vmax.f32 %v1923, %v2211
  %v2344 = vmax.f32 %v1924, %v2212
  %v2345 = vmax.f32 %v1925, %v2213
  %v2346 = vmax.f32 %v1926, %v2214
  %v2347 = vmax.f32 %v1927, %v2077
  %v2348 = vmax.f32 %v1928, %v2215
  %v2349 = vmax.f32 %v1929, %v2216
  %v2350 = vmax.f32 %v1930, %v2217
  %v2351 = vmax.f32 %v1931, %v2218
  %v2352 = vmax.f32 %v1932, %v2219
  %v2353 = vmax.f32 %v1933, %v2089
  %v2354 = vmax.f32 %v1934, %v2220
  %v2355 = vmax.f32 %v1935, %v2221
  %v2356 = vmax.f32 %v1936, %v2222
  %v2357 = vmax.f32 %v1937, %v2223
  %v2358 = vmax.f32 %v1938, %v2224
  %v2359 = vmax.f32 %v1939, %v2101
  %v2360 = vmax.f32 %v1940, %v2225
  %v2361 = vmax.f32 %v1941, %v2226
  %v2362 = vmax.f32 %v1942, %v2227
  %v2363 = vmax.f32 %v1943, %v2228
  %v2364 = vmax.f32 %v1944, %v2229
  %v2365 = vmax.f32 %v1945, %v2113
  %v2366 = vmax.f32 %v1946, %v2230
  %v2367 = vmax.f32 %v1947, %v2231
  %v2368 = vmax.f32 %v1948, %v2232
  %v2369 = vmax.f32 %v1949, %v2233
  %v2370 = vmax.f32 %v1950, %v2234
  %v2371 = vmax.f32 %v1951, %v2125
  %v2372 = vmax.f32 %v1952, %v2235
  %v2373 = vmax.f32 %v1953, %v2236
  %v2374 = vmax.f32 %v1954, %v2237
  %v2375 = vmax.f32 %v1955, %v2238
  %v2376 = vmax.f32 %v1956, %v2239
  %v2377 = vmax.f32 %v1957, %v2137
  %v2378 = vmax.f32 %v1958, %v2240
  %v2379 = vmax.f32 %v1959, %v2241
  %v2380 = vmax.f32 %v1960, %v2242
  %v2381 = vmax.f32 %v1961, %v2243
  %v2382 = vmax.f32 %v1962, %v2244
  %v2383 = vmax.f32 %v1963, %v2149
  %v2384 = vmax.f32 %v1964, %v2245
  %v2385 = vmax.f32 %v1965, %v2246
  %v2386 = vmax.f32 %v1966, %v2247
  %v2387 = vmax.f32 %v1967, %v2248
  %v2388 = vmax.f32 %v1968, %v2249
  %v2389 = vmax.f32 %v1969, %v2161
  %v2390 = vmax.f32 %v1970, %v2250
  %v2391 = vmax.f32 %v1971, %v2251
  %v2392 = vmax.f32 %v1972, %v2252
  %v2393 = vmax.f32 %v1973, %v2253
  %v2394 = vmax.f32 %v1974, %v2254
  %v2395 = vmax.f32 %v1975, %v2173
  %v2396 = vmax.f32 %v1976, %v2255
  %v2397 = vmax.f32 %v1977, %v2256
  %v2398 = vmax.f32 %v1978, %v2257
  %v2399 = vmax.f32 %v1979, %v2258
  %v2400 = vmax.f32 %v1980, %v2259
  %v2401 = vmax.f32 %v1981, %v2185
  %v2402 = vmax.f32 %v1982, %v2260
  %v2403 = vmax.f32 %v1983, %v2261
  %v2404 = vmax.f32 %v1984, %v2262
  %v2405 = vmax.f32 %v1985, %v2263
  %v2406 = vmax.f32 %v1986, %v2264
  %v2407 = vmax.f32 %v1987, %v2197
  %v2408 = vmax.f32 %v1988, %v2265
  %v2409 = vmax.f32 %v1989, %v2266
  %v2410 = vmax.f32 %v1990, %v2267
  %v2411 = vmax.f32 %v1991, %v2268
  %v2412 = vmax.f32 %v1992, %v2269
  %v2413 = vmax.f32 %v1993, %v2209
  %v2414 = vld [vmem:[%s3] sm:$0xff]
  %v2415 = vld [vmem:[%s3 + $0x8] sm:$0xff]
  %v2416 = vld [vmem:[%s3 + $0x10] sm:$0xff]
  %v2417 = vld [vmem:[%s3 + $0x18] sm:$0xff]
  %v2418 = vld [vmem:[%s3 + $0x20] sm:$0xff]
  %v2419 = vld [vmem:[%s3 + $0x28] sm:$0xff]
  %v2420 = vld [vmem:[%s3 + $0x30] sm:$0xff]
  %v2421 = vld [vmem:[%s3 + $0x38] sm:$0xff]
  %v2422 = vld [vmem:[%s3 + $0x40] sm:$0xff]
  %v2423 = vld [vmem:[%s3 + $0x48] sm:$0xff]
  %v2424 = vld [vmem:[%s3 + $0x50] sm:$0xff]
  %v2425 = vld [vmem:[%s3 + $0x58] sm:$0xff]
  %v2426 = vld [vmem:[%s3 + $0x60] sm:$0xff]
  %v2427 = vld [vmem:[%s3 + $0x68] sm:$0xff]
  %v2428 = vld [vmem:[%s3 + $0x70] sm:$0xff]
  %v2429 = vld [vmem:[%s3 + $0x78] sm:$0xff]
  %v2430 = vld [vmem:[%s3 + $0x80] sm:$0xff]
  %v2431 = vld [vmem:[%s3 + $0x88] sm:$0xff]
  %v2432 = vld [vmem:[%s3 + $0x90] sm:$0xff]
  %v2433 = vld [vmem:[%s3 + $0x98] sm:$0xff]
  %v2434 = vld [vmem:[%s3 + $0xa0] sm:$0xff]
  %v2435 = vld [vmem:[%s3 + $0xa8] sm:$0xff]
  %v2436 = vld [vmem:[%s3 + $0xb0] sm:$0xff]
  %v2437 = vld [vmem:[%s3 + $0xb8] sm:$0xff]
  %v2438 = vld [vmem:[%s3 + $0xc0] sm:$0xff]
  %v2439 = vld [vmem:[%s3 + $0xc8] sm:$0xff]
  %v2440 = vld [vmem:[%s3 + $0xd0] sm:$0xff]
  %v2441 = vld [vmem:[%s3 + $0xd8] sm:$0xff]
  %v2442 = vld [vmem:[%s3 + $0xe0] sm:$0xff]
  %v2443 = vld [vmem:[%s3 + $0xe8] sm:$0xff]
  %v2444 = vld [vmem:[%s3 + $0xf0] sm:$0xff]
  %v2445 = vld [vmem:[%s3 + $0xf8] sm:$0xff]
  %v2446 = vld [vmem:[%s3 + $0x100] sm:$0xff]
  %v2447 = vld [vmem:[%s3 + $0x108] sm:$0xff]
  %v2448 = vld [vmem:[%s3 + $0x110] sm:$0xff]
  %v2449 = vld [vmem:[%s3 + $0x118] sm:$0xff]
  %v2450 = vld [vmem:[%s3 + $0x120] sm:$0xff]
  %v2451 = vld [vmem:[%s3 + $0x128] sm:$0xff]
  %v2452 = vld [vmem:[%s3 + $0x130] sm:$0xff]
  %v2453 = vld [vmem:[%s3 + $0x138] sm:$0xff]
  %v2454 = vld [vmem:[%s3 + $0x140] sm:$0xff]
  %v2455 = vld [vmem:[%s3 + $0x148] sm:$0xff]
  %v2456 = vld [vmem:[%s3 + $0x150] sm:$0xff]
  %v2457 = vld [vmem:[%s3 + $0x158] sm:$0xff]
  %v2458 = vld [vmem:[%s3 + $0x160] sm:$0xff]
  %v2459 = vld [vmem:[%s3 + $0x168] sm:$0xff]
  %v2460 = vld [vmem:[%s3 + $0x170] sm:$0xff]
  %v2461 = vld [vmem:[%s3 + $0x178] sm:$0xff]
  %v2462 = vld [vmem:[%s3 + $0x180] sm:$0xff]
  %v2463 = vld [vmem:[%s3 + $0x188] sm:$0xff]
  %v2464 = vld [vmem:[%s3 + $0x190] sm:$0xff]
  %v2465 = vld [vmem:[%s3 + $0x198] sm:$0xff]
  %v2466 = vld [vmem:[%s3 + $0x1a0] sm:$0xff]
  %v2467 = vld [vmem:[%s3 + $0x1a8] sm:$0xff]
  %v2468 = vld [vmem:[%s3 + $0x1b0] sm:$0xff]
  %v2469 = vld [vmem:[%s3 + $0x1b8] sm:$0xff]
  %v2470 = vld [vmem:[%s3 + $0x1c0] sm:$0xff]
  %v2471 = vld [vmem:[%s3 + $0x1c8] sm:$0xff]
  %v2472 = vld [vmem:[%s3 + $0x1d0] sm:$0xff]
  %v2473 = vld [vmem:[%s3 + $0x1d8] sm:$0xff]
  %v2474 = vld [vmem:[%s3 + $0x1e0] sm:$0xff]
  %v2475 = vld [vmem:[%s3 + $0x1e8] sm:$0xff]
  %v2476 = vld [vmem:[%s3 + $0x1f0] sm:$0xff]
  %v2477 = vld [vmem:[%s3 + $0x1f8] sm:$0xff]
  %v2478 = vld [vmem:[%s3 + $0x200] sm:$0xff]
  %v2479 = vld [vmem:[%s3 + $0x208] sm:$0xff]
  %v2480 = vld [vmem:[%s3 + $0x210] sm:$0xff]
  %v2481 = vld [vmem:[%s3 + $0x218] sm:$0xff]
  %v2482 = vld [vmem:[%s3 + $0x220] sm:$0xff]
  %v2483 = vld [vmem:[%s3 + $0x228] sm:$0xff]
  %v2484 = vld [vmem:[%s3 + $0x230] sm:$0xff]
  %v2485 = vld [vmem:[%s3 + $0x238] sm:$0xff]
  %v2486 = vld [vmem:[%s3 + $0x240] sm:$0xff]
  %v2487 = vld [vmem:[%s3 + $0x248] sm:$0xff]
  %v2488 = vld [vmem:[%s3 + $0x250] sm:$0xff]
  %v2489 = vld [vmem:[%s3 + $0x258] sm:$0xff]
  %v2490 = vld [vmem:[%s3 + $0x260] sm:$0xff]
  %v2491 = vld [vmem:[%s3 + $0x268] sm:$0xff]
  %v2492 = vld [vmem:[%s3 + $0x270] sm:$0xff]
  %v2493 = vld [vmem:[%s3 + $0x278] sm:$0xff]
  %v2494 = vld [vmem:[%s3 + $0x280] sm:$0xff]
  %v2495 = vld [vmem:[%s3 + $0x288] sm:$0xff]
  %v2496 = vld [vmem:[%s3 + $0x290] sm:$0xff]
  %v2497 = vld [vmem:[%s3 + $0x298] sm:$0xff]
  %v2498 = vld [vmem:[%s3 + $0x2a0] sm:$0xff]
  %v2499 = vld [vmem:[%s3 + $0x2a8] sm:$0xff]
  %v2500 = vld [vmem:[%s3 + $0x2b0] sm:$0xff]
  %v2501 = vld [vmem:[%s3 + $0x2b8] sm:$0xff]
  %v2502 = vld [vmem:[%s3 + $0x2c0] sm:$0xff]
  %v2503 = vld [vmem:[%s3 + $0x2c8] sm:$0xff]
  %v2504 = vld [vmem:[%s3 + $0x2d0] sm:$0xff]
  %v2505 = vld [vmem:[%s3 + $0x2d8] sm:$0xff]
  %v2506 = vld [vmem:[%s3 + $0x2e0] sm:$0xff]
  %v2507 = vld [vmem:[%s3 + $0x2e8] sm:$0xff]
  %v2508 = vld [vmem:[%s3 + $0x2f0] sm:$0xff]
  %v2509 = vld [vmem:[%s3 + $0x2f8] sm:$0xff]
  %v2510 = vld [vmem:[%s3 + $0x300] sm:$0xff]
  %v2511 = vld [vmem:[%s3 + $0x308] sm:$0xff]
  %v2512 = vld [vmem:[%s3 + $0x310] sm:$0xff]
  %v2513 = vld [vmem:[%s3 + $0x318] sm:$0xff]
  %v2514 = vld [vmem:[%s3 + $0x320] sm:$0xff]
  %v2515 = vld [vmem:[%s3 + $0x328] sm:$0xff]
  %v2516 = vld [vmem:[%s3 + $0x330] sm:$0xff]
  %v2517 = vld [vmem:[%s3 + $0x338] sm:$0xff]
  %v2518 = vld [vmem:[%s3 + $0x340] sm:$0xff]
  %v2519 = vld [vmem:[%s3 + $0x348] sm:$0xff]
  %v2520 = vld [vmem:[%s3 + $0x350] sm:$0xff]
  %v2521 = vld [vmem:[%s3 + $0x358] sm:$0xff]
  %v2522 = vld [vmem:[%s3 + $0x360] sm:$0xff]
  %v2523 = vld [vmem:[%s3 + $0x368] sm:$0xff]
  %v2524 = vld [vmem:[%s3 + $0x370] sm:$0xff]
  %v2525 = vld [vmem:[%s3 + $0x378] sm:$0xff]
  %v2526 = vld [vmem:[%s3 + $0x380] sm:$0xff]
  %v2527 = vld [vmem:[%s3 + $0x388] sm:$0xff]
  %v2528 = vld [vmem:[%s3 + $0x390] sm:$0xff]
  %v2529 = vld [vmem:[%s3 + $0x398] sm:$0xff]
  %v2530 = vld [vmem:[%s3 + $0x3a0] sm:$0xff]
  %v2531 = vld [vmem:[%s3 + $0x3a8] sm:$0xff]
  %v2532 = vld [vmem:[%s3 + $0x3b0] sm:$0xff]
  %v2533 = vld [vmem:[%s3 + $0x3b8] sm:$0xff]
  %v2534 = vld [vmem:[%s3 + $0x3c0] sm:$0xff]
  %v2535 = vld [vmem:[%s3 + $0x3c8] sm:$0xff]
  %v2536 = vld [vmem:[%s3 + $0x3d0] sm:$0xff]
  %v2537 = vld [vmem:[%s3 + $0x3d8] sm:$0xff]
  %v2538 = vld [vmem:[%s3 + $0x3e0] sm:$0xff]
  %v2539 = vld [vmem:[%s3 + $0x3e8] sm:$0xff]
  %v2540 = vld [vmem:[%s3 + $0x3f0] sm:$0xff]
  %v2541 = vld [vmem:[%s3 + $0x3f8] sm:$0xff]
  %v2542 = vld [vmem:[%s3 + $0x400] sm:$0xff]
  %v2543 = vld [vmem:[%s3 + $0x408] sm:$0xff]
  %v2544 = vld [vmem:[%s3 + $0x410] sm:$0xff]
  %v2545 = vld [vmem:[%s3 + $0x418] sm:$0xff]
  %v2546 = vld [vmem:[%s3 + $0x420] sm:$0xff]
  %v2547 = vld [vmem:[%s3 + $0x428] sm:$0xff]
  %v2548 = vld [vmem:[%s3 + $0x430] sm:$0xff]
  %v2549 = vld [vmem:[%s3 + $0x438] sm:$0xff]
  %v2550 = vld [vmem:[%s3 + $0x440] sm:$0xff]
  %v2551 = vld [vmem:[%s3 + $0x448] sm:$0xff]
  %v2552 = vld [vmem:[%s3 + $0x450] sm:$0xff]
  %v2553 = vld [vmem:[%s3 + $0x458] sm:$0xff]
  %v2554 = vld [vmem:[%s3 + $0x460] sm:$0xff]
  %v2555 = vld [vmem:[%s3 + $0x468] sm:$0xff]
  %v2556 = vld [vmem:[%s3 + $0x470] sm:$0xff]
  %v2557 = vld [vmem:[%s3 + $0x478] sm:$0xff]
  %v2558 = vld [vmem:[%s3 + $0x480] sm:$0xff]
  %v2559 = vld [vmem:[%s3 + $0x488] sm:$0xff]
  %v2560 = vld [vmem:[%s3 + $0x490] sm:$0xff]
  %v2561 = vld [vmem:[%s3 + $0x498] sm:$0xff]
  %v2562 = vld [vmem:[%s3 + $0x4a0] sm:$0xff]
  %v2563 = vld [vmem:[%s3 + $0x4a8] sm:$0xff]
  %v2564 = vld [vmem:[%s3 + $0x4b0] sm:$0xff]
  %v2565 = vld [vmem:[%s3 + $0x4b8] sm:$0xff]
  %v2566 = vld [vmem:[%s3 + $0x4c0] sm:$0xff]
  %v2567 = vld [vmem:[%s3 + $0x4c8] sm:$0xff]
  %v2568 = vld [vmem:[%s3 + $0x4d0] sm:$0xff]
  %v2569 = vld [vmem:[%s3 + $0x4d8] sm:$0xff]
  %v2570 = vld [vmem:[%s3 + $0x4e0] sm:$0xff]
  %v2571 = vld [vmem:[%s3 + $0x4e8] sm:$0xff]
  %v2572 = vld [vmem:[%s3 + $0x4f0] sm:$0xff]
  %v2573 = vld [vmem:[%s3 + $0x4f8] sm:$0xff]
  %v2574 = vld [vmem:[%s3 + $0x500] sm:$0xff]
  %v2575 = vld [vmem:[%s3 + $0x508] sm:$0xff]
  %v2576 = vld [vmem:[%s3 + $0x510] sm:$0xff]
  %v2577 = vld [vmem:[%s3 + $0x518] sm:$0xff]
  %v2578 = vld [vmem:[%s3 + $0x520] sm:$0xff]
  %v2579 = vld [vmem:[%s3 + $0x528] sm:$0xff]
  %v2580 = vld [vmem:[%s3 + $0x530] sm:$0xff]
  %v2581 = vld [vmem:[%s3 + $0x538] sm:$0xff]
  %v2582 = vld [vmem:[%s3 + $0x540] sm:$0xff]
  %v2583 = vld [vmem:[%s3 + $0x548] sm:$0xff]
  %v2584 = vld [vmem:[%s3 + $0x550] sm:$0xff]
  %v2585 = vld [vmem:[%s3 + $0x558] sm:$0xff]
  %v2586 = vld [vmem:[%s3 + $0x560] sm:$0xff]
  %v2587 = vld [vmem:[%s3 + $0x568] sm:$0xff]
  %v2588 = vld [vmem:[%s3 + $0x570] sm:$0xff]
  %v2589 = vld [vmem:[%s3 + $0x578] sm:$0xff]
  %v2590 = vld [vmem:[%s3 + $0x580] sm:$0xff]
  %v2591 = vld [vmem:[%s3 + $0x588] sm:$0xff]
  %v2592 = vld [vmem:[%s3 + $0x590] sm:$0xff]
  %v2593 = vld [vmem:[%s3 + $0x598] sm:$0xff]
  %v2594 = vld [vmem:[%s3 + $0x5a0] sm:$0xff]
  %v2595 = vld [vmem:[%s3 + $0x5a8] sm:$0xff]
  %v2596 = vld [vmem:[%s3 + $0x5b0] sm:$0xff]
  %v2597 = vld [vmem:[%s3 + $0x5b8] sm:$0xff]
  %v2598 = vld [vmem:[%s3 + $0x5c0] sm:$0xff]
  %v2599 = vld [vmem:[%s3 + $0x5c8] sm:$0xff]
  %v2600 = vld [vmem:[%s3 + $0x5d0] sm:$0xff]
  %v2601 = vld [vmem:[%s3 + $0x5d8] sm:$0xff]
  %v2602 = vld [vmem:[%s3 + $0x5e0] sm:$0xff]
  %v2603 = vld [vmem:[%s3 + $0x5e8] sm:$0xff]
  %v2604 = vld [vmem:[%s3 + $0x5f0] sm:$0xff]
  %v2605 = vld [vmem:[%s3 + $0x5f8] sm:$0xff]
  %v2606 = vld [vmem:[%s3 + $0x600] sm:$0xff]
  %v2607 = vld [vmem:[%s3 + $0x608] sm:$0xff]
  %v2608 = vld [vmem:[%s3 + $0x610] sm:$0xff]
  %v2609 = vld [vmem:[%s3 + $0x618] sm:$0xff]
  %v2610 = vld [vmem:[%s3 + $0x620] sm:$0xff]
  %v2611 = vld [vmem:[%s3 + $0x628] sm:$0xff]
  %v2612 = vld [vmem:[%s3 + $0x630] sm:$0xff]
  %v2613 = vld [vmem:[%s3 + $0x638] sm:$0xff]
  %v2614 = vld [vmem:[%s3 + $0x640] sm:$0xff]
  %v2615 = vld [vmem:[%s3 + $0x648] sm:$0xff]
  %v2616 = vld [vmem:[%s3 + $0x650] sm:$0xff]
  %v2617 = vld [vmem:[%s3 + $0x658] sm:$0xff]
  %v2618 = vld [vmem:[%s3 + $0x660] sm:$0xff]
  %v2619 = vld [vmem:[%s3 + $0x668] sm:$0xff]
  %v2620 = vld [vmem:[%s3 + $0x670] sm:$0xff]
  %v2621 = vld [vmem:[%s3 + $0x678] sm:$0xff]
  %v2622 = vld [vmem:[%s3 + $0x680] sm:$0xff]
  %v2623 = vld [vmem:[%s3 + $0x688] sm:$0xff]
  %v2624 = vld [vmem:[%s3 + $0x690] sm:$0xff]
  %v2625 = vld [vmem:[%s3 + $0x698] sm:$0xff]
  %v2626 = vld [vmem:[%s3 + $0x6a0] sm:$0xff]
  %v2627 = vld [vmem:[%s3 + $0x6a8] sm:$0xff]
  %v2628 = vld [vmem:[%s3 + $0x6b0] sm:$0xff]
  %v2629 = vld [vmem:[%s3 + $0x6b8] sm:$0xff]
  %v2630 = vld [vmem:[%s3 + $0x6c0] sm:$0xff]
  %v2631 = vld [vmem:[%s3 + $0x6c8] sm:$0xff]
  %v2632 = vld [vmem:[%s3 + $0x6d0] sm:$0xff]
  %v2633 = vld [vmem:[%s3 + $0x6d8] sm:$0xff]
  %v2634 = vld [vmem:[%s3 + $0x6e0] sm:$0xff]
  %v2635 = vld [vmem:[%s3 + $0x6e8] sm:$0xff]
  %v2636 = vld [vmem:[%s3 + $0x6f0] sm:$0xff]
  %v2637 = vld [vmem:[%s3 + $0x6f8] sm:$0xff]
  %v2638 = vld [vmem:[%s3 + $0x700] sm:$0xff]
  %v2639 = vld [vmem:[%s3 + $0x708] sm:$0xff]
  %v2640 = vld [vmem:[%s3 + $0x710] sm:$0xff]
  %v2641 = vld [vmem:[%s3 + $0x718] sm:$0xff]
  %v2642 = vld [vmem:[%s3 + $0x720] sm:$0xff]
  %v2643 = vld [vmem:[%s3 + $0x728] sm:$0xff]
  %v2644 = vld [vmem:[%s3 + $0x730] sm:$0xff]
  %v2645 = vld [vmem:[%s3 + $0x738] sm:$0xff]
  %v2646 = vld [vmem:[%s3 + $0x740] sm:$0xff]
  %v2647 = vld [vmem:[%s3 + $0x748] sm:$0xff]
  %v2648 = vld [vmem:[%s3 + $0x750] sm:$0xff]
  %v2649 = vld [vmem:[%s3 + $0x758] sm:$0xff]
  %v2650 = vld [vmem:[%s3 + $0x760] sm:$0xff]
  %v2651 = vld [vmem:[%s3 + $0x768] sm:$0xff]
  %v2652 = vld [vmem:[%s3 + $0x770] sm:$0xff]
  %v2653 = vld [vmem:[%s3 + $0x778] sm:$0xff]
  %v2654 = vld [vmem:[%s3 + $0x780] sm:$0xff]
  %v2655 = vld [vmem:[%s3 + $0x788] sm:$0xff]
  %v2656 = vld [vmem:[%s3 + $0x790] sm:$0xff]
  %v2657 = vld [vmem:[%s3 + $0x798] sm:$0xff]
  %v2658 = vld [vmem:[%s3 + $0x7a0] sm:$0xff]
  %v2659 = vld [vmem:[%s3 + $0x7a8] sm:$0xff]
  %v2660 = vld [vmem:[%s3 + $0x7b0] sm:$0xff]
  %v2661 = vld [vmem:[%s3 + $0x7b8] sm:$0xff]
  %v2662 = vld [vmem:[%s3 + $0x7c0] sm:$0xff]
  %v2663 = vld [vmem:[%s3 + $0x7c8] sm:$0xff]
  %v2664 = vld [vmem:[%s3 + $0x7d0] sm:$0xff]
  %v2665 = vld [vmem:[%s3 + $0x7d8] sm:$0xff]
  %v2666 = vld [vmem:[%s3 + $0x7e0] sm:$0xff]
  %v2667 = vld [vmem:[%s3 + $0x7e8] sm:$0xff]
  %v2668 = vld [vmem:[%s3 + $0x7f0] sm:$0xff]
  %v2669 = vld [vmem:[%s3 + $0x7f8] sm:$0xff]
  %v2670 = vld [vmem:[%s3 + $0x800] sm:$0xff]
  %v2671 = vld [vmem:[%s3 + $0x808] sm:$0xff]
  %v2672 = vld [vmem:[%s3 + $0x810] sm:$0xff]
  %v2673 = vld [vmem:[%s3 + $0x818] sm:$0xff]
  %v2674 = vld [vmem:[%s3 + $0x820] sm:$0xff]
  %v2675 = vld [vmem:[%s3 + $0x828] sm:$0xff]
  %v2676 = vld [vmem:[%s3 + $0x830] sm:$0xff]
  %v2677 = vld [vmem:[%s3 + $0x838] sm:$0xff]
  %v2678 = vld [vmem:[%s3 + $0x840] sm:$0xff]
  %v2679 = vld [vmem:[%s3 + $0x848] sm:$0xff]
  %v2680 = vld [vmem:[%s3 + $0x850] sm:$0xff]
  %v2681 = vld [vmem:[%s3 + $0x858] sm:$0xff]
  %v2682 = vld [vmem:[%s3 + $0x860] sm:$0xff]
  %v2683 = vld [vmem:[%s3 + $0x868] sm:$0xff]
  %v2684 = vld [vmem:[%s3 + $0x870] sm:$0xff]
  %v2685 = vld [vmem:[%s3 + $0x878] sm:$0xff]
  %v2686 = vld [vmem:[%s3 + $0x880] sm:$0xff]
  %v2687 = vld [vmem:[%s3 + $0x888] sm:$0xff]
  %v2688 = vld [vmem:[%s3 + $0x890] sm:$0xff]
  %v2689 = vld [vmem:[%s3 + $0x898] sm:$0xff]
  %v2691 = vsel %vm204, %v2347, 0
  %v2694 = vsel %vm204, %v2353, 0
  %v2697 = vsel %vm204, %v2359, 0
  %v2700 = vsel %vm204, %v2365, 0
  %v2703 = vsel %vm204, %v2371, 0
  %v2706 = vsel %vm204, %v2377, 0
  %v2709 = vsel %vm204, %v2383, 0
  %v2712 = vsel %vm204, %v2389, 0
  %v2715 = vsel %vm204, %v2395, 0
  %v2718 = vsel %vm204, %v2401, 0
  %v2721 = vsel %vm204, %v2407, 0
  %v2724 = vsel %vm204, %v2413, 0
  %2726 = vmatprep.subr.mxu0 %v2415
  %2727 = vmatpush1.msra.mxu0 %v2414
  %2728 = vmatprep.subr.mxu0 %v2418
  %2729 = vmatpush1.msra.mxu0 %v2417
  %2730 = vmatprep.subr.mxu0 %v2421
  %2731 = vmatpush1.msra.mxu0 %v2420
  %2732 = vmatprep.subr.mxu0 %v2424
  %2733 = vmatpush1.msra.mxu0 %v2423
  %2734 = vmatprep.subr.mxu0 %v2427
  %2735 = vmatpush1.msra.mxu0 %v2426
  %2736 = vmatprep.subr.mxu0 %v2430
  %2737 = vmatpush1.msra.mxu0 %v2429
  %2738 = vmatprep.subr.mxu0 %v2433
  %2739 = vmatpush1.msra.mxu0 %v2432
  %2740 = vmatprep.subr.mxu0 %v2436
  %2741 = vmatpush1.msra.mxu0 %v2435
  %2742 = vmatprep.subr.mxu0 %v2439
  %2743 = vmatpush1.msra.mxu0 %v2438
  %2744 = vmatprep.subr.mxu0 %v2442
  %2745 = vmatpush1.msra.mxu0 %v2441
  %2746 = vmatprep.subr.mxu0 %v2445
  %2747 = vmatpush1.msra.mxu0 %v2444
  %2748 = vmatprep.subr.mxu0 %v2448
  %2749 = vmatpush1.msra.mxu0 %v2447
  %2750 = vmatprep.subr.mxu0 %v2451
  %2751 = vmatpush1.msra.mxu0 %v2450
  %2752 = vmatprep.subr.mxu0 %v2454
  %2753 = vmatpush1.msra.mxu0 %v2453
  %2754 = vmatprep.subr.mxu0 %v2457
  %2755 = vmatpush1.msra.mxu0 %v2456
  %2756 = vmatprep.subr.mxu0 %v2460
  %2757 = vmatpush1.msra.mxu0 %v2459
  %2758 = vmatprep.subr.mxu0 %v2463
  %2759 = vmatpush1.msra.mxu0 %v2462
  %2760 = vmatprep.subr.mxu0 %v2466
  %2761 = vmatpush1.msra.mxu0 %v2465
  %2762 = vmatprep.subr.mxu0 %v2469
  %2763 = vmatpush1.msra.mxu0 %v2468
  %2764 = vmatprep.subr.mxu0 %v2472
  %2765 = vmatpush1.msra.mxu0 %v2471
  %2766 = vmatprep.subr.mxu0 %v2475
  %2767 = vmatpush1.msra.mxu0 %v2474
  %2768 = vmatprep.subr.mxu0 %v2478
  %2769 = vmatpush1.msra.mxu0 %v2477
  %2770 = vmatprep.subr.mxu0 %v2481
  %2771 = vmatpush1.msra.mxu0 %v2480
  %2772 = vmatprep.subr.mxu0 %v2484
  %2773 = vmatpush1.msra.mxu0 %v2483
  %2774 = vmatprep.subr.mxu0 %v2487
  %2775 = vmatpush1.msra.mxu0 %v2486
  %2776 = vmatprep.subr.mxu0 %v2490
  %2777 = vmatpush1.msra.mxu0 %v2489
  %2778 = vmatprep.subr.mxu0 %v2493
  %2779 = vmatpush1.msra.mxu0 %v2492
  %2780 = vmatprep.subr.mxu0 %v2496
  %2781 = vmatpush1.msra.mxu0 %v2495
  %2782 = vmatprep.subr.mxu0 %v2499
  %2783 = vmatpush1.msra.mxu0 %v2498
  %2784 = vmatprep.subr.mxu0 %v2502
  %2785 = vmatpush1.msra.mxu0 %v2501
  %2786 = vmatprep.subr.mxu0 %v2505
  %2787 = vmatpush1.msra.mxu0 %v2504
  %2788 = vmatprep.subr.mxu0 %v2508
  %2789 = vmatpush1.msra.mxu0 %v2507
  %2790 = vmatprep.mubr.f32.mxu0 %v2343
  %2791 = vmatmul.mubr.f32.gmra.mrb[0].mxu0 %v2342
  %v2792 = vpop.f32.mrb[0].mxu0
  %v2793 = vadd.f32 0.0, %v2792
  %v2794 = vpop.f32.mrb[0].mxu0
  %v2795 = vadd.f32 0.0, %v2794
  %2796 = vmatprep.mubr.f32.mxu0 %v2349
  %2797 = vmatmul.mubr.f32.gmra.mrb[0].mxu0 %v2348
  %v2798 = vpop.f32.mrb[0].mxu0
  %v2799 = vadd.f32 0.0, %v2798
  %v2800 = vpop.f32.mrb[0].mxu0
  %v2801 = vadd.f32 0.0, %v2800
  %2802 = vmatprep.mubr.f32.mxu0 %v2355
  %2803 = vmatmul.mubr.f32.gmra.mrb[0].mxu0 %v2354
  %v2804 = vpop.f32.mrb[0].mxu0
  %v2805 = vadd.f32 0.0, %v2804
  %v2806 = vpop.f32.mrb[0].mxu0
  %v2807 = vadd.f32 0.0, %v2806
  %2808 = vmatprep.mubr.f32.mxu0 %v2361
  %2809 = vmatmul.mubr.f32.gmra.mrb[0].mxu0 %v2360
  %v2810 = vpop.f32.mrb[0].mxu0
  %v2811 = vadd.f32 0.0, %v2810
  %v2812 = vpop.f32.mrb[0].mxu0
  %v2813 = vadd.f32 0.0, %v2812
  %2814 = vmatprep.mubr.f32.mxu0 %v2367
  %2815 = vmatmul.mubr.f32.gmra.mrb[0].mxu0 %v2366
  %v2816 = vpop.f32.mrb[0].mxu0
  %v2817 = vadd.f32 0.0, %v2816
  %v2818 = vpop.f32.mrb[0].mxu0
  %v2819 = vadd.f32 0.0, %v2818
  %2820 = vmatprep.mubr.f32.mxu0 %v2373
  %2821 = vmatmul.mubr.f32.gmra.mrb[0].mxu0 %v2372
  %v2822 = vpop.f32.mrb[0].mxu0
  %v2823 = vadd.f32 0.0, %v2822
  %v2824 = vpop.f32.mrb[0].mxu0
  %v2825 = vadd.f32 0.0, %v2824
  %2826 = vmatprep.mubr.f32.mxu0 %v2379
  %2827 = vmatmul.mubr.f32.gmra.mrb[0].mxu0 %v2378
  %v2828 = vpop.f32.mrb[0].mxu0
  %v2829 = vadd.f32 0.0, %v2828
  %v2830 = vpop.f32.mrb[0].mxu0
  %v2831 = vadd.f32 0.0, %v2830
  %2832 = vmatprep.mubr.f32.mxu0 %v2385
  %2833 = vmatmul.mubr.f32.gmra.mrb[0].mxu0 %v2384
  %v2834 = vpop.f32.mrb[0].mxu0
  %v2835 = vadd.f32 0.0, %v2834
  %v2836 = vpop.f32.mrb[0].mxu0
  %v2837 = vadd.f32 0.0, %v2836
  %2838 = vmatprep.mubr.f32.mxu0 %v2391
  %2839 = vmatmul.mubr.f32.gmra.mrb[0].mxu0 %v2390
  %v2840 = vpop.f32.mrb[0].mxu0
  %v2841 = vadd.f32 0.0, %v2840
  %v2842 = vpop.f32.mrb[0].mxu0
  %v2843 = vadd.f32 0.0, %v2842
  %2844 = vmatprep.mubr.f32.mxu0 %v2397
  %2845 = vmatmul.mubr.f32.gmra.mrb[0].mxu0 %v2396
  %v2846 = vpop.f32.mrb[0].mxu0
  %v2847 = vadd.f32 0.0, %v2846
  %v2848 = vpop.f32.mrb[0].mxu0
  %v2849 = vadd.f32 0.0, %v2848
  %2850 = vmatprep.mubr.f32.mxu0 %v2403
  %2851 = vmatmul.mubr.f32.gmra.mrb[0].mxu0 %v2402
  %v2852 = vpop.f32.mrb[0].mxu0
  %v2853 = vadd.f32 0.0, %v2852
  %v2854 = vpop.f32.mrb[0].mxu0
  %v2855 = vadd.f32 0.0, %v2854
  %2856 = vmatprep.mubr.f32.mxu0 %v2409
  %2857 = vmatmul.mubr.f32.gmra.mrb[0].mxu0 %v2408
  %v2858 = vpop.f32.mrb[0].mxu0
  %v2859 = vadd.f32 0.0, %v2858
  %v2860 = vpop.f32.mrb[0].mxu0
  %v2861 = vadd.f32 0.0, %v2860
  %2862 = vdwg.mxu0
  %2863 = vmatprep.subr.mxu0 %v2511
  %2864 = vmatpush1.msra.mxu0 %v2510
  %2865 = vmatprep.subr.mxu0 %v2514
  %2866 = vmatpush1.msra.mxu0 %v2513
  %2867 = vmatprep.subr.mxu0 %v2517
  %2868 = vmatpush1.msra.mxu0 %v2516
  %2869 = vmatprep.subr.mxu0 %v2520
  %2870 = vmatpush1.msra.mxu0 %v2519
  %2871 = vmatprep.subr.mxu0 %v2523
  %2872 = vmatpush1.msra.mxu0 %v2522
  %2873 = vmatprep.subr.mxu0 %v2526
  %2874 = vmatpush1.msra.mxu0 %v2525
  %2875 = vmatprep.subr.mxu0 %v2529
  %2876 = vmatpush1.msra.mxu0 %v2528
  %2877 = vmatprep.subr.mxu0 %v2532
  %2878 = vmatpush1.msra.mxu0 %v2531
  %2879 = vmatprep.subr.mxu0 %v2535
  %2880 = vmatpush1.msra.mxu0 %v2534
  %2881 = vmatprep.subr.mxu0 %v2538
  %2882 = vmatpush1.msra.mxu0 %v2537
  %2883 = vmatprep.subr.mxu0 %v2541
  %2884 = vmatpush1.msra.mxu0 %v2540
  %2885 = vmatprep.subr.mxu0 %v2544
  %2886 = vmatpush1.msra.mxu0 %v2543
  %2887 = vmatprep.subr.mxu0 %v2547
  %2888 = vmatpush1.msra.mxu0 %v2546
  %2889 = vmatprep.subr.mxu0 %v2550
  %2890 = vmatpush1.msra.mxu0 %v2549
  %2891 = vmatprep.subr.mxu0 %v2553
  %2892 = vmatpush1.msra.mxu0 %v2552
  %2893 = vmatprep.subr.mxu0 %v2556
  %2894 = vmatpush1.msra.mxu0 %v2555
  %2895 = vmatprep.subr.mxu0 %v2559
  %2896 = vmatpush1.msra.mxu0 %v2558
  %2897 = vmatprep.subr.mxu0 %v2562
  %2898 = vmatpush1.msra.mxu0 %v2561
  %2899 = vmatprep.subr.mxu0 %v2565
  %2900 = vmatpush1.msra.mxu0 %v2564
  %2901 = vmatprep.subr.mxu0 %v2568
  %2902 = vmatpush1.msra.mxu0 %v2567
  %2903 = vmatprep.subr.mxu0 %v2571
  %2904 = vmatpush1.msra.mxu0 %v2570
  %2905 = vmatprep.subr.mxu0 %v2574
  %2906 = vmatpush1.msra.mxu0 %v2573
  %2907 = vmatprep.subr.mxu0 %v2577
  %2908 = vmatpush1.msra.mxu0 %v2576
  %2909 = vmatprep.subr.mxu0 %v2580
  %2910 = vmatpush1.msra.mxu0 %v2579
  %2911 = vmatprep.subr.mxu0 %v2583
  %2912 = vmatpush1.msra.mxu0 %v2582
  %2913 = vmatprep.subr.mxu0 %v2586
  %2914 = vmatpush1.msra.mxu0 %v2585
  %2915 = vmatprep.subr.mxu0 %v2589
  %2916 = vmatpush1.msra.mxu0 %v2588
  %2917 = vmatprep.subr.mxu0 %v2592
  %2918 = vmatpush1.msra.mxu0 %v2591
  %2919 = vmatprep.subr.mxu0 %v2595
  %2920 = vmatpush1.msra.mxu0 %v2594
  %2921 = vmatprep.subr.mxu0 %v2598
  %2922 = vmatpush1.msra.mxu0 %v2597
  %2923 = vmatprep.subr.mxu0 %v2601
  %2924 = vmatpush1.msra.mxu0 %v2600
  %2925 = vmatprep.subr.mxu0 %v2604
  %2926 = vmatpush1.msra.mxu0 %v2603
  %2927 = vmatprep.mubr.f32.mxu0 %v2345
  %2928 = vmatmul.mubr.f32.gmra.mrb[0].mxu0 %v2344
  %v2929 = vpop.f32.mrb[0].mxu0
  %v2930 = vadd.f32 %v2793, %v2929
  %v2931 = vpop.f32.mrb[0].mxu0
  %v2932 = vadd.f32 %v2795, %v2931
  %2933 = vmatprep.mubr.f32.mxu0 %v2351
  %2934 = vmatmul.mubr.f32.gmra.mrb[0].mxu0 %v2350
  %v2935 = vpop.f32.mrb[0].mxu0
  %v2936 = vadd.f32 %v2799, %v2935
  %v2937 = vpop.f32.mrb[0].mxu0
  %v2938 = vadd.f32 %v2801, %v2937
  %2939 = vmatprep.mubr.f32.mxu0 %v2357
  %2940 = vmatmul.mubr.f32.gmra.mrb[0].mxu0 %v2356
  %v2941 = vpop.f32.mrb[0].mxu0
  %v2942 = vadd.f32 %v2805, %v2941
  %v2943 = vpop.f32.mrb[0].mxu0
  %v2944 = vadd.f32 %v2807, %v2943
  %2945 = vmatprep.mubr.f32.mxu0 %v2363
  %2946 = vmatmul.mubr.f32.gmra.mrb[0].mxu0 %v2362
  %v2947 = vpop.f32.mrb[0].mxu0
  %v2948 = vadd.f32 %v2811, %v2947
  %v2949 = vpop.f32.mrb[0].mxu0
  %v2950 = vadd.f32 %v2813, %v2949
  %2951 = vmatprep.mubr.f32.mxu0 %v2369
  %2952 = vmatmul.mubr.f32.gmra.mrb[0].mxu0 %v2368
  %v2953 = vpop.f32.mrb[0].mxu0
  %v2954 = vadd.f32 %v2817, %v2953
  %v2955 = vpop.f32.mrb[0].mxu0
  %v2956 = vadd.f32 %v2819, %v2955
  %2957 = vmatprep.mubr.f32.mxu0 %v2375
  %2958 = vmatmul.mubr.f32.gmra.mrb[0].mxu0 %v2374
  %v2959 = vpop.f32.mrb[0].mxu0
  %v2960 = vadd.f32 %v2823, %v2959
  %v2961 = vpop.f32.mrb[0].mxu0
  %v2962 = vadd.f32 %v2825, %v2961
  %2963 = vmatprep.mubr.f32.mxu0 %v2381
  %2964 = vmatmul.mubr.f32.gmra.mrb[0].mxu0 %v2380
  %v2965 = vpop.f32.mrb[0].mxu0
  %v2966 = vadd.f32 %v2829, %v2965
  %v2967 = vpop.f32.mrb[0].mxu0
  %v2968 = vadd.f32 %v2831, %v2967
  %2969 = vmatprep.mubr.f32.mxu0 %v2387
  %2970 = vmatmul.mubr.f32.gmra.mrb[0].mxu0 %v2386
  %v2971 = vpop.f32.mrb[0].mxu0
  %v2972 = vadd.f32 %v2835, %v2971
  %v2973 = vpop.f32.mrb[0].mxu0
  %v2974 = vadd.f32 %v2837, %v2973
  %2975 = vmatprep.mubr.f32.mxu0 %v2393
  %2976 = vmatmul.mubr.f32.gmra.mrb[0].mxu0 %v2392
  %v2977 = vpop.f32.mrb[0].mxu0
  %v2978 = vadd.f32 %v2841, %v2977
  %v2979 = vpop.f32.mrb[0].mxu0
  %v2980 = vadd.f32 %v2843, %v2979
  %2981 = vmatprep.mubr.f32.mxu0 %v2399
  %2982 = vmatmul.mubr.f32.gmra.mrb[0].mxu0 %v2398
  %v2983 = vpop.f32.mrb[0].mxu0
  %v2984 = vadd.f32 %v2847, %v2983
  %v2985 = vpop.f32.mrb[0].mxu0
  %v2986 = vadd.f32 %v2849, %v2985
  %2987 = vmatprep.mubr.f32.mxu0 %v2405
  %2988 = vmatmul.mubr.f32.gmra.mrb[0].mxu0 %v2404
  %v2989 = vpop.f32.mrb[0].mxu0
  %v2990 = vadd.f32 %v2853, %v2989
  %v2991 = vpop.f32.mrb[0].mxu0
  %v2992 = vadd.f32 %v2855, %v2991
  %2993 = vmatprep.mubr.f32.mxu0 %v2411
  %2994 = vmatmul.mubr.f32.gmra.mrb[0].mxu0 %v2410
  %v2995 = vpop.f32.mrb[0].mxu0
  %v2996 = vadd.f32 %v2859, %v2995
  %v2997 = vpop.f32.mrb[0].mxu0
  %v2998 = vadd.f32 %v2861, %v2997
  %2999 = vdwg.mxu0
  %3000 = vmatprep.subr.mxu0 %v2607
  %3001 = vmatpush1.msra.mxu0 %v2606
  %3002 = vmatprep.subr.mxu0 %v2610
  %3003 = vmatpush1.msra.mxu0 %v2609
  %3004 = vmatprep.subr.mxu0 %v2613
  %3005 = vmatpush1.msra.mxu0 %v2612
  %3006 = vmatprep.subr.mxu0 %v2616
  %3007 = vmatpush1.msra.mxu0 %v2615
  %3008 = vmatprep.subr.mxu0 %v2619
  %3009 = vmatpush1.msra.mxu0 %v2618
  %3010 = vmatprep.subr.mxu0 %v2622
  %3011 = vmatpush1.msra.mxu0 %v2621
  %3012 = vmatprep.subr.mxu0 %v2625
  %3013 = vmatpush1.msra.mxu0 %v2624
  %3014 = vmatprep.subr.mxu0 %v2628
  %3015 = vmatpush1.msra.mxu0 %v2627
  %3016 = vmatprep.subr.mxu0 %v2631
  %3017 = vmatpush1.msra.mxu0 %v2630
  %3018 = vmatprep.subr.mxu0 %v2634
  %3019 = vmatpush1.msra.mxu0 %v2633
  %3020 = vmatprep.subr.mxu0 %v2637
  %3021 = vmatpush1.msra.mxu0 %v2636
  %3022 = vmatprep.subr.mxu0 %v2640
  %3023 = vmatpush1.msra.mxu0 %v2639
  %3024 = vmatprep.subr.mxu0 %v2643
  %3025 = vmatpush1.msra.mxu0 %v2642
  %3026 = vmatprep.subr.mxu0 %v2646
  %3027 = vmatpush1.msra.mxu0 %v2645
  %3028 = vmatprep.subr.mxu0 %v2649
  %3029 = vmatpush1.msra.mxu0 %v2648
  %3030 = vmatprep.subr.mxu0 %v2652
  %3031 = vmatpush1.msra.mxu0 %v2651
  %3032 = vmatprep.subr.mxu0 %v2655
  %3033 = vmatpush1.msra.mxu0 %v2654
  %3034 = vmatprep.subr.mxu0 %v2658
  %3035 = vmatpush1.msra.mxu0 %v2657
  %3036 = vmatprep.subr.mxu0 %v2661
  %3037 = vmatpush1.msra.mxu0 %v2660
  %3038 = vmatprep.subr.mxu0 %v2664
  %3039 = vmatpush1.msra.mxu0 %v2663
  %3040 = vmatprep.subr.mxu0 %v2667
  %3041 = vmatpush1.msra.mxu0 %v2666
  %3042 = vmatprep.subr.mxu0 %v2670
  %3043 = vmatpush1.msra.mxu0 %v2669
  %3044 = vmatprep.subr.mxu0 %v2673
  %3045 = vmatpush1.msra.mxu0 %v2672
  %3046 = vmatprep.subr.mxu0 %v2676
  %3047 = vmatpush1.msra.mxu0 %v2675
  %3048 = vmatprep.subr.mxu0 %v2679
  %3049 = vmatpush1.msra.mxu0 %v2678
  %3050 = vmatprep.subr.mxu0 %v2682
  %3051 = vmatpush1.msra.mxu0 %v2681
  %3052 = vmatprep.subr.mxu0 %v2685
  %3053 = vmatpush1.msra.mxu0 %v2684
  %3054 = vmatprep.subr.mxu0 %v2688
  %3055 = vmatpush1.msra.mxu0 %v2687
  %3056 = vmatprep.subr.mxu0 0.0
  %3057 = vmatpush1.msra.mxu0 0.0
  %3058 = vmatprep.subr.mxu0 0.0
  %3059 = vmatpush1.msra.mxu0 0.0
  %3060 = vmatprep.subr.mxu0 0.0
  %3061 = vmatpush1.msra.mxu0 0.0
  %3062 = vmatprep.subr.mxu0 0.0
  %3063 = vmatpush1.msra.mxu0 0.0
  %3064 = vmatprep.mubr.f32.mxu0 %v2691
  %3065 = vmatmul.mubr.f32.gmra.mrb[0].mxu0 %v2346
  %v3066 = vpop.f32.mrb[0].mxu0
  %v3067 = vadd.f32 %v2930, %v3066
  %v3068 = vpop.f32.mrb[0].mxu0
  %v3069 = vadd.f32 %v2932, %v3068
  %3070 = vmatprep.mubr.f32.mxu0 %v2694
  %3071 = vmatmul.mubr.f32.gmra.mrb[0].mxu0 %v2352
  %v3072 = vpop.f32.mrb[0].mxu0
  %v3073 = vadd.f32 %v2936, %v3072
  %v3074 = vpop.f32.mrb[0].mxu0
  %v3075 = vadd.f32 %v2938, %v3074
  %3076 = vmatprep.mubr.f32.mxu0 %v2697
  %3077 = vmatmul.mubr.f32.gmra.mrb[0].mxu0 %v2358
  %v3078 = vpop.f32.mrb[0].mxu0
  %v3079 = vadd.f32 %v2942, %v3078
  %v3080 = vpop.f32.mrb[0].mxu0
  %v3081 = vadd.f32 %v2944, %v3080
  %3082 = vmatprep.mubr.f32.mxu0 %v2700
  %3083 = vmatmul.mubr.f32.gmra.mrb[0].mxu0 %v2364
  %v3084 = vpop.f32.mrb[0].mxu0
  %v3085 = vadd.f32 %v2948, %v3084
  %v3086 = vpop.f32.mrb[0].mxu0
  %v3087 = vadd.f32 %v2950, %v3086
  %3088 = vmatprep.mubr.f32.mxu0 %v2703
  %3089 = vmatmul.mubr.f32.gmra.mrb[0].mxu0 %v2370
  %v3090 = vpop.f32.mrb[0].mxu0
  %v3091 = vadd.f32 %v2954, %v3090
  %v3092 = vpop.f32.mrb[0].mxu0
  %v3093 = vadd.f32 %v2956, %v3092
  %3094 = vmatprep.mubr.f32.mxu0 %v2706
  %3095 = vmatmul.mubr.f32.gmra.mrb[0].mxu0 %v2376
  %v3096 = vpop.f32.mrb[0].mxu0
  %v3097 = vadd.f32 %v2960, %v3096
  %v3098 = vpop.f32.mrb[0].mxu0
  %v3099 = vadd.f32 %v2962, %v3098
  %3100 = vmatprep.mubr.f32.mxu0 %v2709
  %3101 = vmatmul.mubr.f32.gmra.mrb[0].mxu0 %v2382
  %v3102 = vpop.f32.mrb[0].mxu0
  %v3103 = vadd.f32 %v2966, %v3102
  %v3104 = vpop.f32.mrb[0].mxu0
  %v3105 = vadd.f32 %v2968, %v3104
  %3106 = vmatprep.mubr.f32.mxu0 %v2712
  %3107 = vmatmul.mubr.f32.gmra.mrb[0].mxu0 %v2388
  %v3108 = vpop.f32.mrb[0].mxu0
  %v3109 = vadd.f32 %v2972, %v3108
  %v3110 = vpop.f32.mrb[0].mxu0
  %v3111 = vadd.f32 %v2974, %v3110
  %3112 = vmatprep.mubr.f32.mxu0 %v2715
  %3113 = vmatmul.mubr.f32.gmra.mrb[0].mxu0 %v2394
  %v3114 = vpop.f32.mrb[0].mxu0
  %v3115 = vadd.f32 %v2978, %v3114
  %v3116 = vpop.f32.mrb[0].mxu0
  %v3117 = vadd.f32 %v2980, %v3116
  %3118 = vmatprep.mubr.f32.mxu0 %v2718
  %3119 = vmatmul.mubr.f32.gmra.mrb[0].mxu0 %v2400
  %v3120 = vpop.f32.mrb[0].mxu0
  %v3121 = vadd.f32 %v2984, %v3120
  %v3122 = vpop.f32.mrb[0].mxu0
  %v3123 = vadd.f32 %v2986, %v3122
  %3124 = vmatprep.mubr.f32.mxu0 %v2721
  %3125 = vmatmul.mubr.f32.gmra.mrb[0].mxu0 %v2406
  %v3126 = vpop.f32.mrb[0].mxu0
  %v3127 = vadd.f32 %v2990, %v3126
  %v3128 = vpop.f32.mrb[0].mxu0
  %v3129 = vadd.f32 %v2992, %v3128
  %3130 = vmatprep.mubr.f32.mxu0 %v2724
  %3131 = vmatmul.mubr.f32.gmra.mrb[0].mxu0 %v2412
  %v3132 = vpop.f32.mrb[0].mxu0
  %v3133 = vadd.f32 %v2996, %v3132
  %v3134 = vpop.f32.mrb[0].mxu0
  %v3135 = vadd.f32 %v2998, %v3134
  %3136 = vdwg.mxu0
  %3137 = vmatprep.subr.mxu0 0.0
  %3138 = vmatpush1.msra.mxu0 %v2416
  %3139 = vmatprep.subr.mxu0 0.0
  %3140 = vmatpush1.msra.mxu0 %v2419
  %3141 = vmatprep.subr.mxu0 0.0
  %3142 = vmatpush1.msra.mxu0 %v2422
  %3143 = vmatprep.subr.mxu0 0.0
  %3144 = vmatpush1.msra.mxu0 %v2425
  %3145 = vmatprep.subr.mxu0 0.0
  %3146 = vmatpush1.msra.mxu0 %v2428
  %3147 = vmatprep.subr.mxu0 0.0
  %3148 = vmatpush1.msra.mxu0 %v2431
  %3149 = vmatprep.subr.mxu0 0.0
  %3150 = vmatpush1.msra.mxu0 %v2434
  %3151 = vmatprep.subr.mxu0 0.0
  %3152 = vmatpush1.msra.mxu0 %v2437
  %3153 = vmatprep.subr.mxu0 0.0
  %3154 = vmatpush1.msra.mxu0 %v2440
  %3155 = vmatprep.subr.mxu0 0.0
  %3156 = vmatpush1.msra.mxu0 %v2443
  %3157 = vmatprep.subr.mxu0 0.0
  %3158 = vmatpush1.msra.mxu0 %v2446
  %3159 = vmatprep.subr.mxu0 0.0
  %3160 = vmatpush1.msra.mxu0 %v2449
  %3161 = vmatprep.subr.mxu0 0.0
  %3162 = vmatpush1.msra.mxu0 %v2452
  %3163 = vmatprep.subr.mxu0 0.0
  %3164 = vmatpush1.msra.mxu0 %v2455
  %3165 = vmatprep.subr.mxu0 0.0
  %3166 = vmatpush1.msra.mxu0 %v2458
  %3167 = vmatprep.subr.mxu0 0.0
  %3168 = vmatpush1.msra.mxu0 %v2461
  %3169 = vmatprep.subr.mxu0 0.0
  %3170 = vmatpush1.msra.mxu0 %v2464
  %3171 = vmatprep.subr.mxu0 0.0
  %3172 = vmatpush1.msra.mxu0 %v2467
  %3173 = vmatprep.subr.mxu0 0.0
  %3174 = vmatpush1.msra.mxu0 %v2470
  %3175 = vmatprep.subr.mxu0 0.0
  %3176 = vmatpush1.msra.mxu0 %v2473
  %3177 = vmatprep.subr.mxu0 0.0
  %3178 = vmatpush1.msra.mxu0 %v2476
  %3179 = vmatprep.subr.mxu0 0.0
  %3180 = vmatpush1.msra.mxu0 %v2479
  %3181 = vmatprep.subr.mxu0 0.0
  %3182 = vmatpush1.msra.mxu0 %v2482
  %3183 = vmatprep.subr.mxu0 0.0
  %3184 = vmatpush1.msra.mxu0 %v2485
  %3185 = vmatprep.subr.mxu0 0.0
  %3186 = vmatpush1.msra.mxu0 %v2488
  %3187 = vmatprep.subr.mxu0 0.0
  %3188 = vmatpush1.msra.mxu0 %v2491
  %3189 = vmatprep.subr.mxu0 0.0
  %3190 = vmatpush1.msra.mxu0 %v2494
  %3191 = vmatprep.subr.mxu0 0.0
  %3192 = vmatpush1.msra.mxu0 %v2497
  %3193 = vmatprep.subr.mxu0 0.0
  %3194 = vmatpush1.msra.mxu0 %v2500
  %3195 = vmatprep.subr.mxu0 0.0
  %3196 = vmatpush1.msra.mxu0 %v2503
  %3197 = vmatprep.subr.mxu0 0.0
  %3198 = vmatpush1.msra.mxu0 %v2506
  %3199 = vmatprep.subr.mxu0 0.0
  %3200 = vmatpush1.msra.mxu0 %v2509
  %3201 = vmatprep.mubr.f32.mxu0 %v2343
  %3202 = vmatmul.mubr.f32.gmra.mrb[0].mxu0 %v2342
  %v3203 = vpop.f32.mrb[0].mxu0
  %v3204 = vadd.f32 0.0, %v3203
  %v3205 = vpop.f32.mrb[0].mxu0
  %3206 = vmatprep.mubr.f32.mxu0 %v2349
  %3207 = vmatmul.mubr.f32.gmra.mrb[0].mxu0 %v2348
  %v3208 = vpop.f32.mrb[0].mxu0
  %v3209 = vadd.f32 0.0, %v3208
  %v3210 = vpop.f32.mrb[0].mxu0
  %3211 = vmatprep.mubr.f32.mxu0 %v2355
  %3212 = vmatmul.mubr.f32.gmra.mrb[0].mxu0 %v2354
  %v3213 = vpop.f32.mrb[0].mxu0
  %v3214 = vadd.f32 0.0, %v3213
  %v3215 = vpop.f32.mrb[0].mxu0
  %3216 = vmatprep.mubr.f32.mxu0 %v2361
  %3217 = vmatmul.mubr.f32.gmra.mrb[0].mxu0 %v2360
  %v3218 = vpop.f32.mrb[0].mxu0
  %v3219 = vadd.f32 0.0, %v3218
  %v3220 = vpop.f32.mrb[0].mxu0
  %3221 = vmatprep.mubr.f32.mxu0 %v2367
  %3222 = vmatmul.mubr.f32.gmra.mrb[0].mxu0 %v2366
  %v3223 = vpop.f32.mrb[0].mxu0
  %v3224 = vadd.f32 0.0, %v3223
  %v3225 = vpop.f32.mrb[0].mxu0
  %3226 = vmatprep.mubr.f32.mxu0 %v2373
  %3227 = vmatmul.mubr.f32.gmra.mrb[0].mxu0 %v2372
  %v3228 = vpop.f32.mrb[0].mxu0
  %v3229 = vadd.f32 0.0, %v3228
  %v3230 = vpop.f32.mrb[0].mxu0
  %3231 = vmatprep.mubr.f32.mxu0 %v2379
  %3232 = vmatmul.mubr.f32.gmra.mrb[0].mxu0 %v2378
  %v3233 = vpop.f32.mrb[0].mxu0
  %v3234 = vadd.f32 0.0, %v3233
  %v3235 = vpop.f32.mrb[0].mxu0
  %3236 = vmatprep.mubr.f32.mxu0 %v2385
  %3237 = vmatmul.mubr.f32.gmra.mrb[0].mxu0 %v2384
  %v3238 = vpop.f32.mrb[0].mxu0
  %v3239 = vadd.f32 0.0, %v3238
  %v3240 = vpop.f32.mrb[0].mxu0
  %3241 = vmatprep.mubr.f32.mxu0 %v2391
  %3242 = vmatmul.mubr.f32.gmra.mrb[0].mxu0 %v2390
  %v3243 = vpop.f32.mrb[0].mxu0
  %v3244 = vadd.f32 0.0, %v3243
  %v3245 = vpop.f32.mrb[0].mxu0
  %3246 = vmatprep.mubr.f32.mxu0 %v2397
  %3247 = vmatmul.mubr.f32.gmra.mrb[0].mxu0 %v2396
  %v3248 = vpop.f32.mrb[0].mxu0
  %v3249 = vadd.f32 0.0, %v3248
  %v3250 = vpop.f32.mrb[0].mxu0
  %3251 = vmatprep.mubr.f32.mxu0 %v2403
  %3252 = vmatmul.mubr.f32.gmra.mrb[0].mxu0 %v2402
  %v3253 = vpop.f32.mrb[0].mxu0
  %v3254 = vadd.f32 0.0, %v3253
  %v3255 = vpop.f32.mrb[0].mxu0
  %3256 = vmatprep.mubr.f32.mxu0 %v2409
  %3257 = vmatmul.mubr.f32.gmra.mrb[0].mxu0 %v2408
  %v3258 = vpop.f32.mrb[0].mxu0
  %v3259 = vadd.f32 0.0, %v3258
  %v3260 = vpop.f32.mrb[0].mxu0
  %3261 = vdwg.mxu0
  %3262 = vmatprep.subr.mxu0 0.0
  %3263 = vmatpush1.msra.mxu0 %v2512
  %3264 = vmatprep.subr.mxu0 0.0
  %3265 = vmatpush1.msra.mxu0 %v2515
  %3266 = vmatprep.subr.mxu0 0.0
  %3267 = vmatpush1.msra.mxu0 %v2518
  %3268 = vmatprep.subr.mxu0 0.0
  %3269 = vmatpush1.msra.mxu0 %v2521
  %3270 = vmatprep.subr.mxu0 0.0
  %3271 = vmatpush1.msra.mxu0 %v2524
  %3272 = vmatprep.subr.mxu0 0.0
  %3273 = vmatpush1.msra.mxu0 %v2527
  %3274 = vmatprep.subr.mxu0 0.0
  %3275 = vmatpush1.msra.mxu0 %v2530
  %3276 = vmatprep.subr.mxu0 0.0
  %3277 = vmatpush1.msra.mxu0 %v2533
  %3278 = vmatprep.subr.mxu0 0.0
  %3279 = vmatpush1.msra.mxu0 %v2536
  %3280 = vmatprep.subr.mxu0 0.0
  %3281 = vmatpush1.msra.mxu0 %v2539
  %3282 = vmatprep.subr.mxu0 0.0
  %3283 = vmatpush1.msra.mxu0 %v2542
  %3284 = vmatprep.subr.mxu0 0.0
  %3285 = vmatpush1.msra.mxu0 %v2545
  %3286 = vmatprep.subr.mxu0 0.0
  %3287 = vmatpush1.msra.mxu0 %v2548
  %3288 = vmatprep.subr.mxu0 0.0
  %3289 = vmatpush1.msra.mxu0 %v2551
  %3290 = vmatprep.subr.mxu0 0.0
  %3291 = vmatpush1.msra.mxu0 %v2554
  %3292 = vmatprep.subr.mxu0 0.0
  %3293 = vmatpush1.msra.mxu0 %v2557
  %3294 = vmatprep.subr.mxu0 0.0
  %3295 = vmatpush1.msra.mxu0 %v2560
  %3296 = vmatprep.subr.mxu0 0.0
  %3297 = vmatpush1.msra.mxu0 %v2563
  %3298 = vmatprep.subr.mxu0 0.0
  %3299 = vmatpush1.msra.mxu0 %v2566
  %3300 = vmatprep.subr.mxu0 0.0
  %3301 = vmatpush1.msra.mxu0 %v2569
  %3302 = vmatprep.subr.mxu0 0.0
  %3303 = vmatpush1.msra.mxu0 %v2572
  %3304 = vmatprep.subr.mxu0 0.0
  %3305 = vmatpush1.msra.mxu0 %v2575
  %3306 = vmatprep.subr.mxu0 0.0
  %3307 = vmatpush1.msra.mxu0 %v2578
  %3308 = vmatprep.subr.mxu0 0.0
  %3309 = vmatpush1.msra.mxu0 %v2581
  %3310 = vmatprep.subr.mxu0 0.0
  %3311 = vmatpush1.msra.mxu0 %v2584
  %3312 = vmatprep.subr.mxu0 0.0
  %3313 = vmatpush1.msra.mxu0 %v2587
  %3314 = vmatprep.subr.mxu0 0.0
  %3315 = vmatpush1.msra.mxu0 %v2590
  %3316 = vmatprep.subr.mxu0 0.0
  %3317 = vmatpush1.msra.mxu0 %v2593
  %3318 = vmatprep.subr.mxu0 0.0
  %3319 = vmatpush1.msra.mxu0 %v2596
  %3320 = vmatprep.subr.mxu0 0.0
  %3321 = vmatpush1.msra.mxu0 %v2599
  %3322 = vmatprep.subr.mxu0 0.0
  %3323 = vmatpush1.msra.mxu0 %v2602
  %3324 = vmatprep.subr.mxu0 0.0
  %3325 = vmatpush1.msra.mxu0 %v2605
  %3326 = vmatprep.mubr.f32.mxu0 %v2345
  %3327 = vmatmul.mubr.f32.gmra.mrb[0].mxu0 %v2344
  %v3328 = vpop.f32.mrb[0].mxu0
  %v3329 = vadd.f32 %v3204, %v3328
  %v3330 = vpop.f32.mrb[0].mxu0
  %3331 = vmatprep.mubr.f32.mxu0 %v2351
  %3332 = vmatmul.mubr.f32.gmra.mrb[0].mxu0 %v2350
  %v3333 = vpop.f32.mrb[0].mxu0
  %v3334 = vadd.f32 %v3209, %v3333
  %v3335 = vpop.f32.mrb[0].mxu0
  %3336 = vmatprep.mubr.f32.mxu0 %v2357
  %3337 = vmatmul.mubr.f32.gmra.mrb[0].mxu0 %v2356
  %v3338 = vpop.f32.mrb[0].mxu0
  %v3339 = vadd.f32 %v3214, %v3338
  %v3340 = vpop.f32.mrb[0].mxu0
  %3341 = vmatprep.mubr.f32.mxu0 %v2363
  %3342 = vmatmul.mubr.f32.gmra.mrb[0].mxu0 %v2362
  %v3343 = vpop.f32.mrb[0].mxu0
  %v3344 = vadd.f32 %v3219, %v3343
  %v3345 = vpop.f32.mrb[0].mxu0
  %3346 = vmatprep.mubr.f32.mxu0 %v2369
  %3347 = vmatmul.mubr.f32.gmra.mrb[0].mxu0 %v2368
  %v3348 = vpop.f32.mrb[0].mxu0
  %v3349 = vadd.f32 %v3224, %v3348
  %v3350 = vpop.f32.mrb[0].mxu0
  %3351 = vmatprep.mubr.f32.mxu0 %v2375
  %3352 = vmatmul.mubr.f32.gmra.mrb[0].mxu0 %v2374
  %v3353 = vpop.f32.mrb[0].mxu0
  %v3354 = vadd.f32 %v3229, %v3353
  %v3355 = vpop.f32.mrb[0].mxu0
  %3356 = vmatprep.mubr.f32.mxu0 %v2381
  %3357 = vmatmul.mubr.f32.gmra.mrb[0].mxu0 %v2380
  %v3358 = vpop.f32.mrb[0].mxu0
  %v3359 = vadd.f32 %v3234, %v3358
  %v3360 = vpop.f32.mrb[0].mxu0
  %3361 = vmatprep.mubr.f32.mxu0 %v2387
  %3362 = vmatmul.mubr.f32.gmra.mrb[0].mxu0 %v2386
  %v3363 = vpop.f32.mrb[0].mxu0
  %v3364 = vadd.f32 %v3239, %v3363
  %v3365 = vpop.f32.mrb[0].mxu0
  %3366 = vmatprep.mubr.f32.mxu0 %v2393
  %3367 = vmatmul.mubr.f32.gmra.mrb[0].mxu0 %v2392
  %v3368 = vpop.f32.mrb[0].mxu0
  %v3369 = vadd.f32 %v3244, %v3368
  %v3370 = vpop.f32.mrb[0].mxu0
  %3371 = vmatprep.mubr.f32.mxu0 %v2399
  %3372 = vmatmul.mubr.f32.gmra.mrb[0].mxu0 %v2398
  %v3373 = vpop.f32.mrb[0].mxu0
  %v3374 = vadd.f32 %v3249, %v3373
  %v3375 = vpop.f32.mrb[0].mxu0
  %3376 = vmatprep.mubr.f32.mxu0 %v2405
  %3377 = vmatmul.mubr.f32.gmra.mrb[0].mxu0 %v2404
  %v3378 = vpop.f32.mrb[0].mxu0
  %v3379 = vadd.f32 %v3254, %v3378
  %v3380 = vpop.f32.mrb[0].mxu0
  %3381 = vmatprep.mubr.f32.mxu0 %v2411
  %3382 = vmatmul.mubr.f32.gmra.mrb[0].mxu0 %v2410
  %v3383 = vpop.f32.mrb[0].mxu0
  %v3384 = vadd.f32 %v3259, %v3383
  %v3385 = vpop.f32.mrb[0].mxu0
  %3386 = vdwg.mxu0
  %3387 = vmatprep.subr.mxu0 0.0
  %3388 = vmatpush1.msra.mxu0 %v2608
  %3389 = vmatprep.subr.mxu0 0.0
  %3390 = vmatpush1.msra.mxu0 %v2611
  %3391 = vmatprep.subr.mxu0 0.0
  %3392 = vmatpush1.msra.mxu0 %v2614
  %3393 = vmatprep.subr.mxu0 0.0
  %3394 = vmatpush1.msra.mxu0 %v2617
  %3395 = vmatprep.subr.mxu0 0.0
  %3396 = vmatpush1.msra.mxu0 %v2620
  %3397 = vmatprep.subr.mxu0 0.0
  %3398 = vmatpush1.msra.mxu0 %v2623
  %3399 = vmatprep.subr.mxu0 0.0
  %3400 = vmatpush1.msra.mxu0 %v2626
  %3401 = vmatprep.subr.mxu0 0.0
  %3402 = vmatpush1.msra.mxu0 %v2629
  %3403 = vmatprep.subr.mxu0 0.0
  %3404 = vmatpush1.msra.mxu0 %v2632
  %3405 = vmatprep.subr.mxu0 0.0
  %3406 = vmatpush1.msra.mxu0 %v2635
  %3407 = vmatprep.subr.mxu0 0.0
  %3408 = vmatpush1.msra.mxu0 %v2638
  %3409 = vmatprep.subr.mxu0 0.0
  %3410 = vmatpush1.msra.mxu0 %v2641
  %3411 = vmatprep.subr.mxu0 0.0
  %3412 = vmatpush1.msra.mxu0 %v2644
  %3413 = vmatprep.subr.mxu0 0.0
  %3414 = vmatpush1.msra.mxu0 %v2647
  %3415 = vmatprep.subr.mxu0 0.0
  %3416 = vmatpush1.msra.mxu0 %v2650
  %3417 = vmatprep.subr.mxu0 0.0
  %3418 = vmatpush1.msra.mxu0 %v2653
  %3419 = vmatprep.subr.mxu0 0.0
  %3420 = vmatpush1.msra.mxu0 %v2656
  %3421 = vmatprep.subr.mxu0 0.0
  %3422 = vmatpush1.msra.mxu0 %v2659
  %3423 = vmatprep.subr.mxu0 0.0
  %3424 = vmatpush1.msra.mxu0 %v2662
  %3425 = vmatprep.subr.mxu0 0.0
  %3426 = vmatpush1.msra.mxu0 %v2665
  %3427 = vmatprep.subr.mxu0 0.0
  %3428 = vmatpush1.msra.mxu0 %v2668
  %3429 = vmatprep.subr.mxu0 0.0
  %3430 = vmatpush1.msra.mxu0 %v2671
  %3431 = vmatprep.subr.mxu0 0.0
  %3432 = vmatpush1.msra.mxu0 %v2674
  %3433 = vmatprep.subr.mxu0 0.0
  %3434 = vmatpush1.msra.mxu0 %v2677
  %3435 = vmatprep.subr.mxu0 0.0
  %3436 = vmatpush1.msra.mxu0 %v2680
  %3437 = vmatprep.subr.mxu0 0.0
  %3438 = vmatpush1.msra.mxu0 %v2683
  %3439 = vmatprep.subr.mxu0 0.0
  %3440 = vmatpush1.msra.mxu0 %v2686
  %3441 = vmatprep.subr.mxu0 0.0
  %3442 = vmatpush1.msra.mxu0 %v2689
  %3443 = vmatprep.subr.mxu0 0.0
  %3444 = vmatpush1.msra.mxu0 0.0
  %3445 = vmatprep.subr.mxu0 0.0
  %3446 = vmatpush1.msra.mxu0 0.0
  %3447 = vmatprep.subr.mxu0 0.0
  %3448 = vmatpush1.msra.mxu0 0.0
  %3449 = vmatprep.subr.mxu0 0.0
  %3450 = vmatpush1.msra.mxu0 0.0
  %3451 = vmatprep.mubr.f32.mxu0 %v2691
  %3452 = vmatmul.mubr.f32.gmra.mrb[0].mxu0 %v2346
  %v3453 = vpop.f32.mrb[0].mxu0
  %v3454 = vadd.f32 %v3329, %v3453
  %v3455 = vpop.f32.mrb[0].mxu0
  %3456 = vmatprep.mubr.f32.mxu0 %v2694
  %3457 = vmatmul.mubr.f32.gmra.mrb[0].mxu0 %v2352
  %v3458 = vpop.f32.mrb[0].mxu0
  %v3459 = vadd.f32 %v3334, %v3458
  %v3460 = vpop.f32.mrb[0].mxu0
  %3461 = vmatprep.mubr.f32.mxu0 %v2697
  %3462 = vmatmul.mubr.f32.gmra.mrb[0].mxu0 %v2358
  %v3463 = vpop.f32.mrb[0].mxu0
  %v3464 = vadd.f32 %v3339, %v3463
  %v3465 = vpop.f32.mrb[0].mxu0
  %3466 = vmatprep.mubr.f32.mxu0 %v2700
  %3467 = vmatmul.mubr.f32.gmra.mrb[0].mxu0 %v2364
  %v3468 = vpop.f32.mrb[0].mxu0
  %v3469 = vadd.f32 %v3344, %v3468
  %v3470 = vpop.f32.mrb[0].mxu0
  %3471 = vmatprep.mubr.f32.mxu0 %v2703
  %3472 = vmatmul.mubr.f32.gmra.mrb[0].mxu0 %v2370
  %v3473 = vpop.f32.mrb[0].mxu0
  %v3474 = vadd.f32 %v3349, %v3473
  %v3475 = vpop.f32.mrb[0].mxu0
  %3476 = vmatprep.mubr.f32.mxu0 %v2706
  %3477 = vmatmul.mubr.f32.gmra.mrb[0].mxu0 %v2376
  %v3478 = vpop.f32.mrb[0].mxu0
  %v3479 = vadd.f32 %v3354, %v3478
  %v3480 = vpop.f32.mrb[0].mxu0
  %3481 = vmatprep.mubr.f32.mxu0 %v2709
  %3482 = vmatmul.mubr.f32.gmra.mrb[0].mxu0 %v2382
  %v3483 = vpop.f32.mrb[0].mxu0
  %v3484 = vadd.f32 %v3359, %v3483
  %v3485 = vpop.f32.mrb[0].mxu0
  %3486 = vmatprep.mubr.f32.mxu0 %v2712
  %3487 = vmatmul.mubr.f32.gmra.mrb[0].mxu0 %v2388
  %v3488 = vpop.f32.mrb[0].mxu0
  %v3489 = vadd.f32 %v3364, %v3488
  %v3490 = vpop.f32.mrb[0].mxu0
  %3491 = vmatprep.mubr.f32.mxu0 %v2715
  %3492 = vmatmul.mubr.f32.gmra.mrb[0].mxu0 %v2394
  %v3493 = vpop.f32.mrb[0].mxu0
  %v3494 = vadd.f32 %v3369, %v3493
  %v3495 = vpop.f32.mrb[0].mxu0
  %3496 = vmatprep.mubr.f32.mxu0 %v2718
  %3497 = vmatmul.mubr.f32.gmra.mrb[0].mxu0 %v2400
  %v3498 = vpop.f32.mrb[0].mxu0
  %v3499 = vadd.f32 %v3374, %v3498
  %v3500 = vpop.f32.mrb[0].mxu0
  %3501 = vmatprep.mubr.f32.mxu0 %v2721
  %3502 = vmatmul.mubr.f32.gmra.mrb[0].mxu0 %v2406
  %v3503 = vpop.f32.mrb[0].mxu0
  %v3504 = vadd.f32 %v3379, %v3503
  %v3505 = vpop.f32.mrb[0].mxu0
  %3506 = vmatprep.mubr.f32.mxu0 %v2724
  %3507 = vmatmul.mubr.f32.gmra.mrb[0].mxu0 %v2412
  %v3508 = vpop.f32.mrb[0].mxu0
  %v3509 = vadd.f32 %v3384, %v3508
  %v3510 = vpop.f32.mrb[0].mxu0
  %3511 = vdwg.mxu0
  %3512 = vst [vmem:[#allocation4] sm:$0xff] %v3067
  %3513 = vst [vmem:[#allocation4 + $0x8] sm:$0xff] %v3069
  %3514 = vst [vmem:[#allocation4 + $0x10] sm:$0xff] %v3454
  %3515 = vst [vmem:[#allocation4 + $0x18] sm:$0xff] %v3073
  %3516 = vst [vmem:[#allocation4 + $0x20] sm:$0xff] %v3075
  %3517 = vst [vmem:[#allocation4 + $0x28] sm:$0xff] %v3459
  %3518 = vst [vmem:[#allocation4 + $0x30] sm:$0xff] %v3079
  %3519 = vst [vmem:[#allocation4 + $0x38] sm:$0xff] %v3081
  %3520 = vst [vmem:[#allocation4 + $0x40] sm:$0xff] %v3464
  %3521 = vst [vmem:[#allocation4 + $0x48] sm:$0xff] %v3085
  %3522 = vst [vmem:[#allocation4 + $0x50] sm:$0xff] %v3087
  %3523 = vst [vmem:[#allocation4 + $0x58] sm:$0xff] %v3469
  %3524 = vst [vmem:[#allocation4 + $0x60] sm:$0xff] %v3091
  %3525 = vst [vmem:[#allocation4 + $0x68] sm:$0xff] %v3093
  %3526 = vst [vmem:[#allocation4 + $0x70] sm:$0xff] %v3474
  %3527 = vst [vmem:[#allocation4 + $0x78] sm:$0xff] %v3097
  %3528 = vst [vmem:[#allocation4 + $0x80] sm:$0xff] %v3099
  %3529 = vst [vmem:[#allocation4 + $0x88] sm:$0xff] %v3479
  %3530 = vst [vmem:[#allocation4 + $0x90] sm:$0xff] %v3103
  %3531 = vst [vmem:[#allocation4 + $0x98] sm:$0xff] %v3105
  %3532 = vst [vmem:[#allocation4 + $0xa0] sm:$0xff] %v3484
  %3533 = vst [vmem:[#allocation4 + $0xa8] sm:$0xff] %v3109
  %3534 = vst [vmem:[#allocation4 + $0xb0] sm:$0xff] %v3111
  %3535 = vst [vmem:[#allocation4 + $0xb8] sm:$0xff] %v3489
  %3536 = vst [vmem:[#allocation4 + $0xc0] sm:$0xff] %v3115
  %3537 = vst [vmem:[#allocation4 + $0xc8] sm:$0xff] %v3117
  %3538 = vst [vmem:[#allocation4 + $0xd0] sm:$0xff] %v3494
  %3539 = vst [vmem:[#allocation4 + $0xd8] sm:$0xff] %v3121
  %3540 = vst [vmem:[#allocation4 + $0xe0] sm:$0xff] %v3123
  %3541 = vst [vmem:[#allocation4 + $0xe8] sm:$0xff] %v3499
  %3542 = vst [vmem:[#allocation4 + $0xf0] sm:$0xff] %v3127
  %3543 = vst [vmem:[#allocation4 + $0xf8] sm:$0xff] %v3129
  %3544 = vst [vmem:[#allocation4 + $0x100] sm:$0xff] %v3504
  %3545 = vst [vmem:[#allocation4 + $0x108] sm:$0xff] %v3133
  %3546 = vst [vmem:[#allocation4 + $0x110] sm:$0xff] %v3135
  %3547 = vst [vmem:[#allocation4 + $0x118] sm:$0xff] %v3509
  %v3548 = vld [vmem:[#allocation4] sm:$0xff]
  %v3549 = vld [vmem:[#allocation4 + $0x8] sm:$0xff]
  %v3550 = vld [vmem:[#allocation4 + $0x18] sm:$0xff]
  %v3551 = vld [vmem:[#allocation4 + $0x20] sm:$0xff]
  %v3552 = vld [vmem:[#allocation4 + $0x30] sm:$0xff]
  %v3553 = vld [vmem:[#allocation4 + $0x38] sm:$0xff]
  %v3554 = vld [vmem:[#allocation4 + $0x48] sm:$0xff]
  %v3555 = vld [vmem:[#allocation4 + $0x50] sm:$0xff]
  %v3556 = vld [vmem:[#allocation4 + $0x60] sm:$0xff]
  %v3557 = vld [vmem:[#allocation4 + $0x68] sm:$0xff]
  %v3558 = vld [vmem:[#allocation4 + $0x78] sm:$0xff]
  %v3559 = vld [vmem:[#allocation4 + $0x80] sm:$0xff]
  %v3560 = vld [vmem:[#allocation4 + $0x90] sm:$0xff]
  %v3561 = vld [vmem:[#allocation4 + $0x98] sm:$0xff]
  %v3562 = vld [vmem:[#allocation4 + $0xa8] sm:$0xff]
  %v3563 = vld [vmem:[#allocation4 + $0xb0] sm:$0xff]
  %v3564 = vld [vmem:[#allocation4 + $0xc0] sm:$0xff]
  %v3565 = vld [vmem:[#allocation4 + $0xc8] sm:$0xff]
  %v3566 = vld [vmem:[#allocation4 + $0xd8] sm:$0xff]
  %v3567 = vld [vmem:[#allocation4 + $0xe0] sm:$0xff]
  %v3568 = vld [vmem:[#allocation4 + $0xf0] sm:$0xff]
  %v3569 = vld [vmem:[#allocation4 + $0xf8] sm:$0xff]
  %v3570 = vld [vmem:[#allocation4 + $0x108] sm:$0xff]
  %v3571 = vld [vmem:[#allocation4 + $0x110] sm:$0xff]
  %3572 = vst [vmem:[#allocation5] sm:$0xff] %v3548
  %3573 = vst [vmem:[#allocation5 + $0x8] sm:$0xff] %v3549
  %3574 = vst [vmem:[#allocation5 + $0x10] sm:$0xff] %v3550
  %3575 = vst [vmem:[#allocation5 + $0x18] sm:$0xff] %v3551
  %3576 = vst [vmem:[#allocation5 + $0x20] sm:$0xff] %v3552
  %3577 = vst [vmem:[#allocation5 + $0x28] sm:$0xff] %v3553
  %3578 = vst [vmem:[#allocation5 + $0x30] sm:$0xff] %v3554
  %3579 = vst [vmem:[#allocation5 + $0x38] sm:$0xff] %v3555
  %3580 = vst [vmem:[#allocation5 + $0x40] sm:$0xff] %v3556
  %3581 = vst [vmem:[#allocation5 + $0x48] sm:$0xff] %v3557
  %3582 = vst [vmem:[#allocation5 + $0x50] sm:$0xff] %v3558
  %3583 = vst [vmem:[#allocation5 + $0x58] sm:$0xff] %v3559
  %3584 = vst [vmem:[#allocation5 + $0x60] sm:$0xff] %v3560
  %3585 = vst [vmem:[#allocation5 + $0x68] sm:$0xff] %v3561
  %3586 = vst [vmem:[#allocation5 + $0x70] sm:$0xff] %v3562
  %3587 = vst [vmem:[#allocation5 + $0x78] sm:$0xff] %v3563
  %3588 = vst [vmem:[#allocation5 + $0x80] sm:$0xff] %v3564
  %3589 = vst [vmem:[#allocation5 + $0x88] sm:$0xff] %v3565
  %3590 = vst [vmem:[#allocation5 + $0x90] sm:$0xff] %v3566
  %3591 = vst [vmem:[#allocation5 + $0x98] sm:$0xff] %v3567
  %3592 = vst [vmem:[#allocation5 + $0xa0] sm:$0xff] %v3568
  %3593 = vst [vmem:[#allocation5 + $0xa8] sm:$0xff] %v3569
  %3594 = vst [vmem:[#allocation5 + $0xb0] sm:$0xff] %v3570
  %3595 = vst [vmem:[#allocation5 + $0xb8] sm:$0xff] %v3571
  %v3596 = vld [vmem:[#allocation4] sm:$0xff]
  %v3597 = vld [vmem:[#allocation4 + $0x8] sm:$0xff]
  %v3598 = vld [vmem:[#allocation4 + $0x10] sm:$0xff]
  %v3599 = vld [vmem:[#allocation4 + $0x18] sm:$0xff]
  %v3600 = vld [vmem:[#allocation4 + $0x20] sm:$0xff]
  %v3601 = vld [vmem:[#allocation4 + $0x28] sm:$0xff]
  %v3602 = vld [vmem:[#allocation4 + $0x30] sm:$0xff]
  %v3603 = vld [vmem:[#allocation4 + $0x38] sm:$0xff]
  %v3604 = vld [vmem:[#allocation4 + $0x40] sm:$0xff]
  %v3605 = vld [vmem:[#allocation4 + $0x48] sm:$0xff]
  %v3606 = vld [vmem:[#allocation4 + $0x50] sm:$0xff]
  %v3607 = vld [vmem:[#allocation4 + $0x58] sm:$0xff]
  %v3608 = vld [vmem:[#allocation4 + $0x60] sm:$0xff]
  %v3609 = vld [vmem:[#allocation4 + $0x68] sm:$0xff]
  %v3610 = vld [vmem:[#allocation4 + $0x70] sm:$0xff]
  %v3611 = vld [vmem:[#allocation4 + $0x78] sm:$0xff]
  %v3612 = vld [vmem:[#allocation4 + $0x80] sm:$0xff]
  %v3613 = vld [vmem:[#allocation4 + $0x88] sm:$0xff]
  %v3614 = vld [vmem:[#allocation4 + $0x90] sm:$0xff]
  %v3615 = vld [vmem:[#allocation4 + $0x98] sm:$0xff]
  %v3616 = vld [vmem:[#allocation4 + $0xa0] sm:$0xff]
  %v3617 = vld [vmem:[#allocation4 + $0xa8] sm:$0xff]
  %v3618 = vld [vmem:[#allocation4 + $0xb0] sm:$0xff]
  %v3619 = vld [vmem:[#allocation4 + $0xb8] sm:$0xff]
  %v3620 = vld [vmem:[#allocation4 + $0xc0] sm:$0xff]
  %v3621 = vld [vmem:[#allocation4 + $0xc8] sm:$0xff]
  %v3622 = vld [vmem:[#allocation4 + $0xd0] sm:$0xff]
  %v3623 = vld [vmem:[#allocation4 + $0xd8] sm:$0xff]
  %v3624 = vld [vmem:[#allocation4 + $0xe0] sm:$0xff]
  %v3625 = vld [vmem:[#allocation4 + $0xe8] sm:$0xff]
  %v3626 = vld [vmem:[#allocation4 + $0xf0] sm:$0xff]
  %v3627 = vld [vmem:[#allocation4 + $0xf8] sm:$0xff]
  %v3628 = vld [vmem:[#allocation4 + $0x100] sm:$0xff]
  %v3629 = vld [vmem:[#allocation4 + $0x108] sm:$0xff]
  %v3630 = vld [vmem:[#allocation4 + $0x110] sm:$0xff]
  %v3631 = vld [vmem:[#allocation4 + $0x118] sm:$0xff]
  %3668 = vrot.lane.b32.xlu0 %v3596, 96
  %v3669 = vpop.permute.xlu0 %3668
  %3670 = vrot.lane.b32.xlu0 %v3597, 96
  %v3671 = vpop.permute.xlu0 %3670
  %3672 = vrot.lane.b32.xlu0 %v3598, 96
  %v3673 = vpop.permute.xlu0 %3672
  %3674 = vrot.lane.b32.xlu0 %v3599, 96
  %v3675 = vpop.permute.xlu0 %3674
  %3676 = vrot.lane.b32.xlu0 %v3600, 96
  %v3677 = vpop.permute.xlu0 %3676
  %3678 = vrot.lane.b32.xlu0 %v3601, 96
  %v3679 = vpop.permute.xlu0 %3678
  %3680 = vrot.lane.b32.xlu0 %v3602, 96
  %v3681 = vpop.permute.xlu0 %3680
  %3682 = vrot.lane.b32.xlu0 %v3603, 96
  %v3683 = vpop.permute.xlu0 %3682
  %3684 = vrot.lane.b32.xlu0 %v3604, 96
  %v3685 = vpop.permute.xlu0 %3684
  %3686 = vrot.lane.b32.xlu0 %v3605, 96
  %v3687 = vpop.permute.xlu0 %3686
  %3688 = vrot.lane.b32.xlu0 %v3606, 96
  %v3689 = vpop.permute.xlu0 %3688
  %3690 = vrot.lane.b32.xlu0 %v3607, 96
  %v3691 = vpop.permute.xlu0 %3690
  %3692 = vrot.lane.b32.xlu0 %v3608, 96
  %v3693 = vpop.permute.xlu0 %3692
  %3694 = vrot.lane.b32.xlu0 %v3609, 96
  %v3695 = vpop.permute.xlu0 %3694
  %3696 = vrot.lane.b32.xlu0 %v3610, 96
  %v3697 = vpop.permute.xlu0 %3696
  %3698 = vrot.lane.b32.xlu0 %v3611, 96
  %v3699 = vpop.permute.xlu0 %3698
  %3700 = vrot.lane.b32.xlu0 %v3612, 96
  %v3701 = vpop.permute.xlu0 %3700
  %3702 = vrot.lane.b32.xlu0 %v3613, 96
  %v3703 = vpop.permute.xlu0 %3702
  %3704 = vrot.lane.b32.xlu0 %v3614, 96
  %v3705 = vpop.permute.xlu0 %3704
  %3706 = vrot.lane.b32.xlu0 %v3615, 96
  %v3707 = vpop.permute.xlu0 %3706
  %3708 = vrot.lane.b32.xlu0 %v3616, 96
  %v3709 = vpop.permute.xlu0 %3708
  %3710 = vrot.lane.b32.xlu0 %v3617, 96
  %v3711 = vpop.permute.xlu0 %3710
  %3712 = vrot.lane.b32.xlu0 %v3618, 96
  %v3713 = vpop.permute.xlu0 %3712
  %3714 = vrot.lane.b32.xlu0 %v3619, 96
  %v3715 = vpop.permute.xlu0 %3714
  %3716 = vrot.lane.b32.xlu0 %v3620, 96
  %v3717 = vpop.permute.xlu0 %3716
  %3718 = vrot.lane.b32.xlu0 %v3621, 96
  %v3719 = vpop.permute.xlu0 %3718
  %3720 = vrot.lane.b32.xlu0 %v3622, 96
  %v3721 = vpop.permute.xlu0 %3720
  %3722 = vrot.lane.b32.xlu0 %v3623, 96
  %v3723 = vpop.permute.xlu0 %3722
  %3724 = vrot.lane.b32.xlu0 %v3624, 96
  %v3725 = vpop.permute.xlu0 %3724
  %3726 = vrot.lane.b32.xlu0 %v3625, 96
  %v3727 = vpop.permute.xlu0 %3726
  %3728 = vrot.lane.b32.xlu0 %v3626, 96
  %v3729 = vpop.permute.xlu0 %3728
  %3730 = vrot.lane.b32.xlu0 %v3627, 96
  %v3731 = vpop.permute.xlu0 %3730
  %3732 = vrot.lane.b32.xlu0 %v3628, 96
  %v3733 = vpop.permute.xlu0 %3732
  %3734 = vrot.lane.b32.xlu0 %v3629, 96
  %v3735 = vpop.permute.xlu0 %3734
  %3736 = vrot.lane.b32.xlu0 %v3630, 96
  %v3737 = vpop.permute.xlu0 %3736
  %3738 = vrot.lane.b32.xlu0 %v3631, 96
  %v3739 = vpop.permute.xlu0 %3738
  %v3740 = vsel %vm204, %v3669, %v3671
  %v3741 = vsel %vm204, %v3671, %v3673
  %v3742 = vsel %vm204, %v3675, %v3677
  %v3743 = vsel %vm204, %v3677, %v3679
  %v3744 = vsel %vm204, %v3681, %v3683
  %v3745 = vsel %vm204, %v3683, %v3685
  %v3746 = vsel %vm204, %v3687, %v3689
  %v3747 = vsel %vm204, %v3689, %v3691
  %v3748 = vsel %vm204, %v3693, %v3695
  %v3749 = vsel %vm204, %v3695, %v3697
  %v3750 = vsel %vm204, %v3699, %v3701
  %v3751 = vsel %vm204, %v3701, %v3703
  %v3752 = vsel %vm204, %v3705, %v3707
  %v3753 = vsel %vm204, %v3707, %v3709
  %v3754 = vsel %vm204, %v3711, %v3713
  %v3755 = vsel %vm204, %v3713, %v3715
  %v3756 = vsel %vm204, %v3717, %v3719
  %v3757 = vsel %vm204, %v3719, %v3721
  %v3758 = vsel %vm204, %v3723, %v3725
  %v3759 = vsel %vm204, %v3725, %v3727
  %v3760 = vsel %vm204, %v3729, %v3731
  %v3761 = vsel %vm204, %v3731, %v3733
  %v3762 = vsel %vm204, %v3735, %v3737
  %v3763 = vsel %vm204, %v3737, %v3739
  %3788 = vst [vmem:[#allocation5 + $0xc0] sm:$0xff] %v3740
  %3789 = vst [vmem:[#allocation5 + $0xc8] sm:$0xff] %v3741
  %3790 = vst [vmem:[#allocation5 + $0xd0] sm:$0xff] %v3742
  %3791 = vst [vmem:[#allocation5 + $0xd8] sm:$0xff] %v3743
  %3792 = vst [vmem:[#allocation5 + $0xe0] sm:$0xff] %v3744
  %3793 = vst [vmem:[#allocation5 + $0xe8] sm:$0xff] %v3745
  %3794 = vst [vmem:[#allocation5 + $0xf0] sm:$0xff] %v3746
  %3795 = vst [vmem:[#allocation5 + $0xf8] sm:$0xff] %v3747
  %3796 = vst [vmem:[#allocation5 + $0x100] sm:$0xff] %v3748
  %3797 = vst [vmem:[#allocation5 + $0x108] sm:$0xff] %v3749
  %3798 = vst [vmem:[#allocation5 + $0x110] sm:$0xff] %v3750
  %3799 = vst [vmem:[#allocation5 + $0x118] sm:$0xff] %v3751
  %3800 = vst [vmem:[#allocation5 + $0x120] sm:$0xff] %v3752
  %3801 = vst [vmem:[#allocation5 + $0x128] sm:$0xff] %v3753
  %3802 = vst [vmem:[#allocation5 + $0x130] sm:$0xff] %v3754
  %3803 = vst [vmem:[#allocation5 + $0x138] sm:$0xff] %v3755
  %3804 = vst [vmem:[#allocation5 + $0x140] sm:$0xff] %v3756
  %3805 = vst [vmem:[#allocation5 + $0x148] sm:$0xff] %v3757
  %3806 = vst [vmem:[#allocation5 + $0x150] sm:$0xff] %v3758
  %3807 = vst [vmem:[#allocation5 + $0x158] sm:$0xff] %v3759
  %3808 = vst [vmem:[#allocation5 + $0x160] sm:$0xff] %v3760
  %3809 = vst [vmem:[#allocation5 + $0x168] sm:$0xff] %v3761
  %3810 = vst [vmem:[#allocation5 + $0x170] sm:$0xff] %v3762
  %3811 = vst [vmem:[#allocation5 + $0x178] sm:$0xff] %v3763
  %v3812 = vld [vmem:[#allocation4] sm:$0xff]
  %v3813 = vld [vmem:[#allocation4 + $0x8] sm:$0xff]
  %v3814 = vld [vmem:[#allocation4 + $0x10] sm:$0xff]
  %v3815 = vld [vmem:[#allocation4 + $0x18] sm:$0xff]
  %v3816 = vld [vmem:[#allocation4 + $0x20] sm:$0xff]
  %v3817 = vld [vmem:[#allocation4 + $0x28] sm:$0xff]
  %v3818 = vld [vmem:[#allocation4 + $0x30] sm:$0xff]
  %v3819 = vld [vmem:[#allocation4 + $0x38] sm:$0xff]
  %v3820 = vld [vmem:[#allocation4 + $0x40] sm:$0xff]
  %v3821 = vld [vmem:[#allocation4 + $0x48] sm:$0xff]
  %v3822 = vld [vmem:[#allocation4 + $0x50] sm:$0xff]
  %v3823 = vld [vmem:[#allocation4 + $0x58] sm:$0xff]
  %v3824 = vld [vmem:[#allocation4 + $0x60] sm:$0xff]
  %v3825 = vld [vmem:[#allocation4 + $0x68] sm:$0xff]
  %v3826 = vld [vmem:[#allocation4 + $0x70] sm:$0xff]
  %v3827 = vld [vmem:[#allocation4 + $0x78] sm:$0xff]
  %v3828 = vld [vmem:[#allocation4 + $0x80] sm:$0xff]
  %v3829 = vld [vmem:[#allocation4 + $0x88] sm:$0xff]
  %v3830 = vld [vmem:[#allocation4 + $0x90] sm:$0xff]
  %v3831 = vld [vmem:[#allocation4 + $0x98] sm:$0xff]
  %v3832 = vld [vmem:[#allocation4 + $0xa0] sm:$0xff]
  %v3833 = vld [vmem:[#allocation4 + $0xa8] sm:$0xff]
  %v3834 = vld [vmem:[#allocation4 + $0xb0] sm:$0xff]
  %v3835 = vld [vmem:[#allocation4 + $0xb8] sm:$0xff]
  %v3836 = vld [vmem:[#allocation4 + $0xc0] sm:$0xff]
  %v3837 = vld [vmem:[#allocation4 + $0xc8] sm:$0xff]
  %v3838 = vld [vmem:[#allocation4 + $0xd0] sm:$0xff]
  %v3839 = vld [vmem:[#allocation4 + $0xd8] sm:$0xff]
  %v3840 = vld [vmem:[#allocation4 + $0xe0] sm:$0xff]
  %v3841 = vld [vmem:[#allocation4 + $0xe8] sm:$0xff]
  %v3842 = vld [vmem:[#allocation4 + $0xf0] sm:$0xff]
  %v3843 = vld [vmem:[#allocation4 + $0xf8] sm:$0xff]
  %v3844 = vld [vmem:[#allocation4 + $0x100] sm:$0xff]
  %v3845 = vld [vmem:[#allocation4 + $0x108] sm:$0xff]
  %v3846 = vld [vmem:[#allocation4 + $0x110] sm:$0xff]
  %v3847 = vld [vmem:[#allocation4 + $0x118] sm:$0xff]
  %3884 = vrot.lane.b32.xlu0 %v3812, 64
  %v3885 = vpop.permute.xlu0 %3884
  %3886 = vrot.lane.b32.xlu0 %v3813, 64
  %v3887 = vpop.permute.xlu0 %3886
  %3888 = vrot.lane.b32.xlu0 %v3814, 64
  %v3889 = vpop.permute.xlu0 %3888
  %3890 = vrot.lane.b32.xlu0 %v3815, 64
  %v3891 = vpop.permute.xlu0 %3890
  %3892 = vrot.lane.b32.xlu0 %v3816, 64
  %v3893 = vpop.permute.xlu0 %3892
  %3894 = vrot.lane.b32.xlu0 %v3817, 64
  %v3895 = vpop.permute.xlu0 %3894
  %3896 = vrot.lane.b32.xlu0 %v3818, 64
  %v3897 = vpop.permute.xlu0 %3896
  %3898 = vrot.lane.b32.xlu0 %v3819, 64
  %v3899 = vpop.permute.xlu0 %3898
  %3900 = vrot.lane.b32.xlu0 %v3820, 64
  %v3901 = vpop.permute.xlu0 %3900
  %3902 = vrot.lane.b32.xlu0 %v3821, 64
  %v3903 = vpop.permute.xlu0 %3902
  %3904 = vrot.lane.b32.xlu0 %v3822, 64
  %v3905 = vpop.permute.xlu0 %3904
  %3906 = vrot.lane.b32.xlu0 %v3823, 64
  %v3907 = vpop.permute.xlu0 %3906
  %3908 = vrot.lane.b32.xlu0 %v3824, 64
  %v3909 = vpop.permute.xlu0 %3908
  %3910 = vrot.lane.b32.xlu0 %v3825, 64
  %v3911 = vpop.permute.xlu0 %3910
  %3912 = vrot.lane.b32.xlu0 %v3826, 64
  %v3913 = vpop.permute.xlu0 %3912
  %3914 = vrot.lane.b32.xlu0 %v3827, 64
  %v3915 = vpop.permute.xlu0 %3914
  %3916 = vrot.lane.b32.xlu0 %v3828, 64
  %v3917 = vpop.permute.xlu0 %3916
  %3918 = vrot.lane.b32.xlu0 %v3829, 64
  %v3919 = vpop.permute.xlu0 %3918
  %3920 = vrot.lane.b32.xlu0 %v3830, 64
  %v3921 = vpop.permute.xlu0 %3920
  %3922 = vrot.lane.b32.xlu0 %v3831, 64
  %v3923 = vpop.permute.xlu0 %3922
  %3924 = vrot.lane.b32.xlu0 %v3832, 64
  %v3925 = vpop.permute.xlu0 %3924
  %3926 = vrot.lane.b32.xlu0 %v3833, 64
  %v3927 = vpop.permute.xlu0 %3926
  %3928 = vrot.lane.b32.xlu0 %v3834, 64
  %v3929 = vpop.permute.xlu0 %3928
  %3930 = vrot.lane.b32.xlu0 %v3835, 64
  %v3931 = vpop.permute.xlu0 %3930
  %3932 = vrot.lane.b32.xlu0 %v3836, 64
  %v3933 = vpop.permute.xlu0 %3932
  %3934 = vrot.lane.b32.xlu0 %v3837, 64
  %v3935 = vpop.permute.xlu0 %3934
  %3936 = vrot.lane.b32.xlu0 %v3838, 64
  %v3937 = vpop.permute.xlu0 %3936
  %3938 = vrot.lane.b32.xlu0 %v3839, 64
  %v3939 = vpop.permute.xlu0 %3938
  %3940 = vrot.lane.b32.xlu0 %v3840, 64
  %v3941 = vpop.permute.xlu0 %3940
  %3942 = vrot.lane.b32.xlu0 %v3841, 64
  %v3943 = vpop.permute.xlu0 %3942
  %3944 = vrot.lane.b32.xlu0 %v3842, 64
  %v3945 = vpop.permute.xlu0 %3944
  %3946 = vrot.lane.b32.xlu0 %v3843, 64
  %v3947 = vpop.permute.xlu0 %3946
  %3948 = vrot.lane.b32.xlu0 %v3844, 64
  %v3949 = vpop.permute.xlu0 %3948
  %3950 = vrot.lane.b32.xlu0 %v3845, 64
  %v3951 = vpop.permute.xlu0 %3950
  %3952 = vrot.lane.b32.xlu0 %v3846, 64
  %v3953 = vpop.permute.xlu0 %3952
  %3954 = vrot.lane.b32.xlu0 %v3847, 64
  %v3955 = vpop.permute.xlu0 %3954
  %v3956 = vsel %vm389, %v3885, %v3887
  %v3957 = vsel %vm389, %v3887, %v3889
  %v3958 = vsel %vm389, %v3891, %v3893
  %v3959 = vsel %vm389, %v3893, %v3895
  %v3960 = vsel %vm389, %v3897, %v3899
  %v3961 = vsel %vm389, %v3899, %v3901
  %v3962 = vsel %vm389, %v3903, %v3905
  %v3963 = vsel %vm389, %v3905, %v3907
  %v3964 = vsel %vm389, %v3909, %v3911
  %v3965 = vsel %vm389, %v3911, %v3913
  %v3966 = vsel %vm389, %v3915, %v3917
  %v3967 = vsel %vm389, %v3917, %v3919
  %v3968 = vsel %vm389, %v3921, %v3923
  %v3969 = vsel %vm389, %v3923, %v3925
  %v3970 = vsel %vm389, %v3927, %v3929
  %v3971 = vsel %vm389, %v3929, %v3931
  %v3972 = vsel %vm389, %v3933, %v3935
  %v3973 = vsel %vm389, %v3935, %v3937
  %v3974 = vsel %vm389, %v3939, %v3941
  %v3975 = vsel %vm389, %v3941, %v3943
  %v3976 = vsel %vm389, %v3945, %v3947
  %v3977 = vsel %vm389, %v3947, %v3949
  %v3978 = vsel %vm389, %v3951, %v3953
  %v3979 = vsel %vm389, %v3953, %v3955
  %4004 = vst [vmem:[#allocation5 + $0x180] sm:$0xff] %v3956
  %4005 = vst [vmem:[#allocation5 + $0x188] sm:$0xff] %v3957
  %4006 = vst [vmem:[#allocation5 + $0x190] sm:$0xff] %v3958
  %4007 = vst [vmem:[#allocation5 + $0x198] sm:$0xff] %v3959
  %4008 = vst [vmem:[#allocation5 + $0x1a0] sm:$0xff] %v3960
  %4009 = vst [vmem:[#allocation5 + $0x1a8] sm:$0xff] %v3961
  %4010 = vst [vmem:[#allocation5 + $0x1b0] sm:$0xff] %v3962
  %4011 = vst [vmem:[#allocation5 + $0x1b8] sm:$0xff] %v3963
  %4012 = vst [vmem:[#allocation5 + $0x1c0] sm:$0xff] %v3964
  %4013 = vst [vmem:[#allocation5 + $0x1c8] sm:$0xff] %v3965
  %4014 = vst [vmem:[#allocation5 + $0x1d0] sm:$0xff] %v3966
  %4015 = vst [vmem:[#allocation5 + $0x1d8] sm:$0xff] %v3967
  %4016 = vst [vmem:[#allocation5 + $0x1e0] sm:$0xff] %v3968
  %4017 = vst [vmem:[#allocation5 + $0x1e8] sm:$0xff] %v3969
  %4018 = vst [vmem:[#allocation5 + $0x1f0] sm:$0xff] %v3970
  %4019 = vst [vmem:[#allocation5 + $0x1f8] sm:$0xff] %v3971
  %4020 = vst [vmem:[#allocation5 + $0x200] sm:$0xff] %v3972
  %4021 = vst [vmem:[#allocation5 + $0x208] sm:$0xff] %v3973
  %4022 = vst [vmem:[#allocation5 + $0x210] sm:$0xff] %v3974
  %4023 = vst [vmem:[#allocation5 + $0x218] sm:$0xff] %v3975
  %4024 = vst [vmem:[#allocation5 + $0x220] sm:$0xff] %v3976
  %4025 = vst [vmem:[#allocation5 + $0x228] sm:$0xff] %v3977
  %4026 = vst [vmem:[#allocation5 + $0x230] sm:$0xff] %v3978
  %4027 = vst [vmem:[#allocation5 + $0x238] sm:$0xff] %v3979
  %v4028 = vld [vmem:[#allocation4] sm:$0xff]
  %v4029 = vld [vmem:[#allocation4 + $0x8] sm:$0xff]
  %v4030 = vld [vmem:[#allocation4 + $0x10] sm:$0xff]
  %v4031 = vld [vmem:[#allocation4 + $0x18] sm:$0xff]
  %v4032 = vld [vmem:[#allocation4 + $0x20] sm:$0xff]
  %v4033 = vld [vmem:[#allocation4 + $0x28] sm:$0xff]
  %v4034 = vld [vmem:[#allocation4 + $0x30] sm:$0xff]
  %v4035 = vld [vmem:[#allocation4 + $0x38] sm:$0xff]
  %v4036 = vld [vmem:[#allocation4 + $0x40] sm:$0xff]
  %v4037 = vld [vmem:[#allocation4 + $0x48] sm:$0xff]
  %v4038 = vld [vmem:[#allocation4 + $0x50] sm:$0xff]
  %v4039 = vld [vmem:[#allocation4 + $0x58] sm:$0xff]
  %v4040 = vld [vmem:[#allocation4 + $0x60] sm:$0xff]
  %v4041 = vld [vmem:[#allocation4 + $0x68] sm:$0xff]
  %v4042 = vld [vmem:[#allocation4 + $0x70] sm:$0xff]
  %v4043 = vld [vmem:[#allocation4 + $0x78] sm:$0xff]
  %v4044 = vld [vmem:[#allocation4 + $0x80] sm:$0xff]
  %v4045 = vld [vmem:[#allocation4 + $0x88] sm:$0xff]
  %v4046 = vld [vmem:[#allocation4 + $0x90] sm:$0xff]
  %v4047 = vld [vmem:[#allocation4 + $0x98] sm:$0xff]
  %v4048 = vld [vmem:[#allocation4 + $0xa0] sm:$0xff]
  %v4049 = vld [vmem:[#allocation4 + $0xa8] sm:$0xff]
  %v4050 = vld [vmem:[#allocation4 + $0xb0] sm:$0xff]
  %v4051 = vld [vmem:[#allocation4 + $0xb8] sm:$0xff]
  %v4052 = vld [vmem:[#allocation4 + $0xc0] sm:$0xff]
  %v4053 = vld [vmem:[#allocation4 + $0xc8] sm:$0xff]
  %v4054 = vld [vmem:[#allocation4 + $0xd0] sm:$0xff]
  %v4055 = vld [vmem:[#allocation4 + $0xd8] sm:$0xff]
  %v4056 = vld [vmem:[#allocation4 + $0xe0] sm:$0xff]
  %v4057 = vld [vmem:[#allocation4 + $0xe8] sm:$0xff]
  %v4058 = vld [vmem:[#allocation4 + $0xf0] sm:$0xff]
  %v4059 = vld [vmem:[#allocation4 + $0xf8] sm:$0xff]
  %v4060 = vld [vmem:[#allocation4 + $0x100] sm:$0xff]
  %v4061 = vld [vmem:[#allocation4 + $0x108] sm:$0xff]
  %v4062 = vld [vmem:[#allocation4 + $0x110] sm:$0xff]
  %v4063 = vld [vmem:[#allocation4 + $0x118] sm:$0xff]
  %4100 = vrot.lane.b32.xlu0 %v4028, 32
  %v4101 = vpop.permute.xlu0 %4100
  %4102 = vrot.lane.b32.xlu0 %v4029, 32
  %v4103 = vpop.permute.xlu0 %4102
  %4104 = vrot.lane.b32.xlu0 %v4030, 32
  %v4105 = vpop.permute.xlu0 %4104
  %4106 = vrot.lane.b32.xlu0 %v4031, 32
  %v4107 = vpop.permute.xlu0 %4106
  %4108 = vrot.lane.b32.xlu0 %v4032, 32
  %v4109 = vpop.permute.xlu0 %4108
  %4110 = vrot.lane.b32.xlu0 %v4033, 32
  %v4111 = vpop.permute.xlu0 %4110
  %4112 = vrot.lane.b32.xlu0 %v4034, 32
  %v4113 = vpop.permute.xlu0 %4112
  %4114 = vrot.lane.b32.xlu0 %v4035, 32
  %v4115 = vpop.permute.xlu0 %4114
  %4116 = vrot.lane.b32.xlu0 %v4036, 32
  %v4117 = vpop.permute.xlu0 %4116
  %4118 = vrot.lane.b32.xlu0 %v4037, 32
  %v4119 = vpop.permute.xlu0 %4118
  %4120 = vrot.lane.b32.xlu0 %v4038, 32
  %v4121 = vpop.permute.xlu0 %4120
  %4122 = vrot.lane.b32.xlu0 %v4039, 32
  %v4123 = vpop.permute.xlu0 %4122
  %4124 = vrot.lane.b32.xlu0 %v4040, 32
  %v4125 = vpop.permute.xlu0 %4124
  %4126 = vrot.lane.b32.xlu0 %v4041, 32
  %v4127 = vpop.permute.xlu0 %4126
  %4128 = vrot.lane.b32.xlu0 %v4042, 32
  %v4129 = vpop.permute.xlu0 %4128
  %4130 = vrot.lane.b32.xlu0 %v4043, 32
  %v4131 = vpop.permute.xlu0 %4130
  %4132 = vrot.lane.b32.xlu0 %v4044, 32
  %v4133 = vpop.permute.xlu0 %4132
  %4134 = vrot.lane.b32.xlu0 %v4045, 32
  %v4135 = vpop.permute.xlu0 %4134
  %4136 = vrot.lane.b32.xlu0 %v4046, 32
  %v4137 = vpop.permute.xlu0 %4136
  %4138 = vrot.lane.b32.xlu0 %v4047, 32
  %v4139 = vpop.permute.xlu0 %4138
  %4140 = vrot.lane.b32.xlu0 %v4048, 32
  %v4141 = vpop.permute.xlu0 %4140
  %4142 = vrot.lane.b32.xlu0 %v4049, 32
  %v4143 = vpop.permute.xlu0 %4142
  %4144 = vrot.lane.b32.xlu0 %v4050, 32
  %v4145 = vpop.permute.xlu0 %4144
  %4146 = vrot.lane.b32.xlu0 %v4051, 32
  %v4147 = vpop.permute.xlu0 %4146
  %4148 = vrot.lane.b32.xlu0 %v4052, 32
  %v4149 = vpop.permute.xlu0 %4148
  %4150 = vrot.lane.b32.xlu0 %v4053, 32
  %v4151 = vpop.permute.xlu0 %4150
  %4152 = vrot.lane.b32.xlu0 %v4054, 32
  %v4153 = vpop.permute.xlu0 %4152
  %4154 = vrot.lane.b32.xlu0 %v4055, 32
  %v4155 = vpop.permute.xlu0 %4154
  %4156 = vrot.lane.b32.xlu0 %v4056, 32
  %v4157 = vpop.permute.xlu0 %4156
  %4158 = vrot.lane.b32.xlu0 %v4057, 32
  %v4159 = vpop.permute.xlu0 %4158
  %4160 = vrot.lane.b32.xlu0 %v4058, 32
  %v4161 = vpop.permute.xlu0 %4160
  %4162 = vrot.lane.b32.xlu0 %v4059, 32
  %v4163 = vpop.permute.xlu0 %4162
  %4164 = vrot.lane.b32.xlu0 %v4060, 32
  %v4165 = vpop.permute.xlu0 %4164
  %4166 = vrot.lane.b32.xlu0 %v4061, 32
  %v4167 = vpop.permute.xlu0 %4166
  %4168 = vrot.lane.b32.xlu0 %v4062, 32
  %v4169 = vpop.permute.xlu0 %4168
  %4170 = vrot.lane.b32.xlu0 %v4063, 32
  %v4171 = vpop.permute.xlu0 %4170
  %v4172 = vsel %vm574, %v4101, %v4103
  %v4173 = vsel %vm574, %v4103, %v4105
  %v4174 = vsel %vm574, %v4107, %v4109
  %v4175 = vsel %vm574, %v4109, %v4111
  %v4176 = vsel %vm574, %v4113, %v4115
  %v4177 = vsel %vm574, %v4115, %v4117
  %v4178 = vsel %vm574, %v4119, %v4121
  %v4179 = vsel %vm574, %v4121, %v4123
  %v4180 = vsel %vm574, %v4125, %v4127
  %v4181 = vsel %vm574, %v4127, %v4129
  %v4182 = vsel %vm574, %v4131, %v4133
  %v4183 = vsel %vm574, %v4133, %v4135
  %v4184 = vsel %vm574, %v4137, %v4139
  %v4185 = vsel %vm574, %v4139, %v4141
  %v4186 = vsel %vm574, %v4143, %v4145
  %v4187 = vsel %vm574, %v4145, %v4147
  %v4188 = vsel %vm574, %v4149, %v4151
  %v4189 = vsel %vm574, %v4151, %v4153
  %v4190 = vsel %vm574, %v4155, %v4157
  %v4191 = vsel %vm574, %v4157, %v4159
  %v4192 = vsel %vm574, %v4161, %v4163
  %v4193 = vsel %vm574, %v4163, %v4165
  %v4194 = vsel %vm574, %v4167, %v4169
  %v4195 = vsel %vm574, %v4169, %v4171
  %4220 = vst [vmem:[#allocation5 + $0x240] sm:$0xff] %v4172
  %4221 = vst [vmem:[#allocation5 + $0x248] sm:$0xff] %v4173
  %4222 = vst [vmem:[#allocation5 + $0x250] sm:$0xff] %v4174
  %4223 = vst [vmem:[#allocation5 + $0x258] sm:$0xff] %v4175
  %4224 = vst [vmem:[#allocation5 + $0x260] sm:$0xff] %v4176
  %4225 = vst [vmem:[#allocation5 + $0x268] sm:$0xff] %v4177
  %4226 = vst [vmem:[#allocation5 + $0x270] sm:$0xff] %v4178
  %4227 = vst [vmem:[#allocation5 + $0x278] sm:$0xff] %v4179
  %4228 = vst [vmem:[#allocation5 + $0x280] sm:$0xff] %v4180
  %4229 = vst [vmem:[#allocation5 + $0x288] sm:$0xff] %v4181
  %4230 = vst [vmem:[#allocation5 + $0x290] sm:$0xff] %v4182
  %4231 = vst [vmem:[#allocation5 + $0x298] sm:$0xff] %v4183
  %4232 = vst [vmem:[#allocation5 + $0x2a0] sm:$0xff] %v4184
  %4233 = vst [vmem:[#allocation5 + $0x2a8] sm:$0xff] %v4185
  %4234 = vst [vmem:[#allocation5 + $0x2b0] sm:$0xff] %v4186
  %4235 = vst [vmem:[#allocation5 + $0x2b8] sm:$0xff] %v4187
  %4236 = vst [vmem:[#allocation5 + $0x2c0] sm:$0xff] %v4188
  %4237 = vst [vmem:[#allocation5 + $0x2c8] sm:$0xff] %v4189
  %4238 = vst [vmem:[#allocation5 + $0x2d0] sm:$0xff] %v4190
  %4239 = vst [vmem:[#allocation5 + $0x2d8] sm:$0xff] %v4191
  %4240 = vst [vmem:[#allocation5 + $0x2e0] sm:$0xff] %v4192
  %4241 = vst [vmem:[#allocation5 + $0x2e8] sm:$0xff] %v4193
  %4242 = vst [vmem:[#allocation5 + $0x2f0] sm:$0xff] %v4194
  %4243 = vst [vmem:[#allocation5 + $0x2f8] sm:$0xff] %v4195
  %v4244 = vld [vmem:[#allocation4 + $0x8] sm:$0xff]
  %v4245 = vld [vmem:[#allocation4 + $0x10] sm:$0xff]
  %v4246 = vld [vmem:[#allocation4 + $0x20] sm:$0xff]
  %v4247 = vld [vmem:[#allocation4 + $0x28] sm:$0xff]
  %v4248 = vld [vmem:[#allocation4 + $0x38] sm:$0xff]
  %v4249 = vld [vmem:[#allocation4 + $0x40] sm:$0xff]
  %v4250 = vld [vmem:[#allocation4 + $0x50] sm:$0xff]
  %v4251 = vld [vmem:[#allocation4 + $0x58] sm:$0xff]
  %v4252 = vld [vmem:[#allocation4 + $0x68] sm:$0xff]
  %v4253 = vld [vmem:[#allocation4 + $0x70] sm:$0xff]
  %v4254 = vld [vmem:[#allocation4 + $0x80] sm:$0xff]
  %v4255 = vld [vmem:[#allocation4 + $0x88] sm:$0xff]
  %v4256 = vld [vmem:[#allocation4 + $0x98] sm:$0xff]
  %v4257 = vld [vmem:[#allocation4 + $0xa0] sm:$0xff]
  %v4258 = vld [vmem:[#allocation4 + $0xb0] sm:$0xff]
  %v4259 = vld [vmem:[#allocation4 + $0xb8] sm:$0xff]
  %v4260 = vld [vmem:[#allocation4 + $0xc8] sm:$0xff]
  %v4261 = vld [vmem:[#allocation4 + $0xd0] sm:$0xff]
  %v4262 = vld [vmem:[#allocation4 + $0xe0] sm:$0xff]
  %v4263 = vld [vmem:[#allocation4 + $0xe8] sm:$0xff]
  %v4264 = vld [vmem:[#allocation4 + $0xf8] sm:$0xff]
  %v4265 = vld [vmem:[#allocation4 + $0x100] sm:$0xff]
  %v4266 = vld [vmem:[#allocation4 + $0x110] sm:$0xff]
  %v4267 = vld [vmem:[#allocation4 + $0x118] sm:$0xff]
  %4268 = vst [vmem:[#allocation5 + $0x300] sm:$0xff] %v4244
  %4269 = vst [vmem:[#allocation5 + $0x308] sm:$0xff] %v4245
  %4270 = vst [vmem:[#allocation5 + $0x310] sm:$0xff] %v4246
  %4271 = vst [vmem:[#allocation5 + $0x318] sm:$0xff] %v4247
  %4272 = vst [vmem:[#allocation5 + $0x320] sm:$0xff] %v4248
  %4273 = vst [vmem:[#allocation5 + $0x328] sm:$0xff] %v4249
  %4274 = vst [vmem:[#allocation5 + $0x330] sm:$0xff] %v4250
  %4275 = vst [vmem:[#allocation5 + $0x338] sm:$0xff] %v4251
  %4276 = vst [vmem:[#allocation5 + $0x340] sm:$0xff] %v4252
  %4277 = vst [vmem:[#allocation5 + $0x348] sm:$0xff] %v4253
  %4278 = vst [vmem:[#allocation5 + $0x350] sm:$0xff] %v4254
  %4279 = vst [vmem:[#allocation5 + $0x358] sm:$0xff] %v4255
  %4280 = vst [vmem:[#allocation5 + $0x360] sm:$0xff] %v4256
  %4281 = vst [vmem:[#allocation5 + $0x368] sm:$0xff] %v4257
  %4282 = vst [vmem:[#allocation5 + $0x370] sm:$0xff] %v4258
  %4283 = vst [vmem:[#allocation5 + $0x378] sm:$0xff] %v4259
  %4284 = vst [vmem:[#allocation5 + $0x380] sm:$0xff] %v4260
  %4285 = vst [vmem:[#allocation5 + $0x388] sm:$0xff] %v4261
  %4286 = vst [vmem:[#allocation5 + $0x390] sm:$0xff] %v4262
  %4287 = vst [vmem:[#allocation5 + $0x398] sm:$0xff] %v4263
  %4288 = vst [vmem:[#allocation5 + $0x3a0] sm:$0xff] %v4264
  %4289 = vst [vmem:[#allocation5 + $0x3a8] sm:$0xff] %v4265
  %4290 = vst [vmem:[#allocation5 + $0x3b0] sm:$0xff] %v4266
  %4291 = vst [vmem:[#allocation5 + $0x3b8] sm:$0xff] %v4267
  %v4292 = vld [vmem:[%s4] sm:$0xff]
  %v4293 = vld [vmem:[%s4 + $0x8] sm:$0xff]
  %v4294 = vld [vmem:[%s4 + $0x10] sm:$0xff]
  %v4295 = vld [vmem:[%s4 + $0x18] sm:$0xff]
  %v4296 = vld [vmem:[%s4 + $0x20] sm:$0xff]
  %v4297 = vld [vmem:[%s4 + $0x28] sm:$0xff]
  %v4298 = vld [vmem:[%s4 + $0x30] sm:$0xff]
  %v4299 = vld [vmem:[%s4 + $0x38] sm:$0xff]
  %v4300 = vld [vmem:[%s4 + $0x40] sm:$0xff]
  %v4301 = vld [vmem:[%s4 + $0x48] sm:$0xff]
  %v4302 = vld [vmem:[%s4 + $0x50] sm:$0xff]
  %v4303 = vld [vmem:[%s4 + $0x58] sm:$0xff]
  %v4304 = vld [vmem:[%s4 + $0x60] sm:$0xff]
  %v4305 = vld [vmem:[%s4 + $0x68] sm:$0xff]
  %v4306 = vld [vmem:[%s4 + $0x70] sm:$0xff]
  %v4307 = vld [vmem:[%s4 + $0x78] sm:$0xff]
  %v4308 = vld [vmem:[%s4 + $0x80] sm:$0xff]
  %v4309 = vld [vmem:[%s4 + $0x88] sm:$0xff]
  %v4310 = vld [vmem:[%s4 + $0x90] sm:$0xff]
  %v4311 = vld [vmem:[%s4 + $0x98] sm:$0xff]
  %v4312 = vld [vmem:[%s4 + $0xa0] sm:$0xff]
  %v4313 = vld [vmem:[%s4 + $0xa8] sm:$0xff]
  %v4314 = vld [vmem:[%s4 + $0xb0] sm:$0xff]
  %v4315 = vld [vmem:[%s4 + $0xb8] sm:$0xff]
  %v4316 = vld [vmem:[%s4 + $0xc0] sm:$0xff]
  %v4317 = vld [vmem:[%s4 + $0xc8] sm:$0xff]
  %v4318 = vld [vmem:[%s4 + $0xd0] sm:$0xff]
  %v4319 = vld [vmem:[%s4 + $0xd8] sm:$0xff]
  %v4320 = vld [vmem:[%s4 + $0xe0] sm:$0xff]
  %v4321 = vld [vmem:[%s4 + $0xe8] sm:$0xff]
  %v4322 = vld [vmem:[%s4 + $0xf0] sm:$0xff]
  %v4323 = vld [vmem:[%s4 + $0xf8] sm:$0xff]
  %v4324 = vld [vmem:[%s4 + $0x100] sm:$0xff]
  %v4325 = vld [vmem:[%s4 + $0x108] sm:$0xff]
  %v4326 = vld [vmem:[%s4 + $0x110] sm:$0xff]
  %v4327 = vld [vmem:[%s4 + $0x118] sm:$0xff]
  %v4328 = vld [vmem:[%s4 + $0x120] sm:$0xff]
  %v4329 = vld [vmem:[%s4 + $0x128] sm:$0xff]
  %v4330 = vld [vmem:[%s4 + $0x130] sm:$0xff]
  %v4331 = vld [vmem:[%s4 + $0x138] sm:$0xff]
  %v4332 = vld [vmem:[%s4 + $0x140] sm:$0xff]
  %v4333 = vld [vmem:[%s4 + $0x148] sm:$0xff]
  %v4334 = vld [vmem:[%s4 + $0x150] sm:$0xff]
  %v4335 = vld [vmem:[%s4 + $0x158] sm:$0xff]
  %v4336 = vld [vmem:[%s4 + $0x160] sm:$0xff]
  %v4337 = vld [vmem:[%s4 + $0x168] sm:$0xff]
  %v4338 = vld [vmem:[%s4 + $0x170] sm:$0xff]
  %v4339 = vld [vmem:[%s4 + $0x178] sm:$0xff]
  %v4340 = vld [vmem:[%s4 + $0x180] sm:$0xff]
  %v4341 = vld [vmem:[%s4 + $0x188] sm:$0xff]
  %v4342 = vld [vmem:[%s4 + $0x190] sm:$0xff]
  %v4343 = vld [vmem:[%s4 + $0x198] sm:$0xff]
  %v4344 = vld [vmem:[%s4 + $0x1a0] sm:$0xff]
  %v4345 = vld [vmem:[%s4 + $0x1a8] sm:$0xff]
  %v4346 = vld [vmem:[%s4 + $0x1b0] sm:$0xff]
  %v4347 = vld [vmem:[%s4 + $0x1b8] sm:$0xff]
  %v4348 = vld [vmem:[%s4 + $0x1c0] sm:$0xff]
  %v4349 = vld [vmem:[%s4 + $0x1c8] sm:$0xff]
  %v4350 = vld [vmem:[%s4 + $0x1d0] sm:$0xff]
  %v4351 = vld [vmem:[%s4 + $0x1d8] sm:$0xff]
  %v4352 = vld [vmem:[%s4 + $0x1e0] sm:$0xff]
  %v4353 = vld [vmem:[%s4 + $0x1e8] sm:$0xff]
  %v4354 = vld [vmem:[%s4 + $0x1f0] sm:$0xff]
  %v4355 = vld [vmem:[%s4 + $0x1f8] sm:$0xff]
  %v4356 = vld [vmem:[%s4 + $0x200] sm:$0xff]
  %v4357 = vld [vmem:[%s4 + $0x208] sm:$0xff]
  %v4358 = vld [vmem:[%s4 + $0x210] sm:$0xff]
  %v4359 = vld [vmem:[%s4 + $0x218] sm:$0xff]
  %v4360 = vld [vmem:[%s4 + $0x220] sm:$0xff]
  %v4361 = vld [vmem:[%s4 + $0x228] sm:$0xff]
  %v4362 = vld [vmem:[%s4 + $0x230] sm:$0xff]
  %v4363 = vld [vmem:[%s4 + $0x238] sm:$0xff]
  %v4364 = vld [vmem:[#allocation5] sm:$0xff]
  %v4365 = vld [vmem:[#allocation5 + $0x8] sm:$0xff]
  %v4366 = vld [vmem:[#allocation5 + $0x10] sm:$0xff]
  %v4367 = vld [vmem:[#allocation5 + $0x18] sm:$0xff]
  %v4368 = vld [vmem:[#allocation5 + $0x20] sm:$0xff]
  %v4369 = vld [vmem:[#allocation5 + $0x28] sm:$0xff]
  %v4370 = vld [vmem:[#allocation5 + $0x30] sm:$0xff]
  %v4371 = vld [vmem:[#allocation5 + $0x38] sm:$0xff]
  %v4372 = vld [vmem:[#allocation5 + $0x40] sm:$0xff]
  %v4373 = vld [vmem:[#allocation5 + $0x48] sm:$0xff]
  %v4374 = vld [vmem:[#allocation5 + $0x50] sm:$0xff]
  %v4375 = vld [vmem:[#allocation5 + $0x58] sm:$0xff]
  %v4376 = vld [vmem:[#allocation5 + $0x60] sm:$0xff]
  %v4377 = vld [vmem:[#allocation5 + $0x68] sm:$0xff]
  %v4378 = vld [vmem:[#allocation5 + $0x70] sm:$0xff]
  %v4379 = vld [vmem:[#allocation5 + $0x78] sm:$0xff]
  %v4380 = vld [vmem:[#allocation5 + $0x80] sm:$0xff]
  %v4381 = vld [vmem:[#allocation5 + $0x88] sm:$0xff]
  %v4382 = vld [vmem:[#allocation5 + $0x90] sm:$0xff]
  %v4383 = vld [vmem:[#allocation5 + $0x98] sm:$0xff]
  %v4384 = vld [vmem:[#allocation5 + $0xa0] sm:$0xff]
  %v4385 = vld [vmem:[#allocation5 + $0xa8] sm:$0xff]
  %v4386 = vld [vmem:[#allocation5 + $0xb0] sm:$0xff]
  %v4387 = vld [vmem:[#allocation5 + $0xb8] sm:$0xff]
  %v4388 = vld [vmem:[#allocation5 + $0xc0] sm:$0xff]
  %v4389 = vld [vmem:[#allocation5 + $0xc8] sm:$0xff]
  %v4390 = vld [vmem:[#allocation5 + $0xd0] sm:$0xff]
  %v4391 = vld [vmem:[#allocation5 + $0xd8] sm:$0xff]
  %v4392 = vld [vmem:[#allocation5 + $0xe0] sm:$0xff]
  %v4393 = vld [vmem:[#allocation5 + $0xe8] sm:$0xff]
  %v4394 = vld [vmem:[#allocation5 + $0xf0] sm:$0xff]
  %v4395 = vld [vmem:[#allocation5 + $0xf8] sm:$0xff]
  %v4396 = vld [vmem:[#allocation5 + $0x100] sm:$0xff]
  %v4397 = vld [vmem:[#allocation5 + $0x108] sm:$0xff]
  %v4398 = vld [vmem:[#allocation5 + $0x110] sm:$0xff]
  %v4399 = vld [vmem:[#allocation5 + $0x118] sm:$0xff]
  %v4400 = vld [vmem:[#allocation5 + $0x120] sm:$0xff]
  %v4401 = vld [vmem:[#allocation5 + $0x128] sm:$0xff]
  %v4402 = vld [vmem:[#allocation5 + $0x130] sm:$0xff]
  %v4403 = vld [vmem:[#allocation5 + $0x138] sm:$0xff]
  %v4404 = vld [vmem:[#allocation5 + $0x140] sm:$0xff]
  %v4405 = vld [vmem:[#allocation5 + $0x148] sm:$0xff]
  %v4406 = vld [vmem:[#allocation5 + $0x150] sm:$0xff]
  %v4407 = vld [vmem:[#allocation5 + $0x158] sm:$0xff]
  %v4408 = vld [vmem:[#allocation5 + $0x160] sm:$0xff]
  %v4409 = vld [vmem:[#allocation5 + $0x168] sm:$0xff]
  %v4410 = vld [vmem:[#allocation5 + $0x170] sm:$0xff]
  %v4411 = vld [vmem:[#allocation5 + $0x178] sm:$0xff]
  %v4412 = vld [vmem:[#allocation5 + $0x180] sm:$0xff]
  %v4413 = vld [vmem:[#allocation5 + $0x188] sm:$0xff]
  %v4414 = vld [vmem:[#allocation5 + $0x190] sm:$0xff]
  %v4415 = vld [vmem:[#allocation5 + $0x198] sm:$0xff]
  %v4416 = vld [vmem:[#allocation5 + $0x1a0] sm:$0xff]
  %v4417 = vld [vmem:[#allocation5 + $0x1a8] sm:$0xff]
  %v4418 = vld [vmem:[#allocation5 + $0x1b0] sm:$0xff]
  %v4419 = vld [vmem:[#allocation5 + $0x1b8] sm:$0xff]
  %v4420 = vld [vmem:[#allocation5 + $0x1c0] sm:$0xff]
  %v4421 = vld [vmem:[#allocation5 + $0x1c8] sm:$0xff]
  %v4422 = vld [vmem:[#allocation5 + $0x1d0] sm:$0xff]
  %v4423 = vld [vmem:[#allocation5 + $0x1d8] sm:$0xff]
  %v4424 = vld [vmem:[#allocation5 + $0x1e0] sm:$0xff]
  %v4425 = vld [vmem:[#allocation5 + $0x1e8] sm:$0xff]
  %v4426 = vld [vmem:[#allocation5 + $0x1f0] sm:$0xff]
  %v4427 = vld [vmem:[#allocation5 + $0x1f8] sm:$0xff]
  %v4428 = vld [vmem:[#allocation5 + $0x200] sm:$0xff]
  %v4429 = vld [vmem:[#allocation5 + $0x208] sm:$0xff]
  %v4430 = vld [vmem:[#allocation5 + $0x210] sm:$0xff]
  %v4431 = vld [vmem:[#allocation5 + $0x218] sm:$0xff]
  %v4432 = vld [vmem:[#allocation5 + $0x220] sm:$0xff]
  %v4433 = vld [vmem:[#allocation5 + $0x228] sm:$0xff]
  %v4434 = vld [vmem:[#allocation5 + $0x230] sm:$0xff]
  %v4435 = vld [vmem:[#allocation5 + $0x238] sm:$0xff]
  %v4436 = vld [vmem:[#allocation5 + $0x240] sm:$0xff]
  %v4437 = vld [vmem:[#allocation5 + $0x248] sm:$0xff]
  %v4438 = vld [vmem:[#allocation5 + $0x250] sm:$0xff]
  %v4439 = vld [vmem:[#allocation5 + $0x258] sm:$0xff]
  %v4440 = vld [vmem:[#allocation5 + $0x260] sm:$0xff]
  %v4441 = vld [vmem:[#allocation5 + $0x268] sm:$0xff]
  %v4442 = vld [vmem:[#allocation5 + $0x270] sm:$0xff]
  %v4443 = vld [vmem:[#allocation5 + $0x278] sm:$0xff]
  %v4444 = vld [vmem:[#allocation5 + $0x280] sm:$0xff]
  %v4445 = vld [vmem:[#allocation5 + $0x288] sm:$0xff]
  %v4446 = vld [vmem:[#allocation5 + $0x290] sm:$0xff]
  %v4447 = vld [vmem:[#allocation5 + $0x298] sm:$0xff]
  %v4448 = vld [vmem:[#allocation5 + $0x2a0] sm:$0xff]
  %v4449 = vld [vmem:[#allocation5 + $0x2a8] sm:$0xff]
  %v4450 = vld [vmem:[#allocation5 + $0x2b0] sm:$0xff]
  %v4451 = vld [vmem:[#allocation5 + $0x2b8] sm:$0xff]
  %v4452 = vld [vmem:[#allocation5 + $0x2c0] sm:$0xff]
  %v4453 = vld [vmem:[#allocation5 + $0x2c8] sm:$0xff]
  %v4454 = vld [vmem:[#allocation5 + $0x2d0] sm:$0xff]
  %v4455 = vld [vmem:[#allocation5 + $0x2d8] sm:$0xff]
  %v4456 = vld [vmem:[#allocation5 + $0x2e0] sm:$0xff]
  %v4457 = vld [vmem:[#allocation5 + $0x2e8] sm:$0xff]
  %v4458 = vld [vmem:[#allocation5 + $0x2f0] sm:$0xff]
  %v4459 = vld [vmem:[#allocation5 + $0x2f8] sm:$0xff]
  %v4460 = vld [vmem:[#allocation5 + $0x300] sm:$0xff]
  %v4461 = vld [vmem:[#allocation5 + $0x308] sm:$0xff]
  %v4462 = vld [vmem:[#allocation5 + $0x310] sm:$0xff]
  %v4463 = vld [vmem:[#allocation5 + $0x318] sm:$0xff]
  %v4464 = vld [vmem:[#allocation5 + $0x320] sm:$0xff]
  %v4465 = vld [vmem:[#allocation5 + $0x328] sm:$0xff]
  %v4466 = vld [vmem:[#allocation5 + $0x330] sm:$0xff]
  %v4467 = vld [vmem:[#allocation5 + $0x338] sm:$0xff]
  %v4468 = vld [vmem:[#allocation5 + $0x340] sm:$0xff]
  %v4469 = vld [vmem:[#allocation5 + $0x348] sm:$0xff]
  %v4470 = vld [vmem:[#allocation5 + $0x350] sm:$0xff]
  %v4471 = vld [vmem:[#allocation5 + $0x358] sm:$0xff]
  %v4472 = vld [vmem:[#allocation5 + $0x360] sm:$0xff]
  %v4473 = vld [vmem:[#allocation5 + $0x368] sm:$0xff]
  %v4474 = vld [vmem:[#allocation5 + $0x370] sm:$0xff]
  %v4475 = vld [vmem:[#allocation5 + $0x378] sm:$0xff]
  %v4476 = vld [vmem:[#allocation5 + $0x380] sm:$0xff]
  %v4477 = vld [vmem:[#allocation5 + $0x388] sm:$0xff]
  %v4478 = vld [vmem:[#allocation5 + $0x390] sm:$0xff]
  %v4479 = vld [vmem:[#allocation5 + $0x398] sm:$0xff]
  %v4480 = vld [vmem:[#allocation5 + $0x3a0] sm:$0xff]
  %v4481 = vld [vmem:[#allocation5 + $0x3a8] sm:$0xff]
  %v4482 = vld [vmem:[#allocation5 + $0x3b0] sm:$0xff]
  %v4483 = vld [vmem:[#allocation5 + $0x3b8] sm:$0xff]
  %v4485 = vsel %vm204, %v4295, 0
  %v4488 = vsel %vm204, %v4299, 0
  %v4491 = vsel %vm204, %v4303, 0
  %v4494 = vsel %vm204, %v4307, 0
  %v4497 = vsel %vm204, %v4311, 0
  %v4500 = vsel %vm204, %v4315, 0
  %v4503 = vsel %vm204, %v4319, 0
  %v4506 = vsel %vm204, %v4323, 0
  %v4509 = vsel %vm204, %v4327, 0
  %v4512 = vsel %vm204, %v4331, 0
  %v4515 = vsel %vm204, %v4335, 0
  %v4518 = vsel %vm204, %v4339, 0
  %v4521 = vsel %vm204, %v4343, 0
  %v4524 = vsel %vm204, %v4347, 0
  %v4527 = vsel %vm204, %v4351, 0
  %v4530 = vsel %vm204, %v4355, 0
  %v4533 = vsel %vm204, %v4359, 0
  %v4536 = vsel %vm204, %v4363, 0
  %4538 = vmatprep.subr.mxu0 %v4365
  %4539 = vmatpush1.msra.mxu0 %v4364
  %4540 = vmatprep.subr.mxu0 %v4367
  %4541 = vmatpush1.msra.mxu0 %v4366
  %4542 = vmatprep.subr.mxu0 %v4369
  %4543 = vmatpush1.msra.mxu0 %v4368
  %4544 = vmatprep.subr.mxu0 %v4371
  %4545 = vmatpush1.msra.mxu0 %v4370
  %4546 = vmatprep.subr.mxu0 %v4373
  %4547 = vmatpush1.msra.mxu0 %v4372
  %4548 = vmatprep.subr.mxu0 %v4375
  %4549 = vmatpush1.msra.mxu0 %v4374
  %4550 = vmatprep.subr.mxu0 %v4377
  %4551 = vmatpush1.msra.mxu0 %v4376
  %4552 = vmatprep.subr.mxu0 %v4379
  %4553 = vmatpush1.msra.mxu0 %v4378
  %4554 = vmatprep.subr.mxu0 %v4381
  %4555 = vmatpush1.msra.mxu0 %v4380
  %4556 = vmatprep.subr.mxu0 %v4383
  %4557 = vmatpush1.msra.mxu0 %v4382
  %4558 = vmatprep.subr.mxu0 %v4385
  %4559 = vmatpush1.msra.mxu0 %v4384
  %4560 = vmatprep.subr.mxu0 %v4387
  %4561 = vmatpush1.msra.mxu0 %v4386
  %4562 = vmatprep.subr.mxu0 %v4389
  %4563 = vmatpush1.msra.mxu0 %v4388
  %4564 = vmatprep.subr.mxu0 %v4391
  %4565 = vmatpush1.msra.mxu0 %v4390
  %4566 = vmatprep.subr.mxu0 %v4393
  %4567 = vmatpush1.msra.mxu0 %v4392
  %4568 = vmatprep.subr.mxu0 %v4395
  %4569 = vmatpush1.msra.mxu0 %v4394
  %4570 = vmatprep.subr.mxu0 %v4397
  %4571 = vmatpush1.msra.mxu0 %v4396
  %4572 = vmatprep.subr.mxu0 %v4399
  %4573 = vmatpush1.msra.mxu0 %v4398
  %4574 = vmatprep.subr.mxu0 %v4401
  %4575 = vmatpush1.msra.mxu0 %v4400
  %4576 = vmatprep.subr.mxu0 %v4403
  %4577 = vmatpush1.msra.mxu0 %v4402
  %4578 = vmatprep.subr.mxu0 %v4405
  %4579 = vmatpush1.msra.mxu0 %v4404
  %4580 = vmatprep.subr.mxu0 %v4407
  %4581 = vmatpush1.msra.mxu0 %v4406
  %4582 = vmatprep.subr.mxu0 %v4409
  %4583 = vmatpush1.msra.mxu0 %v4408
  %4584 = vmatprep.subr.mxu0 %v4411
  %4585 = vmatpush1.msra.mxu0 %v4410
  %4586 = vmatprep.subr.mxu0 %v4413
  %4587 = vmatpush1.msra.mxu0 %v4412
  %4588 = vmatprep.subr.mxu0 %v4415
  %4589 = vmatpush1.msra.mxu0 %v4414
  %4590 = vmatprep.subr.mxu0 %v4417
  %4591 = vmatpush1.msra.mxu0 %v4416
  %4592 = vmatprep.subr.mxu0 %v4419
  %4593 = vmatpush1.msra.mxu0 %v4418
  %4594 = vmatprep.subr.mxu0 %v4421
  %4595 = vmatpush1.msra.mxu0 %v4420
  %4596 = vmatprep.subr.mxu0 %v4423
  %4597 = vmatpush1.msra.mxu0 %v4422
  %4598 = vmatprep.subr.mxu0 %v4425
  %4599 = vmatpush1.msra.mxu0 %v4424
  %4600 = vmatprep.subr.mxu0 %v4427
  %4601 = vmatpush1.msra.mxu0 %v4426
  %4602 = vmatprep.mubr.f32.mxu0 %v4293
  %4603 = vmatmul.mubr.f32.gmra.mrb[0].mxu0 %v4292
  %v4604 = vpop.f32.mrb[0].mxu0
  %v4605 = vadd.f32 0.0, %v4604
  %v4606 = vpop.f32.mrb[0].mxu0
  %v4607 = vadd.f32 0.0, %v4606
  %4608 = vmatprep.mubr.f32.mxu0 %v4297
  %4609 = vmatmul.mubr.f32.gmra.mrb[0].mxu0 %v4296
  %v4610 = vpop.f32.mrb[0].mxu0
  %v4611 = vadd.f32 0.0, %v4610
  %v4612 = vpop.f32.mrb[0].mxu0
  %v4613 = vadd.f32 0.0, %v4612
  %4614 = vmatprep.mubr.f32.mxu0 %v4301
  %4615 = vmatmul.mubr.f32.gmra.mrb[0].mxu0 %v4300
  %v4616 = vpop.f32.mrb[0].mxu0
  %v4617 = vadd.f32 0.0, %v4616
  %v4618 = vpop.f32.mrb[0].mxu0
  %v4619 = vadd.f32 0.0, %v4618
  %4620 = vmatprep.mubr.f32.mxu0 %v4305
  %4621 = vmatmul.mubr.f32.gmra.mrb[0].mxu0 %v4304
  %v4622 = vpop.f32.mrb[0].mxu0
  %v4623 = vadd.f32 0.0, %v4622
  %v4624 = vpop.f32.mrb[0].mxu0
  %v4625 = vadd.f32 0.0, %v4624
  %4626 = vmatprep.mubr.f32.mxu0 %v4309
  %4627 = vmatmul.mubr.f32.gmra.mrb[0].mxu0 %v4308
  %v4628 = vpop.f32.mrb[0].mxu0
  %v4629 = vadd.f32 0.0, %v4628
  %v4630 = vpop.f32.mrb[0].mxu0
  %v4631 = vadd.f32 0.0, %v4630
  %4632 = vmatprep.mubr.f32.mxu0 %v4313
  %4633 = vmatmul.mubr.f32.gmra.mrb[0].mxu0 %v4312
  %v4634 = vpop.f32.mrb[0].mxu0
  %v4635 = vadd.f32 0.0, %v4634
  %v4636 = vpop.f32.mrb[0].mxu0
  %v4637 = vadd.f32 0.0, %v4636
  %4638 = vmatprep.mubr.f32.mxu0 %v4317
  %4639 = vmatmul.mubr.f32.gmra.mrb[0].mxu0 %v4316
  %v4640 = vpop.f32.mrb[0].mxu0
  %v4641 = vadd.f32 0.0, %v4640
  %v4642 = vpop.f32.mrb[0].mxu0
  %v4643 = vadd.f32 0.0, %v4642
  %4644 = vmatprep.mubr.f32.mxu0 %v4321
  %4645 = vmatmul.mubr.f32.gmra.mrb[0].mxu0 %v4320
  %v4646 = vpop.f32.mrb[0].mxu0
  %v4647 = vadd.f32 0.0, %v4646
  %v4648 = vpop.f32.mrb[0].mxu0
  %v4649 = vadd.f32 0.0, %v4648
  %4650 = vmatprep.mubr.f32.mxu0 %v4325
  %4651 = vmatmul.mubr.f32.gmra.mrb[0].mxu0 %v4324
  %v4652 = vpop.f32.mrb[0].mxu0
  %v4653 = vadd.f32 0.0, %v4652
  %v4654 = vpop.f32.mrb[0].mxu0
  %v4655 = vadd.f32 0.0, %v4654
  %4656 = vmatprep.mubr.f32.mxu0 %v4329
  %4657 = vmatmul.mubr.f32.gmra.mrb[0].mxu0 %v4328
  %v4658 = vpop.f32.mrb[0].mxu0
  %v4659 = vadd.f32 0.0, %v4658
  %v4660 = vpop.f32.mrb[0].mxu0
  %v4661 = vadd.f32 0.0, %v4660
  %4662 = vmatprep.mubr.f32.mxu0 %v4333
  %4663 = vmatmul.mubr.f32.gmra.mrb[0].mxu0 %v4332
  %v4664 = vpop.f32.mrb[0].mxu0
  %v4665 = vadd.f32 0.0, %v4664
  %v4666 = vpop.f32.mrb[0].mxu0
  %v4667 = vadd.f32 0.0, %v4666
  %4668 = vmatprep.mubr.f32.mxu0 %v4337
  %4669 = vmatmul.mubr.f32.gmra.mrb[0].mxu0 %v4336
  %v4670 = vpop.f32.mrb[0].mxu0
  %v4671 = vadd.f32 0.0, %v4670
  %v4672 = vpop.f32.mrb[0].mxu0
  %v4673 = vadd.f32 0.0, %v4672
  %4674 = vmatprep.mubr.f32.mxu0 %v4341
  %4675 = vmatmul.mubr.f32.gmra.mrb[0].mxu0 %v4340
  %v4676 = vpop.f32.mrb[0].mxu0
  %v4677 = vadd.f32 0.0, %v4676
  %v4678 = vpop.f32.mrb[0].mxu0
  %v4679 = vadd.f32 0.0, %v4678
  %4680 = vmatprep.mubr.f32.mxu0 %v4345
  %4681 = vmatmul.mubr.f32.gmra.mrb[0].mxu0 %v4344
  %v4682 = vpop.f32.mrb[0].mxu0
  %v4683 = vadd.f32 0.0, %v4682
  %v4684 = vpop.f32.mrb[0].mxu0
  %v4685 = vadd.f32 0.0, %v4684
  %4686 = vmatprep.mubr.f32.mxu0 %v4349
  %4687 = vmatmul.mubr.f32.gmra.mrb[0].mxu0 %v4348
  %v4688 = vpop.f32.mrb[0].mxu0
  %v4689 = vadd.f32 0.0, %v4688
  %v4690 = vpop.f32.mrb[0].mxu0
  %v4691 = vadd.f32 0.0, %v4690
  %4692 = vmatprep.mubr.f32.mxu0 %v4353
  %4693 = vmatmul.mubr.f32.gmra.mrb[0].mxu0 %v4352
  %v4694 = vpop.f32.mrb[0].mxu0
  %v4695 = vadd.f32 0.0, %v4694
  %v4696 = vpop.f32.mrb[0].mxu0
  %v4697 = vadd.f32 0.0, %v4696
  %4698 = vmatprep.mubr.f32.mxu0 %v4357
  %4699 = vmatmul.mubr.f32.gmra.mrb[0].mxu0 %v4356
  %v4700 = vpop.f32.mrb[0].mxu0
  %v4701 = vadd.f32 0.0, %v4700
  %v4702 = vpop.f32.mrb[0].mxu0
  %v4703 = vadd.f32 0.0, %v4702
  %4704 = vmatprep.mubr.f32.mxu0 %v4361
  %4705 = vmatmul.mubr.f32.gmra.mrb[0].mxu0 %v4360
  %v4706 = vpop.f32.mrb[0].mxu0
  %v4707 = vadd.f32 0.0, %v4706
  %v4708 = vpop.f32.mrb[0].mxu0
  %v4709 = vadd.f32 0.0, %v4708
  %4710 = vdwg.mxu0
  %4711 = vmatprep.subr.mxu0 %v4429
  %4712 = vmatpush1.msra.mxu0 %v4428
  %4713 = vmatprep.subr.mxu0 %v4431
  %4714 = vmatpush1.msra.mxu0 %v4430
  %4715 = vmatprep.subr.mxu0 %v4433
  %4716 = vmatpush1.msra.mxu0 %v4432
  %4717 = vmatprep.subr.mxu0 %v4435
  %4718 = vmatpush1.msra.mxu0 %v4434
  %4719 = vmatprep.subr.mxu0 %v4437
  %4720 = vmatpush1.msra.mxu0 %v4436
  %4721 = vmatprep.subr.mxu0 %v4439
  %4722 = vmatpush1.msra.mxu0 %v4438
  %4723 = vmatprep.subr.mxu0 %v4441
  %4724 = vmatpush1.msra.mxu0 %v4440
  %4725 = vmatprep.subr.mxu0 %v4443
  %4726 = vmatpush1.msra.mxu0 %v4442
  %4727 = vmatprep.subr.mxu0 %v4445
  %4728 = vmatpush1.msra.mxu0 %v4444
  %4729 = vmatprep.subr.mxu0 %v4447
  %4730 = vmatpush1.msra.mxu0 %v4446
  %4731 = vmatprep.subr.mxu0 %v4449
  %4732 = vmatpush1.msra.mxu0 %v4448
  %4733 = vmatprep.subr.mxu0 %v4451
  %4734 = vmatpush1.msra.mxu0 %v4450
  %4735 = vmatprep.subr.mxu0 %v4453
  %4736 = vmatpush1.msra.mxu0 %v4452
  %4737 = vmatprep.subr.mxu0 %v4455
  %4738 = vmatpush1.msra.mxu0 %v4454
  %4739 = vmatprep.subr.mxu0 %v4457
  %4740 = vmatpush1.msra.mxu0 %v4456
  %4741 = vmatprep.subr.mxu0 %v4459
  %4742 = vmatpush1.msra.mxu0 %v4458
  %4743 = vmatprep.subr.mxu0 %v4461
  %4744 = vmatpush1.msra.mxu0 %v4460
  %4745 = vmatprep.subr.mxu0 %v4463
  %4746 = vmatpush1.msra.mxu0 %v4462
  %4747 = vmatprep.subr.mxu0 %v4465
  %4748 = vmatpush1.msra.mxu0 %v4464
  %4749 = vmatprep.subr.mxu0 %v4467
  %4750 = vmatpush1.msra.mxu0 %v4466
  %4751 = vmatprep.subr.mxu0 %v4469
  %4752 = vmatpush1.msra.mxu0 %v4468
  %4753 = vmatprep.subr.mxu0 %v4471
  %4754 = vmatpush1.msra.mxu0 %v4470
  %4755 = vmatprep.subr.mxu0 %v4473
  %4756 = vmatpush1.msra.mxu0 %v4472
  %4757 = vmatprep.subr.mxu0 %v4475
  %4758 = vmatpush1.msra.mxu0 %v4474
  %4759 = vmatprep.subr.mxu0 %v4477
  %4760 = vmatpush1.msra.mxu0 %v4476
  %4761 = vmatprep.subr.mxu0 %v4479
  %4762 = vmatpush1.msra.mxu0 %v4478
  %4763 = vmatprep.subr.mxu0 %v4481
  %4764 = vmatpush1.msra.mxu0 %v4480
  %4765 = vmatprep.subr.mxu0 %v4483
  %4766 = vmatpush1.msra.mxu0 %v4482
  %4767 = vmatprep.subr.mxu0 0.0
  %4768 = vmatpush1.msra.mxu0 0.0
  %4769 = vmatprep.subr.mxu0 0.0
  %4770 = vmatpush1.msra.mxu0 0.0
  %4771 = vmatprep.subr.mxu0 0.0
  %4772 = vmatpush1.msra.mxu0 0.0
  %4773 = vmatprep.subr.mxu0 0.0
  %4774 = vmatpush1.msra.mxu0 0.0
  %4775 = vmatprep.mubr.f32.mxu0 %v4485
  %4776 = vmatmul.mubr.f32.gmra.mrb[0].mxu0 %v4294
  %v4777 = vpop.f32.mrb[0].mxu0
  %v4778 = vadd.f32 %v4605, %v4777
  %v4779 = vpop.f32.mrb[0].mxu0
  %v4780 = vadd.f32 %v4607, %v4779
  %4781 = vmatprep.mubr.f32.mxu0 %v4488
  %4782 = vmatmul.mubr.f32.gmra.mrb[0].mxu0 %v4298
  %v4783 = vpop.f32.mrb[0].mxu0
  %v4784 = vadd.f32 %v4611, %v4783
  %v4785 = vpop.f32.mrb[0].mxu0
  %v4786 = vadd.f32 %v4613, %v4785
  %4787 = vmatprep.mubr.f32.mxu0 %v4491
  %4788 = vmatmul.mubr.f32.gmra.mrb[0].mxu0 %v4302
  %v4789 = vpop.f32.mrb[0].mxu0
  %v4790 = vadd.f32 %v4617, %v4789
  %v4791 = vpop.f32.mrb[0].mxu0
  %v4792 = vadd.f32 %v4619, %v4791
  %4793 = vmatprep.mubr.f32.mxu0 %v4494
  %4794 = vmatmul.mubr.f32.gmra.mrb[0].mxu0 %v4306
  %v4795 = vpop.f32.mrb[0].mxu0
  %v4796 = vadd.f32 %v4623, %v4795
  %v4797 = vpop.f32.mrb[0].mxu0
  %v4798 = vadd.f32 %v4625, %v4797
  %4799 = vmatprep.mubr.f32.mxu0 %v4497
  %4800 = vmatmul.mubr.f32.gmra.mrb[0].mxu0 %v4310
  %v4801 = vpop.f32.mrb[0].mxu0
  %v4802 = vadd.f32 %v4629, %v4801
  %v4803 = vpop.f32.mrb[0].mxu0
  %v4804 = vadd.f32 %v4631, %v4803
  %4805 = vmatprep.mubr.f32.mxu0 %v4500
  %4806 = vmatmul.mubr.f32.gmra.mrb[0].mxu0 %v4314
  %v4807 = vpop.f32.mrb[0].mxu0
  %v4808 = vadd.f32 %v4635, %v4807
  %v4809 = vpop.f32.mrb[0].mxu0
  %v4810 = vadd.f32 %v4637, %v4809
  %4811 = vmatprep.mubr.f32.mxu0 %v4503
  %4812 = vmatmul.mubr.f32.gmra.mrb[0].mxu0 %v4318
  %v4813 = vpop.f32.mrb[0].mxu0
  %v4814 = vadd.f32 %v4641, %v4813
  %v4815 = vpop.f32.mrb[0].mxu0
  %v4816 = vadd.f32 %v4643, %v4815
  %4817 = vmatprep.mubr.f32.mxu0 %v4506
  %4818 = vmatmul.mubr.f32.gmra.mrb[0].mxu0 %v4322
  %v4819 = vpop.f32.mrb[0].mxu0
  %v4820 = vadd.f32 %v4647, %v4819
  %v4821 = vpop.f32.mrb[0].mxu0
  %v4822 = vadd.f32 %v4649, %v4821
  %4823 = vmatprep.mubr.f32.mxu0 %v4509
  %4824 = vmatmul.mubr.f32.gmra.mrb[0].mxu0 %v4326
  %v4825 = vpop.f32.mrb[0].mxu0
  %v4826 = vadd.f32 %v4653, %v4825
  %v4827 = vpop.f32.mrb[0].mxu0
  %v4828 = vadd.f32 %v4655, %v4827
  %4829 = vmatprep.mubr.f32.mxu0 %v4512
  %4830 = vmatmul.mubr.f32.gmra.mrb[0].mxu0 %v4330
  %v4831 = vpop.f32.mrb[0].mxu0
  %v4832 = vadd.f32 %v4659, %v4831
  %v4833 = vpop.f32.mrb[0].mxu0
  %v4834 = vadd.f32 %v4661, %v4833
  %4835 = vmatprep.mubr.f32.mxu0 %v4515
  %4836 = vmatmul.mubr.f32.gmra.mrb[0].mxu0 %v4334
  %v4837 = vpop.f32.mrb[0].mxu0
  %v4838 = vadd.f32 %v4665, %v4837
  %v4839 = vpop.f32.mrb[0].mxu0
  %v4840 = vadd.f32 %v4667, %v4839
  %4841 = vmatprep.mubr.f32.mxu0 %v4518
  %4842 = vmatmul.mubr.f32.gmra.mrb[0].mxu0 %v4338
  %v4843 = vpop.f32.mrb[0].mxu0
  %v4844 = vadd.f32 %v4671, %v4843
  %v4845 = vpop.f32.mrb[0].mxu0
  %v4846 = vadd.f32 %v4673, %v4845
  %4847 = vmatprep.mubr.f32.mxu0 %v4521
  %4848 = vmatmul.mubr.f32.gmra.mrb[0].mxu0 %v4342
  %v4849 = vpop.f32.mrb[0].mxu0
  %v4850 = vadd.f32 %v4677, %v4849
  %v4851 = vpop.f32.mrb[0].mxu0
  %v4852 = vadd.f32 %v4679, %v4851
  %4853 = vmatprep.mubr.f32.mxu0 %v4524
  %4854 = vmatmul.mubr.f32.gmra.mrb[0].mxu0 %v4346
  %v4855 = vpop.f32.mrb[0].mxu0
  %v4856 = vadd.f32 %v4683, %v4855
  %v4857 = vpop.f32.mrb[0].mxu0
  %v4858 = vadd.f32 %v4685, %v4857
  %4859 = vmatprep.mubr.f32.mxu0 %v4527
  %4860 = vmatmul.mubr.f32.gmra.mrb[0].mxu0 %v4350
  %v4861 = vpop.f32.mrb[0].mxu0
  %v4862 = vadd.f32 %v4689, %v4861
  %v4863 = vpop.f32.mrb[0].mxu0
  %v4864 = vadd.f32 %v4691, %v4863
  %4865 = vmatprep.mubr.f32.mxu0 %v4530
  %4866 = vmatmul.mubr.f32.gmra.mrb[0].mxu0 %v4354
  %v4867 = vpop.f32.mrb[0].mxu0
  %v4868 = vadd.f32 %v4695, %v4867
  %v4869 = vpop.f32.mrb[0].mxu0
  %v4870 = vadd.f32 %v4697, %v4869
  %4871 = vmatprep.mubr.f32.mxu0 %v4533
  %4872 = vmatmul.mubr.f32.gmra.mrb[0].mxu0 %v4358
  %v4873 = vpop.f32.mrb[0].mxu0
  %v4874 = vadd.f32 %v4701, %v4873
  %v4875 = vpop.f32.mrb[0].mxu0
  %v4876 = vadd.f32 %v4703, %v4875
  %4877 = vmatprep.mubr.f32.mxu0 %v4536
  %4878 = vmatmul.mubr.f32.gmra.mrb[0].mxu0 %v4362
  %v4879 = vpop.f32.mrb[0].mxu0
  %v4880 = vadd.f32 %v4707, %v4879
  %v4881 = vpop.f32.mrb[0].mxu0
  %v4882 = vadd.f32 %v4709, %v4881
  %4883 = vdwg.mxu0
  %v4884 = vmax.f32 %v4778, %v4832
  %v4885 = vmax.f32 %v4780, %v4834
  %v4886 = vmax.f32 %v4784, %v4838
  %v4887 = vmax.f32 %v4786, %v4840
  %v4888 = vmax.f32 %v4790, %v4844
  %v4889 = vmax.f32 %v4792, %v4846
  %v4890 = vmax.f32 %v4796, %v4850
  %v4891 = vmax.f32 %v4798, %v4852
  %v4892 = vmax.f32 %v4802, %v4856
  %v4893 = vmax.f32 %v4804, %v4858
  %v4894 = vmax.f32 %v4808, %v4862
  %v4895 = vmax.f32 %v4810, %v4864
  %v4896 = vmax.f32 %v4814, %v4868
  %v4897 = vmax.f32 %v4816, %v4870
  %v4898 = vmax.f32 %v4820, %v4874
  %v4899 = vmax.f32 %v4822, %v4876
  %v4900 = vmax.f32 %v4826, %v4880
  %v4901 = vmax.f32 %v4828, %v4882
  %v4902 = vld [vmem:[%s5] sm:$0xff]
  %v4903 = vld [vmem:[%s5 + $0x8] sm:$0xff]
  %v4904 = vld [vmem:[%s5 + $0x10] sm:$0xff]
  %v4905 = vld [vmem:[%s5 + $0x18] sm:$0xff]
  %v4906 = vld [vmem:[%s5 + $0x20] sm:$0xff]
  %v4907 = vld [vmem:[%s5 + $0x28] sm:$0xff]
  %v4908 = vld [vmem:[%s5 + $0x30] sm:$0xff]
  %v4909 = vld [vmem:[%s5 + $0x38] sm:$0xff]
  %v4910 = vld [vmem:[%s5 + $0x40] sm:$0xff]
  %4912 = vset.pattern.permute.xlu0 0
  %4913 = vperm.xlu0 %4912, %v4902
  %v4914 = vpop.permute.xlu0 %4913
  %4917 = vset.pattern.permute.xlu0 0
  %4918 = vperm.xlu0 %4917, %v4903
  %v4919 = vpop.permute.xlu0 %4918
  %4922 = vset.pattern.permute.xlu0 0
  %4923 = vperm.xlu0 %4922, %v4904
  %v4924 = vpop.permute.xlu0 %4923
  %4927 = vset.pattern.permute.xlu0 0
  %4928 = vperm.xlu0 %4927, %v4905
  %v4929 = vpop.permute.xlu0 %4928
  %4932 = vset.pattern.permute.xlu0 0
  %4933 = vperm.xlu0 %4932, %v4906
  %v4934 = vpop.permute.xlu0 %4933
  %4937 = vset.pattern.permute.xlu0 0
  %4938 = vperm.xlu0 %4937, %v4907
  %v4939 = vpop.permute.xlu0 %4938
  %4942 = vset.pattern.permute.xlu0 0
  %4943 = vperm.xlu0 %4942, %v4908
  %v4944 = vpop.permute.xlu0 %4943
  %4947 = vset.pattern.permute.xlu0 0
  %4948 = vperm.xlu0 %4947, %v4909
  %v4949 = vpop.permute.xlu0 %4948
  %4952 = vset.pattern.permute.xlu0 0
  %4953 = vperm.xlu0 %4952, %v4910
  %v4954 = vpop.permute.xlu0 %4953
  %v4956 = vadd.f32 %v4884, %v4914
  %v4957 = vadd.f32 %v4885, %v4914
  %v4958 = vadd.f32 %v4886, %v4919
  %v4959 = vadd.f32 %v4887, %v4919
  %v4960 = vadd.f32 %v4888, %v4924
  %v4961 = vadd.f32 %v4889, %v4924
  %v4962 = vadd.f32 %v4890, %v4929
  %v4963 = vadd.f32 %v4891, %v4929
  %v4964 = vadd.f32 %v4892, %v4934
  %v4965 = vadd.f32 %v4893, %v4934
  %v4966 = vadd.f32 %v4894, %v4939
  %v4967 = vadd.f32 %v4895, %v4939
  %v4968 = vadd.f32 %v4896, %v4944
  %v4969 = vadd.f32 %v4897, %v4944
  %v4970 = vadd.f32 %v4898, %v4949
  %v4971 = vadd.f32 %v4899, %v4949
  %v4972 = vadd.f32 %v4900, %v4954
  %v4973 = vadd.f32 %v4901, %v4954
  %v4974 = vmax.f32 %v4956, 0.0
  %v4975 = vmax.f32 %v4957, 0.0
  %v4976 = vmax.f32 %v4958, 0.0
  %v4977 = vmax.f32 %v4959, 0.0
  %v4978 = vmax.f32 %v4960, 0.0
  %v4979 = vmax.f32 %v4961, 0.0
  %v4980 = vmax.f32 %v4962, 0.0
  %v4981 = vmax.f32 %v4963, 0.0
  %v4982 = vmax.f32 %v4964, 0.0
  %v4983 = vmax.f32 %v4965, 0.0
  %v4984 = vmax.f32 %v4966, 0.0
  %v4985 = vmax.f32 %v4967, 0.0
  %v4986 = vmax.f32 %v4968, 0.0
  %v4987 = vmax.f32 %v4969, 0.0
  %v4988 = vmax.f32 %v4970, 0.0
  %v4989 = vmax.f32 %v4971, 0.0
  %v4990 = vmax.f32 %v4972, 0.0
  %v4991 = vmax.f32 %v4973, 0.0
  %4992 = vst [vmem:[#allocation6] sm:$0xff] %v4974
  %4993 = vst [vmem:[#allocation6 + $0x8] sm:$0xff] %v4975
  %4994 = vst [vmem:[#allocation6 + $0x10] sm:$0xff] %v4976
  %4995 = vst [vmem:[#allocation6 + $0x18] sm:$0xff] %v4977
  %4996 = vst [vmem:[#allocation6 + $0x20] sm:$0xff] %v4978
  %4997 = vst [vmem:[#allocation6 + $0x28] sm:$0xff] %v4979
  %4998 = vst [vmem:[#allocation6 + $0x30] sm:$0xff] %v4980
  %4999 = vst [vmem:[#allocation6 + $0x38] sm:$0xff] %v4981
  %5000 = vst [vmem:[#allocation6 + $0x40] sm:$0xff] %v4982
  %5001 = vst [vmem:[#allocation6 + $0x48] sm:$0xff] %v4983
  %5002 = vst [vmem:[#allocation6 + $0x50] sm:$0xff] %v4984
  %5003 = vst [vmem:[#allocation6 + $0x58] sm:$0xff] %v4985
  %5004 = vst [vmem:[#allocation6 + $0x60] sm:$0xff] %v4986
  %5005 = vst [vmem:[#allocation6 + $0x68] sm:$0xff] %v4987
  %5006 = vst [vmem:[#allocation6 + $0x70] sm:$0xff] %v4988
  %5007 = vst [vmem:[#allocation6 + $0x78] sm:$0xff] %v4989
  %5008 = vst [vmem:[#allocation6 + $0x80] sm:$0xff] %v4990
  %5009 = vst [vmem:[#allocation6 + $0x88] sm:$0xff] %v4991
  %v5010 = vld [vmem:[#allocation6] sm:$0xff]
  %v5011 = vld [vmem:[#allocation6 + $0x8] sm:$0xff]
  %v5012 = vld [vmem:[#allocation6 + $0x10] sm:$0xff]
  %v5013 = vld [vmem:[#allocation6 + $0x18] sm:$0xff]
  %v5014 = vld [vmem:[#allocation6 + $0x20] sm:$0xff]
  %v5015 = vld [vmem:[#allocation6 + $0x28] sm:$0xff]
  %v5016 = vld [vmem:[#allocation6 + $0x30] sm:$0xff]
  %v5017 = vld [vmem:[#allocation6 + $0x38] sm:$0xff]
  %v5018 = vld [vmem:[#allocation6 + $0x40] sm:$0xff]
  %v5019 = vld [vmem:[#allocation6 + $0x48] sm:$0xff]
  %v5020 = vld [vmem:[#allocation6 + $0x50] sm:$0xff]
  %v5021 = vld [vmem:[#allocation6 + $0x58] sm:$0xff]
  %v5022 = vld [vmem:[#allocation6 + $0x60] sm:$0xff]
  %v5023 = vld [vmem:[#allocation6 + $0x68] sm:$0xff]
  %v5024 = vld [vmem:[#allocation6 + $0x70] sm:$0xff]
  %v5025 = vld [vmem:[#allocation6 + $0x78] sm:$0xff]
  %v5026 = vld [vmem:[#allocation6 + $0x80] sm:$0xff]
  %v5027 = vld [vmem:[#allocation6 + $0x88] sm:$0xff]
  %5046 = vrot.lane.b32.xlu0 %v5010, 96
  %v5047 = vpop.permute.xlu0 %5046
  %5048 = vrot.lane.b32.xlu0 %v5011, 96
  %v5049 = vpop.permute.xlu0 %5048
  %5050 = vrot.lane.b32.xlu0 %v5012, 96
  %v5051 = vpop.permute.xlu0 %5050
  %5052 = vrot.lane.b32.xlu0 %v5013, 96
  %v5053 = vpop.permute.xlu0 %5052
  %5054 = vrot.lane.b32.xlu0 %v5014, 96
  %v5055 = vpop.permute.xlu0 %5054
  %5056 = vrot.lane.b32.xlu0 %v5015, 96
  %v5057 = vpop.permute.xlu0 %5056
  %5058 = vrot.lane.b32.xlu0 %v5016, 96
  %v5059 = vpop.permute.xlu0 %5058
  %5060 = vrot.lane.b32.xlu0 %v5017, 96
  %v5061 = vpop.permute.xlu0 %5060
  %5062 = vrot.lane.b32.xlu0 %v5018, 96
  %v5063 = vpop.permute.xlu0 %5062
  %5064 = vrot.lane.b32.xlu0 %v5019, 96
  %v5065 = vpop.permute.xlu0 %5064
  %5066 = vrot.lane.b32.xlu0 %v5020, 96
  %v5067 = vpop.permute.xlu0 %5066
  %5068 = vrot.lane.b32.xlu0 %v5021, 96
  %v5069 = vpop.permute.xlu0 %5068
  %5070 = vrot.lane.b32.xlu0 %v5022, 96
  %v5071 = vpop.permute.xlu0 %5070
  %5072 = vrot.lane.b32.xlu0 %v5023, 96
  %v5073 = vpop.permute.xlu0 %5072
  %5074 = vrot.lane.b32.xlu0 %v5024, 96
  %v5075 = vpop.permute.xlu0 %5074
  %5076 = vrot.lane.b32.xlu0 %v5025, 96
  %v5077 = vpop.permute.xlu0 %5076
  %5078 = vrot.lane.b32.xlu0 %v5026, 96
  %v5079 = vpop.permute.xlu0 %5078
  %5080 = vrot.lane.b32.xlu0 %v5027, 96
  %v5081 = vpop.permute.xlu0 %5080
  %v5082 = vsel %vm204, %v5047, %v5049
  %v5083 = vsel %vm204, %v5051, %v5053
  %v5084 = vsel %vm204, %v5055, %v5057
  %v5085 = vsel %vm204, %v5059, %v5061
  %v5086 = vsel %vm204, %v5063, %v5065
  %v5087 = vsel %vm204, %v5067, %v5069
  %v5088 = vsel %vm204, %v5071, %v5073
  %v5089 = vsel %vm204, %v5075, %v5077
  %v5090 = vsel %vm204, %v5079, %v5081
  %v5109 = vmax.f32 %v5010, %v5082
  %v5110 = vmax.f32 %v5011, %v5049
  %v5111 = vmax.f32 %v5012, %v5083
  %v5112 = vmax.f32 %v5013, %v5053
  %v5113 = vmax.f32 %v5014, %v5084
  %v5114 = vmax.f32 %v5015, %v5057
  %v5115 = vmax.f32 %v5016, %v5085
  %v5116 = vmax.f32 %v5017, %v5061
  %v5117 = vmax.f32 %v5018, %v5086
  %v5118 = vmax.f32 %v5019, %v5065
  %v5119 = vmax.f32 %v5020, %v5087
  %v5120 = vmax.f32 %v5021, %v5069
  %v5121 = vmax.f32 %v5022, %v5088
  %v5122 = vmax.f32 %v5023, %v5073
  %v5123 = vmax.f32 %v5024, %v5089
  %v5124 = vmax.f32 %v5025, %v5077
  %v5125 = vmax.f32 %v5026, %v5090
  %v5126 = vmax.f32 %v5027, %v5081
  %v5127 = vld [vmem:[%s6] sm:$0xff]
  %v5128 = vld [vmem:[%s6 + $0x8] sm:$0xff]
  %v5129 = vld [vmem:[%s6 + $0x10] sm:$0xff]
  %v5130 = vld [vmem:[%s6 + $0x18] sm:$0xff]
  %v5131 = vld [vmem:[%s6 + $0x20] sm:$0xff]
  %v5132 = vld [vmem:[%s6 + $0x28] sm:$0xff]
  %v5133 = vld [vmem:[%s6 + $0x30] sm:$0xff]
  %v5134 = vld [vmem:[%s6 + $0x38] sm:$0xff]
  %v5135 = vld [vmem:[%s6 + $0x40] sm:$0xff]
  %v5136 = vld [vmem:[%s6 + $0x48] sm:$0xff]
  %v5137 = vld [vmem:[%s6 + $0x50] sm:$0xff]
  %v5138 = vld [vmem:[%s6 + $0x58] sm:$0xff]
  %v5139 = vld [vmem:[%s6 + $0x60] sm:$0xff]
  %v5140 = vld [vmem:[%s6 + $0x68] sm:$0xff]
  %v5141 = vld [vmem:[%s6 + $0x70] sm:$0xff]
  %v5142 = vld [vmem:[%s6 + $0x78] sm:$0xff]
  %v5143 = vld [vmem:[%s6 + $0x80] sm:$0xff]
  %v5144 = vld [vmem:[%s6 + $0x88] sm:$0xff]
  %v5145 = vld [vmem:[%s6 + $0x90] sm:$0xff]
  %v5146 = vld [vmem:[%s6 + $0x98] sm:$0xff]
  %v5147 = vld [vmem:[%s6 + $0xa0] sm:$0xff]
  %v5148 = vld [vmem:[%s6 + $0xa8] sm:$0xff]
  %v5149 = vld [vmem:[%s6 + $0xb0] sm:$0xff]
  %v5150 = vld [vmem:[%s6 + $0xb8] sm:$0xff]
  %v5151 = vld [vmem:[%s6 + $0xc0] sm:$0xff]
  %v5152 = vld [vmem:[%s6 + $0xc8] sm:$0xff]
  %v5153 = vld [vmem:[%s6 + $0xd0] sm:$0xff]
  %v5154 = vld [vmem:[%s6 + $0xd8] sm:$0xff]
  %v5156 = vsel %vm204, %v5110, 0
  %v5159 = vsel %vm204, %v5112, 0
  %v5162 = vsel %vm204, %v5114, 0
  %v5165 = vsel %vm204, %v5116, 0
  %v5168 = vsel %vm204, %v5118, 0
  %v5171 = vsel %vm204, %v5120, 0
  %v5174 = vsel %vm204, %v5122, 0
  %v5177 = vsel %vm204, %v5124, 0
  %v5180 = vsel %vm204, %v5126, 0
  %5182 = vmatprep.subr.mxu0 0.0
  %5183 = vmatpush1.msra.mxu0 %v5127
  %5184 = vmatprep.subr.mxu0 0.0
  %5185 = vmatpush1.msra.mxu0 %v5128
  %5186 = vmatprep.subr.mxu0 0.0
  %5187 = vmatpush1.msra.mxu0 %v5129
  %5188 = vmatprep.subr.mxu0 0.0
  %5189 = vmatpush1.msra.mxu0 %v5130
  %5190 = vmatprep.subr.mxu0 0.0
  %5191 = vmatpush1.msra.mxu0 %v5131
  %5192 = vmatprep.subr.mxu0 0.0
  %5193 = vmatpush1.msra.mxu0 %v5132
  %5194 = vmatprep.subr.mxu0 0.0
  %5195 = vmatpush1.msra.mxu0 %v5133
  %5196 = vmatprep.subr.mxu0 0.0
  %5197 = vmatpush1.msra.mxu0 %v5134
  %5198 = vmatprep.subr.mxu0 0.0
  %5199 = vmatpush1.msra.mxu0 %v5135
  %5200 = vmatprep.subr.mxu0 0.0
  %5201 = vmatpush1.msra.mxu0 %v5136
  %5202 = vmatprep.subr.mxu0 0.0
  %5203 = vmatpush1.msra.mxu0 %v5137
  %5204 = vmatprep.subr.mxu0 0.0
  %5205 = vmatpush1.msra.mxu0 %v5138
  %5206 = vmatprep.subr.mxu0 0.0
  %5207 = vmatpush1.msra.mxu0 %v5139
  %5208 = vmatprep.subr.mxu0 0.0
  %5209 = vmatpush1.msra.mxu0 %v5140
  %5210 = vmatprep.subr.mxu0 0.0
  %5211 = vmatpush1.msra.mxu0 %v5141
  %5212 = vmatprep.subr.mxu0 0.0
  %5213 = vmatpush1.msra.mxu0 %v5142
  %5214 = vmatprep.subr.mxu0 0.0
  %5215 = vmatpush1.msra.mxu0 %v5143
  %5216 = vmatprep.subr.mxu0 0.0
  %5217 = vmatpush1.msra.mxu0 %v5144
  %5218 = vmatprep.subr.mxu0 0.0
  %5219 = vmatpush1.msra.mxu0 %v5145
  %5220 = vmatprep.subr.mxu0 0.0
  %5221 = vmatpush1.msra.mxu0 %v5146
  %5222 = vmatprep.subr.mxu0 0.0
  %5223 = vmatpush1.msra.mxu0 %v5147
  %5224 = vmatprep.subr.mxu0 0.0
  %5225 = vmatpush1.msra.mxu0 %v5148
  %5226 = vmatprep.subr.mxu0 0.0
  %5227 = vmatpush1.msra.mxu0 %v5149
  %5228 = vmatprep.subr.mxu0 0.0
  %5229 = vmatpush1.msra.mxu0 %v5150
  %5230 = vmatprep.subr.mxu0 0.0
  %5231 = vmatpush1.msra.mxu0 %v5151
  %5232 = vmatprep.subr.mxu0 0.0
  %5233 = vmatpush1.msra.mxu0 %v5152
  %5234 = vmatprep.subr.mxu0 0.0
  %5235 = vmatpush1.msra.mxu0 %v5153
  %5236 = vmatprep.subr.mxu0 0.0
  %5237 = vmatpush1.msra.mxu0 %v5154
  %5238 = vmatprep.subr.mxu0 0.0
  %5239 = vmatpush1.msra.mxu0 0.0
  %5240 = vmatprep.subr.mxu0 0.0
  %5241 = vmatpush1.msra.mxu0 0.0
  %5242 = vmatprep.subr.mxu0 0.0
  %5243 = vmatpush1.msra.mxu0 0.0
  %5244 = vmatprep.subr.mxu0 0.0
  %5245 = vmatpush1.msra.mxu0 0.0
  %5246 = vmatprep.mubr.f32.mxu0 %v5156
  %5247 = vmatmul.mubr.f32.gmra.mrb[0].mxu0 %v5109
  %v5248 = vpop.f32.mrb[0].mxu0
  %v5249 = vadd.f32 0.0, %v5248
  %v5250 = vpop.f32.mrb[0].mxu0
  %5251 = vmatprep.mubr.f32.mxu0 %v5159
  %5252 = vmatmul.mubr.f32.gmra.mrb[0].mxu0 %v5111
  %v5253 = vpop.f32.mrb[0].mxu0
  %v5254 = vadd.f32 0.0, %v5253
  %v5255 = vpop.f32.mrb[0].mxu0
  %5256 = vmatprep.mubr.f32.mxu0 %v5162
  %5257 = vmatmul.mubr.f32.gmra.mrb[0].mxu0 %v5113
  %v5258 = vpop.f32.mrb[0].mxu0
  %v5259 = vadd.f32 0.0, %v5258
  %v5260 = vpop.f32.mrb[0].mxu0
  %5261 = vmatprep.mubr.f32.mxu0 %v5165
  %5262 = vmatmul.mubr.f32.gmra.mrb[0].mxu0 %v5115
  %v5263 = vpop.f32.mrb[0].mxu0
  %v5264 = vadd.f32 0.0, %v5263
  %v5265 = vpop.f32.mrb[0].mxu0
  %5266 = vmatprep.mubr.f32.mxu0 %v5168
  %5267 = vmatmul.mubr.f32.gmra.mrb[0].mxu0 %v5117
  %v5268 = vpop.f32.mrb[0].mxu0
  %v5269 = vadd.f32 0.0, %v5268
  %v5270 = vpop.f32.mrb[0].mxu0
  %5271 = vmatprep.mubr.f32.mxu0 %v5171
  %5272 = vmatmul.mubr.f32.gmra.mrb[0].mxu0 %v5119
  %v5273 = vpop.f32.mrb[0].mxu0
  %v5274 = vadd.f32 0.0, %v5273
  %v5275 = vpop.f32.mrb[0].mxu0
  %5276 = vmatprep.mubr.f32.mxu0 %v5174
  %5277 = vmatmul.mubr.f32.gmra.mrb[0].mxu0 %v5121
  %v5278 = vpop.f32.mrb[0].mxu0
  %v5279 = vadd.f32 0.0, %v5278
  %v5280 = vpop.f32.mrb[0].mxu0
  %5281 = vmatprep.mubr.f32.mxu0 %v5177
  %5282 = vmatmul.mubr.f32.gmra.mrb[0].mxu0 %v5123
  %v5283 = vpop.f32.mrb[0].mxu0
  %v5284 = vadd.f32 0.0, %v5283
  %v5285 = vpop.f32.mrb[0].mxu0
  %5286 = vmatprep.mubr.f32.mxu0 %v5180
  %5287 = vmatmul.mubr.f32.gmra.mrb[0].mxu0 %v5125
  %v5288 = vpop.f32.mrb[0].mxu0
  %v5289 = vadd.f32 0.0, %v5288
  %v5290 = vpop.f32.mrb[0].mxu0
  %5291 = vdwg.mxu0
  %5292 = vst [vmem:[#allocation7] sm:$0xff] %v5249
  %5293 = vst [vmem:[#allocation7 + $0x8] sm:$0xff] %v5254
  %5294 = vst [vmem:[#allocation7 + $0x10] sm:$0xff] %v5259
  %5295 = vst [vmem:[#allocation7 + $0x18] sm:$0xff] %v5264
  %5296 = vst [vmem:[#allocation7 + $0x20] sm:$0xff] %v5269
  %5297 = vst [vmem:[#allocation7 + $0x28] sm:$0xff] %v5274
  %5298 = vst [vmem:[#allocation7 + $0x30] sm:$0xff] %v5279
  %5299 = vst [vmem:[#allocation7 + $0x38] sm:$0xff] %v5284
  %5300 = vst [vmem:[#allocation7 + $0x40] sm:$0xff] %v5289
  %v5301 = vld [vmem:[#allocation7] sm:$0xff]
  %v5302 = vld [vmem:[#allocation7 + $0x8] sm:$0xff]
  %v5303 = vld [vmem:[#allocation7 + $0x10] sm:$0xff]
  %v5304 = vld [vmem:[#allocation7 + $0x18] sm:$0xff]
  %v5305 = vld [vmem:[#allocation7 + $0x20] sm:$0xff]
  %v5306 = vld [vmem:[#allocation7 + $0x28] sm:$0xff]
  %v5307 = vld [vmem:[#allocation7 + $0x30] sm:$0xff]
  %v5308 = vld [vmem:[#allocation7 + $0x38] sm:$0xff]
  %v5309 = vld [vmem:[#allocation7 + $0x40] sm:$0xff]
  %5310 = vst.msk [vmem:[#allocation8] sm:$0xff] %vm574, %v5301
  %5311 = vst.msk [vmem:[#allocation8 + $0x8] sm:$0xff] %vm574, %v5302
  %5312 = vst.msk [vmem:[#allocation8 + $0x10] sm:$0xff] %vm574, %v5303
  %5313 = vst.msk [vmem:[#allocation8 + $0x18] sm:$0xff] %vm574, %v5304
  %5314 = vst.msk [vmem:[#allocation8 + $0x20] sm:$0xff] %vm574, %v5305
  %5315 = vst.msk [vmem:[#allocation8 + $0x28] sm:$0xff] %vm574, %v5306
  %5316 = vst.msk [vmem:[#allocation8 + $0x30] sm:$0xff] %vm574, %v5307
  %5317 = vst.msk [vmem:[#allocation8 + $0x38] sm:$0xff] %vm574, %v5308
  %5318 = vst.msk [vmem:[#allocation8 + $0x40] sm:$0xff] %vm574, %v5309
  %v5319 = vld [vmem:[#allocation7] sm:$0xff]
  %v5320 = vld [vmem:[#allocation7 + $0x8] sm:$0xff]
  %v5321 = vld [vmem:[#allocation7 + $0x10] sm:$0xff]
  %v5322 = vld [vmem:[#allocation7 + $0x18] sm:$0xff]
  %v5323 = vld [vmem:[#allocation7 + $0x20] sm:$0xff]
  %v5324 = vld [vmem:[#allocation7 + $0x28] sm:$0xff]
  %v5325 = vld [vmem:[#allocation7 + $0x30] sm:$0xff]
  %v5326 = vld [vmem:[#allocation7 + $0x38] sm:$0xff]
  %v5327 = vld [vmem:[#allocation7 + $0x40] sm:$0xff]
  %5337 = vrot.lane.b32.xlu0 %v5319, 96
  %v5338 = vpop.permute.xlu0 %5337
  %5339 = vrot.lane.b32.xlu0 %v5320, 96
  %v5340 = vpop.permute.xlu0 %5339
  %5341 = vrot.lane.b32.xlu0 %v5321, 96
  %v5342 = vpop.permute.xlu0 %5341
  %5343 = vrot.lane.b32.xlu0 %v5322, 96
  %v5344 = vpop.permute.xlu0 %5343
  %5345 = vrot.lane.b32.xlu0 %v5323, 96
  %v5346 = vpop.permute.xlu0 %5345
  %5347 = vrot.lane.b32.xlu0 %v5324, 96
  %v5348 = vpop.permute.xlu0 %5347
  %5349 = vrot.lane.b32.xlu0 %v5325, 96
  %v5350 = vpop.permute.xlu0 %5349
  %5351 = vrot.lane.b32.xlu0 %v5326, 96
  %v5352 = vpop.permute.xlu0 %5351
  %5353 = vrot.lane.b32.xlu0 %v5327, 96
  %v5354 = vpop.permute.xlu0 %5353
  %5364 = vst.msk [vmem:[#allocation8 + $0x48] sm:$0xff] %vm574, %v5338
  %5365 = vst.msk [vmem:[#allocation8 + $0x50] sm:$0xff] %vm574, %v5340
  %5366 = vst.msk [vmem:[#allocation8 + $0x58] sm:$0xff] %vm574, %v5342
  %5367 = vst.msk [vmem:[#allocation8 + $0x60] sm:$0xff] %vm574, %v5344
  %5368 = vst.msk [vmem:[#allocation8 + $0x68] sm:$0xff] %vm574, %v5346
  %5369 = vst.msk [vmem:[#allocation8 + $0x70] sm:$0xff] %vm574, %v5348
  %5370 = vst.msk [vmem:[#allocation8 + $0x78] sm:$0xff] %vm574, %v5350
  %5371 = vst.msk [vmem:[#allocation8 + $0x80] sm:$0xff] %vm574, %v5352
  %5372 = vst.msk [vmem:[#allocation8 + $0x88] sm:$0xff] %vm574, %v5354
  %v5373 = vld [vmem:[#allocation7] sm:$0xff]
  %v5374 = vld [vmem:[#allocation7 + $0x8] sm:$0xff]
  %v5375 = vld [vmem:[#allocation7 + $0x10] sm:$0xff]
  %v5376 = vld [vmem:[#allocation7 + $0x18] sm:$0xff]
  %v5377 = vld [vmem:[#allocation7 + $0x20] sm:$0xff]
  %v5378 = vld [vmem:[#allocation7 + $0x28] sm:$0xff]
  %v5379 = vld [vmem:[#allocation7 + $0x30] sm:$0xff]
  %v5380 = vld [vmem:[#allocation7 + $0x38] sm:$0xff]
  %v5381 = vld [vmem:[#allocation7 + $0x40] sm:$0xff]
  %5391 = vrot.lane.b32.xlu0 %v5373, 64
  %v5392 = vpop.permute.xlu0 %5391
  %5393 = vrot.lane.b32.xlu0 %v5374, 64
  %v5394 = vpop.permute.xlu0 %5393
  %5395 = vrot.lane.b32.xlu0 %v5375, 64
  %v5396 = vpop.permute.xlu0 %5395
  %5397 = vrot.lane.b32.xlu0 %v5376, 64
  %v5398 = vpop.permute.xlu0 %5397
  %5399 = vrot.lane.b32.xlu0 %v5377, 64
  %v5400 = vpop.permute.xlu0 %5399
  %5401 = vrot.lane.b32.xlu0 %v5378, 64
  %v5402 = vpop.permute.xlu0 %5401
  %5403 = vrot.lane.b32.xlu0 %v5379, 64
  %v5404 = vpop.permute.xlu0 %5403
  %5405 = vrot.lane.b32.xlu0 %v5380, 64
  %v5406 = vpop.permute.xlu0 %5405
  %5407 = vrot.lane.b32.xlu0 %v5381, 64
  %v5408 = vpop.permute.xlu0 %5407
  %5418 = vst.msk [vmem:[#allocation8 + $0x90] sm:$0xff] %vm574, %v5392
  %5419 = vst.msk [vmem:[#allocation8 + $0x98] sm:$0xff] %vm574, %v5394
  %5420 = vst.msk [vmem:[#allocation8 + $0xa0] sm:$0xff] %vm574, %v5396
  %5421 = vst.msk [vmem:[#allocation8 + $0xa8] sm:$0xff] %vm574, %v5398
  %5422 = vst.msk [vmem:[#allocation8 + $0xb0] sm:$0xff] %vm574, %v5400
  %5423 = vst.msk [vmem:[#allocation8 + $0xb8] sm:$0xff] %vm574, %v5402
  %5424 = vst.msk [vmem:[#allocation8 + $0xc0] sm:$0xff] %vm574, %v5404
  %5425 = vst.msk [vmem:[#allocation8 + $0xc8] sm:$0xff] %vm574, %v5406
  %5426 = vst.msk [vmem:[#allocation8 + $0xd0] sm:$0xff] %vm574, %v5408
  %v5427 = vld [vmem:[#allocation7] sm:$0xff]
  %v5428 = vld [vmem:[#allocation7 + $0x8] sm:$0xff]
  %v5429 = vld [vmem:[#allocation7 + $0x10] sm:$0xff]
  %v5430 = vld [vmem:[#allocation7 + $0x18] sm:$0xff]
  %v5431 = vld [vmem:[#allocation7 + $0x20] sm:$0xff]
  %v5432 = vld [vmem:[#allocation7 + $0x28] sm:$0xff]
  %v5433 = vld [vmem:[#allocation7 + $0x30] sm:$0xff]
  %v5434 = vld [vmem:[#allocation7 + $0x38] sm:$0xff]
  %v5435 = vld [vmem:[#allocation7 + $0x40] sm:$0xff]
  %5445 = vrot.lane.b32.xlu0 %v5427, 32
  %v5446 = vpop.permute.xlu0 %5445
  %5447 = vrot.lane.b32.xlu0 %v5428, 32
  %v5448 = vpop.permute.xlu0 %5447
  %5449 = vrot.lane.b32.xlu0 %v5429, 32
  %v5450 = vpop.permute.xlu0 %5449
  %5451 = vrot.lane.b32.xlu0 %v5430, 32
  %v5452 = vpop.permute.xlu0 %5451
  %5453 = vrot.lane.b32.xlu0 %v5431, 32
  %v5454 = vpop.permute.xlu0 %5453
  %5455 = vrot.lane.b32.xlu0 %v5432, 32
  %v5456 = vpop.permute.xlu0 %5455
  %5457 = vrot.lane.b32.xlu0 %v5433, 32
  %v5458 = vpop.permute.xlu0 %5457
  %5459 = vrot.lane.b32.xlu0 %v5434, 32
  %v5460 = vpop.permute.xlu0 %5459
  %5461 = vrot.lane.b32.xlu0 %v5435, 32
  %v5462 = vpop.permute.xlu0 %5461
  %5472 = vst.msk [vmem:[#allocation8 + $0xd8] sm:$0xff] %vm574, %v5446
  %5473 = vst.msk [vmem:[#allocation8 + $0xe0] sm:$0xff] %vm574, %v5448
  %5474 = vst.msk [vmem:[#allocation8 + $0xe8] sm:$0xff] %vm574, %v5450
  %5475 = vst.msk [vmem:[#allocation8 + $0xf0] sm:$0xff] %vm574, %v5452
  %5476 = vst.msk [vmem:[#allocation8 + $0xf8] sm:$0xff] %vm574, %v5454
  %5477 = vst.msk [vmem:[#allocation8 + $0x100] sm:$0xff] %vm574, %v5456
  %5478 = vst.msk [vmem:[#allocation8 + $0x108] sm:$0xff] %vm574, %v5458
  %5479 = vst.msk [vmem:[#allocation8 + $0x110] sm:$0xff] %vm574, %v5460
  %5480 = vst.msk [vmem:[#allocation8 + $0x118] sm:$0xff] %vm574, %v5462
  %v5481 = vld [vmem:[%s7] sm:$0xff]
  %v5482 = vld [vmem:[%s7 + $0x8] sm:$0xff]
  %v5483 = vld [vmem:[%s7 + $0x10] sm:$0xff]
  %v5484 = vld [vmem:[%s7 + $0x18] sm:$0xff]
  %v5485 = vld [vmem:[%s7 + $0x20] sm:$0xff]
  %v5486 = vld [vmem:[%s7 + $0x28] sm:$0xff]
  %v5487 = vld [vmem:[%s7 + $0x30] sm:$0xff]
  %v5488 = vld [vmem:[%s7 + $0x38] sm:$0xff]
  %v5489 = vld [vmem:[%s7 + $0x40] sm:$0xff]
  %v5490 = vld [vmem:[%s7 + $0x48] sm:$0xff]
  %v5491 = vld [vmem:[%s7 + $0x50] sm:$0xff]
  %v5492 = vld [vmem:[%s7 + $0x58] sm:$0xff]
  %v5493 = vld [vmem:[%s7 + $0x60] sm:$0xff]
  %v5494 = vld [vmem:[%s7 + $0x68] sm:$0xff]
  %v5495 = vld [vmem:[%s7 + $0x70] sm:$0xff]
  %v5496 = vld [vmem:[%s7 + $0x78] sm:$0xff]
  %v5497 = vld [vmem:[%s7 + $0x80] sm:$0xff]
  %v5498 = vld [vmem:[%s7 + $0x88] sm:$0xff]
  %v5499 = vld [vmem:[%s7 + $0x90] sm:$0xff]
  %v5500 = vld [vmem:[%s7 + $0x98] sm:$0xff]
  %v5501 = vld [vmem:[%s7 + $0xa0] sm:$0xff]
  %v5502 = vld [vmem:[%s7 + $0xa8] sm:$0xff]
  %v5503 = vld [vmem:[%s7 + $0xb0] sm:$0xff]
  %v5504 = vld [vmem:[%s7 + $0xb8] sm:$0xff]
  %v5505 = vld [vmem:[%s7 + $0xc0] sm:$0xff]
  %v5506 = vld [vmem:[%s7 + $0xc8] sm:$0xff]
  %v5507 = vld [vmem:[%s7 + $0xd0] sm:$0xff]
  %v5508 = vld [vmem:[%s7 + $0xd8] sm:$0xff]
  %v5509 = vld [vmem:[%s7 + $0xe0] sm:$0xff]
  %v5510 = vld [vmem:[%s7 + $0xe8] sm:$0xff]
  %v5511 = vld [vmem:[%s7 + $0xf0] sm:$0xff]
  %v5512 = vld [vmem:[%s7 + $0xf8] sm:$0xff]
  %v5513 = vld [vmem:[%s7 + $0x100] sm:$0xff]
  %v5514 = vld [vmem:[%s7 + $0x108] sm:$0xff]
  %v5515 = vld [vmem:[%s7 + $0x110] sm:$0xff]
  %v5516 = vld [vmem:[%s7 + $0x118] sm:$0xff]
  %v5517 = vld [vmem:[%s7 + $0x120] sm:$0xff]
  %v5518 = vld [vmem:[%s7 + $0x128] sm:$0xff]
  %v5519 = vld [vmem:[%s7 + $0x130] sm:$0xff]
  %v5520 = vld [vmem:[%s7 + $0x138] sm:$0xff]
  %v5521 = vld [vmem:[%s7 + $0x140] sm:$0xff]
  %v5522 = vld [vmem:[%s7 + $0x148] sm:$0xff]
  %v5523 = vld [vmem:[%s7 + $0x150] sm:$0xff]
  %v5524 = vld [vmem:[%s7 + $0x158] sm:$0xff]
  %v5525 = vld [vmem:[%s7 + $0x160] sm:$0xff]
  %v5526 = vld [vmem:[#allocation8] sm:$0xff]
  %v5527 = vld [vmem:[#allocation8 + $0x8] sm:$0xff]
  %v5528 = vld [vmem:[#allocation8 + $0x10] sm:$0xff]
  %v5529 = vld [vmem:[#allocation8 + $0x18] sm:$0xff]
  %v5530 = vld [vmem:[#allocation8 + $0x20] sm:$0xff]
  %v5531 = vld [vmem:[#allocation8 + $0x28] sm:$0xff]
  %v5532 = vld [vmem:[#allocation8 + $0x30] sm:$0xff]
  %v5533 = vld [vmem:[#allocation8 + $0x38] sm:$0xff]
  %v5534 = vld [vmem:[#allocation8 + $0x40] sm:$0xff]
  %v5535 = vld [vmem:[#allocation8 + $0x48] sm:$0xff]
  %v5536 = vld [vmem:[#allocation8 + $0x50] sm:$0xff]
  %v5537 = vld [vmem:[#allocation8 + $0x58] sm:$0xff]
  %v5538 = vld [vmem:[#allocation8 + $0x60] sm:$0xff]
  %v5539 = vld [vmem:[#allocation8 + $0x68] sm:$0xff]
  %v5540 = vld [vmem:[#allocation8 + $0x70] sm:$0xff]
  %v5541 = vld [vmem:[#allocation8 + $0x78] sm:$0xff]
  %v5542 = vld [vmem:[#allocation8 + $0x80] sm:$0xff]
  %v5543 = vld [vmem:[#allocation8 + $0x88] sm:$0xff]
  %v5544 = vld [vmem:[#allocation8 + $0x90] sm:$0xff]
  %v5545 = vld [vmem:[#allocation8 + $0x98] sm:$0xff]
  %v5546 = vld [vmem:[#allocation8 + $0xa0] sm:$0xff]
  %v5547 = vld [vmem:[#allocation8 + $0xa8] sm:$0xff]
  %v5548 = vld [vmem:[#allocation8 + $0xb0] sm:$0xff]
  %v5549 = vld [vmem:[#allocation8 + $0xb8] sm:$0xff]
  %v5550 = vld [vmem:[#allocation8 + $0xc0] sm:$0xff]
  %v5551 = vld [vmem:[#allocation8 + $0xc8] sm:$0xff]
  %v5552 = vld [vmem:[#allocation8 + $0xd0] sm:$0xff]
  %v5553 = vld [vmem:[#allocation8 + $0xd8] sm:$0xff]
  %v5554 = vld [vmem:[#allocation8 + $0xe0] sm:$0xff]
  %v5555 = vld [vmem:[#allocation8 + $0xe8] sm:$0xff]
  %v5556 = vld [vmem:[#allocation8 + $0xf0] sm:$0xff]
  %v5557 = vld [vmem:[#allocation8 + $0xf8] sm:$0xff]
  %v5558 = vld [vmem:[#allocation8 + $0x100] sm:$0xff]
  %v5559 = vld [vmem:[#allocation8 + $0x108] sm:$0xff]
  %v5560 = vld [vmem:[#allocation8 + $0x110] sm:$0xff]
  %v5561 = vld [vmem:[#allocation8 + $0x118] sm:$0xff]
  %v5562 = vld [vmem:[%s8] sm:$0xff]
  %v5563 = vld [vmem:[%s8 + $0x8] sm:$0xff]
  %v5564 = vld [vmem:[%s8 + $0x10] sm:$0xff]
  %v5565 = vld [vmem:[%s8 + $0x18] sm:$0xff]
  %v5566 = vld [vmem:[%s8 + $0x20] sm:$0xff]
  %v5567 = vld [vmem:[%s8 + $0x28] sm:$0xff]
  %v5568 = vld [vmem:[%s8 + $0x30] sm:$0xff]
  %v5569 = vld [vmem:[%s8 + $0x38] sm:$0xff]
  %v5570 = vld [vmem:[%s8 + $0x40] sm:$0xff]
  %v5571 = vld [vmem:[%s8 + $0x48] sm:$0xff]
  %v5572 = vld [vmem:[%s8 + $0x50] sm:$0xff]
  %v5573 = vld [vmem:[%s8 + $0x58] sm:$0xff]
  %v5574 = vld [vmem:[%s8 + $0x60] sm:$0xff]
  %v5575 = vld [vmem:[%s8 + $0x68] sm:$0xff]
  %v5576 = vld [vmem:[%s8 + $0x70] sm:$0xff]
  %5578 = vset.pattern.permute.xlu0 0
  %5579 = vperm.xlu0 %5578, %v5562
  %v5580 = vpop.permute.xlu0 %5579
  %5583 = vset.pattern.permute.xlu0 0
  %5584 = vperm.xlu0 %5583, %v5563
  %v5585 = vpop.permute.xlu0 %5584
  %5588 = vset.pattern.permute.xlu0 0
  %5589 = vperm.xlu0 %5588, %v5564
  %v5590 = vpop.permute.xlu0 %5589
  %5593 = vset.pattern.permute.xlu0 0
  %5594 = vperm.xlu0 %5593, %v5565
  %v5595 = vpop.permute.xlu0 %5594
  %5598 = vset.pattern.permute.xlu0 0
  %5599 = vperm.xlu0 %5598, %v5566
  %v5600 = vpop.permute.xlu0 %5599
  %5603 = vset.pattern.permute.xlu0 0
  %5604 = vperm.xlu0 %5603, %v5567
  %v5605 = vpop.permute.xlu0 %5604
  %5608 = vset.pattern.permute.xlu0 0
  %5609 = vperm.xlu0 %5608, %v5568
  %v5610 = vpop.permute.xlu0 %5609
  %5613 = vset.pattern.permute.xlu0 0
  %5614 = vperm.xlu0 %5613, %v5569
  %v5615 = vpop.permute.xlu0 %5614
  %5618 = vset.pattern.permute.xlu0 0
  %5619 = vperm.xlu0 %5618, %v5570
  %v5620 = vpop.permute.xlu0 %5619
  %5623 = vset.pattern.permute.xlu0 0
  %5624 = vperm.xlu0 %5623, %v5571
  %v5625 = vpop.permute.xlu0 %5624
  %5628 = vset.pattern.permute.xlu0 0
  %5629 = vperm.xlu0 %5628, %v5572
  %v5630 = vpop.permute.xlu0 %5629
  %5633 = vset.pattern.permute.xlu0 0
  %5634 = vperm.xlu0 %5633, %v5573
  %v5635 = vpop.permute.xlu0 %5634
  %5638 = vset.pattern.permute.xlu0 0
  %5639 = vperm.xlu0 %5638, %v5574
  %v5640 = vpop.permute.xlu0 %5639
  %5643 = vset.pattern.permute.xlu0 0
  %5644 = vperm.xlu0 %5643, %v5575
  %v5645 = vpop.permute.xlu0 %5644
  %5648 = vset.pattern.permute.xlu0 0
  %5649 = vperm.xlu0 %5648, %v5576
  %v5650 = vpop.permute.xlu0 %5649
  %v5653 = vsel %vm574, %v5483, 0
  %v5656 = vsel %vm574, %v5486, 0
  %v5659 = vsel %vm574, %v5489, 0
  %v5662 = vsel %vm574, %v5492, 0
  %v5665 = vsel %vm574, %v5495, 0
  %v5668 = vsel %vm574, %v5498, 0
  %v5671 = vsel %vm574, %v5501, 0
  %v5674 = vsel %vm574, %v5504, 0
  %v5677 = vsel %vm574, %v5507, 0
  %v5680 = vsel %vm574, %v5510, 0
  %v5683 = vsel %vm574, %v5513, 0
  %v5686 = vsel %vm574, %v5516, 0
  %v5689 = vsel %vm574, %v5519, 0
  %v5692 = vsel %vm574, %v5522, 0
  %v5695 = vsel %vm574, %v5525, 0
  %5697 = vmatprep.subr.mxu0 0.0
  %5698 = vmatpush1.msra.mxu0 %v5526
  %5699 = vmatprep.subr.mxu0 0.0
  %5700 = vmatpush1.msra.mxu0 %v5527
  %5701 = vmatprep.subr.mxu0 0.0
  %5702 = vmatpush1.msra.mxu0 %v5528
  %5703 = vmatprep.subr.mxu0 0.0
  %5704 = vmatpush1.msra.mxu0 %v5529
  %5705 = vmatprep.subr.mxu0 0.0
  %5706 = vmatpush1.msra.mxu0 %v5530
  %5707 = vmatprep.subr.mxu0 0.0
  %5708 = vmatpush1.msra.mxu0 %v5531
  %5709 = vmatprep.subr.mxu0 0.0
  %5710 = vmatpush1.msra.mxu0 %v5532
  %5711 = vmatprep.subr.mxu0 0.0
  %5712 = vmatpush1.msra.mxu0 %v5533
  %5713 = vmatprep.subr.mxu0 0.0
  %5714 = vmatpush1.msra.mxu0 %v5534
  %5715 = vmatprep.subr.mxu0 0.0
  %5716 = vmatpush1.msra.mxu0 %v5535
  %5717 = vmatprep.subr.mxu0 0.0
  %5718 = vmatpush1.msra.mxu0 %v5536
  %5719 = vmatprep.subr.mxu0 0.0
  %5720 = vmatpush1.msra.mxu0 %v5537
  %5721 = vmatprep.subr.mxu0 0.0
  %5722 = vmatpush1.msra.mxu0 %v5538
  %5723 = vmatprep.subr.mxu0 0.0
  %5724 = vmatpush1.msra.mxu0 %v5539
  %5725 = vmatprep.subr.mxu0 0.0
  %5726 = vmatpush1.msra.mxu0 %v5540
  %5727 = vmatprep.subr.mxu0 0.0
  %5728 = vmatpush1.msra.mxu0 %v5541
  %5729 = vmatprep.subr.mxu0 0.0
  %5730 = vmatpush1.msra.mxu0 %v5542
  %5731 = vmatprep.subr.mxu0 0.0
  %5732 = vmatpush1.msra.mxu0 %v5543
  %5733 = vmatprep.subr.mxu0 0.0
  %5734 = vmatpush1.msra.mxu0 %v5544
  %5735 = vmatprep.subr.mxu0 0.0
  %5736 = vmatpush1.msra.mxu0 %v5545
  %5737 = vmatprep.subr.mxu0 0.0
  %5738 = vmatpush1.msra.mxu0 %v5546
  %5739 = vmatprep.subr.mxu0 0.0
  %5740 = vmatpush1.msra.mxu0 %v5547
  %5741 = vmatprep.subr.mxu0 0.0
  %5742 = vmatpush1.msra.mxu0 %v5548
  %5743 = vmatprep.subr.mxu0 0.0
  %5744 = vmatpush1.msra.mxu0 %v5549
  %5745 = vmatprep.subr.mxu0 0.0
  %5746 = vmatpush1.msra.mxu0 %v5550
  %5747 = vmatprep.subr.mxu0 0.0
  %5748 = vmatpush1.msra.mxu0 %v5551
  %5749 = vmatprep.subr.mxu0 0.0
  %5750 = vmatpush1.msra.mxu0 %v5552
  %5751 = vmatprep.subr.mxu0 0.0
  %5752 = vmatpush1.msra.mxu0 %v5553
  %5753 = vmatprep.subr.mxu0 0.0
  %5754 = vmatpush1.msra.mxu0 %v5554
  %5755 = vmatprep.subr.mxu0 0.0
  %5756 = vmatpush1.msra.mxu0 %v5555
  %5757 = vmatprep.subr.mxu0 0.0
  %5758 = vmatpush1.msra.mxu0 %v5556
  %5759 = vmatprep.subr.mxu0 0.0
  %5760 = vmatpush1.msra.mxu0 %v5557
  %5761 = vmatprep.mubr.f32.mxu0 %v5482
  %5762 = vmatmul.mubr.f32.gmra.mrb[0].mxu0 %v5481
  %v5763 = vpop.f32.mrb[0].mxu0
  %v5764 = vadd.f32 %v5580, %v5763
  %v5765 = vpop.f32.mrb[0].mxu0
  %5766 = vmatprep.mubr.f32.mxu0 %v5485
  %5767 = vmatmul.mubr.f32.gmra.mrb[0].mxu0 %v5484
  %v5768 = vpop.f32.mrb[0].mxu0
  %v5769 = vadd.f32 %v5585, %v5768
  %v5770 = vpop.f32.mrb[0].mxu0
  %5771 = vmatprep.mubr.f32.mxu0 %v5488
  %5772 = vmatmul.mubr.f32.gmra.mrb[0].mxu0 %v5487
  %v5773 = vpop.f32.mrb[0].mxu0
  %v5774 = vadd.f32 %v5590, %v5773
  %v5775 = vpop.f32.mrb[0].mxu0
  %5776 = vmatprep.mubr.f32.mxu0 %v5491
  %5777 = vmatmul.mubr.f32.gmra.mrb[0].mxu0 %v5490
  %v5778 = vpop.f32.mrb[0].mxu0
  %v5779 = vadd.f32 %v5595, %v5778
  %v5780 = vpop.f32.mrb[0].mxu0
  %5781 = vmatprep.mubr.f32.mxu0 %v5494
  %5782 = vmatmul.mubr.f32.gmra.mrb[0].mxu0 %v5493
  %v5783 = vpop.f32.mrb[0].mxu0
  %v5784 = vadd.f32 %v5600, %v5783
  %v5785 = vpop.f32.mrb[0].mxu0
  %5786 = vmatprep.mubr.f32.mxu0 %v5497
  %5787 = vmatmul.mubr.f32.gmra.mrb[0].mxu0 %v5496
  %v5788 = vpop.f32.mrb[0].mxu0
  %v5789 = vadd.f32 %v5605, %v5788
  %v5790 = vpop.f32.mrb[0].mxu0
  %5791 = vmatprep.mubr.f32.mxu0 %v5500
  %5792 = vmatmul.mubr.f32.gmra.mrb[0].mxu0 %v5499
  %v5793 = vpop.f32.mrb[0].mxu0
  %v5794 = vadd.f32 %v5610, %v5793
  %v5795 = vpop.f32.mrb[0].mxu0
  %5796 = vmatprep.mubr.f32.mxu0 %v5503
  %5797 = vmatmul.mubr.f32.gmra.mrb[0].mxu0 %v5502
  %v5798 = vpop.f32.mrb[0].mxu0
  %v5799 = vadd.f32 %v5615, %v5798
  %v5800 = vpop.f32.mrb[0].mxu0
  %5801 = vmatprep.mubr.f32.mxu0 %v5506
  %5802 = vmatmul.mubr.f32.gmra.mrb[0].mxu0 %v5505
  %v5803 = vpop.f32.mrb[0].mxu0
  %v5804 = vadd.f32 %v5620, %v5803
  %v5805 = vpop.f32.mrb[0].mxu0
  %5806 = vmatprep.mubr.f32.mxu0 %v5509
  %5807 = vmatmul.mubr.f32.gmra.mrb[0].mxu0 %v5508
  %v5808 = vpop.f32.mrb[0].mxu0
  %v5809 = vadd.f32 %v5625, %v5808
  %v5810 = vpop.f32.mrb[0].mxu0
  %5811 = vmatprep.mubr.f32.mxu0 %v5512
  %5812 = vmatmul.mubr.f32.gmra.mrb[0].mxu0 %v5511
  %v5813 = vpop.f32.mrb[0].mxu0
  %v5814 = vadd.f32 %v5630, %v5813
  %v5815 = vpop.f32.mrb[0].mxu0
  %5816 = vmatprep.mubr.f32.mxu0 %v5515
  %5817 = vmatmul.mubr.f32.gmra.mrb[0].mxu0 %v5514
  %v5818 = vpop.f32.mrb[0].mxu0
  %v5819 = vadd.f32 %v5635, %v5818
  %v5820 = vpop.f32.mrb[0].mxu0
  %5821 = vmatprep.mubr.f32.mxu0 %v5518
  %5822 = vmatmul.mubr.f32.gmra.mrb[0].mxu0 %v5517
  %v5823 = vpop.f32.mrb[0].mxu0
  %v5824 = vadd.f32 %v5640, %v5823
  %v5825 = vpop.f32.mrb[0].mxu0
  %5826 = vmatprep.mubr.f32.mxu0 %v5521
  %5827 = vmatmul.mubr.f32.gmra.mrb[0].mxu0 %v5520
  %v5828 = vpop.f32.mrb[0].mxu0
  %v5829 = vadd.f32 %v5645, %v5828
  %v5830 = vpop.f32.mrb[0].mxu0
  %5831 = vmatprep.mubr.f32.mxu0 %v5524
  %5832 = vmatmul.mubr.f32.gmra.mrb[0].mxu0 %v5523
  %v5833 = vpop.f32.mrb[0].mxu0
  %v5834 = vadd.f32 %v5650, %v5833
  %v5835 = vpop.f32.mrb[0].mxu0
  %5836 = vdwg.mxu0
  %5837 = vmatprep.subr.mxu0 0.0
  %5838 = vmatpush1.msra.mxu0 %v5558
  %5839 = vmatprep.subr.mxu0 0.0
  %5840 = vmatpush1.msra.mxu0 %v5559
  %5841 = vmatprep.subr.mxu0 0.0
  %5842 = vmatpush1.msra.mxu0 %v5560
  %5843 = vmatprep.subr.mxu0 0.0
  %5844 = vmatpush1.msra.mxu0 %v5561
  %5845 = vmatprep.subr.mxu0 0.0
  %5846 = vmatpush1.msra.mxu0 0.0
  %5847 = vmatprep.subr.mxu0 0.0
  %5848 = vmatpush1.msra.mxu0 0.0
  %5849 = vmatprep.subr.mxu0 0.0
  %5850 = vmatpush1.msra.mxu0 0.0
  %5851 = vmatprep.subr.mxu0 0.0
  %5852 = vmatpush1.msra.mxu0 0.0
  %5853 = vmatprep.subr.mxu0 0.0
  %5854 = vmatpush1.msra.mxu0 0.0
  %5855 = vmatprep.subr.mxu0 0.0
  %5856 = vmatpush1.msra.mxu0 0.0
  %5857 = vmatprep.subr.mxu0 0.0
  %5858 = vmatpush1.msra.mxu0 0.0
  %5859 = vmatprep.subr.mxu0 0.0
  %5860 = vmatpush1.msra.mxu0 0.0
  %5861 = vmatprep.subr.mxu0 0.0
  %5862 = vmatpush1.msra.mxu0 0.0
  %5863 = vmatprep.subr.mxu0 0.0
  %5864 = vmatpush1.msra.mxu0 0.0
  %5865 = vmatprep.subr.mxu0 0.0
  %5866 = vmatpush1.msra.mxu0 0.0
  %5867 = vmatprep.subr.mxu0 0.0
  %5868 = vmatpush1.msra.mxu0 0.0
  %5869 = vmatprep.subr.mxu0 0.0
  %5870 = vmatpush1.msra.mxu0 0.0
  %5871 = vmatprep.subr.mxu0 0.0
  %5872 = vmatpush1.msra.mxu0 0.0
  %5873 = vmatprep.subr.mxu0 0.0
  %5874 = vmatpush1.msra.mxu0 0.0
  %5875 = vmatprep.subr.mxu0 0.0
  %5876 = vmatpush1.msra.mxu0 0.0
  %5877 = vmatprep.subr.mxu0 0.0
  %5878 = vmatpush1.msra.mxu0 0.0
  %5879 = vmatprep.subr.mxu0 0.0
  %5880 = vmatpush1.msra.mxu0 0.0
  %5881 = vmatprep.subr.mxu0 0.0
  %5882 = vmatpush1.msra.mxu0 0.0
  %5883 = vmatprep.subr.mxu0 0.0
  %5884 = vmatpush1.msra.mxu0 0.0
  %5885 = vmatprep.subr.mxu0 0.0
  %5886 = vmatpush1.msra.mxu0 0.0
  %5887 = vmatprep.subr.mxu0 0.0
  %5888 = vmatpush1.msra.mxu0 0.0
  %5889 = vmatprep.subr.mxu0 0.0
  %5890 = vmatpush1.msra.mxu0 0.0
  %5891 = vmatprep.subr.mxu0 0.0
  %5892 = vmatpush1.msra.mxu0 0.0
  %5893 = vmatprep.subr.mxu0 0.0
  %5894 = vmatpush1.msra.mxu0 0.0
  %5895 = vmatprep.subr.mxu0 0.0
  %5896 = vmatpush1.msra.mxu0 0.0
  %5897 = vmatprep.subr.mxu0 0.0
  %5898 = vmatpush1.msra.mxu0 0.0
  %5899 = vmatprep.subr.mxu0 0.0
  %5900 = vmatpush1.msra.mxu0 0.0
  %5901 = vmatprep.mubr.f32.mxu0 0.0
  %5902 = vmatmul.mubr.f32.gmra.mrb[0].mxu0 %v5653
  %v5903 = vpop.f32.mrb[0].mxu0
  %v5904 = vadd.f32 %v5764, %v5903
  %v5905 = vpop.f32.mrb[0].mxu0
  %5906 = vmatprep.mubr.f32.mxu0 0.0
  %5907 = vmatmul.mubr.f32.gmra.mrb[0].mxu0 %v5656
  %v5908 = vpop.f32.mrb[0].mxu0
  %v5909 = vadd.f32 %v5769, %v5908
  %v5910 = vpop.f32.mrb[0].mxu0
  %5911 = vmatprep.mubr.f32.mxu0 0.0
  %5912 = vmatmul.mubr.f32.gmra.mrb[0].mxu0 %v5659
  %v5913 = vpop.f32.mrb[0].mxu0
  %v5914 = vadd.f32 %v5774, %v5913
  %v5915 = vpop.f32.mrb[0].mxu0
  %5916 = vmatprep.mubr.f32.mxu0 0.0
  %5917 = vmatmul.mubr.f32.gmra.mrb[0].mxu0 %v5662
  %v5918 = vpop.f32.mrb[0].mxu0
  %v5919 = vadd.f32 %v5779, %v5918
  %v5920 = vpop.f32.mrb[0].mxu0
  %5921 = vmatprep.mubr.f32.mxu0 0.0
  %5922 = vmatmul.mubr.f32.gmra.mrb[0].mxu0 %v5665
  %v5923 = vpop.f32.mrb[0].mxu0
  %v5924 = vadd.f32 %v5784, %v5923
  %v5925 = vpop.f32.mrb[0].mxu0
  %5926 = vmatprep.mubr.f32.mxu0 0.0
  %5927 = vmatmul.mubr.f32.gmra.mrb[0].mxu0 %v5668
  %v5928 = vpop.f32.mrb[0].mxu0
  %v5929 = vadd.f32 %v5789, %v5928
  %v5930 = vpop.f32.mrb[0].mxu0
  %5931 = vmatprep.mubr.f32.mxu0 0.0
  %5932 = vmatmul.mubr.f32.gmra.mrb[0].mxu0 %v5671
  %v5933 = vpop.f32.mrb[0].mxu0
  %v5934 = vadd.f32 %v5794, %v5933
  %v5935 = vpop.f32.mrb[0].mxu0
  %5936 = vmatprep.mubr.f32.mxu0 0.0
  %5937 = vmatmul.mubr.f32.gmra.mrb[0].mxu0 %v5674
  %v5938 = vpop.f32.mrb[0].mxu0
  %v5939 = vadd.f32 %v5799, %v5938
  %v5940 = vpop.f32.mrb[0].mxu0
  %5941 = vmatprep.mubr.f32.mxu0 0.0
  %5942 = vmatmul.mubr.f32.gmra.mrb[0].mxu0 %v5677
  %v5943 = vpop.f32.mrb[0].mxu0
  %v5944 = vadd.f32 %v5804, %v5943
  %v5945 = vpop.f32.mrb[0].mxu0
  %5946 = vmatprep.mubr.f32.mxu0 0.0
  %5947 = vmatmul.mubr.f32.gmra.mrb[0].mxu0 %v5680
  %v5948 = vpop.f32.mrb[0].mxu0
  %v5949 = vadd.f32 %v5809, %v5948
  %v5950 = vpop.f32.mrb[0].mxu0
  %5951 = vmatprep.mubr.f32.mxu0 0.0
  %5952 = vmatmul.mubr.f32.gmra.mrb[0].mxu0 %v5683
  %v5953 = vpop.f32.mrb[0].mxu0
  %v5954 = vadd.f32 %v5814, %v5953
  %v5955 = vpop.f32.mrb[0].mxu0
  %5956 = vmatprep.mubr.f32.mxu0 0.0
  %5957 = vmatmul.mubr.f32.gmra.mrb[0].mxu0 %v5686
  %v5958 = vpop.f32.mrb[0].mxu0
  %v5959 = vadd.f32 %v5819, %v5958
  %v5960 = vpop.f32.mrb[0].mxu0
  %5961 = vmatprep.mubr.f32.mxu0 0.0
  %5962 = vmatmul.mubr.f32.gmra.mrb[0].mxu0 %v5689
  %v5963 = vpop.f32.mrb[0].mxu0
  %v5964 = vadd.f32 %v5824, %v5963
  %v5965 = vpop.f32.mrb[0].mxu0
  %5966 = vmatprep.mubr.f32.mxu0 0.0
  %5967 = vmatmul.mubr.f32.gmra.mrb[0].mxu0 %v5692
  %v5968 = vpop.f32.mrb[0].mxu0
  %v5969 = vadd.f32 %v5829, %v5968
  %v5970 = vpop.f32.mrb[0].mxu0
  %5971 = vmatprep.mubr.f32.mxu0 0.0
  %5972 = vmatmul.mubr.f32.gmra.mrb[0].mxu0 %v5695
  %v5973 = vpop.f32.mrb[0].mxu0
  %v5974 = vadd.f32 %v5834, %v5973
  %v5975 = vpop.f32.mrb[0].mxu0
  %5976 = vdwg.mxu0
  %v5977 = vmax.f32 %v5904, 0.0
  %v5978 = vmax.f32 %v5909, 0.0
  %v5979 = vmax.f32 %v5914, 0.0
  %v5980 = vmax.f32 %v5919, 0.0
  %v5981 = vmax.f32 %v5924, 0.0
  %v5982 = vmax.f32 %v5929, 0.0
  %v5983 = vmax.f32 %v5934, 0.0
  %v5984 = vmax.f32 %v5939, 0.0
  %v5985 = vmax.f32 %v5944, 0.0
  %v5986 = vmax.f32 %v5949, 0.0
  %v5987 = vmax.f32 %v5954, 0.0
  %v5988 = vmax.f32 %v5959, 0.0
  %v5989 = vmax.f32 %v5964, 0.0
  %v5990 = vmax.f32 %v5969, 0.0
  %v5991 = vmax.f32 %v5974, 0.0
  %v5992 = vld [vmem:[%s9] sm:$0xff]
  %v5993 = vld [vmem:[%s9 + $0x8] sm:$0xff]
  %v5994 = vld [vmem:[%s9 + $0x10] sm:$0xff]
  %v5995 = vld [vmem:[%s9 + $0x18] sm:$0xff]
  %v5996 = vld [vmem:[%s9 + $0x20] sm:$0xff]
  %v5997 = vld [vmem:[%s9 + $0x28] sm:$0xff]
  %v5998 = vld [vmem:[%s9 + $0x30] sm:$0xff]
  %v5999 = vld [vmem:[%s9 + $0x38] sm:$0xff]
  %v6000 = vld [vmem:[%s9 + $0x40] sm:$0xff]
  %v6001 = vld [vmem:[%s9 + $0x48] sm:$0xff]
  %v6002 = vld [vmem:[%s9 + $0x50] sm:$0xf]
  %v6003 = vld [vmem:[%s10] sm:$0xff]
  %v6004 = vld [vmem:[%s10 + $0x8] sm:$0xff]
  %v6005 = vld [vmem:[%s10 + $0x10] sm:$0xff]
  %v6006 = vld [vmem:[%s10 + $0x18] sm:$0xff]
  %v6007 = vld [vmem:[%s10 + $0x20] sm:$0xff]
  %v6008 = vld [vmem:[%s10 + $0x28] sm:$0xff]
  %v6009 = vld [vmem:[%s10 + $0x30] sm:$0xff]
  %v6010 = vld [vmem:[%s10 + $0x38] sm:$0xff]
  %v6011 = vld [vmem:[%s10 + $0x40] sm:$0xff]
  %v6012 = vld [vmem:[%s10 + $0x48] sm:$0xff]
  %v6013 = vld [vmem:[%s10 + $0x50] sm:$0xf]
  %6015 = vset.pattern.permute.xlu0 0
  %6016 = vperm.xlu0 %6015, %v6003
  %v6017 = vpop.permute.xlu0 %6016
  %6020 = vset.pattern.permute.xlu0 0
  %6021 = vperm.xlu0 %6020, %v6004
  %v6022 = vpop.permute.xlu0 %6021
  %6025 = vset.pattern.permute.xlu0 0
  %6026 = vperm.xlu0 %6025, %v6005
  %v6027 = vpop.permute.xlu0 %6026
  %6030 = vset.pattern.permute.xlu0 0
  %6031 = vperm.xlu0 %6030, %v6006
  %v6032 = vpop.permute.xlu0 %6031
  %6035 = vset.pattern.permute.xlu0 0
  %6036 = vperm.xlu0 %6035, %v6007
  %v6037 = vpop.permute.xlu0 %6036
  %6040 = vset.pattern.permute.xlu0 0
  %6041 = vperm.xlu0 %6040, %v6008
  %v6042 = vpop.permute.xlu0 %6041
  %6045 = vset.pattern.permute.xlu0 0
  %6046 = vperm.xlu0 %6045, %v6009
  %v6047 = vpop.permute.xlu0 %6046
  %6050 = vset.pattern.permute.xlu0 0
  %6051 = vperm.xlu0 %6050, %v6010
  %v6052 = vpop.permute.xlu0 %6051
  %6055 = vset.pattern.permute.xlu0 0
  %6056 = vperm.xlu0 %6055, %v6011
  %v6057 = vpop.permute.xlu0 %6056
  %6060 = vset.pattern.permute.xlu0 0
  %6061 = vperm.xlu0 %6060, %v6012
  %v6062 = vpop.permute.xlu0 %6061
  %6065 = vset.pattern.permute.xlu0 0
  %6066 = vperm.xlu0 %6065, %v6013
  %v6067 = vpop.permute.xlu0 %6066
  %vm6069 = vcmask 982016
  %v6071 = vsel %vm6069, %v5992, 0
  %v6074 = vsel %vm6069, %v5993, 0
  %v6077 = vsel %vm6069, %v5994, 0
  %v6080 = vsel %vm6069, %v5995, 0
  %v6083 = vsel %vm6069, %v5996, 0
  %v6086 = vsel %vm6069, %v5997, 0
  %v6089 = vsel %vm6069, %v5998, 0
  %v6092 = vsel %vm6069, %v5999, 0
  %v6095 = vsel %vm6069, %v6000, 0
  %v6098 = vsel %vm6069, %v6001, 0
  %v6101 = vsel %vm6069, %v6002, 0
  %6103 = vmatprep.subr.mxu0 0.0
  %6104 = vmatpush1.msra.mxu0 %v5977
  %6105 = vmatprep.subr.mxu0 0.0
  %6106 = vmatpush1.msra.mxu0 %v5978
  %6107 = vmatprep.subr.mxu0 0.0
  %6108 = vmatpush1.msra.mxu0 %v5979
  %6109 = vmatprep.subr.mxu0 0.0
  %6110 = vmatpush1.msra.mxu0 %v5980
  %6111 = vmatprep.subr.mxu0 0.0
  %6112 = vmatpush1.msra.mxu0 %v5981
  %6113 = vmatprep.subr.mxu0 0.0
  %6114 = vmatpush1.msra.mxu0 %v5982
  %6115 = vmatprep.subr.mxu0 0.0
  %6116 = vmatpush1.msra.mxu0 %v5983
  %6117 = vmatprep.subr.mxu0 0.0
  %6118 = vmatpush1.msra.mxu0 %v5984
  %6119 = vmatprep.subr.mxu0 0.0
  %6120 = vmatpush1.msra.mxu0 %v5985
  %6121 = vmatprep.subr.mxu0 0.0
  %6122 = vmatpush1.msra.mxu0 %v5986
  %6123 = vmatprep.subr.mxu0 0.0
  %6124 = vmatpush1.msra.mxu0 %v5987
  %6125 = vmatprep.subr.mxu0 0.0
  %6126 = vmatpush1.msra.mxu0 %v5988
  %6127 = vmatprep.subr.mxu0 0.0
  %6128 = vmatpush1.msra.mxu0 %v5989
  %6129 = vmatprep.subr.mxu0 0.0
  %6130 = vmatpush1.msra.mxu0 %v5990
  %6131 = vmatprep.subr.mxu0 0.0
  %6132 = vmatpush1.msra.mxu0 %v5991
  %6133 = vmatprep.subr.mxu0 0.0
  %6134 = vmatpush1.msra.mxu0 0.0
  %6135 = vmatprep.subr.mxu0 0.0
  %6136 = vmatpush1.msra.mxu0 0.0
  %6137 = vmatprep.subr.mxu0 0.0
  %6138 = vmatpush1.msra.mxu0 0.0
  %6139 = vmatprep.subr.mxu0 0.0
  %6140 = vmatpush1.msra.mxu0 0.0
  %6141 = vmatprep.subr.mxu0 0.0
  %6142 = vmatpush1.msra.mxu0 0.0
  %6143 = vmatprep.subr.mxu0 0.0
  %6144 = vmatpush1.msra.mxu0 0.0
  %6145 = vmatprep.subr.mxu0 0.0
  %6146 = vmatpush1.msra.mxu0 0.0
  %6147 = vmatprep.subr.mxu0 0.0
  %6148 = vmatpush1.msra.mxu0 0.0
  %6149 = vmatprep.subr.mxu0 0.0
  %6150 = vmatpush1.msra.mxu0 0.0
  %6151 = vmatprep.subr.mxu0 0.0
  %6152 = vmatpush1.msra.mxu0 0.0
  %6153 = vmatprep.subr.mxu0 0.0
  %6154 = vmatpush1.msra.mxu0 0.0
  %6155 = vmatprep.subr.mxu0 0.0
  %6156 = vmatpush1.msra.mxu0 0.0
  %6157 = vmatprep.subr.mxu0 0.0
  %6158 = vmatpush1.msra.mxu0 0.0
  %6159 = vmatprep.subr.mxu0 0.0
  %6160 = vmatpush1.msra.mxu0 0.0
  %6161 = vmatprep.subr.mxu0 0.0
  %6162 = vmatpush1.msra.mxu0 0.0
  %6163 = vmatprep.subr.mxu0 0.0
  %6164 = vmatpush1.msra.mxu0 0.0
  %6165 = vmatprep.subr.mxu0 0.0
  %6166 = vmatpush1.msra.mxu0 0.0
  %6167 = vmatprep.mubr.f32.mxu0 0.0
  %6168 = vmatmul.mubr.f32.gmra.mrb[0].mxu0 %v6071
  %v6169 = vpop.f32.mrb[0].mxu0
  %v6170 = vadd.f32 %v6017, %v6169
  %v6171 = vpop.f32.mrb[0].mxu0
  %6172 = vmatprep.mubr.f32.mxu0 0.0
  %6173 = vmatmul.mubr.f32.gmra.mrb[0].mxu0 %v6074
  %v6174 = vpop.f32.mrb[0].mxu0
  %v6175 = vadd.f32 %v6022, %v6174
  %v6176 = vpop.f32.mrb[0].mxu0
  %6177 = vmatprep.mubr.f32.mxu0 0.0
  %6178 = vmatmul.mubr.f32.gmra.mrb[0].mxu0 %v6077
  %v6179 = vpop.f32.mrb[0].mxu0
  %v6180 = vadd.f32 %v6027, %v6179
  %v6181 = vpop.f32.mrb[0].mxu0
  %6182 = vmatprep.mubr.f32.mxu0 0.0
  %6183 = vmatmul.mubr.f32.gmra.mrb[0].mxu0 %v6080
  %v6184 = vpop.f32.mrb[0].mxu0
  %v6185 = vadd.f32 %v6032, %v6184
  %v6186 = vpop.f32.mrb[0].mxu0
  %6187 = vmatprep.mubr.f32.mxu0 0.0
  %6188 = vmatmul.mubr.f32.gmra.mrb[0].mxu0 %v6083
  %v6189 = vpop.f32.mrb[0].mxu0
  %v6190 = vadd.f32 %v6037, %v6189
  %v6191 = vpop.f32.mrb[0].mxu0
  %6192 = vmatprep.mubr.f32.mxu0 0.0
  %6193 = vmatmul.mubr.f32.gmra.mrb[0].mxu0 %v6086
  %v6194 = vpop.f32.mrb[0].mxu0
  %v6195 = vadd.f32 %v6042, %v6194
  %v6196 = vpop.f32.mrb[0].mxu0
  %6197 = vmatprep.mubr.f32.mxu0 0.0
  %6198 = vmatmul.mubr.f32.gmra.mrb[0].mxu0 %v6089
  %v6199 = vpop.f32.mrb[0].mxu0
  %v6200 = vadd.f32 %v6047, %v6199
  %v6201 = vpop.f32.mrb[0].mxu0
  %6202 = vmatprep.mubr.f32.mxu0 0.0
  %6203 = vmatmul.mubr.f32.gmra.mrb[0].mxu0 %v6092
  %v6204 = vpop.f32.mrb[0].mxu0
  %v6205 = vadd.f32 %v6052, %v6204
  %v6206 = vpop.f32.mrb[0].mxu0
  %6207 = vmatprep.mubr.f32.mxu0 0.0
  %6208 = vmatmul.mubr.f32.gmra.mrb[0].mxu0 %v6095
  %v6209 = vpop.f32.mrb[0].mxu0
  %v6210 = vadd.f32 %v6057, %v6209
  %v6211 = vpop.f32.mrb[0].mxu0
  %6212 = vmatprep.mubr.f32.mxu0 0.0
  %6213 = vmatmul.mubr.f32.gmra.mrb[0].mxu0 %v6098
  %v6214 = vpop.f32.mrb[0].mxu0
  %v6215 = vadd.f32 %v6062, %v6214
  %v6216 = vpop.f32.mrb[0].mxu0
  %6217 = vmatprep.mubr.f32.mxu0 0.0
  %6218 = vmatmul.mubr.f32.gmra.mrb[0].mxu0 %v6101
  %v6219 = vpop.f32.mrb[0].mxu0
  %v6220 = vadd.f32 %v6067, %v6219
  %v6221 = vpop.f32.mrb[0].mxu0
  %6222 = vdwg.mxu0
  %v6223 = vmax.f32 %v6170, 0.0
  %v6224 = vmax.f32 %v6175, 0.0
  %v6225 = vmax.f32 %v6180, 0.0
  %v6226 = vmax.f32 %v6185, 0.0
  %v6227 = vmax.f32 %v6190, 0.0
  %v6228 = vmax.f32 %v6195, 0.0
  %v6229 = vmax.f32 %v6200, 0.0
  %v6230 = vmax.f32 %v6205, 0.0
  %v6231 = vmax.f32 %v6210, 0.0
  %v6232 = vmax.f32 %v6215, 0.0
  %v6233 = vmax.f32 %v6220, 0.0
  %v6234 = vld [vmem:[%s11] sm:$0xff]
  %v6235 = vld [vmem:[%s11 + $0x8] sm:$0x3]
  %v6236 = vld [vmem:[%s12] sm:$0xff]
  %v6237 = vld [vmem:[%s12 + $0x8] sm:$0x3]
  %6239 = vset.pattern.permute.xlu0 0
  %6240 = vperm.xlu0 %6239, %v6236
  %v6241 = vpop.permute.xlu0 %6240
  %6244 = vset.pattern.permute.xlu0 0
  %6245 = vperm.xlu0 %6244, %v6237
  %v6246 = vpop.permute.xlu0 %6245
  %vm6248 = vcmask 687104
  %v6250 = vsel %vm6248, %v6234, 0
  %v6253 = vsel %vm6248, %v6235, 0
  %vm6255 = vcmask 1043456
  %v6257 = vsel %vm6255, %v6233, 0
  %6259 = vmatprep.subr.mxu0 0.0
  %6260 = vmatpush1.msra.mxu0 %v6223
  %6261 = vmatprep.subr.mxu0 0.0
  %6262 = vmatpush1.msra.mxu0 %v6224
  %6263 = vmatprep.subr.mxu0 0.0
  %6264 = vmatpush1.msra.mxu0 %v6225
  %6265 = vmatprep.subr.mxu0 0.0
  %6266 = vmatpush1.msra.mxu0 %v6226
  %6267 = vmatprep.subr.mxu0 0.0
  %6268 = vmatpush1.msra.mxu0 %v6227
  %6269 = vmatprep.subr.mxu0 0.0
  %6270 = vmatpush1.msra.mxu0 %v6228
  %6271 = vmatprep.subr.mxu0 0.0
  %6272 = vmatpush1.msra.mxu0 %v6229
  %6273 = vmatprep.subr.mxu0 0.0
  %6274 = vmatpush1.msra.mxu0 %v6230
  %6275 = vmatprep.subr.mxu0 0.0
  %6276 = vmatpush1.msra.mxu0 %v6231
  %6277 = vmatprep.subr.mxu0 0.0
  %6278 = vmatpush1.msra.mxu0 %v6232
  %6279 = vmatprep.subr.mxu0 0.0
  %6280 = vmatpush1.msra.mxu0 %v6257
  %6281 = vmatprep.subr.mxu0 0.0
  %6282 = vmatpush1.msra.mxu0 0.0
  %6283 = vmatprep.subr.mxu0 0.0
  %6284 = vmatpush1.msra.mxu0 0.0
  %6285 = vmatprep.subr.mxu0 0.0
  %6286 = vmatpush1.msra.mxu0 0.0
  %6287 = vmatprep.subr.mxu0 0.0
  %6288 = vmatpush1.msra.mxu0 0.0
  %6289 = vmatprep.subr.mxu0 0.0
  %6290 = vmatpush1.msra.mxu0 0.0
  %6291 = vmatprep.subr.mxu0 0.0
  %6292 = vmatpush1.msra.mxu0 0.0
  %6293 = vmatprep.subr.mxu0 0.0
  %6294 = vmatpush1.msra.mxu0 0.0
  %6295 = vmatprep.subr.mxu0 0.0
  %6296 = vmatpush1.msra.mxu0 0.0
  %6297 = vmatprep.subr.mxu0 0.0
  %6298 = vmatpush1.msra.mxu0 0.0
  %6299 = vmatprep.subr.mxu0 0.0
  %6300 = vmatpush1.msra.mxu0 0.0
  %6301 = vmatprep.subr.mxu0 0.0
  %6302 = vmatpush1.msra.mxu0 0.0
  %6303 = vmatprep.subr.mxu0 0.0
  %6304 = vmatpush1.msra.mxu0 0.0
  %6305 = vmatprep.subr.mxu0 0.0
  %6306 = vmatpush1.msra.mxu0 0.0
  %6307 = vmatprep.subr.mxu0 0.0
  %6308 = vmatpush1.msra.mxu0 0.0
  %6309 = vmatprep.subr.mxu0 0.0
  %6310 = vmatpush1.msra.mxu0 0.0
  %6311 = vmatprep.subr.mxu0 0.0
  %6312 = vmatpush1.msra.mxu0 0.0
  %6313 = vmatprep.subr.mxu0 0.0
  %6314 = vmatpush1.msra.mxu0 0.0
  %6315 = vmatprep.subr.mxu0 0.0
  %6316 = vmatpush1.msra.mxu0 0.0
  %6317 = vmatprep.subr.mxu0 0.0
  %6318 = vmatpush1.msra.mxu0 0.0
  %6319 = vmatprep.subr.mxu0 0.0
  %6320 = vmatpush1.msra.mxu0 0.0
  %6321 = vmatprep.subr.mxu0 0.0
  %6322 = vmatpush1.msra.mxu0 0.0
  %6323 = vmatprep.mubr.f32.mxu0 0.0
  %6324 = vmatmul.mubr.f32.gmra.mrb[0].mxu0 %v6250
  %v6325 = vpop.f32.mrb[0].mxu0
  %v6326 = vadd.f32 %v6241, %v6325
  %v6327 = vpop.f32.mrb[0].mxu0
  %6328 = vmatprep.mubr.f32.mxu0 0.0
  %6329 = vmatmul.mubr.f32.gmra.mrb[0].mxu0 %v6253
  %v6330 = vpop.f32.mrb[0].mxu0
  %v6331 = vadd.f32 %v6246, %v6330
  %v6332 = vpop.f32.mrb[0].mxu0
  %6333 = vdwg.mxu0
  %6334 = vst.msk [vmem:[%s13] sm:$0xff] %vm574, %v6326
  %vm6335 = vcmask 254976
  %6336 = vst.msk [vmem:[%s13 + $0x8] sm:$0x3] %vm6335, %v6331
  // Predicated region
  $region54: #{forward.1} parent=0 // pred_check
    _
  $region55: #{forward.1} parent=0 // pred_check_branch
    %6338 = sbr.rel (0) target = $region57
  $region56: #{forward.1} parent=0 // pred_region
    _
  $region57: #{forward.1} parent=0 // pred_fallthru
    _
  // Predicated region
  $region58: #{forward.1} parent=0 // pred_check
    _
  $region59: #{forward.1} parent=0 // pred_check_branch
    %6340 = sbr.rel (0) target = $region61
  $region60: #{forward.1} parent=0 // pred_region
    _
  $region61: #{forward.1} parent=0 // pred_fallthru
    _

</llo_original>
